<compile_context>
chip_gen: v5e
topology: v5e:2x2
jax: 0.10.0
libtpu: 0.0.40
codegen_flags: <defaults>
</compile_context>

<pallas_src>
import functools

import jax
import jax.numpy as jnp
from jax.experimental import pallas as pl
from jax.experimental.pallas import tpu as pltpu


_VMEM_LIMIT = 48 * 1024 * 1024   # explicit scoped-VMEM budget (safe on v5e/v6e/v7x)


# ----------------------------- helpers ---------------------------------------

def _round_up(x, m):
    return (x + m - 1) // m * m


def _choose_tm(M, target):
    """Row-tile: as large as `target`, multiple of 8, never exceeding M (rounded)."""
    return min(target, _round_up(M, 8))


def _pick_tk(K, max_tk=1024):
    """K-tile: whole K if small, else the largest 128-multiple divisor <= max_tk."""
    if K <= max_tk:
        return K
    for d in range(max_tk // 128, 0, -1):
        t = d * 128
        if K % t == 0:
            return t
    return K


def _pad_rows(a, tm):
    M = a.shape[0]
    Mp = _round_up(M, tm)
    if Mp != M:
        a = jnp.pad(a, ((0, Mp - M),) + ((0, 0),) * (a.ndim - 1))
    return a, M, Mp


def _gelu(x):
    # tanh approximation of GELU (PyTorch nn.GELU uses exact erf; delta ~1e-3)
    return 0.5 * x * (1.0 + jnp.tanh(0.7978845608028654 * (x + 0.044715 * x * x * x)))


def _apply_act(x, act):
    if act == "relu":
        return jnp.maximum(x, 0.0)
    if act == "gelu":
        return _gelu(x)
    return x


# ----------------------------- Pallas kernels --------------------------------

def _mm_kernel(a_ref, w_ref, b_ref, o_ref, acc_ref, *, act):
    """acc[i] += a[i,k] @ w[k];  epilogue (bias+act) at last k."""
    @pl.when(pl.program_id(1) == 0)
    def _():
        acc_ref[...] = jnp.zeros_like(acc_ref)

    acc_ref[...] += jnp.dot(a_ref[...], w_ref[...],
                            preferred_element_type=jnp.float32)

    @pl.when(pl.program_id(1) == pl.num_programs(1) - 1)
    def _():
        y = acc_ref[...] + b_ref[...]
        o_ref[...] = _apply_act(y, act).astype(o_ref.dtype)


def _mm_ln_kernel(a_ref, w_ref, b_ref, g_ref, be_ref, y_ref, ln_ref, *, eps):
    """Fused proj 1x1 + LayerNorm: emits both y = a@w+b and LN(y)."""
    y = jnp.dot(a_ref[...], w_ref[...], preferred_element_type=jnp.float32)
    y = y + b_ref[...]
    y_ref[...] = y.astype(y_ref.dtype)
    mu = jnp.mean(y, axis=-1, keepdims=True)
    yc = y - mu
    var = jnp.mean(yc * yc, axis=-1, keepdims=True)
    inv = jax.lax.rsqrt(var + eps)
    ln_ref[...] = (yc * inv * g_ref[...] + be_ref[...]).astype(ln_ref.dtype)


def _dwtaps_kernel(p_ref, w_ref, b_ref, *refs, act, ntaps, has_residual):
    """Depthwise / grouped conv as per-channel tap-weighted accumulation (VPU)."""
    if has_residual:
        r_ref, o_ref = refs
    else:
        (o_ref,) = refs
    w = w_ref[...]                                    # (ntaps, L) f32, loaded once
    acc = jnp.zeros(o_ref.shape, jnp.float32)
    for k in range(ntaps):                            # static unroll; per-tap loads
        acc = acc + p_ref[k].astype(jnp.float32) * w[k]
    acc = acc + b_ref[...]
    acc = _apply_act(acc, act)
    if has_residual:
        acc = acc + r_ref[...].astype(jnp.float32)
    o_ref[...] = acc.astype(o_ref.dtype)


def _maxpool_kernel(p_ref, o_ref, *, nwin):
    acc = p_ref[0]
    for k in range(1, nwin):
        acc = jnp.maximum(acc, p_ref[k])
    o_ref[...] = acc


def _tail_kernel(g_ref, x_ref, r_ref, wc1_ref, bc1_ref, wc2_ref, bc2_ref,
                 wta_ref, wtb_ref, bt_ref, o_ref):
    """Fused dw2_c1 -> dw2_c2 -> turn_channel (+ x_PE residual)."""
    g1 = _gelu(jnp.dot(g_ref[...], wc1_ref[...],
                       preferred_element_type=jnp.float32) + bc1_ref[...])
    g2 = _gelu(jnp.dot(g1.astype(jnp.bfloat16), wc2_ref[...],
                       preferred_element_type=jnp.float32) + bc2_ref[...])
    y = (jnp.dot(g2.astype(jnp.bfloat16), wta_ref[...],
                 preferred_element_type=jnp.float32)
         + jnp.dot(x_ref[...], wtb_ref[...],
                   preferred_element_type=jnp.float32)
         + bt_ref[...])
    o_ref[...] = (_gelu(y) + r_ref[...]).astype(o_ref.dtype)


# ----------------------------- kernel wrappers --------------------------------

def matmul_bias_act(a, w, b, act="none", out_dtype=jnp.float32, tm_target=512):
    """out = act(a @ w + b).   a:(M,K) (K may exceed w's rows; w zero-padded)."""
    M, Ka = a.shape
    Kw, N = w.shape
    if Ka > Kw:                                   # im2col K padded to mult of 128
        w = jnp.pad(w, ((0, Ka - Kw), (0, 0)))
    K = Ka
    tk = _pick_tk(K)
    tm = _choose_tm(M, tm_target)
    a_p, M0, Mp = _pad_rows(a.astype(jnp.bfloat16), tm)

    out = pl.pallas_call(
        functools.partial(_mm_kernel, act=act),
        out_shape=jax.ShapeDtypeStruct((Mp, N), out_dtype),
        grid_spec=pltpu.PrefetchScalarGridSpec(
            num_scalar_prefetch=0,
            grid=(Mp // tm, K // tk),
            in_specs=[
                pl.BlockSpec((tm, tk), lambda i, k: (i, k)),
                pl.BlockSpec((tk, N), lambda i, k: (k, 0)),
                pl.BlockSpec((1, N), lambda i, k: (0, 0)),
            ],
            out_specs=pl.BlockSpec((tm, N), lambda i, k: (i, 0)),
            scratch_shapes=[pltpu.VMEM((tm, N), jnp.float32)],
        ),
        compiler_params=pltpu.CompilerParams(
            dimension_semantics=("parallel", "arbitrary"),
            vmem_limit_bytes=_VMEM_LIMIT),
    )(a_p, w.astype(jnp.bfloat16), b.reshape(1, N).astype(jnp.float32))
    return out[:M0]


def matmul_ln(a, w, b, gamma, beta, eps=1e-5, tm_target=512):
    """(y, LN(y)) with y = a @ w + b fused in one kernel."""
    M, K = a.shape
    _, N = w.shape
    tm = _choose_tm(M, tm_target)
    a_p, M0, Mp = _pad_rows(a.astype(jnp.bfloat16), tm)

    y, ln = pl.pallas_call(
        functools.partial(_mm_ln_kernel, eps=eps),
        out_shape=(jax.ShapeDtypeStruct((Mp, N), jnp.bfloat16),
                   jax.ShapeDtypeStruct((Mp, N), jnp.float32)),
        grid_spec=pltpu.PrefetchScalarGridSpec(
            num_scalar_prefetch=0,
            grid=(Mp // tm,),
            in_specs=[
                pl.BlockSpec((tm, K), lambda i: (i, 0)),
                pl.BlockSpec((K, N), lambda i: (0, 0)),
                pl.BlockSpec((1, N), lambda i: (0, 0)),
                pl.BlockSpec((1, N), lambda i: (0, 0)),
                pl.BlockSpec((1, N), lambda i: (0, 0)),
            ],
            out_specs=(pl.BlockSpec((tm, N), lambda i: (i, 0)),
                       pl.BlockSpec((tm, N), lambda i: (i, 0))),
        ),
        compiler_params=pltpu.CompilerParams(
            dimension_semantics=("parallel",), vmem_limit_bytes=_VMEM_LIMIT),
    )(a_p, w.astype(jnp.bfloat16), b.reshape(1, N).astype(jnp.float32),
      gamma.reshape(1, N).astype(jnp.float32),
      beta.reshape(1, N).astype(jnp.float32))
    return y[:M0], ln[:M0]


def _lane_pack_factor(M, C):
    if 128 % C == 0 and M % (128 // C) == 0:
        return 128 // C
    return 1


def dw_taps_conv(patches, w_taps, b, act="gelu", residual=None,
                 out_dtype=jnp.bfloat16, tm_target=256):
    """Tap-weighted depthwise conv; lane-dense repack (M,C)->(M/pf, C*pf)."""
    ntaps, M, C = patches.shape
    pf = _lane_pack_factor(M, C)
    L, Mq = C * pf, M // pf
    p = patches.reshape(ntaps, Mq, L).astype(jnp.bfloat16)
    w_l = jnp.tile(w_taps.astype(jnp.float32), (1, pf))                 # (ntaps, L)
    b_l = jnp.tile(b.astype(jnp.float32).reshape(1, C), (1, pf))        # (1, L)

    tm = _choose_tm(Mq, tm_target)
    Mqp = _round_up(Mq, tm)
    if Mqp != Mq:
        p = jnp.pad(p, ((0, 0), (0, Mqp - Mq), (0, 0)))

    has_res = residual is not None
    inputs = [p, w_l, b_l]
    in_specs = [
        pl.BlockSpec((ntaps, tm, L), lambda i: (0, i, 0)),
        pl.BlockSpec((ntaps, L), lambda i: (0, 0)),
        pl.BlockSpec((1, L), lambda i: (0, 0)),
    ]
    if has_res:
        r = residual.astype(jnp.float32).reshape(Mq, L)
        if Mqp != Mq:
            r = jnp.pad(r, ((0, Mqp - Mq), (0, 0)))
        inputs.append(r)
        in_specs.append(pl.BlockSpec((tm, L), lambda i: (i, 0)))

    out = pl.pallas_call(
        functools.partial(_dwtaps_kernel, act=act, ntaps=ntaps,
                          has_residual=has_res),
        out_shape=jax.ShapeDtypeStruct((Mqp, L), out_dtype),
        grid_spec=pltpu.PrefetchScalarGridSpec(
            num_scalar_prefetch=0,
            grid=(Mqp // tm,),
            in_specs=in_specs,
            out_specs=pl.BlockSpec((tm, L), lambda i: (i, 0)),
        ),
        compiler_params=pltpu.CompilerParams(
            dimension_semantics=("parallel",), vmem_limit_bytes=_VMEM_LIMIT),
    )(*inputs)
    return out[:Mq].reshape(M, C)


def maxpool_windows(stacked, tm_target=512):
    """Elementwise max over the window axis; lane-dense repacked."""
    nwin, M, C = stacked.shape
    pf = _lane_pack_factor(M, C)
    L, Mq = C * pf, M // pf
    p = stacked.reshape(nwin, Mq, L)
    tm = _choose_tm(Mq, tm_target)
    Mqp = _round_up(Mq, tm)
    if Mqp != Mq:
        p = jnp.pad(p, ((0, 0), (0, Mqp - Mq), (0, 0)))
    out = pl.pallas_call(
        functools.partial(_maxpool_kernel, nwin=nwin),
        out_shape=jax.ShapeDtypeStruct((Mqp, L), stacked.dtype),
        grid_spec=pltpu.PrefetchScalarGridSpec(
            num_scalar_prefetch=0,
            grid=(Mqp // tm,),
            in_specs=[pl.BlockSpec((nwin, tm, L), lambda i: (0, i, 0))],
            out_specs=pl.BlockSpec((tm, L), lambda i: (i, 0)),
        ),
        compiler_params=pltpu.CompilerParams(
            dimension_semantics=("parallel",), vmem_limit_bytes=_VMEM_LIMIT),
    )(p)
    return out[:Mq].reshape(M, C)


def fused_tail(g, x_pe, x_PE, wc1, bc1, wc2, bc2, wt_a, wt_b, bt, tm_target=512):
    """gelu(gelu(gelu(g@wc1+bc1)@wc2+bc2)@wt_a + x_pe@wt_b + bt) + x_PE."""
    M, C = g.shape
    tm = _choose_tm(M, tm_target)
    Mp = _round_up(M, tm)

    def pad(a):
        return jnp.pad(a, ((0, Mp - M), (0, 0))) if Mp != M else a

    row_spec = pl.BlockSpec((tm, C), lambda i: (i, 0))
    w_spec = pl.BlockSpec((C, C), lambda i: (0, 0))
    b_spec = pl.BlockSpec((1, C), lambda i: (0, 0))

    out = pl.pallas_call(
        _tail_kernel,
        out_shape=jax.ShapeDtypeStruct((Mp, C), jnp.float32),
        grid_spec=pltpu.PrefetchScalarGridSpec(
            num_scalar_prefetch=0,
            grid=(Mp // tm,),
            in_specs=[row_spec, row_spec, row_spec,
                      w_spec, b_spec, w_spec, b_spec, w_spec, w_spec, b_spec],
            out_specs=pl.BlockSpec((tm, C), lambda i: (i, 0)),
        ),
        compiler_params=pltpu.CompilerParams(
            dimension_semantics=("parallel",), vmem_limit_bytes=_VMEM_LIMIT),
    )(pad(g).astype(jnp.bfloat16), pad(x_pe).astype(jnp.bfloat16),
      pad(x_PE).astype(jnp.float32),
      wc1.astype(jnp.bfloat16), bc1.reshape(1, C).astype(jnp.float32),
      wc2.astype(jnp.bfloat16), bc2.reshape(1, C).astype(jnp.float32),
      wt_a.astype(jnp.bfloat16), wt_b.astype(jnp.bfloat16),
      bt.reshape(1, C).astype(jnp.float32))
    return out[:M]


# ----------------------------- glue (layout / im2col) -------------------------

# TODO(synk): im2col / tap-stacking below still materializes duplicated
# activations in HBM via XLA; a fully in-kernel tap accumulation would remove it.

def im2col3d(x, ksize, stride, pad, k_pad_to=128):
    """x: (B,D,H,W,C) bf16 -> (M, Kp) with tap-major cols, K zero-padded to 128x."""
    B, D, H, W, C = x.shape
    xp = jnp.pad(x, ((0, 0), (pad, pad), (pad, pad), (pad, pad), (0, 0)))
    Do = (D + 2 * pad - ksize) // stride + 1
    Ho = (H + 2 * pad - ksize) // stride + 1
    Wo = (W + 2 * pad - ksize) // stride + 1
    M = B * Do * Ho * Wo
    cols = []
    for kd in range(ksize):
        for kh in range(ksize):
            for kw in range(ksize):
                sl = xp[:, kd:kd + stride * (Do - 1) + 1:stride,
                        kh:kh + stride * (Ho - 1) + 1:stride,
                        kw:kw + stride * (Wo - 1) + 1:stride, :]
                cols.append(sl.reshape(M, C))
    K = ksize ** 3 * C
    Kp = _round_up(K, k_pad_to) if K >= k_pad_to else K
    if Kp != K:
        cols.append(jnp.zeros((M, Kp - K), x.dtype))
    return jnp.concatenate(cols, axis=-1), (B, Do, Ho, Wo)


def dw_patches(x):
    """3x3x3 / stride 1 / pad 1 depthwise taps: (27, M, C)."""
    B, D, H, W, C = x.shape
    xp = jnp.pad(x, ((0, 0), (1, 1), (1, 1), (1, 1), (0, 0)))
    taps = []
    for kd in range(3):
        for kh in range(3):
            for kw in range(3):
                taps.append(xp[:, kd:kd + D, kh:kh + H, kw:kw + W, :]
                            .reshape(B * D * H * W, C))
    return jnp.stack(taps, axis=0)


def pool_windows(x):
    """2x2x2 / stride 2 max-pool windows: (8, B*(D/2)*(H/2)*(W/2), C)."""
    B, D, H, W, C = x.shape
    Mh = B * (D // 2) * (H // 2) * (W // 2)
    wins = []
    for pd in range(2):
        for ph in range(2):
            for pw in range(2):
                wins.append(x[:, pd::2, ph::2, pw::2, :].reshape(Mh, C))
    return jnp.stack(wins, axis=0)


# ----------------------------- weight transforms ------------------------------

def conv_w_to_mat(w):            # (Cout,Cin,kd,kh,kw) -> (k^3*Cin, Cout)
    Cout = w.shape[0]
    return jnp.transpose(w, (2, 3, 4, 1, 0)).reshape(-1, Cout)


def conv1x1_w_to_mat(w):         # (Cout,Cin,1,1,1) -> (Cin, Cout)
    return w[:, :, 0, 0, 0].T


def dw_w_to_taps(w):             # (C,1,3,3,3) -> (27, C)
    return jnp.transpose(w[:, 0], (1, 2, 3, 0)).reshape(27, -1)


def fold_bn(w_mat, b, bn, eps=1e-5):
    """Fold eval-mode BatchNorm3d into the preceding conv (matmul) weights (f32)."""
    gamma, beta, mean, var = bn
    scale = gamma / jnp.sqrt(var + eps)
    return w_mat * scale[None, :], b * scale + (beta - mean * scale)


# ----------------------------- parameters -------------------------------------

def init_params(key, in_chans, embed_dim):
    C = embed_dim
    keys = iter(jax.random.split(key, 64))

    def w(shape, s=0.05):
        return s * jax.random.normal(next(keys), shape, jnp.float32)

    def bn(c):
        return (1.0 + 0.1 * jax.random.normal(next(keys), (c,), jnp.float32),
                0.1 * jax.random.normal(next(keys), (c,), jnp.float32),
                0.1 * jax.random.normal(next(keys), (c,), jnp.float32),
                1.0 + 0.1 * jnp.abs(jax.random.normal(next(keys), (c,), jnp.float32)))

    # TODO(synk): att (IRE), dwconv_1 and fc1 are constructed in __init__ but
    # unused on the default forward path (use_att=0, double_branch=1); skipped.
    return {
        "proj0_w": w((C, in_chans, 3, 3, 3)), "proj0_b": w((C,)),
        "proj1_w": w((C, C, 1, 1, 1)),        "proj1_b": w((C,)),
        "pc0_w": w((C, in_chans, 3, 3, 3)),   "pc0_b": w((C,)),
        "pc2_w": w((C, C, 1, 1, 1)),          "pc2_b": w((C,)),
        "pc3_bn": bn(C),
        "ln_g": 1.0 + 0.1 * jax.random.normal(next(keys), (C,), jnp.float32),
        "ln_b": 0.1 * jax.random.normal(next(keys), (C,), jnp.float32),
        "dw_w": w((C, 1, 3, 3, 3)),           "dw_b": w((C,)),
        "fc0_w": w((C, C, 3, 3, 3)),          "fc0_b": w((C,)),
        "fc0_bn": bn(C),
        "dw2_w": w((C, 2, 3, 3, 3)),          "dw2_b": w((C,)),
        "dw2_c1_w": w((C, C, 1, 1, 1)),       "dw2_c1_b": w((C,)),
        "dw2_bn1": bn(C),
        "dw2_c2_w": w((C, C, 1, 1, 1)),       "dw2_c2_b": w((C,)),
        "dw2_bn2": bn(C),
        "tc_w": w((C, 2 * C, 1, 1, 1)),       "tc_b": w((C,)),
        "tc_bn": bn(C),
    }


# ----------------------------- forward ----------------------------------------

def fine_encoder_forward(x_ncdhw, params):
    C = params["ln_g"].shape[0]
    x = jnp.transpose(x_ncdhw, (0, 2, 3, 4, 1)).astype(jnp.bfloat16)   # NDHWC bf16
    B, D, H, W, _ = x.shape
    Do, Ho, Wo = D // 2, H // 2, W // 2

    # ---- proj: conv3x3 stride2 -> conv1x1, with LayerNorm fused into conv1x1 ----
    p1, _ = im2col3d(x, 3, 2, 1)
    t = matmul_bias_act(p1, conv_w_to_mat(params["proj0_w"]), params["proj0_b"],
                        act="none", out_dtype=jnp.bfloat16)
    x_pe_flat, x_PE = matmul_ln(t, conv1x1_w_to_mat(params["proj1_w"]),
                                params["proj1_b"], params["ln_g"], params["ln_b"])
    x_pe_vol = x_pe_flat.reshape(B, Do, Ho, Wo, C)

    # ---- proj_c: conv3x3 s1 -> MaxPool3d(2) -> conv1x1 -> BN -> GELU ----
    pc1, _ = im2col3d(x, 3, 1, 1)
    t2 = matmul_bias_act(pc1, conv_w_to_mat(params["pc0_w"]), params["pc0_b"],
                         act="none", out_dtype=jnp.bfloat16)
    pooled = maxpool_windows(pool_windows(t2.reshape(B, D, H, W, C)))   # (Mh, C)
    w2, b2 = fold_bn(conv1x1_w_to_mat(params["pc2_w"]), params["pc2_b"],
                     params["pc3_bn"])
    x_pe_conv = matmul_bias_act(pooled, w2, b2, act="gelu", out_dtype=jnp.bfloat16)

    # ---- x_0 = x_PE + GELU(dwconv(x_pe)) ----
    x0_flat = dw_taps_conv(dw_patches(x_pe_vol), dw_w_to_taps(params["dw_w"]),
                           params["dw_b"], act="gelu", residual=x_PE,
                           out_dtype=jnp.bfloat16)
    x_0 = x0_flat.reshape(B, Do, Ho, Wo, C)

    # ---- fc0: conv3x3 + BN + ReLU ----
    f1, _ = im2col3d(x_0, 3, 1, 1)
    wf, bf = fold_bn(conv_w_to_mat(params["fc0_w"]), params["fc0_b"],
                     params["fc0_bn"])
    x1_flat = matmul_bias_act(f1, wf, bf, act="relu", out_dtype=jnp.bfloat16)
    x_1 = x1_flat.reshape(B, Do, Ho, Wo, C)

    # ---- dwconv_2 grouped 3x3x3 (2C->C, groups=C) + GELU ----
    xcat = jnp.concatenate([x_1, x_pe_conv.reshape(B, Do, Ho, Wo, C)], axis=-1)
    x_even = xcat[..., 0::2]                  # group g uses cat-channels 2g, 2g+1
    x_odd = xcat[..., 1::2]
    patches = jnp.concatenate([dw_patches(x_even), dw_patches(x_odd)], axis=0)
    w_taps = jnp.concatenate(
        [jnp.transpose(params["dw2_w"][:, 0], (1, 2, 3, 0)).reshape(27, C),
         jnp.transpose(params["dw2_w"][:, 1], (1, 2, 3, 0)).reshape(27, C)], axis=0)
    g = dw_taps_conv(patches, w_taps, params["dw2_b"], act="gelu",
                     out_dtype=jnp.bfloat16)

    # ---- fused pointwise tail: 1x1+BN+GELU, 1x1+BN+GELU, turn_channel, +x_PE ----
    wc1, bc1 = fold_bn(conv1x1_w_to_mat(params["dw2_c1_w"]), params["dw2_c1_b"],
                       params["dw2_bn1"])
    wc2, bc2 = fold_bn(conv1x1_w_to_mat(params["dw2_c2_w"]), params["dw2_c2_b"],
                       params["dw2_bn2"])
    wt, bt = fold_bn(conv1x1_w_to_mat(params["tc_w"]), params["tc_b"],
                     params["tc_bn"])
    out_flat = fused_tail(g, x_pe_flat, x_PE, wc1, bc1, wc2, bc2,
                          wt[:C], wt[C:], bt)

    out = out_flat.reshape(B, Do, Ho, Wo, C)
    return jnp.transpose(out, (0, 4, 1, 2, 3)).astype(jnp.float32)      # NCDHW


# ----------------------------- demo --------------------------------------------

if __name__ == "__main__":
    B, in_chans, D, H, W = 2, 16, 8, 8, 8
    embed_dim = 32

    key = jax.random.PRNGKey(0)
    kx, kp = jax.random.split(key)
    x = jax.random.normal(kx, (B, in_chans, D, H, W), jnp.float32)      # NCDHW
    params = init_params(kp, in_chans, embed_dim)

    fwd = jax.jit(fine_encoder_forward)
    out = fwd(x, params)
    out = jax.block_until_ready(out)

    assert out.shape == (B, embed_dim, D // 2, H // 2, W // 2), out.shape
    assert jnp.all(jnp.isfinite(out))
    print("KERNEL_OK")
</pallas_src>

<mosaic_0001>
module attributes {stable_mosaic.version = 11 : i64} {
  func.func @_mm_kernel(%arg0: i32, %arg1: i32, %arg2: memref<128x512xbf16, #tpu.memory_space<vmem>>, %arg3: memref<512x32xbf16, #tpu.memory_space<vmem>>, %arg4: memref<1x32xf32, #tpu.memory_space<vmem>>, %arg5: memref<128x32xbf16, #tpu.memory_space<vmem>>, %arg6: memref<128x32xf32, #tpu.memory_space<vmem>>) attributes {dimension_semantics = [#tpu.dimension_semantics<parallel>, #tpu.dimension_semantics<arbitrary>], iteration_bounds = array<i64: 1, 1>, scalar_prefetch = 0 : i64, scratch_operands = 1 : i64, tpu.core_type = #tpu.core_type<tc>, window_params = [{transform_indices = @transform_0, window_bounds = array<i64: 128, 512>}, {transform_indices = @transform_1, window_bounds = array<i64: 512, 32>}, {pipeline_mode = #tpu.pipeline_mode<synchronous>, transform_indices = @transform_2, window_bounds = array<i64: 1, 32>}, {transform_indices = @transform_3, window_bounds = array<i64: 128, 32>}]} {
    %c0_i32 = arith.constant 0 : i32
    %0 = arith.cmpi eq, %arg1, %c0_i32 : i32
    %1 = arith.extui %0 : i1 to i32
    %c0_i32_0 = arith.constant 0 : i32
    %2 = arith.cmpi ne, %1, %c0_i32_0 : i32
    scf.if %2 {
      %cst_10 = arith.constant 0.000000e+00 : f32
      %12 = vector.broadcast %cst_10 : f32 to vector<128x32xf32>
      %c0_11 = arith.constant 0 : index
      %c0_12 = arith.constant 0 : index
      %13 = vector.load %arg6[%c0_11, %c0_12] : memref<128x32xf32, #tpu.memory_space<vmem>>, vector<128x32xf32>
      tpu.vector_store %arg6[%c0_11, %c0_12], %12 {strides = array<i32>} : memref<128x32xf32, #tpu.memory_space<vmem>>, vector<128x32xf32>,
    } else {
    }
    %c0 = arith.constant 0 : index
    %c0_1 = arith.constant 0 : index
    %3 = vector.load %arg6[%c0, %c0_1] : memref<128x32xf32, #tpu.memory_space<vmem>>, vector<128x32xf32>
    %c0_2 = arith.constant 0 : index
    %c0_3 = arith.constant 0 : index
    %4 = vector.load %arg2[%c0_2, %c0_3] : memref<128x512xbf16, #tpu.memory_space<vmem>>, vector<128x512xbf16>
    %c0_4 = arith.constant 0 : index
    %c0_5 = arith.constant 0 : index
    %5 = vector.load %arg3[%c0_4, %c0_5] : memref<512x32xbf16, #tpu.memory_space<vmem>>, vector<512x32xbf16>
    %cst = arith.constant dense<0.000000e+00> : vector<128x32xf32>
    %6 = tpu.matmul %4, %5, %cst {dimension_numbers = #tpu.dot_dimension_numbers<[1], [0], [0], [1], [0, 0, 1, 1], [], []>} : vector<128x512xbf16>, vector<512x32xbf16>, vector<128x32xf32> -> vector<128x32xf32>
    %7 = arith.addf %3, %6 : vector<128x32xf32>
    %c0_6 = arith.constant 0 : index
    %c0_7 = arith.constant 0 : index
    %8 = vector.load %arg6[%c0_6, %c0_7] : memref<128x32xf32, #tpu.memory_space<vmem>>, vector<128x32xf32>
    tpu.vector_store %arg6[%c0_6, %c0_7], %7 {strides = array<i32>} : memref<128x32xf32, #tpu.memory_space<vmem>>, vector<128x32xf32>,
    %c0_i32_8 = arith.constant 0 : i32
    %9 = arith.cmpi eq, %arg1, %c0_i32_8 : i32
    %10 = arith.extui %9 : i1 to i32
    %c0_i32_9 = arith.constant 0 : i32
    %11 = arith.cmpi ne, %10, %c0_i32_9 : i32
    scf.if %11 {
      %c0_10 = arith.constant 0 : index
      %c0_11 = arith.constant 0 : index
      %12 = vector.load %arg6[%c0_10, %c0_11] : memref<128x32xf32, #tpu.memory_space<vmem>>, vector<128x32xf32>
      %c0_12 = arith.constant 0 : index
      %c0_13 = arith.constant 0 : index
      %13 = vector.load %arg4[%c0_12, %c0_13] : memref<1x32xf32, #tpu.memory_space<vmem>>, vector<1x32xf32>
      %14 = vector.broadcast %13 : vector<1x32xf32> to vector<128x32xf32>
      %15 = arith.addf %12, %14 : vector<128x32xf32>
      %16 = arith.truncf %15 : vector<128x32xf32> to vector<128x32xbf16>
      %c0_14 = arith.constant 0 : index
      %c0_15 = arith.constant 0 : index
      %17 = vector.load %arg5[%c0_14, %c0_15] : memref<128x32xbf16, #tpu.memory_space<vmem>>, vector<128x32xbf16>
      tpu.vector_store %arg5[%c0_14, %c0_15], %16 {strides = array<i32>} : memref<128x32xbf16, #tpu.memory_space<vmem>>, vector<128x32xbf16>,
    } else {
    }
    return
  }
  func.func @transform_0(%arg0: i32, %arg1: i32) -> (i32, i32) {
    %c0_i32 = arith.constant 0 : i32
    return %arg0, %arg1 : i32, i32
  }
  func.func @transform_1(%arg0: i32, %arg1: i32) -> (i32, i32) {
    %c0_i32 = arith.constant 0 : i32
    %c0_i32_0 = arith.constant 0 : i32
    return %arg1, %c0_i32 : i32, i32
  }
  func.func @transform_2(%arg0: i32, %arg1: i32) -> (i32, i32) {
    %c0_i32 = arith.constant 0 : i32
    %c0_i32_0 = arith.constant 0 : i32
    %c0_i32_1 = arith.constant 0 : i32
    return %c0_i32, %c0_i32_0 : i32, i32
  }
  func.func @transform_3(%arg0: i32, %arg1: i32) -> (i32, i32) {
    %c0_i32 = arith.constant 0 : i32
    %c0_i32_0 = arith.constant 0 : i32
    return %arg0, %c0_i32 : i32, i32
  }
}

module attributes {stable_mosaic.version = 11 : i64} {
  func.func @_mm_ln_kernel(%arg0: i32, %arg1: memref<128x32xbf16, #tpu.memory_space<vmem>>, %arg2: memref<32x32xbf16, #tpu.memory_space<vmem>>, %arg3: memref<1x32xf32, #tpu.memory_space<vmem>>, %arg4: memref<1x32xf32, #tpu.memory_space<vmem>>, %arg5: memref<1x32xf32, #tpu.memory_space<vmem>>, %arg6: memref<128x32xbf16, #tpu.memory_space<vmem>>, %arg7: memref<128x32xf32, #tpu.memory_space<vmem>>) attributes {dimension_semantics = [#tpu.dimension_semantics<parallel>], iteration_bounds = array<i64: 1>, scalar_prefetch = 0 : i64, scratch_operands = 0 : i64, tpu.core_type = #tpu.core_type<tc>, window_params = [{transform_indices = @transform_0, window_bounds = array<i64: 128, 32>}, {pipeline_mode = #tpu.pipeline_mode<synchronous>, transform_indices = @transform_1, window_bounds = array<i64: 32, 32>}, {pipeline_mode = #tpu.pipeline_mode<synchronous>, transform_indices = @transform_2, window_bounds = array<i64: 1, 32>}, {pipeline_mode = #tpu.pipeline_mode<synchronous>, transform_indices = @transform_3, window_bounds = array<i64: 1, 32>}, {pipeline_mode = #tpu.pipeline_mode<synchronous>, transform_indices = @transform_4, window_bounds = array<i64: 1, 32>}, {transform_indices = @transform_5, window_bounds = array<i64: 128, 32>}, {transform_indices = @transform_6, window_bounds = array<i64: 128, 32>}]} {
    %c0 = arith.constant 0 : index
    %c0_0 = arith.constant 0 : index
    %0 = vector.load %arg1[%c0, %c0_0] : memref<128x32xbf16, #tpu.memory_space<vmem>>, vector<128x32xbf16>
    %c0_1 = arith.constant 0 : index
    %c0_2 = arith.constant 0 : index
    %1 = vector.load %arg2[%c0_1, %c0_2] : memref<32x32xbf16, #tpu.memory_space<vmem>>, vector<32x32xbf16>
    %cst = arith.constant dense<0.000000e+00> : vector<128x32xf32>
    %2 = tpu.matmul %0, %1, %cst {dimension_numbers = #tpu.dot_dimension_numbers<[1], [0], [0], [1], [0, 0, 1, 1], [], []>} : vector<128x32xbf16>, vector<32x32xbf16>, vector<128x32xf32> -> vector<128x32xf32>
    %c0_3 = arith.constant 0 : index
    %c0_4 = arith.constant 0 : index
    %3 = vector.load %arg3[%c0_3, %c0_4] : memref<1x32xf32, #tpu.memory_space<vmem>>, vector<1x32xf32>
    %4 = vector.broadcast %3 : vector<1x32xf32> to vector<128x32xf32>
    %5 = arith.addf %2, %4 : vector<128x32xf32>
    %6 = arith.truncf %5 : vector<128x32xf32> to vector<128x32xbf16>
    %c0_5 = arith.constant 0 : index
    %c0_6 = arith.constant 0 : index
    %7 = vector.load %arg6[%c0_5, %c0_6] : memref<128x32xbf16, #tpu.memory_space<vmem>>, vector<128x32xbf16>
    tpu.vector_store %arg6[%c0_5, %c0_6], %6 {strides = array<i32>} : memref<128x32xbf16, #tpu.memory_space<vmem>>, vector<128x32xbf16>,
    %cst_7 = arith.constant dense<0.000000e+00> : vector<128xf32>
    %8 = vector.multi_reduction <add>, %5, %cst_7 [1] : vector<128x32xf32> to vector<128xf32>
    %9 = vector.shape_cast %8 : vector<128xf32> to vector<128x1xf32>
    %cst_8 = arith.constant 3.200000e+01 : f32
    %10 = vector.broadcast %cst_8 : f32 to vector<128x1xf32>
    %11 = arith.divf %9, %10 : vector<128x1xf32>
    %12 = vector.broadcast %11 : vector<128x1xf32> to vector<128x32xf32>
    %13 = arith.subf %5, %12 : vector<128x32xf32>
    %14 = arith.mulf %13, %13 : vector<128x32xf32>
    %cst_9 = arith.constant dense<0.000000e+00> : vector<128xf32>
    %15 = vector.multi_reduction <add>, %14, %cst_9 [1] : vector<128x32xf32> to vector<128xf32>
    %16 = vector.shape_cast %15 : vector<128xf32> to vector<128x1xf32>
    %cst_10 = arith.constant 3.200000e+01 : f32
    %17 = vector.broadcast %cst_10 : f32 to vector<128x1xf32>
    %18 = arith.divf %16, %17 : vector<128x1xf32>
    %cst_11 = arith.constant 9.99999974E-6 : f32
    %19 = vector.broadcast %cst_11 : f32 to vector<128x1xf32>
    %20 = arith.addf %18, %19 : vector<128x1xf32>
    %21 = math.rsqrt %20 : vector<128x1xf32>
    %22 = vector.broadcast %21 : vector<128x1xf32> to vector<128x32xf32>
    %23 = arith.mulf %13, %22 : vector<128x32xf32>
    %c0_12 = arith.constant 0 : index
    %c0_13 = arith.constant 0 : index
    %24 = vector.load %arg4[%c0_12, %c0_13] : memref<1x32xf32, #tpu.memory_space<vmem>>, vector<1x32xf32>
    %25 = vector.broadcast %24 : vector<1x32xf32> to vector<128x32xf32>
    %26 = arith.mulf %23, %25 : vector<128x32xf32>
    %c0_14 = arith.constant 0 : index
    %c0_15 = arith.constant 0 : index
    %27 = vector.load %arg5[%c0_14, %c0_15] : memref<1x32xf32, #tpu.memory_space<vmem>>, vector<1x32xf32>
    %28 = vector.broadcast %27 : vector<1x32xf32> to vector<128x32xf32>
    %29 = arith.addf %26, %28 : vector<128x32xf32>
    %c0_16 = arith.constant 0 : index
    %c0_17 = arith.constant 0 : index
    %30 = vector.load %arg7[%c0_16, %c0_17] : memref<128x32xf32, #tpu.memory_space<vmem>>, vector<128x32xf32>
    tpu.vector_store %arg7[%c0_16, %c0_17], %29 {strides = array<i32>} : memref<128x32xf32, #tpu.memory_space<vmem>>, vector<128x32xf32>,
    return
  }
  func.func @transform_0(%arg0: i32) -> (i32, i32) {
    %c0_i32 = arith.constant 0 : i32
    %c0_i32_0 = arith.constant 0 : i32
    return %arg0, %c0_i32 : i32, i32
  }
  func.func @transform_1(%arg0: i32) -> (i32, i32) {
    %c0_i32 = arith.constant 0 : i32
    %c0_i32_0 = arith.constant 0 : i32
    %c0_i32_1 = arith.constant 0 : i32
    return %c0_i32, %c0_i32_0 : i32, i32
  }
  func.func @transform_2(%arg0: i32) -> (i32, i32) {
    %c0_i32 = arith.constant 0 : i32
    %c0_i32_0 = arith.constant 0 : i32
    %c0_i32_1 = arith.constant 0 : i32
    return %c0_i32, %c0_i32_0 : i32, i32
  }
  func.func @transform_3(%arg0: i32) -> (i32, i32) {
    %c0_i32 = arith.constant 0 : i32
    %c0_i32_0 = arith.constant 0 : i32
    %c0_i32_1 = arith.constant 0 : i32
    return %c0_i32, %c0_i32_0 : i32, i32
  }
  func.func @transform_4(%arg0: i32) -> (i32, i32) {
    %c0_i32 = arith.constant 0 : i32
    %c0_i32_0 = arith.constant 0 : i32
    %c0_i32_1 = arith.constant 0 : i32
    return %c0_i32, %c0_i32_0 : i32, i32
  }
  func.func @transform_5(%arg0: i32) -> (i32, i32) {
    %c0_i32 = arith.constant 0 : i32
    %c0_i32_0 = arith.constant 0 : i32
    return %arg0, %c0_i32 : i32, i32
  }
  func.func @transform_6(%arg0: i32) -> (i32, i32) {
    %c0_i32 = arith.constant 0 : i32
    %c0_i32_0 = arith.constant 0 : i32
    return %arg0, %c0_i32 : i32, i32
  }
}

module attributes {stable_mosaic.version = 11 : i64} {
  func.func @_dwtaps_kernel(%arg0: i32, %arg1: memref<27x32x128xbf16, #tpu.memory_space<vmem>>, %arg2: memref<27x128xf32, #tpu.memory_space<vmem>>, %arg3: memref<1x128xf32, #tpu.memory_space<vmem>>, %arg4: memref<32x128xf32, #tpu.memory_space<vmem>>, %arg5: memref<32x128xbf16, #tpu.memory_space<vmem>>) attributes {dimension_semantics = [#tpu.dimension_semantics<parallel>], iteration_bounds = array<i64: 1>, scalar_prefetch = 0 : i64, scratch_operands = 0 : i64, tpu.core_type = #tpu.core_type<tc>, window_params = [{transform_indices = @transform_0, window_bounds = array<i64: 27, 32, 128>}, {pipeline_mode = #tpu.pipeline_mode<synchronous>, transform_indices = @transform_1, window_bounds = array<i64: 27, 128>}, {pipeline_mode = #tpu.pipeline_mode<synchronous>, transform_indices = @transform_2, window_bounds = array<i64: 1, 128>}, {transform_indices = @transform_3, window_bounds = array<i64: 32, 128>}, {transform_indices = @transform_4, window_bounds = array<i64: 32, 128>}]} {
    %c0 = arith.constant 0 : index
    %c0_0 = arith.constant 0 : index
    %0 = vector.load %arg2[%c0, %c0_0] : memref<27x128xf32, #tpu.memory_space<vmem>>, vector<27x128xf32>
    %cst = arith.constant 0.000000e+00 : f32
    %1 = vector.broadcast %cst : f32 to vector<32x128xf32>
    %c0_1 = arith.constant 0 : index
    %c0_2 = arith.constant 0 : index
    %c0_3 = arith.constant 0 : index
    %2 = vector.load %arg1[%c0_1, %c0_2, %c0_3] : memref<27x32x128xbf16, #tpu.memory_space<vmem>>, vector<1x32x128xbf16>
    %3 = vector.shape_cast %2 : vector<1x32x128xbf16> to vector<32x128xbf16>
    %4 = arith.extf %3 : vector<32x128xbf16> to vector<32x128xf32>
    %5 = vector.extract_strided_slice %0 {offsets = [0, 0], sizes = [1, 128], strides = [1, 1]} : vector<27x128xf32> to vector<1x128xf32>
    %6 = vector.shape_cast %5 : vector<1x128xf32> to vector<128xf32>
    %7 = vector.shape_cast %6 : vector<128xf32> to vector<1x128xf32>
    %8 = vector.broadcast %7 : vector<1x128xf32> to vector<32x128xf32>
    %9 = arith.mulf %4, %8 : vector<32x128xf32>
    %10 = arith.addf %1, %9 : vector<32x128xf32>
    %c1 = arith.constant 1 : index
    %c0_4 = arith.constant 0 : index
    %c0_5 = arith.constant 0 : index
    %11 = vector.load %arg1[%c1, %c0_4, %c0_5] : memref<27x32x128xbf16, #tpu.memory_space<vmem>>, vector<1x32x128xbf16>
    %12 = vector.shape_cast %11 : vector<1x32x128xbf16> to vector<32x128xbf16>
    %13 = arith.extf %12 : vector<32x128xbf16> to vector<32x128xf32>
    %14 = vector.extract_strided_slice %0 {offsets = [1, 0], sizes = [1, 128], strides = [1, 1]} : vector<27x128xf32> to vector<1x128xf32>
    %15 = vector.shape_cast %14 : vector<1x128xf32> to vector<128xf32>
    %16 = vector.shape_cast %15 : vector<128xf32> to vector<1x128xf32>
    %17 = vector.broadcast %16 : vector<1x128xf32> to vector<32x128xf32>
    %18 = arith.mulf %13, %17 : vector<32x128xf32>
    %19 = arith.addf %10, %18 : vector<32x128xf32>
    %c2 = arith.constant 2 : index
    %c0_6 = arith.constant 0 : index
    %c0_7 = arith.constant 0 : index
    %20 = vector.load %arg1[%c2, %c0_6, %c0_7] : memref<27x32x128xbf16, #tpu.memory_space<vmem>>, vector<1x32x128xbf16>
    %21 = vector.shape_cast %20 : vector<1x32x128xbf16> to vector<32x128xbf16>
    %22 = arith.extf %21 : vector<32x128xbf16> to vector<32x128xf32>
    %23 = vector.extract_strided_slice %0 {offsets = [2, 0], sizes = [1, 128], strides = [1, 1]} : vector<27x128xf32> to vector<1x128xf32>
    %24 = vector.shape_cast %23 : vector<1x128xf32> to vector<128xf32>
    %25 = vector.shape_cast %24 : vector<128xf32> to vector<1x128xf32>
    %26 = vector.broadcast %25 : vector<1x128xf32> to vector<32x128xf32>
    %27 = arith.mulf %22, %26 : vector<32x128xf32>
    %28 = arith.addf %19, %27 : vector<32x128xf32>
    %c3 = arith.constant 3 : index
    %c0_8 = arith.constant 0 : index
    %c0_9 = arith.constant 0 : index
    %29 = vector.load %arg1[%c3, %c0_8, %c0_9] : memref<27x32x128xbf16, #tpu.memory_space<vmem>>, vector<1x32x128xbf16>
    %30 = vector.shape_cast %29 : vector<1x32x128xbf16> to vector<32x128xbf16>
    %31 = arith.extf %30 : vector<32x128xbf16> to vector<32x128xf32>
    %32 = vector.extract_strided_slice %0 {offsets = [3, 0], sizes = [1, 128], strides = [1, 1]} : vector<27x128xf32> to vector<1x128xf32>
    %33 = vector.shape_cast %32 : vector<1x128xf32> to vector<128xf32>
    %34 = vector.shape_cast %33 : vector<128xf32> to vector<1x128xf32>
    %35 = vector.broadcast %34 : vector<1x128xf32> to vector<32x128xf32>
    %36 = arith.mulf %31, %35 : vector<32x128xf32>
    %37 = arith.addf %28, %36 : vector<32x128xf32>
    %c4 = arith.constant 4 : index
    %c0_10 = arith.constant 0 : index
    %c0_11 = arith.constant 0 : index
    %38 = vector.load %arg1[%c4, %c0_10, %c0_11] : memref<27x32x128xbf16, #tpu.memory_space<vmem>>, vector<1x32x128xbf16>
    %39 = vector.shape_cast %38 : vector<1x32x128xbf16> to vector<32x128xbf16>
    %40 = arith.extf %39 : vector<32x128xbf16> to vector<32x128xf32>
    %41 = vector.extract_strided_slice %0 {offsets = [4, 0], sizes = [1, 128], strides = [1, 1]} : vector<27x128xf32> to vector<1x128xf32>
    %42 = vector.shape_cast %41 : vector<1x128xf32> to vector<128xf32>
    %43 = vector.shape_cast %42 : vector<128xf32> to vector<1x128xf32>
    %44 = vector.broadcast %43 : vector<1x128xf32> to vector<32x128xf32>
    %45 = arith.mulf %40, %44 : vector<32x128xf32>
    %46 = arith.addf %37, %45 : vector<32x128xf32>
    %c5 = arith.constant 5 : index
    %c0_12 = arith.constant 0 : index
    %c0_13 = arith.constant 0 : index
    %47 = vector.load %arg1[%c5, %c0_12, %c0_13] : memref<27x32x128xbf16, #tpu.memory_space<vmem>>, vector<1x32x128xbf16>
    %48 = vector.shape_cast %47 : vector<1x32x128xbf16> to vector<32x128xbf16>
    %49 = arith.extf %48 : vector<32x128xbf16> to vector<32x128xf32>
    %50 = vector.extract_strided_slice %0 {offsets = [5, 0], sizes = [1, 128], strides = [1, 1]} : vector<27x128xf32> to vector<1x128xf32>
    %51 = vector.shape_cast %50 : vector<1x128xf32> to vector<128xf32>
    %52 = vector.shape_cast %51 : vector<128xf32> to vector<1x128xf32>
    %53 = vector.broadcast %52 : vector<1x128xf32> to vector<32x128xf32>
    %54 = arith.mulf %49, %53 : vector<32x128xf32>
    %55 = arith.addf %46, %54 : vector<32x128xf32>
    %c6 = arith.constant 6 : index
    %c0_14 = arith.constant 0 : index
    %c0_15 = arith.constant 0 : index
    %56 = vector.load %arg1[%c6, %c0_14, %c0_15] : memref<27x32x128xbf16, #tpu.memory_space<vmem>>, vector<1x32x128xbf16>
    %57 = vector.shape_cast %56 : vector<1x32x128xbf16> to vector<32x128xbf16>
    %58 = arith.extf %57 : vector<32x128xbf16> to vector<32x128xf32>
    %59 = vector.extract_strided_slice %0 {offsets = [6, 0], sizes = [1, 128], strides = [1, 1]} : vector<27x128xf32> to vector<1x128xf32>
    %60 = vector.shape_cast %59 : vector<1x128xf32> to vector<128xf32>
    %61 = vector.shape_cast %60 : vector<128xf32> to vector<1x128xf32>
    %62 = vector.broadcast %61 : vector<1x128xf32> to vector<32x128xf32>
    %63 = arith.mulf %58, %62 : vector<32x128xf32>
    %64 = arith.addf %55, %63 : vector<32x128xf32>
    %c7 = arith.constant 7 : index
    %c0_16 = arith.constant 0 : index
    %c0_17 = arith.constant 0 : index
    %65 = vector.load %arg1[%c7, %c0_16, %c0_17] : memref<27x32x128xbf16, #tpu.memory_space<vmem>>, vector<1x32x128xbf16>
    %66 = vector.shape_cast %65 : vector<1x32x128xbf16> to vector<32x128xbf16>
    %67 = arith.extf %66 : vector<32x128xbf16> to vector<32x128xf32>
    %68 = vector.extract_strided_slice %0 {offsets = [7, 0], sizes = [1, 128], strides = [1, 1]} : vector<27x128xf32> to vector<1x128xf32>
    %69 = vector.shape_cast %68 : vector<1x128xf32> to vector<128xf32>
    %70 = vector.shape_cast %69 : vector<128xf32> to vector<1x128xf32>
    %71 = vector.broadcast %70 : vector<1x128xf32> to vector<32x128xf32>
    %72 = arith.mulf %67, %71 : vector<32x128xf32>
    %73 = arith.addf %64, %72 : vector<32x128xf32>
    %c8 = arith.constant 8 : index
    %c0_18 = arith.constant 0 : index
    %c0_19 = arith.constant 0 : index
    %74 = vector.load %arg1[%c8, %c0_18, %c0_19] : memref<27x32x128xbf16, #tpu.memory_space<vmem>>, vector<1x32x128xbf16>
    %75 = vector.shape_cast %74 : vector<1x32x128xbf16> to vector<32x128xbf16>
    %76 = arith.extf %75 : vector<32x128xbf16> to vector<32x128xf32>
    %77 = vector.extract_strided_slice %0 {offsets = [8, 0], sizes = [1, 128], strides = [1, 1]} : vector<27x128xf32> to vector<1x128xf32>
    %78 = vector.shape_cast %77 : vector<1x128xf32> to vector<128xf32>
    %79 = vector.shape_cast %78 : vector<128xf32> to vector<1x128xf32>
    %80 = vector.broadcast %79 : vector<1x128xf32> to vector<32x128xf32>
    %81 = arith.mulf %76, %80 : vector<32x128xf32>
    %82 = arith.addf %73, %81 : vector<32x128xf32>
    %c9 = arith.constant 9 : index
    %c0_20 = arith.constant 0 : index
    %c0_21 = arith.constant 0 : index
    %83 = vector.load %arg1[%c9, %c0_20, %c0_21] : memref<27x32x128xbf16, #tpu.memory_space<vmem>>, vector<1x32x128xbf16>
    %84 = vector.shape_cast %83 : vector<1x32x128xbf16> to vector<32x128xbf16>
    %85 = arith.extf %84 : vector<32x128xbf16> to vector<32x128xf32>
    %86 = vector.extract_strided_slice %0 {offsets = [9, 0], sizes = [1, 128], strides = [1, 1]} : vector<27x128xf32> to vector<1x128xf32>
    %87 = vector.shape_cast %86 : vector<1x128xf32> to vector<128xf32>
    %88 = vector.shape_cast %87 : vector<128xf32> to vector<1x128xf32>
    %89 = vector.broadcast %88 : vector<1x128xf32> to vector<32x128xf32>
    %90 = arith.mulf %85, %89 : vector<32x128xf32>
    %91 = arith.addf %82, %90 : vector<32x128xf32>
    %c10 = arith.constant 10 : index
    %c0_22 = arith.constant 0 : index
    %c0_23 = arith.constant 0 : index
    %92 = vector.load %arg1[%c10, %c0_22, %c0_23] : memref<27x32x128xbf16, #tpu.memory_space<vmem>>, vector<1x32x128xbf16>
    %93 = vector.shape_cast %92 : vector<1x32x128xbf16> to vector<32x128xbf16>
    %94 = arith.extf %93 : vector<32x128xbf16> to vector<32x128xf32>
    %95 = vector.extract_strided_slice %0 {offsets = [10, 0], sizes = [1, 128], strides = [1, 1]} : vector<27x128xf32> to vector<1x128xf32>
    %96 = vector.shape_cast %95 : vector<1x128xf32> to vector<128xf32>
    %97 = vector.shape_cast %96 : vector<128xf32> to vector<1x128xf32>
    %98 = vector.broadcast %97 : vector<1x128xf32> to vector<32x128xf32>
    %99 = arith.mulf %94, %98 : vector<32x128xf32>
    %100 = arith.addf %91, %99 : vector<32x128xf32>
    %c11 = arith.constant 11 : index
    %c0_24 = arith.constant 0 : index
    %c0_25 = arith.constant 0 : index
    %101 = vector.load %arg1[%c11, %c0_24, %c0_25] : memref<27x32x128xbf16, #tpu.memory_space<vmem>>, vector<1x32x128xbf16>
    %102 = vector.shape_cast %101 : vector<1x32x128xbf16> to vector<32x128xbf16>
    %103 = arith.extf %102 : vector<32x128xbf16> to vector<32x128xf32>
    %104 = vector.extract_strided_slice %0 {offsets = [11, 0], sizes = [1, 128], strides = [1, 1]} : vector<27x128xf32> to vector<1x128xf32>
    %105 = vector.shape_cast %104 : vector<1x128xf32> to vector<128xf32>
    %106 = vector.shape_cast %105 : vector<128xf32> to vector<1x128xf32>
    %107 = vector.broadcast %106 : vector<1x128xf32> to vector<32x128xf32>
    %108 = arith.mulf %103, %107 : vector<32x128xf32>
    %109 = arith.addf %100, %108 : vector<32x128xf32>
    %c12 = arith.constant 12 : index
    %c0_26 = arith.constant 0 : index
    %c0_27 = arith.constant 0 : index
    %110 = vector.load %arg1[%c12, %c0_26, %c0_27] : memref<27x32x128xbf16, #tpu.memory_space<vmem>>, vector<1x32x128xbf16>
    %111 = vector.shape_cast %110 : vector<1x32x128xbf16> to vector<32x128xbf16>
    %112 = arith.extf %111 : vector<32x128xbf16> to vector<32x128xf32>
    %113 = vector.extract_strided_slice %0 {offsets = [12, 0], sizes = [1, 128], strides = [1, 1]} : vector<27x128xf32> to vector<1x128xf32>
    %114 = vector.shape_cast %113 : vector<1x128xf32> to vector<128xf32>
    %115 = vector.shape_cast %114 : vector<128xf32> to vector<1x128xf32>
    %116 = vector.broadcast %115 : vector<1x128xf32> to vector<32x128xf32>
    %117 = arith.mulf %112, %116 : vector<32x128xf32>
    %118 = arith.addf %109, %117 : vector<32x128xf32>
    %c13 = arith.constant 13 : index
    %c0_28 = arith.constant 0 : index
    %c0_29 = arith.constant 0 : index
    %119 = vector.load %arg1[%c13, %c0_28, %c0_29] : memref<27x32x128xbf16, #tpu.memory_space<vmem>>, vector<1x32x128xbf16>
    %120 = vector.shape_cast %119 : vector<1x32x128xbf16> to vector<32x128xbf16>
    %121 = arith.extf %120 : vector<32x128xbf16> to vector<32x128xf32>
    %122 = vector.extract_strided_slice %0 {offsets = [13, 0], sizes = [1, 128], strides = [1, 1]} : vector<27x128xf32> to vector<1x128xf32>
    %123 = vector.shape_cast %122 : vector<1x128xf32> to vector<128xf32>
    %124 = vector.shape_cast %123 : vector<128xf32> to vector<1x128xf32>
    %125 = vector.broadcast %124 : vector<1x128xf32> to vector<32x128xf32>
    %126 = arith.mulf %121, %125 : vector<32x128xf32>
    %127 = arith.addf %118, %126 : vector<32x128xf32>
    %c14 = arith.constant 14 : index
    %c0_30 = arith.constant 0 : index
    %c0_31 = arith.constant 0 : index
    %128 = vector.load %arg1[%c14, %c0_30, %c0_31] : memref<27x32x128xbf16, #tpu.memory_space<vmem>>, vector<1x32x128xbf16>
    %129 = vector.shape_cast %128 : vector<1x32x128xbf16> to vector<32x128xbf16>
    %130 = arith.extf %129 : vector<32x128xbf16> to vector<32x128xf32>
    %131 = vector.extract_strided_slice %0 {offsets = [14, 0], sizes = [1, 128], strides = [1, 1]} : vector<27x128xf32> to vector<1x128xf32>
    %132 = vector.shape_cast %131 : vector<1x128xf32> to vector<128xf32>
    %133 = vector.shape_cast %132 : vector<128xf32> to vector<1x128xf32>
    %134 = vector.broadcast %133 : vector<1x128xf32> to vector<32x128xf32>
    %135 = arith.mulf %130, %134 : vector<32x128xf32>
    %136 = arith.addf %127, %135 : vector<32x128xf32>
    %c15 = arith.constant 15 : index
    %c0_32 = arith.constant 0 : index
    %c0_33 = arith.constant 0 : index
    %137 = vector.load %arg1[%c15, %c0_32, %c0_33] : memref<27x32x128xbf16, #tpu.memory_space<vmem>>, vector<1x32x128xbf16>
    %138 = vector.shape_cast %137 : vector<1x32x128xbf16> to vector<32x128xbf16>
    %139 = arith.extf %138 : vector<32x128xbf16> to vector<32x128xf32>
    %140 = vector.extract_strided_slice %0 {offsets = [15, 0], sizes = [1, 128], strides = [1, 1]} : vector<27x128xf32> to vector<1x128xf32>
    %141 = vector.shape_cast %140 : vector<1x128xf32> to vector<128xf32>
    %142 = vector.shape_cast %141 : vector<128xf32> to vector<1x128xf32>
    %143 = vector.broadcast %142 : vector<1x128xf32> to vector<32x128xf32>
    %144 = arith.mulf %139, %143 : vector<32x128xf32>
    %145 = arith.addf %136, %144 : vector<32x128xf32>
    %c16 = arith.constant 16 : index
    %c0_34 = arith.constant 0 : index
    %c0_35 = arith.constant 0 : index
    %146 = vector.load %arg1[%c16, %c0_34, %c0_35] : memref<27x32x128xbf16, #tpu.memory_space<vmem>>, vector<1x32x128xbf16>
    %147 = vector.shape_cast %146 : vector<1x32x128xbf16> to vector<32x128xbf16>
    %148 = arith.extf %147 : vector<32x128xbf16> to vector<32x128xf32>
    %149 = vector.extract_strided_slice %0 {offsets = [16, 0], sizes = [1, 128], strides = [1, 1]} : vector<27x128xf32> to vector<1x128xf32>
    %150 = vector.shape_cast %149 : vector<1x128xf32> to vector<128xf32>
    %151 = vector.shape_cast %150 : vector<128xf32> to vector<1x128xf32>
    %152 = vector.broadcast %151 : vector<1x128xf32> to vector<32x128xf32>
    %153 = arith.mulf %148, %152 : vector<32x128xf32>
    %154 = arith.addf %145, %153 : vector<32x128xf32>
    %c17 = arith.constant 17 : index
    %c0_36 = arith.constant 0 : index
    %c0_37 = arith.constant 0 : index
    %155 = vector.load %arg1[%c17, %c0_36, %c0_37] : memref<27x32x128xbf16, #tpu.memory_space<vmem>>, vector<1x32x128xbf16>
    %156 = vector.shape_cast %155 : vector<1x32x128xbf16> to vector<32x128xbf16>
    %157 = arith.extf %156 : vector<32x128xbf16> to vector<32x128xf32>
    %158 = vector.extract_strided_slice %0 {offsets = [17, 0], sizes = [1, 128], strides = [1, 1]} : vector<27x128xf32> to vector<1x128xf32>
    %159 = vector.shape_cast %158 : vector<1x128xf32> to vector<128xf32>
    %160 = vector.shape_cast %159 : vector<128xf32> to vector<1x128xf32>
    %161 = vector.broadcast %160 : vector<1x128xf32> to vector<32x128xf32>
    %162 = arith.mulf %157, %161 : vector<32x128xf32>
    %163 = arith.addf %154, %162 : vector<32x128xf32>
    %c18 = arith.constant 18 : index
    %c0_38 = arith.constant 0 : index
    %c0_39 = arith.constant 0 : index
    %164 = vector.load %arg1[%c18, %c0_38, %c0_39] : memref<27x32x128xbf16, #tpu.memory_space<vmem>>, vector<1x32x128xbf16>
    %165 = vector.shape_cast %164 : vector<1x32x128xbf16> to vector<32x128xbf16>
    %166 = arith.extf %165 : vector<32x128xbf16> to vector<32x128xf32>
    %167 = vector.extract_strided_slice %0 {offsets = [18, 0], sizes = [1, 128], strides = [1, 1]} : vector<27x128xf32> to vector<1x128xf32>
    %168 = vector.shape_cast %167 : vector<1x128xf32> to vector<128xf32>
    %169 = vector.shape_cast %168 : vector<128xf32> to vector<1x128xf32>
    %170 = vector.broadcast %169 : vector<1x128xf32> to vector<32x128xf32>
    %171 = arith.mulf %166, %170 : vector<32x128xf32>
    %172 = arith.addf %163, %171 : vector<32x128xf32>
    %c19 = arith.constant 19 : index
    %c0_40 = arith.constant 0 : index
    %c0_41 = arith.constant 0 : index
    %173 = vector.load %arg1[%c19, %c0_40, %c0_41] : memref<27x32x128xbf16, #tpu.memory_space<vmem>>, vector<1x32x128xbf16>
    %174 = vector.shape_cast %173 : vector<1x32x128xbf16> to vector<32x128xbf16>
    %175 = arith.extf %174 : vector<32x128xbf16> to vector<32x128xf32>
    %176 = vector.extract_strided_slice %0 {offsets = [19, 0], sizes = [1, 128], strides = [1, 1]} : vector<27x128xf32> to vector<1x128xf32>
    %177 = vector.shape_cast %176 : vector<1x128xf32> to vector<128xf32>
    %178 = vector.shape_cast %177 : vector<128xf32> to vector<1x128xf32>
    %179 = vector.broadcast %178 : vector<1x128xf32> to vector<32x128xf32>
    %180 = arith.mulf %175, %179 : vector<32x128xf32>
    %181 = arith.addf %172, %180 : vector<32x128xf32>
    %c20 = arith.constant 20 : index
    %c0_42 = arith.constant 0 : index
    %c0_43 = arith.constant 0 : index
    %182 = vector.load %arg1[%c20, %c0_42, %c0_43] : memref<27x32x128xbf16, #tpu.memory_space<vmem>>, vector<1x32x128xbf16>
    %183 = vector.shape_cast %182 : vector<1x32x128xbf16> to vector<32x128xbf16>
    %184 = arith.extf %183 : vector<32x128xbf16> to vector<32x128xf32>
    %185 = vector.extract_strided_slice %0 {offsets = [20, 0], sizes = [1, 128], strides = [1, 1]} : vector<27x128xf32> to vector<1x128xf32>
    %186 = vector.shape_cast %185 : vector<1x128xf32> to vector<128xf32>
    %187 = vector.shape_cast %186 : vector<128xf32> to vector<1x128xf32>
    %188 = vector.broadcast %187 : vector<1x128xf32> to vector<32x128xf32>
    %189 = arith.mulf %184, %188 : vector<32x128xf32>
    %190 = arith.addf %181, %189 : vector<32x128xf32>
    %c21 = arith.constant 21 : index
    %c0_44 = arith.constant 0 : index
    %c0_45 = arith.constant 0 : index
    %191 = vector.load %arg1[%c21, %c0_44, %c0_45] : memref<27x32x128xbf16, #tpu.memory_space<vmem>>, vector<1x32x128xbf16>
    %192 = vector.shape_cast %191 : vector<1x32x128xbf16> to vector<32x128xbf16>
    %193 = arith.extf %192 : vector<32x128xbf16> to vector<32x128xf32>
    %194 = vector.extract_strided_slice %0 {offsets = [21, 0], sizes = [1, 128], strides = [1, 1]} : vector<27x128xf32> to vector<1x128xf32>
    %195 = vector.shape_cast %194 : vector<1x128xf32> to vector<128xf32>
    %196 = vector.shape_cast %195 : vector<128xf32> to vector<1x128xf32>
    %197 = vector.broadcast %196 : vector<1x128xf32> to vector<32x128xf32>
    %198 = arith.mulf %193, %197 : vector<32x128xf32>
    %199 = arith.addf %190, %198 : vector<32x128xf32>
    %c22 = arith.constant 22 : index
    %c0_46 = arith.constant 0 : index
    %c0_47 = arith.constant 0 : index
    %200 = vector.load %arg1[%c22, %c0_46, %c0_47] : memref<27x32x128xbf16, #tpu.memory_space<vmem>>, vector<1x32x128xbf16>
    %201 = vector.shape_cast %200 : vector<1x32x128xbf16> to vector<32x128xbf16>
    %202 = arith.extf %201 : vector<32x128xbf16> to vector<32x128xf32>
    %203 = vector.extract_strided_slice %0 {offsets = [22, 0], sizes = [1, 128], strides = [1, 1]} : vector<27x128xf32> to vector<1x128xf32>
    %204 = vector.shape_cast %203 : vector<1x128xf32> to vector<128xf32>
    %205 = vector.shape_cast %204 : vector<128xf32> to vector<1x128xf32>
    %206 = vector.broadcast %205 : vector<1x128xf32> to vector<32x128xf32>
    %207 = arith.mulf %202, %206 : vector<32x128xf32>
    %208 = arith.addf %199, %207 : vector<32x128xf32>
    %c23 = arith.constant 23 : index
    %c0_48 = arith.constant 0 : index
    %c0_49 = arith.constant 0 : index
    %209 = vector.load %arg1[%c23, %c0_48, %c0_49] : memref<27x32x128xbf16, #tpu.memory_space<vmem>>, vector<1x32x128xbf16>
    %210 = vector.shape_cast %209 : vector<1x32x128xbf16> to vector<32x128xbf16>
    %211 = arith.extf %210 : vector<32x128xbf16> to vector<32x128xf32>
    %212 = vector.extract_strided_slice %0 {offsets = [23, 0], sizes = [1, 128], strides = [1, 1]} : vector<27x128xf32> to vector<1x128xf32>
    %213 = vector.shape_cast %212 : vector<1x128xf32> to vector<128xf32>
    %214 = vector.shape_cast %213 : vector<128xf32> to vector<1x128xf32>
    %215 = vector.broadcast %214 : vector<1x128xf32> to vector<32x128xf32>
    %216 = arith.mulf %211, %215 : vector<32x128xf32>
    %217 = arith.addf %208, %216 : vector<32x128xf32>
    %c24 = arith.constant 24 : index
    %c0_50 = arith.constant 0 : index
    %c0_51 = arith.constant 0 : index
    %218 = vector.load %arg1[%c24, %c0_50, %c0_51] : memref<27x32x128xbf16, #tpu.memory_space<vmem>>, vector<1x32x128xbf16>
    %219 = vector.shape_cast %218 : vector<1x32x128xbf16> to vector<32x128xbf16>
    %220 = arith.extf %219 : vector<32x128xbf16> to vector<32x128xf32>
    %221 = vector.extract_strided_slice %0 {offsets = [24, 0], sizes = [1, 128], strides = [1, 1]} : vector<27x128xf32> to vector<1x128xf32>
    %222 = vector.shape_cast %221 : vector<1x128xf32> to vector<128xf32>
    %223 = vector.shape_cast %222 : vector<128xf32> to vector<1x128xf32>
    %224 = vector.broadcast %223 : vector<1x128xf32> to vector<32x128xf32>
    %225 = arith.mulf %220, %224 : vector<32x128xf32>
    %226 = arith.addf %217, %225 : vector<32x128xf32>
    %c25 = arith.constant 25 : index
    %c0_52 = arith.constant 0 : index
    %c0_53 = arith.constant 0 : index
    %227 = vector.load %arg1[%c25, %c0_52, %c0_53] : memref<27x32x128xbf16, #tpu.memory_space<vmem>>, vector<1x32x128xbf16>
    %228 = vector.shape_cast %227 : vector<1x32x128xbf16> to vector<32x128xbf16>
    %229 = arith.extf %228 : vector<32x128xbf16> to vector<32x128xf32>
    %230 = vector.extract_strided_slice %0 {offsets = [25, 0], sizes = [1, 128], strides = [1, 1]} : vector<27x128xf32> to vector<1x128xf32>
    %231 = vector.shape_cast %230 : vector<1x128xf32> to vector<128xf32>
    %232 = vector.shape_cast %231 : vector<128xf32> to vector<1x128xf32>
    %233 = vector.broadcast %232 : vector<1x128xf32> to vector<32x128xf32>
    %234 = arith.mulf %229, %233 : vector<32x128xf32>
    %235 = arith.addf %226, %234 : vector<32x128xf32>
    %c26 = arith.constant 26 : index
    %c0_54 = arith.constant 0 : index
    %c0_55 = arith.constant 0 : index
    %236 = vector.load %arg1[%c26, %c0_54, %c0_55] : memref<27x32x128xbf16, #tpu.memory_space<vmem>>, vector<1x32x128xbf16>
    %237 = vector.shape_cast %236 : vector<1x32x128xbf16> to vector<32x128xbf16>
    %238 = arith.extf %237 : vector<32x128xbf16> to vector<32x128xf32>
    %239 = vector.extract_strided_slice %0 {offsets = [26, 0], sizes = [1, 128], strides = [1, 1]} : vector<27x128xf32> to vector<1x128xf32>
    %240 = vector.shape_cast %239 : vector<1x128xf32> to vector<128xf32>
    %241 = vector.shape_cast %240 : vector<128xf32> to vector<1x128xf32>
    %242 = vector.broadcast %241 : vector<1x128xf32> to vector<32x128xf32>
    %243 = arith.mulf %238, %242 : vector<32x128xf32>
    %244 = arith.addf %235, %243 : vector<32x128xf32>
    %c0_56 = arith.constant 0 : index
    %c0_57 = arith.constant 0 : index
    %245 = vector.load %arg3[%c0_56, %c0_57] : memref<1x128xf32, #tpu.memory_space<vmem>>, vector<1x128xf32>
    %246 = vector.broadcast %245 : vector<1x128xf32> to vector<32x128xf32>
    %247 = arith.addf %244, %246 : vector<32x128xf32>
    %cst_58 = arith.constant 5.000000e-01 : f32
    %248 = vector.broadcast %cst_58 : f32 to vector<32x128xf32>
    %249 = arith.mulf %248, %247 : vector<32x128xf32>
    %cst_59 = arith.constant 4.471500e-02 : f32
    %250 = vector.broadcast %cst_59 : f32 to vector<32x128xf32>
    %251 = arith.mulf %250, %247 : vector<32x128xf32>
    %252 = arith.mulf %251, %247 : vector<32x128xf32>
    %253 = arith.mulf %252, %247 : vector<32x128xf32>
    %254 = arith.addf %247, %253 : vector<32x128xf32>
    %cst_60 = arith.constant 0.797884583 : f32
    %255 = vector.broadcast %cst_60 : f32 to vector<32x128xf32>
    %256 = arith.mulf %255, %254 : vector<32x128xf32>
    %257 = math.tanh %256 : vector<32x128xf32>
    %cst_61 = arith.constant 1.000000e+00 : f32
    %258 = vector.broadcast %cst_61 : f32 to vector<32x128xf32>
    %259 = arith.addf %258, %257 : vector<32x128xf32>
    %260 = arith.mulf %249, %259 : vector<32x128xf32>
    %c0_62 = arith.constant 0 : index
    %c0_63 = arith.constant 0 : index
    %261 = vector.load %arg4[%c0_62, %c0_63] : memref<32x128xf32, #tpu.memory_space<vmem>>, vector<32x128xf32>
    %262 = arith.addf %260, %261 : vector<32x128xf32>
    %263 = arith.truncf %262 : vector<32x128xf32> to vector<32x128xbf16>
    %c0_64 = arith.constant 0 : index
    %c0_65 = arith.constant 0 : index
    %264 = vector.load %arg5[%c0_64, %c0_65] : memref<32x128xbf16, #tpu.memory_space<vmem>>, vector<32x128xbf16>
    tpu.vector_store %arg5[%c0_64, %c0_65], %263 {strides = array<i32>} : memref<32x128xbf16, #tpu.memory_space<vmem>>, vector<32x128xbf16>,
    return
  }
  func.func @transform_0(%arg0: i32) -> (i32, i32, i32) {
    %c0_i32 = arith.constant 0 : i32
    %c0_i32_0 = arith.constant 0 : i32
    %c0_i32_1 = arith.constant 0 : i32
    return %c0_i32, %arg0, %c0_i32_0 : i32, i32, i32
  }
  func.func @transform_1(%arg0: i32) -> (i32, i32) {
    %c0_i32 = arith.constant 0 : i32
    %c0_i32_0 = arith.constant 0 : i32
    %c0_i32_1 = arith.constant 0 : i32
    return %c0_i32, %c0_i32_0 : i32, i32
  }
  func.func @transform_2(%arg0: i32) -> (i32, i32) {
    %c0_i32 = arith.constant 0 : i32
    %c0_i32_0 = arith.constant 0 : i32
    %c0_i32_1 = arith.constant 0 : i32
    return %c0_i32, %c0_i32_0 : i32, i32
  }
  func.func @transform_3(%arg0: i32) -> (i32, i32) {
    %c0_i32 = arith.constant 0 : i32
    %c0_i32_0 = arith.constant 0 : i32
    return %arg0, %c0_i32 : i32, i32
  }
  func.func @transform_4(%arg0: i32) -> (i32, i32) {
    %c0_i32 = arith.constant 0 : i32
    %c0_i32_0 = arith.constant 0 : i32
    return %arg0, %c0_i32 : i32, i32
  }
}

module attributes {stable_mosaic.version = 11 : i64} {
  func.func @_mm_kernel(%arg0: i32, %arg1: i32, %arg2: memref<128x896xbf16, #tpu.memory_space<vmem>>, %arg3: memref<896x32xbf16, #tpu.memory_space<vmem>>, %arg4: memref<1x32xf32, #tpu.memory_space<vmem>>, %arg5: memref<128x32xbf16, #tpu.memory_space<vmem>>, %arg6: memref<128x32xf32, #tpu.memory_space<vmem>>) attributes {dimension_semantics = [#tpu.dimension_semantics<parallel>, #tpu.dimension_semantics<arbitrary>], iteration_bounds = array<i64: 1, 1>, scalar_prefetch = 0 : i64, scratch_operands = 1 : i64, tpu.core_type = #tpu.core_type<tc>, window_params = [{transform_indices = @transform_0, window_bounds = array<i64: 128, 896>}, {transform_indices = @transform_1, window_bounds = array<i64: 896, 32>}, {pipeline_mode = #tpu.pipeline_mode<synchronous>, transform_indices = @transform_2, window_bounds = array<i64: 1, 32>}, {transform_indices = @transform_3, window_bounds = array<i64: 128, 32>}]} {
    %c0_i32 = arith.constant 0 : i32
    %0 = arith.cmpi eq, %arg1, %c0_i32 : i32
    %1 = arith.extui %0 : i1 to i32
    %c0_i32_0 = arith.constant 0 : i32
    %2 = arith.cmpi ne, %1, %c0_i32_0 : i32
    scf.if %2 {
      %cst_10 = arith.constant 0.000000e+00 : f32
      %12 = vector.broadcast %cst_10 : f32 to vector<128x32xf32>
      %c0_11 = arith.constant 0 : index
      %c0_12 = arith.constant 0 : index
      %13 = vector.load %arg6[%c0_11, %c0_12] : memref<128x32xf32, #tpu.memory_space<vmem>>, vector<128x32xf32>
      tpu.vector_store %arg6[%c0_11, %c0_12], %12 {strides = array<i32>} : memref<128x32xf32, #tpu.memory_space<vmem>>, vector<128x32xf32>,
    } else {
    }
    %c0 = arith.constant 0 : index
    %c0_1 = arith.constant 0 : index
    %3 = vector.load %arg6[%c0, %c0_1] : memref<128x32xf32, #tpu.memory_space<vmem>>, vector<128x32xf32>
    %c0_2 = arith.constant 0 : index
    %c0_3 = arith.constant 0 : index
    %4 = vector.load %arg2[%c0_2, %c0_3] : memref<128x896xbf16, #tpu.memory_space<vmem>>, vector<128x896xbf16>
    %c0_4 = arith.constant 0 : index
    %c0_5 = arith.constant 0 : index
    %5 = vector.load %arg3[%c0_4, %c0_5] : memref<896x32xbf16, #tpu.memory_space<vmem>>, vector<896x32xbf16>
    %cst = arith.constant dense<0.000000e+00> : vector<128x32xf32>
    %6 = tpu.matmul %4, %5, %cst {dimension_numbers = #tpu.dot_dimension_numbers<[1], [0], [0], [1], [0, 0, 1, 1], [], []>} : vector<128x896xbf16>, vector<896x32xbf16>, vector<128x32xf32> -> vector<128x32xf32>
    %7 = arith.addf %3, %6 : vector<128x32xf32>
    %c0_6 = arith.constant 0 : index
    %c0_7 = arith.constant 0 : index
    %8 = vector.load %arg6[%c0_6, %c0_7] : memref<128x32xf32, #tpu.memory_space<vmem>>, vector<128x32xf32>
    tpu.vector_store %arg6[%c0_6, %c0_7], %7 {strides = array<i32>} : memref<128x32xf32, #tpu.memory_space<vmem>>, vector<128x32xf32>,
    %c0_i32_8 = arith.constant 0 : i32
    %9 = arith.cmpi eq, %arg1, %c0_i32_8 : i32
    %10 = arith.extui %9 : i1 to i32
    %c0_i32_9 = arith.constant 0 : i32
    %11 = arith.cmpi ne, %10, %c0_i32_9 : i32
    scf.if %11 {
      %c0_10 = arith.constant 0 : index
      %c0_11 = arith.constant 0 : index
      %12 = vector.load %arg6[%c0_10, %c0_11] : memref<128x32xf32, #tpu.memory_space<vmem>>, vector<128x32xf32>
      %c0_12 = arith.constant 0 : index
      %c0_13 = arith.constant 0 : index
      %13 = vector.load %arg4[%c0_12, %c0_13] : memref<1x32xf32, #tpu.memory_space<vmem>>, vector<1x32xf32>
      %14 = vector.broadcast %13 : vector<1x32xf32> to vector<128x32xf32>
      %15 = arith.addf %12, %14 : vector<128x32xf32>
      %cst_14 = arith.constant 0.000000e+00 : f32
      %16 = vector.broadcast %cst_14 : f32 to vector<128x32xf32>
      %17 = arith.maximumf %15, %16 : vector<128x32xf32>
      %18 = arith.truncf %17 : vector<128x32xf32> to vector<128x32xbf16>
      %c0_15 = arith.constant 0 : index
      %c0_16 = arith.constant 0 : index
      %19 = vector.load %arg5[%c0_15, %c0_16] : memref<128x32xbf16, #tpu.memory_space<vmem>>, vector<128x32xbf16>
      tpu.vector_store %arg5[%c0_15, %c0_16], %18 {strides = array<i32>} : memref<128x32xbf16, #tpu.memory_space<vmem>>, vector<128x32xbf16>,
    } else {
    }
    return
  }
  func.func @transform_0(%arg0: i32, %arg1: i32) -> (i32, i32) {
    %c0_i32 = arith.constant 0 : i32
    return %arg0, %arg1 : i32, i32
  }
  func.func @transform_1(%arg0: i32, %arg1: i32) -> (i32, i32) {
    %c0_i32 = arith.constant 0 : i32
    %c0_i32_0 = arith.constant 0 : i32
    return %arg1, %c0_i32 : i32, i32
  }
  func.func @transform_2(%arg0: i32, %arg1: i32) -> (i32, i32) {
    %c0_i32 = arith.constant 0 : i32
    %c0_i32_0 = arith.constant 0 : i32
    %c0_i32_1 = arith.constant 0 : i32
    return %c0_i32, %c0_i32_0 : i32, i32
  }
  func.func @transform_3(%arg0: i32, %arg1: i32) -> (i32, i32) {
    %c0_i32 = arith.constant 0 : i32
    %c0_i32_0 = arith.constant 0 : i32
    return %arg0, %c0_i32 : i32, i32
  }
}

module attributes {stable_mosaic.version = 11 : i64} {
  func.func @_mm_kernel(%arg0: i32, %arg1: i32, %arg2: memref<512x512xbf16, #tpu.memory_space<vmem>>, %arg3: memref<512x32xbf16, #tpu.memory_space<vmem>>, %arg4: memref<1x32xf32, #tpu.memory_space<vmem>>, %arg5: memref<512x32xbf16, #tpu.memory_space<vmem>>, %arg6: memref<512x32xf32, #tpu.memory_space<vmem>>) attributes {dimension_semantics = [#tpu.dimension_semantics<parallel>, #tpu.dimension_semantics<arbitrary>], iteration_bounds = array<i64: 2, 1>, scalar_prefetch = 0 : i64, scratch_operands = 1 : i64, tpu.core_type = #tpu.core_type<tc>, window_params = [{transform_indices = @transform_0, window_bounds = array<i64: 512, 512>}, {transform_indices = @transform_1, window_bounds = array<i64: 512, 32>}, {pipeline_mode = #tpu.pipeline_mode<synchronous>, transform_indices = @transform_2, window_bounds = array<i64: 1, 32>}, {transform_indices = @transform_3, window_bounds = array<i64: 512, 32>}]} {
    %c0_i32 = arith.constant 0 : i32
    %0 = arith.cmpi eq, %arg1, %c0_i32 : i32
    %1 = arith.extui %0 : i1 to i32
    %c0_i32_0 = arith.constant 0 : i32
    %2 = arith.cmpi ne, %1, %c0_i32_0 : i32
    scf.if %2 {
      %cst_10 = arith.constant 0.000000e+00 : f32
      %12 = vector.broadcast %cst_10 : f32 to vector<512x32xf32>
      %c0_11 = arith.constant 0 : index
      %c0_12 = arith.constant 0 : index
      %13 = vector.load %arg6[%c0_11, %c0_12] : memref<512x32xf32, #tpu.memory_space<vmem>>, vector<512x32xf32>
      tpu.vector_store %arg6[%c0_11, %c0_12], %12 {strides = array<i32>} : memref<512x32xf32, #tpu.memory_space<vmem>>, vector<512x32xf32>,
    } else {
    }
    %c0 = arith.constant 0 : index
    %c0_1 = arith.constant 0 : index
    %3 = vector.load %arg6[%c0, %c0_1] : memref<512x32xf32, #tpu.memory_space<vmem>>, vector<512x32xf32>
    %c0_2 = arith.constant 0 : index
    %c0_3 = arith.constant 0 : index
    %4 = vector.load %arg2[%c0_2, %c0_3] : memref<512x512xbf16, #tpu.memory_space<vmem>>, vector<512x512xbf16>
    %c0_4 = arith.constant 0 : index
    %c0_5 = arith.constant 0 : index
    %5 = vector.load %arg3[%c0_4, %c0_5] : memref<512x32xbf16, #tpu.memory_space<vmem>>, vector<512x32xbf16>
    %cst = arith.constant dense<0.000000e+00> : vector<512x32xf32>
    %6 = tpu.matmul %4, %5, %cst {dimension_numbers = #tpu.dot_dimension_numbers<[1], [0], [0], [1], [0, 0, 1, 1], [], []>} : vector<512x512xbf16>, vector<512x32xbf16>, vector<512x32xf32> -> vector<512x32xf32>
    %7 = arith.addf %3, %6 : vector<512x32xf32>
    %c0_6 = arith.constant 0 : index
    %c0_7 = arith.constant 0 : index
    %8 = vector.load %arg6[%c0_6, %c0_7] : memref<512x32xf32, #tpu.memory_space<vmem>>, vector<512x32xf32>
    tpu.vector_store %arg6[%c0_6, %c0_7], %7 {strides = array<i32>} : memref<512x32xf32, #tpu.memory_space<vmem>>, vector<512x32xf32>,
    %c0_i32_8 = arith.constant 0 : i32
    %9 = arith.cmpi eq, %arg1, %c0_i32_8 : i32
    %10 = arith.extui %9 : i1 to i32
    %c0_i32_9 = arith.constant 0 : i32
    %11 = arith.cmpi ne, %10, %c0_i32_9 : i32
    scf.if %11 {
      %c0_10 = arith.constant 0 : index
      %c0_11 = arith.constant 0 : index
      %12 = vector.load %arg6[%c0_10, %c0_11] : memref<512x32xf32, #tpu.memory_space<vmem>>, vector<512x32xf32>
      %c0_12 = arith.constant 0 : index
      %c0_13 = arith.constant 0 : index
      %13 = vector.load %arg4[%c0_12, %c0_13] : memref<1x32xf32, #tpu.memory_space<vmem>>, vector<1x32xf32>
      %14 = vector.broadcast %13 : vector<1x32xf32> to vector<512x32xf32>
      %15 = arith.addf %12, %14 : vector<512x32xf32>
      %16 = arith.truncf %15 : vector<512x32xf32> to vector<512x32xbf16>
      %c0_14 = arith.constant 0 : index
      %c0_15 = arith.constant 0 : index
      %17 = vector.load %arg5[%c0_14, %c0_15] : memref<512x32xbf16, #tpu.memory_space<vmem>>, vector<512x32xbf16>
      tpu.vector_store %arg5[%c0_14, %c0_15], %16 {strides = array<i32>} : memref<512x32xbf16, #tpu.memory_space<vmem>>, vector<512x32xbf16>,
    } else {
    }
    return
  }
  func.func @transform_0(%arg0: i32, %arg1: i32) -> (i32, i32) {
    %c0_i32 = arith.constant 0 : i32
    return %arg0, %arg1 : i32, i32
  }
  func.func @transform_1(%arg0: i32, %arg1: i32) -> (i32, i32) {
    %c0_i32 = arith.constant 0 : i32
    %c0_i32_0 = arith.constant 0 : i32
    return %arg1, %c0_i32 : i32, i32
  }
  func.func @transform_2(%arg0: i32, %arg1: i32) -> (i32, i32) {
    %c0_i32 = arith.constant 0 : i32
    %c0_i32_0 = arith.constant 0 : i32
    %c0_i32_1 = arith.constant 0 : i32
    return %c0_i32, %c0_i32_0 : i32, i32
  }
  func.func @transform_3(%arg0: i32, %arg1: i32) -> (i32, i32) {
    %c0_i32 = arith.constant 0 : i32
    %c0_i32_0 = arith.constant 0 : i32
    return %arg0, %c0_i32 : i32, i32
  }
}

module attributes {stable_mosaic.version = 11 : i64} {
  func.func @_maxpool_kernel(%arg0: i32, %arg1: memref<8x32x128xbf16, #tpu.memory_space<vmem>>, %arg2: memref<32x128xbf16, #tpu.memory_space<vmem>>) attributes {dimension_semantics = [#tpu.dimension_semantics<parallel>], iteration_bounds = array<i64: 1>, scalar_prefetch = 0 : i64, scratch_operands = 0 : i64, tpu.core_type = #tpu.core_type<tc>, window_params = [{transform_indices = @transform_0, window_bounds = array<i64: 8, 32, 128>}, {transform_indices = @transform_1, window_bounds = array<i64: 32, 128>}]} {
    %c0 = arith.constant 0 : index
    %c0_0 = arith.constant 0 : index
    %c0_1 = arith.constant 0 : index
    %0 = vector.load %arg1[%c0, %c0_0, %c0_1] : memref<8x32x128xbf16, #tpu.memory_space<vmem>>, vector<1x32x128xbf16>
    %1 = vector.shape_cast %0 : vector<1x32x128xbf16> to vector<32x128xbf16>
    %c1 = arith.constant 1 : index
    %c0_2 = arith.constant 0 : index
    %c0_3 = arith.constant 0 : index
    %2 = vector.load %arg1[%c1, %c0_2, %c0_3] : memref<8x32x128xbf16, #tpu.memory_space<vmem>>, vector<1x32x128xbf16>
    %3 = vector.shape_cast %2 : vector<1x32x128xbf16> to vector<32x128xbf16>
    %4 = arith.maximumf %1, %3 : vector<32x128xbf16>
    %c2 = arith.constant 2 : index
    %c0_4 = arith.constant 0 : index
    %c0_5 = arith.constant 0 : index
    %5 = vector.load %arg1[%c2, %c0_4, %c0_5] : memref<8x32x128xbf16, #tpu.memory_space<vmem>>, vector<1x32x128xbf16>
    %6 = vector.shape_cast %5 : vector<1x32x128xbf16> to vector<32x128xbf16>
    %7 = arith.maximumf %4, %6 : vector<32x128xbf16>
    %c3 = arith.constant 3 : index
    %c0_6 = arith.constant 0 : index
    %c0_7 = arith.constant 0 : index
    %8 = vector.load %arg1[%c3, %c0_6, %c0_7] : memref<8x32x128xbf16, #tpu.memory_space<vmem>>, vector<1x32x128xbf16>
    %9 = vector.shape_cast %8 : vector<1x32x128xbf16> to vector<32x128xbf16>
    %10 = arith.maximumf %7, %9 : vector<32x128xbf16>
    %c4 = arith.constant 4 : index
    %c0_8 = arith.constant 0 : index
    %c0_9 = arith.constant 0 : index
    %11 = vector.load %arg1[%c4, %c0_8, %c0_9] : memref<8x32x128xbf16, #tpu.memory_space<vmem>>, vector<1x32x128xbf16>
    %12 = vector.shape_cast %11 : vector<1x32x128xbf16> to vector<32x128xbf16>
    %13 = arith.maximumf %10, %12 : vector<32x128xbf16>
    %c5 = arith.constant 5 : index
    %c0_10 = arith.constant 0 : index
    %c0_11 = arith.constant 0 : index
    %14 = vector.load %arg1[%c5, %c0_10, %c0_11] : memref<8x32x128xbf16, #tpu.memory_space<vmem>>, vector<1x32x128xbf16>
    %15 = vector.shape_cast %14 : vector<1x32x128xbf16> to vector<32x128xbf16>
    %16 = arith.maximumf %13, %15 : vector<32x128xbf16>
    %c6 = arith.constant 6 : index
    %c0_12 = arith.constant 0 : index
    %c0_13 = arith.constant 0 : index
    %17 = vector.load %arg1[%c6, %c0_12, %c0_13] : memref<8x32x128xbf16, #tpu.memory_space<vmem>>, vector<1x32x128xbf16>
    %18 = vector.shape_cast %17 : vector<1x32x128xbf16> to vector<32x128xbf16>
    %19 = arith.maximumf %16, %18 : vector<32x128xbf16>
    %c7 = arith.constant 7 : index
    %c0_14 = arith.constant 0 : index
    %c0_15 = arith.constant 0 : index
    %20 = vector.load %arg1[%c7, %c0_14, %c0_15] : memref<8x32x128xbf16, #tpu.memory_space<vmem>>, vector<1x32x128xbf16>
    %21 = vector.shape_cast %20 : vector<1x32x128xbf16> to vector<32x128xbf16>
    %22 = arith.maximumf %19, %21 : vector<32x128xbf16>
    %c0_16 = arith.constant 0 : index
    %c0_17 = arith.constant 0 : index
    %23 = vector.load %arg2[%c0_16, %c0_17] : memref<32x128xbf16, #tpu.memory_space<vmem>>, vector<32x128xbf16>
    tpu.vector_store %arg2[%c0_16, %c0_17], %22 {strides = array<i32>} : memref<32x128xbf16, #tpu.memory_space<vmem>>, vector<32x128xbf16>,
    return
  }
  func.func @transform_0(%arg0: i32) -> (i32, i32, i32) {
    %c0_i32 = arith.constant 0 : i32
    %c0_i32_0 = arith.constant 0 : i32
    %c0_i32_1 = arith.constant 0 : i32
    return %c0_i32, %arg0, %c0_i32_0 : i32, i32, i32
  }
  func.func @transform_1(%arg0: i32) -> (i32, i32) {
    %c0_i32 = arith.constant 0 : i32
    %c0_i32_0 = arith.constant 0 : i32
    return %arg0, %c0_i32 : i32, i32
  }
}

module attributes {stable_mosaic.version = 11 : i64} {
  func.func @_mm_kernel(%arg0: i32, %arg1: i32, %arg2: memref<128x32xbf16, #tpu.memory_space<vmem>>, %arg3: memref<32x32xbf16, #tpu.memory_space<vmem>>, %arg4: memref<1x32xf32, #tpu.memory_space<vmem>>, %arg5: memref<128x32xbf16, #tpu.memory_space<vmem>>, %arg6: memref<128x32xf32, #tpu.memory_space<vmem>>) attributes {dimension_semantics = [#tpu.dimension_semantics<parallel>, #tpu.dimension_semantics<arbitrary>], iteration_bounds = array<i64: 1, 1>, scalar_prefetch = 0 : i64, scratch_operands = 1 : i64, tpu.core_type = #tpu.core_type<tc>, window_params = [{transform_indices = @transform_0, window_bounds = array<i64: 128, 32>}, {transform_indices = @transform_1, window_bounds = array<i64: 32, 32>}, {pipeline_mode = #tpu.pipeline_mode<synchronous>, transform_indices = @transform_2, window_bounds = array<i64: 1, 32>}, {transform_indices = @transform_3, window_bounds = array<i64: 128, 32>}]} {
    %c0_i32 = arith.constant 0 : i32
    %0 = arith.cmpi eq, %arg1, %c0_i32 : i32
    %1 = arith.extui %0 : i1 to i32
    %c0_i32_0 = arith.constant 0 : i32
    %2 = arith.cmpi ne, %1, %c0_i32_0 : i32
    scf.if %2 {
      %cst_10 = arith.constant 0.000000e+00 : f32
      %12 = vector.broadcast %cst_10 : f32 to vector<128x32xf32>
      %c0_11 = arith.constant 0 : index
      %c0_12 = arith.constant 0 : index
      %13 = vector.load %arg6[%c0_11, %c0_12] : memref<128x32xf32, #tpu.memory_space<vmem>>, vector<128x32xf32>
      tpu.vector_store %arg6[%c0_11, %c0_12], %12 {strides = array<i32>} : memref<128x32xf32, #tpu.memory_space<vmem>>, vector<128x32xf32>,
    } else {
    }
    %c0 = arith.constant 0 : index
    %c0_1 = arith.constant 0 : index
    %3 = vector.load %arg6[%c0, %c0_1] : memref<128x32xf32, #tpu.memory_space<vmem>>, vector<128x32xf32>
    %c0_2 = arith.constant 0 : index
    %c0_3 = arith.constant 0 : index
    %4 = vector.load %arg2[%c0_2, %c0_3] : memref<128x32xbf16, #tpu.memory_space<vmem>>, vector<128x32xbf16>
    %c0_4 = arith.constant 0 : index
    %c0_5 = arith.constant 0 : index
    %5 = vector.load %arg3[%c0_4, %c0_5] : memref<32x32xbf16, #tpu.memory_space<vmem>>, vector<32x32xbf16>
    %cst = arith.constant dense<0.000000e+00> : vector<128x32xf32>
    %6 = tpu.matmul %4, %5, %cst {dimension_numbers = #tpu.dot_dimension_numbers<[1], [0], [0], [1], [0, 0, 1, 1], [], []>} : vector<128x32xbf16>, vector<32x32xbf16>, vector<128x32xf32> -> vector<128x32xf32>
    %7 = arith.addf %3, %6 : vector<128x32xf32>
    %c0_6 = arith.constant 0 : index
    %c0_7 = arith.constant 0 : index
    %8 = vector.load %arg6[%c0_6, %c0_7] : memref<128x32xf32, #tpu.memory_space<vmem>>, vector<128x32xf32>
    tpu.vector_store %arg6[%c0_6, %c0_7], %7 {strides = array<i32>} : memref<128x32xf32, #tpu.memory_space<vmem>>, vector<128x32xf32>,
    %c0_i32_8 = arith.constant 0 : i32
    %9 = arith.cmpi eq, %arg1, %c0_i32_8 : i32
    %10 = arith.extui %9 : i1 to i32
    %c0_i32_9 = arith.constant 0 : i32
    %11 = arith.cmpi ne, %10, %c0_i32_9 : i32
    scf.if %11 {
      %c0_10 = arith.constant 0 : index
      %c0_11 = arith.constant 0 : index
      %12 = vector.load %arg6[%c0_10, %c0_11] : memref<128x32xf32, #tpu.memory_space<vmem>>, vector<128x32xf32>
      %c0_12 = arith.constant 0 : index
      %c0_13 = arith.constant 0 : index
      %13 = vector.load %arg4[%c0_12, %c0_13] : memref<1x32xf32, #tpu.memory_space<vmem>>, vector<1x32xf32>
      %14 = vector.broadcast %13 : vector<1x32xf32> to vector<128x32xf32>
      %15 = arith.addf %12, %14 : vector<128x32xf32>
      %cst_14 = arith.constant 5.000000e-01 : f32
      %16 = vector.broadcast %cst_14 : f32 to vector<128x32xf32>
      %17 = arith.mulf %16, %15 : vector<128x32xf32>
      %cst_15 = arith.constant 4.471500e-02 : f32
      %18 = vector.broadcast %cst_15 : f32 to vector<128x32xf32>
      %19 = arith.mulf %18, %15 : vector<128x32xf32>
      %20 = arith.mulf %19, %15 : vector<128x32xf32>
      %21 = arith.mulf %20, %15 : vector<128x32xf32>
      %22 = arith.addf %15, %21 : vector<128x32xf32>
      %cst_16 = arith.constant 0.797884583 : f32
      %23 = vector.broadcast %cst_16 : f32 to vector<128x32xf32>
      %24 = arith.mulf %23, %22 : vector<128x32xf32>
      %25 = math.tanh %24 : vector<128x32xf32>
      %cst_17 = arith.constant 1.000000e+00 : f32
      %26 = vector.broadcast %cst_17 : f32 to vector<128x32xf32>
      %27 = arith.addf %26, %25 : vector<128x32xf32>
      %28 = arith.mulf %17, %27 : vector<128x32xf32>
      %29 = arith.truncf %28 : vector<128x32xf32> to vector<128x32xbf16>
      %c0_18 = arith.constant 0 : index
      %c0_19 = arith.constant 0 : index
      %30 = vector.load %arg5[%c0_18, %c0_19] : memref<128x32xbf16, #tpu.memory_space<vmem>>, vector<128x32xbf16>
      tpu.vector_store %arg5[%c0_18, %c0_19], %29 {strides = array<i32>} : memref<128x32xbf16, #tpu.memory_space<vmem>>, vector<128x32xbf16>,
    } else {
    }
    return
  }
  func.func @transform_0(%arg0: i32, %arg1: i32) -> (i32, i32) {
    %c0_i32 = arith.constant 0 : i32
    return %arg0, %arg1 : i32, i32
  }
  func.func @transform_1(%arg0: i32, %arg1: i32) -> (i32, i32) {
    %c0_i32 = arith.constant 0 : i32
    %c0_i32_0 = arith.constant 0 : i32
    return %arg1, %c0_i32 : i32, i32
  }
  func.func @transform_2(%arg0: i32, %arg1: i32) -> (i32, i32) {
    %c0_i32 = arith.constant 0 : i32
    %c0_i32_0 = arith.constant 0 : i32
    %c0_i32_1 = arith.constant 0 : i32
    return %c0_i32, %c0_i32_0 : i32, i32
  }
  func.func @transform_3(%arg0: i32, %arg1: i32) -> (i32, i32) {
    %c0_i32 = arith.constant 0 : i32
    %c0_i32_0 = arith.constant 0 : i32
    return %arg0, %c0_i32 : i32, i32
  }
}

module attributes {stable_mosaic.version = 11 : i64} {
  func.func @_tail_kernel(%arg0: i32, %arg1: memref<128x32xbf16, #tpu.memory_space<vmem>>, %arg2: memref<128x32xbf16, #tpu.memory_space<vmem>>, %arg3: memref<128x32xf32, #tpu.memory_space<vmem>>, %arg4: memref<32x32xbf16, #tpu.memory_space<vmem>>, %arg5: memref<1x32xf32, #tpu.memory_space<vmem>>, %arg6: memref<32x32xbf16, #tpu.memory_space<vmem>>, %arg7: memref<1x32xf32, #tpu.memory_space<vmem>>, %arg8: memref<32x32xbf16, #tpu.memory_space<vmem>>, %arg9: memref<32x32xbf16, #tpu.memory_space<vmem>>, %arg10: memref<1x32xf32, #tpu.memory_space<vmem>>, %arg11: memref<128x32xf32, #tpu.memory_space<vmem>>) attributes {dimension_semantics = [#tpu.dimension_semantics<parallel>], iteration_bounds = array<i64: 1>, scalar_prefetch = 0 : i64, scratch_operands = 0 : i64, tpu.core_type = #tpu.core_type<tc>, window_params = [{transform_indices = @transform_0, window_bounds = array<i64: 128, 32>}, {transform_indices = @transform_1, window_bounds = array<i64: 128, 32>}, {transform_indices = @transform_2, window_bounds = array<i64: 128, 32>}, {pipeline_mode = #tpu.pipeline_mode<synchronous>, transform_indices = @transform_3, window_bounds = array<i64: 32, 32>}, {pipeline_mode = #tpu.pipeline_mode<synchronous>, transform_indices = @transform_4, window_bounds = array<i64: 1, 32>}, {pipeline_mode = #tpu.pipeline_mode<synchronous>, transform_indices = @transform_5, window_bounds = array<i64: 32, 32>}, {pipeline_mode = #tpu.pipeline_mode<synchronous>, transform_indices = @transform_6, window_bounds = array<i64: 1, 32>}, {pipeline_mode = #tpu.pipeline_mode<synchronous>, transform_indices = @transform_7, window_bounds = array<i64: 32, 32>}, {pipeline_mode = #tpu.pipeline_mode<synchronous>, transform_indices = @transform_8, window_bounds = array<i64: 32, 32>}, {pipeline_mode = #tpu.pipeline_mode<synchronous>, transform_indices = @transform_9, window_bounds = array<i64: 1, 32>}, {transform_indices = @transform_10, window_bounds = array<i64: 128, 32>}]} {
    %c0 = arith.constant 0 : index
    %c0_0 = arith.constant 0 : index
    %0 = vector.load %arg1[%c0, %c0_0] : memref<128x32xbf16, #tpu.memory_space<vmem>>, vector<128x32xbf16>
    %c0_1 = arith.constant 0 : index
    %c0_2 = arith.constant 0 : index
    %1 = vector.load %arg4[%c0_1, %c0_2] : memref<32x32xbf16, #tpu.memory_space<vmem>>, vector<32x32xbf16>
    %cst = arith.constant dense<0.000000e+00> : vector<128x32xf32>
    %2 = tpu.matmul %0, %1, %cst {dimension_numbers = #tpu.dot_dimension_numbers<[1], [0], [0], [1], [0, 0, 1, 1], [], []>} : vector<128x32xbf16>, vector<32x32xbf16>, vector<128x32xf32> -> vector<128x32xf32>
    %c0_3 = arith.constant 0 : index
    %c0_4 = arith.constant 0 : index
    %3 = vector.load %arg5[%c0_3, %c0_4] : memref<1x32xf32, #tpu.memory_space<vmem>>, vector<1x32xf32>
    %4 = vector.broadcast %3 : vector<1x32xf32> to vector<128x32xf32>
    %5 = arith.addf %2, %4 : vector<128x32xf32>
    %cst_5 = arith.constant 5.000000e-01 : f32
    %6 = vector.broadcast %cst_5 : f32 to vector<128x32xf32>
    %7 = arith.mulf %6, %5 : vector<128x32xf32>
    %cst_6 = arith.constant 4.471500e-02 : f32
    %8 = vector.broadcast %cst_6 : f32 to vector<128x32xf32>
    %9 = arith.mulf %8, %5 : vector<128x32xf32>
    %10 = arith.mulf %9, %5 : vector<128x32xf32>
    %11 = arith.mulf %10, %5 : vector<128x32xf32>
    %12 = arith.addf %5, %11 : vector<128x32xf32>
    %cst_7 = arith.constant 0.797884583 : f32
    %13 = vector.broadcast %cst_7 : f32 to vector<128x32xf32>
    %14 = arith.mulf %13, %12 : vector<128x32xf32>
    %15 = math.tanh %14 : vector<128x32xf32>
    %cst_8 = arith.constant 1.000000e+00 : f32
    %16 = vector.broadcast %cst_8 : f32 to vector<128x32xf32>
    %17 = arith.addf %16, %15 : vector<128x32xf32>
    %18 = arith.mulf %7, %17 : vector<128x32xf32>
    %19 = arith.truncf %18 : vector<128x32xf32> to vector<128x32xbf16>
    %c0_9 = arith.constant 0 : index
    %c0_10 = arith.constant 0 : index
    %20 = vector.load %arg6[%c0_9, %c0_10] : memref<32x32xbf16, #tpu.memory_space<vmem>>, vector<32x32xbf16>
    %cst_11 = arith.constant dense<0.000000e+00> : vector<128x32xf32>
    %21 = tpu.matmul %19, %20, %cst_11 {dimension_numbers = #tpu.dot_dimension_numbers<[1], [0], [0], [1], [0, 0, 1, 1], [], []>} : vector<128x32xbf16>, vector<32x32xbf16>, vector<128x32xf32> -> vector<128x32xf32>
    %c0_12 = arith.constant 0 : index
    %c0_13 = arith.constant 0 : index
    %22 = vector.load %arg7[%c0_12, %c0_13] : memref<1x32xf32, #tpu.memory_space<vmem>>, vector<1x32xf32>
    %23 = vector.broadcast %22 : vector<1x32xf32> to vector<128x32xf32>
    %24 = arith.addf %21, %23 : vector<128x32xf32>
    %cst_14 = arith.constant 5.000000e-01 : f32
    %25 = vector.broadcast %cst_14 : f32 to vector<128x32xf32>
    %26 = arith.mulf %25, %24 : vector<128x32xf32>
    %cst_15 = arith.constant 4.471500e-02 : f32
    %27 = vector.broadcast %cst_15 : f32 to vector<128x32xf32>
    %28 = arith.mulf %27, %24 : vector<128x32xf32>
    %29 = arith.mulf %28, %24 : vector<128x32xf32>
    %30 = arith.mulf %29, %24 : vector<128x32xf32>
    %31 = arith.addf %24, %30 : vector<128x32xf32>
    %cst_16 = arith.constant 0.797884583 : f32
    %32 = vector.broadcast %cst_16 : f32 to vector<128x32xf32>
    %33 = arith.mulf %32, %31 : vector<128x32xf32>
    %34 = math.tanh %33 : vector<128x32xf32>
    %cst_17 = arith.constant 1.000000e+00 : f32
    %35 = vector.broadcast %cst_17 : f32 to vector<128x32xf32>
    %36 = arith.addf %35, %34 : vector<128x32xf32>
    %37 = arith.mulf %26, %36 : vector<128x32xf32>
    %38 = arith.truncf %37 : vector<128x32xf32> to vector<128x32xbf16>
    %c0_18 = arith.constant 0 : index
    %c0_19 = arith.constant 0 : index
    %39 = vector.load %arg8[%c0_18, %c0_19] : memref<32x32xbf16, #tpu.memory_space<vmem>>, vector<32x32xbf16>
    %cst_20 = arith.constant dense<0.000000e+00> : vector<128x32xf32>
    %40 = tpu.matmul %38, %39, %cst_20 {dimension_numbers = #tpu.dot_dimension_numbers<[1], [0], [0], [1], [0, 0, 1, 1], [], []>} : vector<128x32xbf16>, vector<32x32xbf16>, vector<128x32xf32> -> vector<128x32xf32>
    %c0_21 = arith.constant 0 : index
    %c0_22 = arith.constant 0 : index
    %41 = vector.load %arg2[%c0_21, %c0_22] : memref<128x32xbf16, #tpu.memory_space<vmem>>, vector<128x32xbf16>
    %c0_23 = arith.constant 0 : index
    %c0_24 = arith.constant 0 : index
    %42 = vector.load %arg9[%c0_23, %c0_24] : memref<32x32xbf16, #tpu.memory_space<vmem>>, vector<32x32xbf16>
    %cst_25 = arith.constant dense<0.000000e+00> : vector<128x32xf32>
    %43 = tpu.matmul %41, %42, %cst_25 {dimension_numbers = #tpu.dot_dimension_numbers<[1], [0], [0], [1], [0, 0, 1, 1], [], []>} : vector<128x32xbf16>, vector<32x32xbf16>, vector<128x32xf32> -> vector<128x32xf32>
    %44 = arith.addf %40, %43 : vector<128x32xf32>
    %c0_26 = arith.constant 0 : index
    %c0_27 = arith.constant 0 : index
    %45 = vector.load %arg10[%c0_26, %c0_27] : memref<1x32xf32, #tpu.memory_space<vmem>>, vector<1x32xf32>
    %46 = vector.broadcast %45 : vector<1x32xf32> to vector<128x32xf32>
    %47 = arith.addf %44, %46 : vector<128x32xf32>
    %cst_28 = arith.constant 5.000000e-01 : f32
    %48 = vector.broadcast %cst_28 : f32 to vector<128x32xf32>
    %49 = arith.mulf %48, %47 : vector<128x32xf32>
    %cst_29 = arith.constant 4.471500e-02 : f32
    %50 = vector.broadcast %cst_29 : f32 to vector<128x32xf32>
    %51 = arith.mulf %50, %47 : vector<128x32xf32>
    %52 = arith.mulf %51, %47 : vector<128x32xf32>
    %53 = arith.mulf %52, %47 : vector<128x32xf32>
    %54 = arith.addf %47, %53 : vector<128x32xf32>
    %cst_30 = arith.constant 0.797884583 : f32
    %55 = vector.broadcast %cst_30 : f32 to vector<128x32xf32>
    %56 = arith.mulf %55, %54 : vector<128x32xf32>
    %57 = math.tanh %56 : vector<128x32xf32>
    %cst_31 = arith.constant 1.000000e+00 : f32
    %58 = vector.broadcast %cst_31 : f32 to vector<128x32xf32>
    %59 = arith.addf %58, %57 : vector<128x32xf32>
    %60 = arith.mulf %49, %59 : vector<128x32xf32>
    %c0_32 = arith.constant 0 : index
    %c0_33 = arith.constant 0 : index
    %61 = vector.load %arg3[%c0_32, %c0_33] : memref<128x32xf32, #tpu.memory_space<vmem>>, vector<128x32xf32>
    %62 = arith.addf %60, %61 : vector<128x32xf32>
    %c0_34 = arith.constant 0 : index
    %c0_35 = arith.constant 0 : index
    %63 = vector.load %arg11[%c0_34, %c0_35] : memref<128x32xf32, #tpu.memory_space<vmem>>, vector<128x32xf32>
    tpu.vector_store %arg11[%c0_34, %c0_35], %62 {strides = array<i32>} : memref<128x32xf32, #tpu.memory_space<vmem>>, vector<128x32xf32>,
    return
  }
  func.func @transform_0(%arg0: i32) -> (i32, i32) {
    %c0_i32 = arith.constant 0 : i32
    %c0_i32_0 = arith.constant 0 : i32
    return %arg0, %c0_i32 : i32, i32
  }
  func.func @transform_1(%arg0: i32) -> (i32, i32) {
    %c0_i32 = arith.constant 0 : i32
    %c0_i32_0 = arith.constant 0 : i32
    return %arg0, %c0_i32 : i32, i32
  }
  func.func @transform_2(%arg0: i32) -> (i32, i32) {
    %c0_i32 = arith.constant 0 : i32
    %c0_i32_0 = arith.constant 0 : i32
    return %arg0, %c0_i32 : i32, i32
  }
  func.func @transform_3(%arg0: i32) -> (i32, i32) {
    %c0_i32 = arith.constant 0 : i32
    %c0_i32_0 = arith.constant 0 : i32
    %c0_i32_1 = arith.constant 0 : i32
    return %c0_i32, %c0_i32_0 : i32, i32
  }
  func.func @transform_4(%arg0: i32) -> (i32, i32) {
    %c0_i32 = arith.constant 0 : i32
    %c0_i32_0 = arith.constant 0 : i32
    %c0_i32_1 = arith.constant 0 : i32
    return %c0_i32, %c0_i32_0 : i32, i32
  }
  func.func @transform_5(%arg0: i32) -> (i32, i32) {
    %c0_i32 = arith.constant 0 : i32
    %c0_i32_0 = arith.constant 0 : i32
    %c0_i32_1 = arith.constant 0 : i32
    return %c0_i32, %c0_i32_0 : i32, i32
  }
  func.func @transform_6(%arg0: i32) -> (i32, i32) {
    %c0_i32 = arith.constant 0 : i32
    %c0_i32_0 = arith.constant 0 : i32
    %c0_i32_1 = arith.constant 0 : i32
    return %c0_i32, %c0_i32_0 : i32, i32
  }
  func.func @transform_7(%arg0: i32) -> (i32, i32) {
    %c0_i32 = arith.constant 0 : i32
    %c0_i32_0 = arith.constant 0 : i32
    %c0_i32_1 = arith.constant 0 : i32
    return %c0_i32, %c0_i32_0 : i32, i32
  }
  func.func @transform_8(%arg0: i32) -> (i32, i32) {
    %c0_i32 = arith.constant 0 : i32
    %c0_i32_0 = arith.constant 0 : i32
    %c0_i32_1 = arith.constant 0 : i32
    return %c0_i32, %c0_i32_0 : i32, i32
  }
  func.func @transform_9(%arg0: i32) -> (i32, i32) {
    %c0_i32 = arith.constant 0 : i32
    %c0_i32_0 = arith.constant 0 : i32
    %c0_i32_1 = arith.constant 0 : i32
    return %c0_i32, %c0_i32_0 : i32, i32
  }
  func.func @transform_10(%arg0: i32) -> (i32, i32) {
    %c0_i32 = arith.constant 0 : i32
    %c0_i32_0 = arith.constant 0 : i32
    return %arg0, %c0_i32 : i32, i32
  }
}

module attributes {stable_mosaic.version = 11 : i64} {
  func.func @_dwtaps_kernel(%arg0: i32, %arg1: memref<54x32x128xbf16, #tpu.memory_space<vmem>>, %arg2: memref<54x128xf32, #tpu.memory_space<vmem>>, %arg3: memref<1x128xf32, #tpu.memory_space<vmem>>, %arg4: memref<32x128xbf16, #tpu.memory_space<vmem>>) attributes {dimension_semantics = [#tpu.dimension_semantics<parallel>], iteration_bounds = array<i64: 1>, scalar_prefetch = 0 : i64, scratch_operands = 0 : i64, tpu.core_type = #tpu.core_type<tc>, window_params = [{transform_indices = @transform_0, window_bounds = array<i64: 54, 32, 128>}, {pipeline_mode = #tpu.pipeline_mode<synchronous>, transform_indices = @transform_1, window_bounds = array<i64: 54, 128>}, {pipeline_mode = #tpu.pipeline_mode<synchronous>, transform_indices = @transform_2, window_bounds = array<i64: 1, 128>}, {transform_indices = @transform_3, window_bounds = array<i64: 32, 128>}]} {
    %c0 = arith.constant 0 : index
    %c0_0 = arith.constant 0 : index
    %0 = vector.load %arg2[%c0, %c0_0] : memref<54x128xf32, #tpu.memory_space<vmem>>, vector<54x128xf32>
    %cst = arith.constant 0.000000e+00 : f32
    %1 = vector.broadcast %cst : f32 to vector<32x128xf32>
    %c0_1 = arith.constant 0 : index
    %c0_2 = arith.constant 0 : index
    %c0_3 = arith.constant 0 : index
    %2 = vector.load %arg1[%c0_1, %c0_2, %c0_3] : memref<54x32x128xbf16, #tpu.memory_space<vmem>>, vector<1x32x128xbf16>
    %3 = vector.shape_cast %2 : vector<1x32x128xbf16> to vector<32x128xbf16>
    %4 = arith.extf %3 : vector<32x128xbf16> to vector<32x128xf32>
    %5 = vector.extract_strided_slice %0 {offsets = [0, 0], sizes = [1, 128], strides = [1, 1]} : vector<54x128xf32> to vector<1x128xf32>
    %6 = vector.shape_cast %5 : vector<1x128xf32> to vector<128xf32>
    %7 = vector.shape_cast %6 : vector<128xf32> to vector<1x128xf32>
    %8 = vector.broadcast %7 : vector<1x128xf32> to vector<32x128xf32>
    %9 = arith.mulf %4, %8 : vector<32x128xf32>
    %10 = arith.addf %1, %9 : vector<32x128xf32>
    %c1 = arith.constant 1 : index
    %c0_4 = arith.constant 0 : index
    %c0_5 = arith.constant 0 : index
    %11 = vector.load %arg1[%c1, %c0_4, %c0_5] : memref<54x32x128xbf16, #tpu.memory_space<vmem>>, vector<1x32x128xbf16>
    %12 = vector.shape_cast %11 : vector<1x32x128xbf16> to vector<32x128xbf16>
    %13 = arith.extf %12 : vector<32x128xbf16> to vector<32x128xf32>
    %14 = vector.extract_strided_slice %0 {offsets = [1, 0], sizes = [1, 128], strides = [1, 1]} : vector<54x128xf32> to vector<1x128xf32>
    %15 = vector.shape_cast %14 : vector<1x128xf32> to vector<128xf32>
    %16 = vector.shape_cast %15 : vector<128xf32> to vector<1x128xf32>
    %17 = vector.broadcast %16 : vector<1x128xf32> to vector<32x128xf32>
    %18 = arith.mulf %13, %17 : vector<32x128xf32>
    %19 = arith.addf %10, %18 : vector<32x128xf32>
    %c2 = arith.constant 2 : index
    %c0_6 = arith.constant 0 : index
    %c0_7 = arith.constant 0 : index
    %20 = vector.load %arg1[%c2, %c0_6, %c0_7] : memref<54x32x128xbf16, #tpu.memory_space<vmem>>, vector<1x32x128xbf16>
    %21 = vector.shape_cast %20 : vector<1x32x128xbf16> to vector<32x128xbf16>
    %22 = arith.extf %21 : vector<32x128xbf16> to vector<32x128xf32>
    %23 = vector.extract_strided_slice %0 {offsets = [2, 0], sizes = [1, 128], strides = [1, 1]} : vector<54x128xf32> to vector<1x128xf32>
    %24 = vector.shape_cast %23 : vector<1x128xf32> to vector<128xf32>
    %25 = vector.shape_cast %24 : vector<128xf32> to vector<1x128xf32>
    %26 = vector.broadcast %25 : vector<1x128xf32> to vector<32x128xf32>
    %27 = arith.mulf %22, %26 : vector<32x128xf32>
    %28 = arith.addf %19, %27 : vector<32x128xf32>
    %c3 = arith.constant 3 : index
    %c0_8 = arith.constant 0 : index
    %c0_9 = arith.constant 0 : index
    %29 = vector.load %arg1[%c3, %c0_8, %c0_9] : memref<54x32x128xbf16, #tpu.memory_space<vmem>>, vector<1x32x128xbf16>
    %30 = vector.shape_cast %29 : vector<1x32x128xbf16> to vector<32x128xbf16>
    %31 = arith.extf %30 : vector<32x128xbf16> to vector<32x128xf32>
    %32 = vector.extract_strided_slice %0 {offsets = [3, 0], sizes = [1, 128], strides = [1, 1]} : vector<54x128xf32> to vector<1x128xf32>
    %33 = vector.shape_cast %32 : vector<1x128xf32> to vector<128xf32>
    %34 = vector.shape_cast %33 : vector<128xf32> to vector<1x128xf32>
    %35 = vector.broadcast %34 : vector<1x128xf32> to vector<32x128xf32>
    %36 = arith.mulf %31, %35 : vector<32x128xf32>
    %37 = arith.addf %28, %36 : vector<32x128xf32>
    %c4 = arith.constant 4 : index
    %c0_10 = arith.constant 0 : index
    %c0_11 = arith.constant 0 : index
    %38 = vector.load %arg1[%c4, %c0_10, %c0_11] : memref<54x32x128xbf16, #tpu.memory_space<vmem>>, vector<1x32x128xbf16>
    %39 = vector.shape_cast %38 : vector<1x32x128xbf16> to vector<32x128xbf16>
    %40 = arith.extf %39 : vector<32x128xbf16> to vector<32x128xf32>
    %41 = vector.extract_strided_slice %0 {offsets = [4, 0], sizes = [1, 128], strides = [1, 1]} : vector<54x128xf32> to vector<1x128xf32>
    %42 = vector.shape_cast %41 : vector<1x128xf32> to vector<128xf32>
    %43 = vector.shape_cast %42 : vector<128xf32> to vector<1x128xf32>
    %44 = vector.broadcast %43 : vector<1x128xf32> to vector<32x128xf32>
    %45 = arith.mulf %40, %44 : vector<32x128xf32>
    %46 = arith.addf %37, %45 : vector<32x128xf32>
    %c5 = arith.constant 5 : index
    %c0_12 = arith.constant 0 : index
    %c0_13 = arith.constant 0 : index
    %47 = vector.load %arg1[%c5, %c0_12, %c0_13] : memref<54x32x128xbf16, #tpu.memory_space<vmem>>, vector<1x32x128xbf16>
    %48 = vector.shape_cast %47 : vector<1x32x128xbf16> to vector<32x128xbf16>
    %49 = arith.extf %48 : vector<32x128xbf16> to vector<32x128xf32>
    %50 = vector.extract_strided_slice %0 {offsets = [5, 0], sizes = [1, 128], strides = [1, 1]} : vector<54x128xf32> to vector<1x128xf32>
    %51 = vector.shape_cast %50 : vector<1x128xf32> to vector<128xf32>
    %52 = vector.shape_cast %51 : vector<128xf32> to vector<1x128xf32>
    %53 = vector.broadcast %52 : vector<1x128xf32> to vector<32x128xf32>
    %54 = arith.mulf %49, %53 : vector<32x128xf32>
    %55 = arith.addf %46, %54 : vector<32x128xf32>
    %c6 = arith.constant 6 : index
    %c0_14 = arith.constant 0 : index
    %c0_15 = arith.constant 0 : index
    %56 = vector.load %arg1[%c6, %c0_14, %c0_15] : memref<54x32x128xbf16, #tpu.memory_space<vmem>>, vector<1x32x128xbf16>
    %57 = vector.shape_cast %56 : vector<1x32x128xbf16> to vector<32x128xbf16>
    %58 = arith.extf %57 : vector<32x128xbf16> to vector<32x128xf32>
    %59 = vector.extract_strided_slice %0 {offsets = [6, 0], sizes = [1, 128], strides = [1, 1]} : vector<54x128xf32> to vector<1x128xf32>
    %60 = vector.shape_cast %59 : vector<1x128xf32> to vector<128xf32>
    %61 = vector.shape_cast %60 : vector<128xf32> to vector<1x128xf32>
    %62 = vector.broadcast %61 : vector<1x128xf32> to vector<32x128xf32>
    %63 = arith.mulf %58, %62 : vector<32x128xf32>
    %64 = arith.addf %55, %63 : vector<32x128xf32>
    %c7 = arith.constant 7 : index
    %c0_16 = arith.constant 0 : index
    %c0_17 = arith.constant 0 : index
    %65 = vector.load %arg1[%c7, %c0_16, %c0_17] : memref<54x32x128xbf16, #tpu.memory_space<vmem>>, vector<1x32x128xbf16>
    %66 = vector.shape_cast %65 : vector<1x32x128xbf16> to vector<32x128xbf16>
    %67 = arith.extf %66 : vector<32x128xbf16> to vector<32x128xf32>
    %68 = vector.extract_strided_slice %0 {offsets = [7, 0], sizes = [1, 128], strides = [1, 1]} : vector<54x128xf32> to vector<1x128xf32>
    %69 = vector.shape_cast %68 : vector<1x128xf32> to vector<128xf32>
    %70 = vector.shape_cast %69 : vector<128xf32> to vector<1x128xf32>
    %71 = vector.broadcast %70 : vector<1x128xf32> to vector<32x128xf32>
    %72 = arith.mulf %67, %71 : vector<32x128xf32>
    %73 = arith.addf %64, %72 : vector<32x128xf32>
    %c8 = arith.constant 8 : index
    %c0_18 = arith.constant 0 : index
    %c0_19 = arith.constant 0 : index
    %74 = vector.load %arg1[%c8, %c0_18, %c0_19] : memref<54x32x128xbf16, #tpu.memory_space<vmem>>, vector<1x32x128xbf16>
    %75 = vector.shape_cast %74 : vector<1x32x128xbf16> to vector<32x128xbf16>
    %76 = arith.extf %75 : vector<32x128xbf16> to vector<32x128xf32>
    %77 = vector.extract_strided_slice %0 {offsets = [8, 0], sizes = [1, 128], strides = [1, 1]} : vector<54x128xf32> to vector<1x128xf32>
    %78 = vector.shape_cast %77 : vector<1x128xf32> to vector<128xf32>
    %79 = vector.shape_cast %78 : vector<128xf32> to vector<1x128xf32>
    %80 = vector.broadcast %79 : vector<1x128xf32> to vector<32x128xf32>
    %81 = arith.mulf %76, %80 : vector<32x128xf32>
    %82 = arith.addf %73, %81 : vector<32x128xf32>
    %c9 = arith.constant 9 : index
    %c0_20 = arith.constant 0 : index
    %c0_21 = arith.constant 0 : index
    %83 = vector.load %arg1[%c9, %c0_20, %c0_21] : memref<54x32x128xbf16, #tpu.memory_space<vmem>>, vector<1x32x128xbf16>
    %84 = vector.shape_cast %83 : vector<1x32x128xbf16> to vector<32x128xbf16>
    %85 = arith.extf %84 : vector<32x128xbf16> to vector<32x128xf32>
    %86 = vector.extract_strided_slice %0 {offsets = [9, 0], sizes = [1, 128], strides = [1, 1]} : vector<54x128xf32> to vector<1x128xf32>
    %87 = vector.shape_cast %86 : vector<1x128xf32> to vector<128xf32>
    %88 = vector.shape_cast %87 : vector<128xf32> to vector<1x128xf32>
    %89 = vector.broadcast %88 : vector<1x128xf32> to vector<32x128xf32>
    %90 = arith.mulf %85, %89 : vector<32x128xf32>
    %91 = arith.addf %82, %90 : vector<32x128xf32>
    %c10 = arith.constant 10 : index
    %c0_22 = arith.constant 0 : index
    %c0_23 = arith.constant 0 : index
    %92 = vector.load %arg1[%c10, %c0_22, %c0_23] : memref<54x32x128xbf16, #tpu.memory_space<vmem>>, vector<1x32x128xbf16>
    %93 = vector.shape_cast %92 : vector<1x32x128xbf16> to vector<32x128xbf16>
    %94 = arith.extf %93 : vector<32x128xbf16> to vector<32x128xf32>
    %95 = vector.extract_strided_slice %0 {offsets = [10, 0], sizes = [1, 128], strides = [1, 1]} : vector<54x128xf32> to vector<1x128xf32>
    %96 = vector.shape_cast %95 : vector<1x128xf32> to vector<128xf32>
    %97 = vector.shape_cast %96 : vector<128xf32> to vector<1x128xf32>
    %98 = vector.broadcast %97 : vector<1x128xf32> to vector<32x128xf32>
    %99 = arith.mulf %94, %98 : vector<32x128xf32>
    %100 = arith.addf %91, %99 : vector<32x128xf32>
    %c11 = arith.constant 11 : index
    %c0_24 = arith.constant 0 : index
    %c0_25 = arith.constant 0 : index
    %101 = vector.load %arg1[%c11, %c0_24, %c0_25] : memref<54x32x128xbf16, #tpu.memory_space<vmem>>, vector<1x32x128xbf16>
    %102 = vector.shape_cast %101 : vector<1x32x128xbf16> to vector<32x128xbf16>
    %103 = arith.extf %102 : vector<32x128xbf16> to vector<32x128xf32>
    %104 = vector.extract_strided_slice %0 {offsets = [11, 0], sizes = [1, 128], strides = [1, 1]} : vector<54x128xf32> to vector<1x128xf32>
    %105 = vector.shape_cast %104 : vector<1x128xf32> to vector<128xf32>
    %106 = vector.shape_cast %105 : vector<128xf32> to vector<1x128xf32>
    %107 = vector.broadcast %106 : vector<1x128xf32> to vector<32x128xf32>
    %108 = arith.mulf %103, %107 : vector<32x128xf32>
    %109 = arith.addf %100, %108 : vector<32x128xf32>
    %c12 = arith.constant 12 : index
    %c0_26 = arith.constant 0 : index
    %c0_27 = arith.constant 0 : index
    %110 = vector.load %arg1[%c12, %c0_26, %c0_27] : memref<54x32x128xbf16, #tpu.memory_space<vmem>>, vector<1x32x128xbf16>
    %111 = vector.shape_cast %110 : vector<1x32x128xbf16> to vector<32x128xbf16>
    %112 = arith.extf %111 : vector<32x128xbf16> to vector<32x128xf32>
    %113 = vector.extract_strided_slice %0 {offsets = [12, 0], sizes = [1, 128], strides = [1, 1]} : vector<54x128xf32> to vector<1x128xf32>
    %114 = vector.shape_cast %113 : vector<1x128xf32> to vector<128xf32>
    %115 = vector.shape_cast %114 : vector<128xf32> to vector<1x128xf32>
    %116 = vector.broadcast %115 : vector<1x128xf32> to vector<32x128xf32>
    %117 = arith.mulf %112, %116 : vector<32x128xf32>
    %118 = arith.addf %109, %117 : vector<32x128xf32>
    %c13 = arith.constant 13 : index
    %c0_28 = arith.constant 0 : index
    %c0_29 = arith.constant 0 : index
    %119 = vector.load %arg1[%c13, %c0_28, %c0_29] : memref<54x32x128xbf16, #tpu.memory_space<vmem>>, vector<1x32x128xbf16>
    %120 = vector.shape_cast %119 : vector<1x32x128xbf16> to vector<32x128xbf16>
    %121 = arith.extf %120 : vector<32x128xbf16> to vector<32x128xf32>
    %122 = vector.extract_strided_slice %0 {offsets = [13, 0], sizes = [1, 128], strides = [1, 1]} : vector<54x128xf32> to vector<1x128xf32>
    %123 = vector.shape_cast %122 : vector<1x128xf32> to vector<128xf32>
    %124 = vector.shape_cast %123 : vector<128xf32> to vector<1x128xf32>
    %125 = vector.broadcast %124 : vector<1x128xf32> to vector<32x128xf32>
    %126 = arith.mulf %121, %125 : vector<32x128xf32>
    %127 = arith.addf %118, %126 : vector<32x128xf32>
    %c14 = arith.constant 14 : index
    %c0_30 = arith.constant 0 : index
    %c0_31 = arith.constant 0 : index
    %128 = vector.load %arg1[%c14, %c0_30, %c0_31] : memref<54x32x128xbf16, #tpu.memory_space<vmem>>, vector<1x32x128xbf16>
    %129 = vector.shape_cast %128 : vector<1x32x128xbf16> to vector<32x128xbf16>
    %130 = arith.extf %129 : vector<32x128xbf16> to vector<32x128xf32>
    %131 = vector.extract_strided_slice %0 {offsets = [14, 0], sizes = [1, 128], strides = [1, 1]} : vector<54x128xf32> to vector<1x128xf32>
    %132 = vector.shape_cast %131 : vector<1x128xf32> to vector<128xf32>
    %133 = vector.shape_cast %132 : vector<128xf32> to vector<1x128xf32>
    %134 = vector.broadcast %133 : vector<1x128xf32> to vector<32x128xf32>
    %135 = arith.mulf %130, %134 : vector<32x128xf32>
    %136 = arith.addf %127, %135 : vector<32x128xf32>
    %c15 = arith.constant 15 : index
    %c0_32 = arith.constant 0 : index
    %c0_33 = arith.constant 0 : index
    %137 = vector.load %arg1[%c15, %c0_32, %c0_33] : memref<54x32x128xbf16, #tpu.memory_space<vmem>>, vector<1x32x128xbf16>
    %138 = vector.shape_cast %137 : vector<1x32x128xbf16> to vector<32x128xbf16>
    %139 = arith.extf %138 : vector<32x128xbf16> to vector<32x128xf32>
    %140 = vector.extract_strided_slice %0 {offsets = [15, 0], sizes = [1, 128], strides = [1, 1]} : vector<54x128xf32> to vector<1x128xf32>
    %141 = vector.shape_cast %140 : vector<1x128xf32> to vector<128xf32>
    %142 = vector.shape_cast %141 : vector<128xf32> to vector<1x128xf32>
    %143 = vector.broadcast %142 : vector<1x128xf32> to vector<32x128xf32>
    %144 = arith.mulf %139, %143 : vector<32x128xf32>
    %145 = arith.addf %136, %144 : vector<32x128xf32>
    %c16 = arith.constant 16 : index
    %c0_34 = arith.constant 0 : index
    %c0_35 = arith.constant 0 : index
    %146 = vector.load %arg1[%c16, %c0_34, %c0_35] : memref<54x32x128xbf16, #tpu.memory_space<vmem>>, vector<1x32x128xbf16>
    %147 = vector.shape_cast %146 : vector<1x32x128xbf16> to vector<32x128xbf16>
    %148 = arith.extf %147 : vector<32x128xbf16> to vector<32x128xf32>
    %149 = vector.extract_strided_slice %0 {offsets = [16, 0], sizes = [1, 128], strides = [1, 1]} : vector<54x128xf32> to vector<1x128xf32>
    %150 = vector.shape_cast %149 : vector<1x128xf32> to vector<128xf32>
    %151 = vector.shape_cast %150 : vector<128xf32> to vector<1x128xf32>
    %152 = vector.broadcast %151 : vector<1x128xf32> to vector<32x128xf32>
    %153 = arith.mulf %148, %152 : vector<32x128xf32>
    %154 = arith.addf %145, %153 : vector<32x128xf32>
    %c17 = arith.constant 17 : index
    %c0_36 = arith.constant 0 : index
    %c0_37 = arith.constant 0 : index
    %155 = vector.load %arg1[%c17, %c0_36, %c0_37] : memref<54x32x128xbf16, #tpu.memory_space<vmem>>, vector<1x32x128xbf16>
    %156 = vector.shape_cast %155 : vector<1x32x128xbf16> to vector<32x128xbf16>
    %157 = arith.extf %156 : vector<32x128xbf16> to vector<32x128xf32>
    %158 = vector.extract_strided_slice %0 {offsets = [17, 0], sizes = [1, 128], strides = [1, 1]} : vector<54x128xf32> to vector<1x128xf32>
    %159 = vector.shape_cast %158 : vector<1x128xf32> to vector<128xf32>
    %160 = vector.shape_cast %159 : vector<128xf32> to vector<1x128xf32>
    %161 = vector.broadcast %160 : vector<1x128xf32> to vector<32x128xf32>
    %162 = arith.mulf %157, %161 : vector<32x128xf32>
    %163 = arith.addf %154, %162 : vector<32x128xf32>
    %c18 = arith.constant 18 : index
    %c0_38 = arith.constant 0 : index
    %c0_39 = arith.constant 0 : index
    %164 = vector.load %arg1[%c18, %c0_38, %c0_39] : memref<54x32x128xbf16, #tpu.memory_space<vmem>>, vector<1x32x128xbf16>
    %165 = vector.shape_cast %164 : vector<1x32x128xbf16> to vector<32x128xbf16>
    %166 = arith.extf %165 : vector<32x128xbf16> to vector<32x128xf32>
    %167 = vector.extract_strided_slice %0 {offsets = [18, 0], sizes = [1, 128], strides = [1, 1]} : vector<54x128xf32> to vector<1x128xf32>
    %168 = vector.shape_cast %167 : vector<1x128xf32> to vector<128xf32>
    %169 = vector.shape_cast %168 : vector<128xf32> to vector<1x128xf32>
    %170 = vector.broadcast %169 : vector<1x128xf32> to vector<32x128xf32>
    %171 = arith.mulf %166, %170 : vector<32x128xf32>
    %172 = arith.addf %163, %171 : vector<32x128xf32>
    %c19 = arith.constant 19 : index
    %c0_40 = arith.constant 0 : index
    %c0_41 = arith.constant 0 : index
    %173 = vector.load %arg1[%c19, %c0_40, %c0_41] : memref<54x32x128xbf16, #tpu.memory_space<vmem>>, vector<1x32x128xbf16>
    %174 = vector.shape_cast %173 : vector<1x32x128xbf16> to vector<32x128xbf16>
    %175 = arith.extf %174 : vector<32x128xbf16> to vector<32x128xf32>
    %176 = vector.extract_strided_slice %0 {offsets = [19, 0], sizes = [1, 128], strides = [1, 1]} : vector<54x128xf32> to vector<1x128xf32>
    %177 = vector.shape_cast %176 : vector<1x128xf32> to vector<128xf32>
    %178 = vector.shape_cast %177 : vector<128xf32> to vector<1x128xf32>
    %179 = vector.broadcast %178 : vector<1x128xf32> to vector<32x128xf32>
    %180 = arith.mulf %175, %179 : vector<32x128xf32>
    %181 = arith.addf %172, %180 : vector<32x128xf32>
    %c20 = arith.constant 20 : index
    %c0_42 = arith.constant 0 : index
    %c0_43 = arith.constant 0 : index
    %182 = vector.load %arg1[%c20, %c0_42, %c0_43] : memref<54x32x128xbf16, #tpu.memory_space<vmem>>, vector<1x32x128xbf16>
    %183 = vector.shape_cast %182 : vector<1x32x128xbf16> to vector<32x128xbf16>
    %184 = arith.extf %183 : vector<32x128xbf16> to vector<32x128xf32>
    %185 = vector.extract_strided_slice %0 {offsets = [20, 0], sizes = [1, 128], strides = [1, 1]} : vector<54x128xf32> to vector<1x128xf32>
    %186 = vector.shape_cast %185 : vector<1x128xf32> to vector<128xf32>
    %187 = vector.shape_cast %186 : vector<128xf32> to vector<1x128xf32>
    %188 = vector.broadcast %187 : vector<1x128xf32> to vector<32x128xf32>
    %189 = arith.mulf %184, %188 : vector<32x128xf32>
    %190 = arith.addf %181, %189 : vector<32x128xf32>
    %c21 = arith.constant 21 : index
    %c0_44 = arith.constant 0 : index
    %c0_45 = arith.constant 0 : index
    %191 = vector.load %arg1[%c21, %c0_44, %c0_45] : memref<54x32x128xbf16, #tpu.memory_space<vmem>>, vector<1x32x128xbf16>
    %192 = vector.shape_cast %191 : vector<1x32x128xbf16> to vector<32x128xbf16>
    %193 = arith.extf %192 : vector<32x128xbf16> to vector<32x128xf32>
    %194 = vector.extract_strided_slice %0 {offsets = [21, 0], sizes = [1, 128], strides = [1, 1]} : vector<54x128xf32> to vector<1x128xf32>
    %195 = vector.shape_cast %194 : vector<1x128xf32> to vector<128xf32>
    %196 = vector.shape_cast %195 : vector<128xf32> to vector<1x128xf32>
    %197 = vector.broadcast %196 : vector<1x128xf32> to vector<32x128xf32>
    %198 = arith.mulf %193, %197 : vector<32x128xf32>
    %199 = arith.addf %190, %198 : vector<32x128xf32>
    %c22 = arith.constant 22 : index
    %c0_46 = arith.constant 0 : index
    %c0_47 = arith.constant 0 : index
    %200 = vector.load %arg1[%c22, %c0_46, %c0_47] : memref<54x32x128xbf16, #tpu.memory_space<vmem>>, vector<1x32x128xbf16>
    %201 = vector.shape_cast %200 : vector<1x32x128xbf16> to vector<32x128xbf16>
    %202 = arith.extf %201 : vector<32x128xbf16> to vector<32x128xf32>
    %203 = vector.extract_strided_slice %0 {offsets = [22, 0], sizes = [1, 128], strides = [1, 1]} : vector<54x128xf32> to vector<1x128xf32>
    %204 = vector.shape_cast %203 : vector<1x128xf32> to vector<128xf32>
    %205 = vector.shape_cast %204 : vector<128xf32> to vector<1x128xf32>
    %206 = vector.broadcast %205 : vector<1x128xf32> to vector<32x128xf32>
    %207 = arith.mulf %202, %206 : vector<32x128xf32>
    %208 = arith.addf %199, %207 : vector<32x128xf32>
    %c23 = arith.constant 23 : index
    %c0_48 = arith.constant 0 : index
    %c0_49 = arith.constant 0 : index
    %209 = vector.load %arg1[%c23, %c0_48, %c0_49] : memref<54x32x128xbf16, #tpu.memory_space<vmem>>, vector<1x32x128xbf16>
    %210 = vector.shape_cast %209 : vector<1x32x128xbf16> to vector<32x128xbf16>
    %211 = arith.extf %210 : vector<32x128xbf16> to vector<32x128xf32>
    %212 = vector.extract_strided_slice %0 {offsets = [23, 0], sizes = [1, 128], strides = [1, 1]} : vector<54x128xf32> to vector<1x128xf32>
    %213 = vector.shape_cast %212 : vector<1x128xf32> to vector<128xf32>
    %214 = vector.shape_cast %213 : vector<128xf32> to vector<1x128xf32>
    %215 = vector.broadcast %214 : vector<1x128xf32> to vector<32x128xf32>
    %216 = arith.mulf %211, %215 : vector<32x128xf32>
    %217 = arith.addf %208, %216 : vector<32x128xf32>
    %c24 = arith.constant 24 : index
    %c0_50 = arith.constant 0 : index
    %c0_51 = arith.constant 0 : index
    %218 = vector.load %arg1[%c24, %c0_50, %c0_51] : memref<54x32x128xbf16, #tpu.memory_space<vmem>>, vector<1x32x128xbf16>
    %219 = vector.shape_cast %218 : vector<1x32x128xbf16> to vector<32x128xbf16>
    %220 = arith.extf %219 : vector<32x128xbf16> to vector<32x128xf32>
    %221 = vector.extract_strided_slice %0 {offsets = [24, 0], sizes = [1, 128], strides = [1, 1]} : vector<54x128xf32> to vector<1x128xf32>
    %222 = vector.shape_cast %221 : vector<1x128xf32> to vector<128xf32>
    %223 = vector.shape_cast %222 : vector<128xf32> to vector<1x128xf32>
    %224 = vector.broadcast %223 : vector<1x128xf32> to vector<32x128xf32>
    %225 = arith.mulf %220, %224 : vector<32x128xf32>
    %226 = arith.addf %217, %225 : vector<32x128xf32>
    %c25 = arith.constant 25 : index
    %c0_52 = arith.constant 0 : index
    %c0_53 = arith.constant 0 : index
    %227 = vector.load %arg1[%c25, %c0_52, %c0_53] : memref<54x32x128xbf16, #tpu.memory_space<vmem>>, vector<1x32x128xbf16>
    %228 = vector.shape_cast %227 : vector<1x32x128xbf16> to vector<32x128xbf16>
    %229 = arith.extf %228 : vector<32x128xbf16> to vector<32x128xf32>
    %230 = vector.extract_strided_slice %0 {offsets = [25, 0], sizes = [1, 128], strides = [1, 1]} : vector<54x128xf32> to vector<1x128xf32>
    %231 = vector.shape_cast %230 : vector<1x128xf32> to vector<128xf32>
    %232 = vector.shape_cast %231 : vector<128xf32> to vector<1x128xf32>
    %233 = vector.broadcast %232 : vector<1x128xf32> to vector<32x128xf32>
    %234 = arith.mulf %229, %233 : vector<32x128xf32>
    %235 = arith.addf %226, %234 : vector<32x128xf32>
    %c26 = arith.constant 26 : index
    %c0_54 = arith.constant 0 : index
    %c0_55 = arith.constant 0 : index
    %236 = vector.load %arg1[%c26, %c0_54, %c0_55] : memref<54x32x128xbf16, #tpu.memory_space<vmem>>, vector<1x32x128xbf16>
    %237 = vector.shape_cast %236 : vector<1x32x128xbf16> to vector<32x128xbf16>
    %238 = arith.extf %237 : vector<32x128xbf16> to vector<32x128xf32>
    %239 = vector.extract_strided_slice %0 {offsets = [26, 0], sizes = [1, 128], strides = [1, 1]} : vector<54x128xf32> to vector<1x128xf32>
    %240 = vector.shape_cast %239 : vector<1x128xf32> to vector<128xf32>
    %241 = vector.shape_cast %240 : vector<128xf32> to vector<1x128xf32>
    %242 = vector.broadcast %241 : vector<1x128xf32> to vector<32x128xf32>
    %243 = arith.mulf %238, %242 : vector<32x128xf32>
    %244 = arith.addf %235, %243 : vector<32x128xf32>
    %c27 = arith.constant 27 : index
    %c0_56 = arith.constant 0 : index
    %c0_57 = arith.constant 0 : index
    %245 = vector.load %arg1[%c27, %c0_56, %c0_57] : memref<54x32x128xbf16, #tpu.memory_space<vmem>>, vector<1x32x128xbf16>
    %246 = vector.shape_cast %245 : vector<1x32x128xbf16> to vector<32x128xbf16>
    %247 = arith.extf %246 : vector<32x128xbf16> to vector<32x128xf32>
    %248 = vector.extract_strided_slice %0 {offsets = [27, 0], sizes = [1, 128], strides = [1, 1]} : vector<54x128xf32> to vector<1x128xf32>
    %249 = vector.shape_cast %248 : vector<1x128xf32> to vector<128xf32>
    %250 = vector.shape_cast %249 : vector<128xf32> to vector<1x128xf32>
    %251 = vector.broadcast %250 : vector<1x128xf32> to vector<32x128xf32>
    %252 = arith.mulf %247, %251 : vector<32x128xf32>
    %253 = arith.addf %244, %252 : vector<32x128xf32>
    %c28 = arith.constant 28 : index
    %c0_58 = arith.constant 0 : index
    %c0_59 = arith.constant 0 : index
    %254 = vector.load %arg1[%c28, %c0_58, %c0_59] : memref<54x32x128xbf16, #tpu.memory_space<vmem>>, vector<1x32x128xbf16>
    %255 = vector.shape_cast %254 : vector<1x32x128xbf16> to vector<32x128xbf16>
    %256 = arith.extf %255 : vector<32x128xbf16> to vector<32x128xf32>
    %257 = vector.extract_strided_slice %0 {offsets = [28, 0], sizes = [1, 128], strides = [1, 1]} : vector<54x128xf32> to vector<1x128xf32>
    %258 = vector.shape_cast %257 : vector<1x128xf32> to vector<128xf32>
    %259 = vector.shape_cast %258 : vector<128xf32> to vector<1x128xf32>
    %260 = vector.broadcast %259 : vector<1x128xf32> to vector<32x128xf32>
    %261 = arith.mulf %256, %260 : vector<32x128xf32>
    %262 = arith.addf %253, %261 : vector<32x128xf32>
    %c29 = arith.constant 29 : index
    %c0_60 = arith.constant 0 : index
    %c0_61 = arith.constant 0 : index
    %263 = vector.load %arg1[%c29, %c0_60, %c0_61] : memref<54x32x128xbf16, #tpu.memory_space<vmem>>, vector<1x32x128xbf16>
    %264 = vector.shape_cast %263 : vector<1x32x128xbf16> to vector<32x128xbf16>
    %265 = arith.extf %264 : vector<32x128xbf16> to vector<32x128xf32>
    %266 = vector.extract_strided_slice %0 {offsets = [29, 0], sizes = [1, 128], strides = [1, 1]} : vector<54x128xf32> to vector<1x128xf32>
    %267 = vector.shape_cast %266 : vector<1x128xf32> to vector<128xf32>
    %268 = vector.shape_cast %267 : vector<128xf32> to vector<1x128xf32>
    %269 = vector.broadcast %268 : vector<1x128xf32> to vector<32x128xf32>
    %270 = arith.mulf %265, %269 : vector<32x128xf32>
    %271 = arith.addf %262, %270 : vector<32x128xf32>
    %c30 = arith.constant 30 : index
    %c0_62 = arith.constant 0 : index
    %c0_63 = arith.constant 0 : index
    %272 = vector.load %arg1[%c30, %c0_62, %c0_63] : memref<54x32x128xbf16, #tpu.memory_space<vmem>>, vector<1x32x128xbf16>
    %273 = vector.shape_cast %272 : vector<1x32x128xbf16> to vector<32x128xbf16>
    %274 = arith.extf %273 : vector<32x128xbf16> to vector<32x128xf32>
    %275 = vector.extract_strided_slice %0 {offsets = [30, 0], sizes = [1, 128], strides = [1, 1]} : vector<54x128xf32> to vector<1x128xf32>
    %276 = vector.shape_cast %275 : vector<1x128xf32> to vector<128xf32>
    %277 = vector.shape_cast %276 : vector<128xf32> to vector<1x128xf32>
    %278 = vector.broadcast %277 : vector<1x128xf32> to vector<32x128xf32>
    %279 = arith.mulf %274, %278 : vector<32x128xf32>
    %280 = arith.addf %271, %279 : vector<32x128xf32>
    %c31 = arith.constant 31 : index
    %c0_64 = arith.constant 0 : index
    %c0_65 = arith.constant 0 : index
    %281 = vector.load %arg1[%c31, %c0_64, %c0_65] : memref<54x32x128xbf16, #tpu.memory_space<vmem>>, vector<1x32x128xbf16>
    %282 = vector.shape_cast %281 : vector<1x32x128xbf16> to vector<32x128xbf16>
    %283 = arith.extf %282 : vector<32x128xbf16> to vector<32x128xf32>
    %284 = vector.extract_strided_slice %0 {offsets = [31, 0], sizes = [1, 128], strides = [1, 1]} : vector<54x128xf32> to vector<1x128xf32>
    %285 = vector.shape_cast %284 : vector<1x128xf32> to vector<128xf32>
    %286 = vector.shape_cast %285 : vector<128xf32> to vector<1x128xf32>
    %287 = vector.broadcast %286 : vector<1x128xf32> to vector<32x128xf32>
    %288 = arith.mulf %283, %287 : vector<32x128xf32>
    %289 = arith.addf %280, %288 : vector<32x128xf32>
    %c32 = arith.constant 32 : index
    %c0_66 = arith.constant 0 : index
    %c0_67 = arith.constant 0 : index
    %290 = vector.load %arg1[%c32, %c0_66, %c0_67] : memref<54x32x128xbf16, #tpu.memory_space<vmem>>, vector<1x32x128xbf16>
    %291 = vector.shape_cast %290 : vector<1x32x128xbf16> to vector<32x128xbf16>
    %292 = arith.extf %291 : vector<32x128xbf16> to vector<32x128xf32>
    %293 = vector.extract_strided_slice %0 {offsets = [32, 0], sizes = [1, 128], strides = [1, 1]} : vector<54x128xf32> to vector<1x128xf32>
    %294 = vector.shape_cast %293 : vector<1x128xf32> to vector<128xf32>
    %295 = vector.shape_cast %294 : vector<128xf32> to vector<1x128xf32>
    %296 = vector.broadcast %295 : vector<1x128xf32> to vector<32x128xf32>
    %297 = arith.mulf %292, %296 : vector<32x128xf32>
    %298 = arith.addf %289, %297 : vector<32x128xf32>
    %c33 = arith.constant 33 : index
    %c0_68 = arith.constant 0 : index
    %c0_69 = arith.constant 0 : index
    %299 = vector.load %arg1[%c33, %c0_68, %c0_69] : memref<54x32x128xbf16, #tpu.memory_space<vmem>>, vector<1x32x128xbf16>
    %300 = vector.shape_cast %299 : vector<1x32x128xbf16> to vector<32x128xbf16>
    %301 = arith.extf %300 : vector<32x128xbf16> to vector<32x128xf32>
    %302 = vector.extract_strided_slice %0 {offsets = [33, 0], sizes = [1, 128], strides = [1, 1]} : vector<54x128xf32> to vector<1x128xf32>
    %303 = vector.shape_cast %302 : vector<1x128xf32> to vector<128xf32>
    %304 = vector.shape_cast %303 : vector<128xf32> to vector<1x128xf32>
    %305 = vector.broadcast %304 : vector<1x128xf32> to vector<32x128xf32>
    %306 = arith.mulf %301, %305 : vector<32x128xf32>
    %307 = arith.addf %298, %306 : vector<32x128xf32>
    %c34 = arith.constant 34 : index
    %c0_70 = arith.constant 0 : index
    %c0_71 = arith.constant 0 : index
    %308 = vector.load %arg1[%c34, %c0_70, %c0_71] : memref<54x32x128xbf16, #tpu.memory_space<vmem>>, vector<1x32x128xbf16>
    %309 = vector.shape_cast %308 : vector<1x32x128xbf16> to vector<32x128xbf16>
    %310 = arith.extf %309 : vector<32x128xbf16> to vector<32x128xf32>
    %311 = vector.extract_strided_slice %0 {offsets = [34, 0], sizes = [1, 128], strides = [1, 1]} : vector<54x128xf32> to vector<1x128xf32>
    %312 = vector.shape_cast %311 : vector<1x128xf32> to vector<128xf32>
    %313 = vector.shape_cast %312 : vector<128xf32> to vector<1x128xf32>
    %314 = vector.broadcast %313 : vector<1x128xf32> to vector<32x128xf32>
    %315 = arith.mulf %310, %314 : vector<32x128xf32>
    %316 = arith.addf %307, %315 : vector<32x128xf32>
    %c35 = arith.constant 35 : index
    %c0_72 = arith.constant 0 : index
    %c0_73 = arith.constant 0 : index
    %317 = vector.load %arg1[%c35, %c0_72, %c0_73] : memref<54x32x128xbf16, #tpu.memory_space<vmem>>, vector<1x32x128xbf16>
    %318 = vector.shape_cast %317 : vector<1x32x128xbf16> to vector<32x128xbf16>
    %319 = arith.extf %318 : vector<32x128xbf16> to vector<32x128xf32>
    %320 = vector.extract_strided_slice %0 {offsets = [35, 0], sizes = [1, 128], strides = [1, 1]} : vector<54x128xf32> to vector<1x128xf32>
    %321 = vector.shape_cast %320 : vector<1x128xf32> to vector<128xf32>
    %322 = vector.shape_cast %321 : vector<128xf32> to vector<1x128xf32>
    %323 = vector.broadcast %322 : vector<1x128xf32> to vector<32x128xf32>
    %324 = arith.mulf %319, %323 : vector<32x128xf32>
    %325 = arith.addf %316, %324 : vector<32x128xf32>
    %c36 = arith.constant 36 : index
    %c0_74 = arith.constant 0 : index
    %c0_75 = arith.constant 0 : index
    %326 = vector.load %arg1[%c36, %c0_74, %c0_75] : memref<54x32x128xbf16, #tpu.memory_space<vmem>>, vector<1x32x128xbf16>
    %327 = vector.shape_cast %326 : vector<1x32x128xbf16> to vector<32x128xbf16>
    %328 = arith.extf %327 : vector<32x128xbf16> to vector<32x128xf32>
    %329 = vector.extract_strided_slice %0 {offsets = [36, 0], sizes = [1, 128], strides = [1, 1]} : vector<54x128xf32> to vector<1x128xf32>
    %330 = vector.shape_cast %329 : vector<1x128xf32> to vector<128xf32>
    %331 = vector.shape_cast %330 : vector<128xf32> to vector<1x128xf32>
    %332 = vector.broadcast %331 : vector<1x128xf32> to vector<32x128xf32>
    %333 = arith.mulf %328, %332 : vector<32x128xf32>
    %334 = arith.addf %325, %333 : vector<32x128xf32>
    %c37 = arith.constant 37 : index
    %c0_76 = arith.constant 0 : index
    %c0_77 = arith.constant 0 : index
    %335 = vector.load %arg1[%c37, %c0_76, %c0_77] : memref<54x32x128xbf16, #tpu.memory_space<vmem>>, vector<1x32x128xbf16>
    %336 = vector.shape_cast %335 : vector<1x32x128xbf16> to vector<32x128xbf16>
    %337 = arith.extf %336 : vector<32x128xbf16> to vector<32x128xf32>
    %338 = vector.extract_strided_slice %0 {offsets = [37, 0], sizes = [1, 128], strides = [1, 1]} : vector<54x128xf32> to vector<1x128xf32>
    %339 = vector.shape_cast %338 : vector<1x128xf32> to vector<128xf32>
    %340 = vector.shape_cast %339 : vector<128xf32> to vector<1x128xf32>
    %341 = vector.broadcast %340 : vector<1x128xf32> to vector<32x128xf32>
    %342 = arith.mulf %337, %341 : vector<32x128xf32>
    %343 = arith.addf %334, %342 : vector<32x128xf32>
    %c38 = arith.constant 38 : index
    %c0_78 = arith.constant 0 : index
    %c0_79 = arith.constant 0 : index
    %344 = vector.load %arg1[%c38, %c0_78, %c0_79] : memref<54x32x128xbf16, #tpu.memory_space<vmem>>, vector<1x32x128xbf16>
    %345 = vector.shape_cast %344 : vector<1x32x128xbf16> to vector<32x128xbf16>
    %346 = arith.extf %345 : vector<32x128xbf16> to vector<32x128xf32>
    %347 = vector.extract_strided_slice %0 {offsets = [38, 0], sizes = [1, 128], strides = [1, 1]} : vector<54x128xf32> to vector<1x128xf32>
    %348 = vector.shape_cast %347 : vector<1x128xf32> to vector<128xf32>
    %349 = vector.shape_cast %348 : vector<128xf32> to vector<1x128xf32>
    %350 = vector.broadcast %349 : vector<1x128xf32> to vector<32x128xf32>
    %351 = arith.mulf %346, %350 : vector<32x128xf32>
    %352 = arith.addf %343, %351 : vector<32x128xf32>
    %c39 = arith.constant 39 : index
    %c0_80 = arith.constant 0 : index
    %c0_81 = arith.constant 0 : index
    %353 = vector.load %arg1[%c39, %c0_80, %c0_81] : memref<54x32x128xbf16, #tpu.memory_space<vmem>>, vector<1x32x128xbf16>
    %354 = vector.shape_cast %353 : vector<1x32x128xbf16> to vector<32x128xbf16>
    %355 = arith.extf %354 : vector<32x128xbf16> to vector<32x128xf32>
    %356 = vector.extract_strided_slice %0 {offsets = [39, 0], sizes = [1, 128], strides = [1, 1]} : vector<54x128xf32> to vector<1x128xf32>
    %357 = vector.shape_cast %356 : vector<1x128xf32> to vector<128xf32>
    %358 = vector.shape_cast %357 : vector<128xf32> to vector<1x128xf32>
    %359 = vector.broadcast %358 : vector<1x128xf32> to vector<32x128xf32>
    %360 = arith.mulf %355, %359 : vector<32x128xf32>
    %361 = arith.addf %352, %360 : vector<32x128xf32>
    %c40 = arith.constant 40 : index
    %c0_82 = arith.constant 0 : index
    %c0_83 = arith.constant 0 : index
    %362 = vector.load %arg1[%c40, %c0_82, %c0_83] : memref<54x32x128xbf16, #tpu.memory_space<vmem>>, vector<1x32x128xbf16>
    %363 = vector.shape_cast %362 : vector<1x32x128xbf16> to vector<32x128xbf16>
    %364 = arith.extf %363 : vector<32x128xbf16> to vector<32x128xf32>
    %365 = vector.extract_strided_slice %0 {offsets = [40, 0], sizes = [1, 128], strides = [1, 1]} : vector<54x128xf32> to vector<1x128xf32>
    %366 = vector.shape_cast %365 : vector<1x128xf32> to vector<128xf32>
    %367 = vector.shape_cast %366 : vector<128xf32> to vector<1x128xf32>
    %368 = vector.broadcast %367 : vector<1x128xf32> to vector<32x128xf32>
    %369 = arith.mulf %364, %368 : vector<32x128xf32>
    %370 = arith.addf %361, %369 : vector<32x128xf32>
    %c41 = arith.constant 41 : index
    %c0_84 = arith.constant 0 : index
    %c0_85 = arith.constant 0 : index
    %371 = vector.load %arg1[%c41, %c0_84, %c0_85] : memref<54x32x128xbf16, #tpu.memory_space<vmem>>, vector<1x32x128xbf16>
    %372 = vector.shape_cast %371 : vector<1x32x128xbf16> to vector<32x128xbf16>
    %373 = arith.extf %372 : vector<32x128xbf16> to vector<32x128xf32>
    %374 = vector.extract_strided_slice %0 {offsets = [41, 0], sizes = [1, 128], strides = [1, 1]} : vector<54x128xf32> to vector<1x128xf32>
    %375 = vector.shape_cast %374 : vector<1x128xf32> to vector<128xf32>
    %376 = vector.shape_cast %375 : vector<128xf32> to vector<1x128xf32>
    %377 = vector.broadcast %376 : vector<1x128xf32> to vector<32x128xf32>
    %378 = arith.mulf %373, %377 : vector<32x128xf32>
    %379 = arith.addf %370, %378 : vector<32x128xf32>
    %c42 = arith.constant 42 : index
    %c0_86 = arith.constant 0 : index
    %c0_87 = arith.constant 0 : index
    %380 = vector.load %arg1[%c42, %c0_86, %c0_87] : memref<54x32x128xbf16, #tpu.memory_space<vmem>>, vector<1x32x128xbf16>
    %381 = vector.shape_cast %380 : vector<1x32x128xbf16> to vector<32x128xbf16>
    %382 = arith.extf %381 : vector<32x128xbf16> to vector<32x128xf32>
    %383 = vector.extract_strided_slice %0 {offsets = [42, 0], sizes = [1, 128], strides = [1, 1]} : vector<54x128xf32> to vector<1x128xf32>
    %384 = vector.shape_cast %383 : vector<1x128xf32> to vector<128xf32>
    %385 = vector.shape_cast %384 : vector<128xf32> to vector<1x128xf32>
    %386 = vector.broadcast %385 : vector<1x128xf32> to vector<32x128xf32>
    %387 = arith.mulf %382, %386 : vector<32x128xf32>
    %388 = arith.addf %379, %387 : vector<32x128xf32>
    %c43 = arith.constant 43 : index
    %c0_88 = arith.constant 0 : index
    %c0_89 = arith.constant 0 : index
    %389 = vector.load %arg1[%c43, %c0_88, %c0_89] : memref<54x32x128xbf16, #tpu.memory_space<vmem>>, vector<1x32x128xbf16>
    %390 = vector.shape_cast %389 : vector<1x32x128xbf16> to vector<32x128xbf16>
    %391 = arith.extf %390 : vector<32x128xbf16> to vector<32x128xf32>
    %392 = vector.extract_strided_slice %0 {offsets = [43, 0], sizes = [1, 128], strides = [1, 1]} : vector<54x128xf32> to vector<1x128xf32>
    %393 = vector.shape_cast %392 : vector<1x128xf32> to vector<128xf32>
    %394 = vector.shape_cast %393 : vector<128xf32> to vector<1x128xf32>
    %395 = vector.broadcast %394 : vector<1x128xf32> to vector<32x128xf32>
    %396 = arith.mulf %391, %395 : vector<32x128xf32>
    %397 = arith.addf %388, %396 : vector<32x128xf32>
    %c44 = arith.constant 44 : index
    %c0_90 = arith.constant 0 : index
    %c0_91 = arith.constant 0 : index
    %398 = vector.load %arg1[%c44, %c0_90, %c0_91] : memref<54x32x128xbf16, #tpu.memory_space<vmem>>, vector<1x32x128xbf16>
    %399 = vector.shape_cast %398 : vector<1x32x128xbf16> to vector<32x128xbf16>
    %400 = arith.extf %399 : vector<32x128xbf16> to vector<32x128xf32>
    %401 = vector.extract_strided_slice %0 {offsets = [44, 0], sizes = [1, 128], strides = [1, 1]} : vector<54x128xf32> to vector<1x128xf32>
    %402 = vector.shape_cast %401 : vector<1x128xf32> to vector<128xf32>
    %403 = vector.shape_cast %402 : vector<128xf32> to vector<1x128xf32>
    %404 = vector.broadcast %403 : vector<1x128xf32> to vector<32x128xf32>
    %405 = arith.mulf %400, %404 : vector<32x128xf32>
    %406 = arith.addf %397, %405 : vector<32x128xf32>
    %c45 = arith.constant 45 : index
    %c0_92 = arith.constant 0 : index
    %c0_93 = arith.constant 0 : index
    %407 = vector.load %arg1[%c45, %c0_92, %c0_93] : memref<54x32x128xbf16, #tpu.memory_space<vmem>>, vector<1x32x128xbf16>
    %408 = vector.shape_cast %407 : vector<1x32x128xbf16> to vector<32x128xbf16>
    %409 = arith.extf %408 : vector<32x128xbf16> to vector<32x128xf32>
    %410 = vector.extract_strided_slice %0 {offsets = [45, 0], sizes = [1, 128], strides = [1, 1]} : vector<54x128xf32> to vector<1x128xf32>
    %411 = vector.shape_cast %410 : vector<1x128xf32> to vector<128xf32>
    %412 = vector.shape_cast %411 : vector<128xf32> to vector<1x128xf32>
    %413 = vector.broadcast %412 : vector<1x128xf32> to vector<32x128xf32>
    %414 = arith.mulf %409, %413 : vector<32x128xf32>
    %415 = arith.addf %406, %414 : vector<32x128xf32>
    %c46 = arith.constant 46 : index
    %c0_94 = arith.constant 0 : index
    %c0_95 = arith.constant 0 : index
    %416 = vector.load %arg1[%c46, %c0_94, %c0_95] : memref<54x32x128xbf16, #tpu.memory_space<vmem>>, vector<1x32x128xbf16>
    %417 = vector.shape_cast %416 : vector<1x32x128xbf16> to vector<32x128xbf16>
    %418 = arith.extf %417 : vector<32x128xbf16> to vector<32x128xf32>
    %419 = vector.extract_strided_slice %0 {offsets = [46, 0], sizes = [1, 128], strides = [1, 1]} : vector<54x128xf32> to vector<1x128xf32>
    %420 = vector.shape_cast %419 : vector<1x128xf32> to vector<128xf32>
    %421 = vector.shape_cast %420 : vector<128xf32> to vector<1x128xf32>
    %422 = vector.broadcast %421 : vector<1x128xf32> to vector<32x128xf32>
    %423 = arith.mulf %418, %422 : vector<32x128xf32>
    %424 = arith.addf %415, %423 : vector<32x128xf32>
    %c47 = arith.constant 47 : index
    %c0_96 = arith.constant 0 : index
    %c0_97 = arith.constant 0 : index
    %425 = vector.load %arg1[%c47, %c0_96, %c0_97] : memref<54x32x128xbf16, #tpu.memory_space<vmem>>, vector<1x32x128xbf16>
    %426 = vector.shape_cast %425 : vector<1x32x128xbf16> to vector<32x128xbf16>
    %427 = arith.extf %426 : vector<32x128xbf16> to vector<32x128xf32>
    %428 = vector.extract_strided_slice %0 {offsets = [47, 0], sizes = [1, 128], strides = [1, 1]} : vector<54x128xf32> to vector<1x128xf32>
    %429 = vector.shape_cast %428 : vector<1x128xf32> to vector<128xf32>
    %430 = vector.shape_cast %429 : vector<128xf32> to vector<1x128xf32>
    %431 = vector.broadcast %430 : vector<1x128xf32> to vector<32x128xf32>
    %432 = arith.mulf %427, %431 : vector<32x128xf32>
    %433 = arith.addf %424, %432 : vector<32x128xf32>
    %c48 = arith.constant 48 : index
    %c0_98 = arith.constant 0 : index
    %c0_99 = arith.constant 0 : index
    %434 = vector.load %arg1[%c48, %c0_98, %c0_99] : memref<54x32x128xbf16, #tpu.memory_space<vmem>>, vector<1x32x128xbf16>
    %435 = vector.shape_cast %434 : vector<1x32x128xbf16> to vector<32x128xbf16>
    %436 = arith.extf %435 : vector<32x128xbf16> to vector<32x128xf32>
    %437 = vector.extract_strided_slice %0 {offsets = [48, 0], sizes = [1, 128], strides = [1, 1]} : vector<54x128xf32> to vector<1x128xf32>
    %438 = vector.shape_cast %437 : vector<1x128xf32> to vector<128xf32>
    %439 = vector.shape_cast %438 : vector<128xf32> to vector<1x128xf32>
    %440 = vector.broadcast %439 : vector<1x128xf32> to vector<32x128xf32>
    %441 = arith.mulf %436, %440 : vector<32x128xf32>
    %442 = arith.addf %433, %441 : vector<32x128xf32>
    %c49 = arith.constant 49 : index
    %c0_100 = arith.constant 0 : index
    %c0_101 = arith.constant 0 : index
    %443 = vector.load %arg1[%c49, %c0_100, %c0_101] : memref<54x32x128xbf16, #tpu.memory_space<vmem>>, vector<1x32x128xbf16>
    %444 = vector.shape_cast %443 : vector<1x32x128xbf16> to vector<32x128xbf16>
    %445 = arith.extf %444 : vector<32x128xbf16> to vector<32x128xf32>
    %446 = vector.extract_strided_slice %0 {offsets = [49, 0], sizes = [1, 128], strides = [1, 1]} : vector<54x128xf32> to vector<1x128xf32>
    %447 = vector.shape_cast %446 : vector<1x128xf32> to vector<128xf32>
    %448 = vector.shape_cast %447 : vector<128xf32> to vector<1x128xf32>
    %449 = vector.broadcast %448 : vector<1x128xf32> to vector<32x128xf32>
    %450 = arith.mulf %445, %449 : vector<32x128xf32>
    %451 = arith.addf %442, %450 : vector<32x128xf32>
    %c50 = arith.constant 50 : index
    %c0_102 = arith.constant 0 : index
    %c0_103 = arith.constant 0 : index
    %452 = vector.load %arg1[%c50, %c0_102, %c0_103] : memref<54x32x128xbf16, #tpu.memory_space<vmem>>, vector<1x32x128xbf16>
    %453 = vector.shape_cast %452 : vector<1x32x128xbf16> to vector<32x128xbf16>
    %454 = arith.extf %453 : vector<32x128xbf16> to vector<32x128xf32>
    %455 = vector.extract_strided_slice %0 {offsets = [50, 0], sizes = [1, 128], strides = [1, 1]} : vector<54x128xf32> to vector<1x128xf32>
    %456 = vector.shape_cast %455 : vector<1x128xf32> to vector<128xf32>
    %457 = vector.shape_cast %456 : vector<128xf32> to vector<1x128xf32>
    %458 = vector.broadcast %457 : vector<1x128xf32> to vector<32x128xf32>
    %459 = arith.mulf %454, %458 : vector<32x128xf32>
    %460 = arith.addf %451, %459 : vector<32x128xf32>
    %c51 = arith.constant 51 : index
    %c0_104 = arith.constant 0 : index
    %c0_105 = arith.constant 0 : index
    %461 = vector.load %arg1[%c51, %c0_104, %c0_105] : memref<54x32x128xbf16, #tpu.memory_space<vmem>>, vector<1x32x128xbf16>
    %462 = vector.shape_cast %461 : vector<1x32x128xbf16> to vector<32x128xbf16>
    %463 = arith.extf %462 : vector<32x128xbf16> to vector<32x128xf32>
    %464 = vector.extract_strided_slice %0 {offsets = [51, 0], sizes = [1, 128], strides = [1, 1]} : vector<54x128xf32> to vector<1x128xf32>
    %465 = vector.shape_cast %464 : vector<1x128xf32> to vector<128xf32>
    %466 = vector.shape_cast %465 : vector<128xf32> to vector<1x128xf32>
    %467 = vector.broadcast %466 : vector<1x128xf32> to vector<32x128xf32>
    %468 = arith.mulf %463, %467 : vector<32x128xf32>
    %469 = arith.addf %460, %468 : vector<32x128xf32>
    %c52 = arith.constant 52 : index
    %c0_106 = arith.constant 0 : index
    %c0_107 = arith.constant 0 : index
    %470 = vector.load %arg1[%c52, %c0_106, %c0_107] : memref<54x32x128xbf16, #tpu.memory_space<vmem>>, vector<1x32x128xbf16>
    %471 = vector.shape_cast %470 : vector<1x32x128xbf16> to vector<32x128xbf16>
    %472 = arith.extf %471 : vector<32x128xbf16> to vector<32x128xf32>
    %473 = vector.extract_strided_slice %0 {offsets = [52, 0], sizes = [1, 128], strides = [1, 1]} : vector<54x128xf32> to vector<1x128xf32>
    %474 = vector.shape_cast %473 : vector<1x128xf32> to vector<128xf32>
    %475 = vector.shape_cast %474 : vector<128xf32> to vector<1x128xf32>
    %476 = vector.broadcast %475 : vector<1x128xf32> to vector<32x128xf32>
    %477 = arith.mulf %472, %476 : vector<32x128xf32>
    %478 = arith.addf %469, %477 : vector<32x128xf32>
    %c53 = arith.constant 53 : index
    %c0_108 = arith.constant 0 : index
    %c0_109 = arith.constant 0 : index
    %479 = vector.load %arg1[%c53, %c0_108, %c0_109] : memref<54x32x128xbf16, #tpu.memory_space<vmem>>, vector<1x32x128xbf16>
    %480 = vector.shape_cast %479 : vector<1x32x128xbf16> to vector<32x128xbf16>
    %481 = arith.extf %480 : vector<32x128xbf16> to vector<32x128xf32>
    %482 = vector.extract_strided_slice %0 {offsets = [53, 0], sizes = [1, 128], strides = [1, 1]} : vector<54x128xf32> to vector<1x128xf32>
    %483 = vector.shape_cast %482 : vector<1x128xf32> to vector<128xf32>
    %484 = vector.shape_cast %483 : vector<128xf32> to vector<1x128xf32>
    %485 = vector.broadcast %484 : vector<1x128xf32> to vector<32x128xf32>
    %486 = arith.mulf %481, %485 : vector<32x128xf32>
    %487 = arith.addf %478, %486 : vector<32x128xf32>
    %c0_110 = arith.constant 0 : index
    %c0_111 = arith.constant 0 : index
    %488 = vector.load %arg3[%c0_110, %c0_111] : memref<1x128xf32, #tpu.memory_space<vmem>>, vector<1x128xf32>
    %489 = vector.broadcast %488 : vector<1x128xf32> to vector<32x128xf32>
    %490 = arith.addf %487, %489 : vector<32x128xf32>
    %cst_112 = arith.constant 5.000000e-01 : f32
    %491 = vector.broadcast %cst_112 : f32 to vector<32x128xf32>
    %492 = arith.mulf %491, %490 : vector<32x128xf32>
    %cst_113 = arith.constant 4.471500e-02 : f32
    %493 = vector.broadcast %cst_113 : f32 to vector<32x128xf32>
    %494 = arith.mulf %493, %490 : vector<32x128xf32>
    %495 = arith.mulf %494, %490 : vector<32x128xf32>
    %496 = arith.mulf %495, %490 : vector<32x128xf32>
    %497 = arith.addf %490, %496 : vector<32x128xf32>
    %cst_114 = arith.constant 0.797884583 : f32
    %498 = vector.broadcast %cst_114 : f32 to vector<32x128xf32>
    %499 = arith.mulf %498, %497 : vector<32x128xf32>
    %500 = math.tanh %499 : vector<32x128xf32>
    %cst_115 = arith.constant 1.000000e+00 : f32
    %501 = vector.broadcast %cst_115 : f32 to vector<32x128xf32>
    %502 = arith.addf %501, %500 : vector<32x128xf32>
    %503 = arith.mulf %492, %502 : vector<32x128xf32>
    %504 = arith.truncf %503 : vector<32x128xf32> to vector<32x128xbf16>
    %c0_116 = arith.constant 0 : index
    %c0_117 = arith.constant 0 : index
    %505 = vector.load %arg4[%c0_116, %c0_117] : memref<32x128xbf16, #tpu.memory_space<vmem>>, vector<32x128xbf16>
    tpu.vector_store %arg4[%c0_116, %c0_117], %504 {strides = array<i32>} : memref<32x128xbf16, #tpu.memory_space<vmem>>, vector<32x128xbf16>,
    return
  }
  func.func @transform_0(%arg0: i32) -> (i32, i32, i32) {
    %c0_i32 = arith.constant 0 : i32
    %c0_i32_0 = arith.constant 0 : i32
    %c0_i32_1 = arith.constant 0 : i32
    return %c0_i32, %arg0, %c0_i32_0 : i32, i32, i32
  }
  func.func @transform_1(%arg0: i32) -> (i32, i32) {
    %c0_i32 = arith.constant 0 : i32
    %c0_i32_0 = arith.constant 0 : i32
    %c0_i32_1 = arith.constant 0 : i32
    return %c0_i32, %c0_i32_0 : i32, i32
  }
  func.func @transform_2(%arg0: i32) -> (i32, i32) {
    %c0_i32 = arith.constant 0 : i32
    %c0_i32_0 = arith.constant 0 : i32
    %c0_i32_1 = arith.constant 0 : i32
    return %c0_i32, %c0_i32_0 : i32, i32
  }
  func.func @transform_3(%arg0: i32) -> (i32, i32) {
    %c0_i32 = arith.constant 0 : i32
    %c0_i32_0 = arith.constant 0 : i32
    return %arg0, %c0_i32 : i32, i32
  }
}

</mosaic_0001>

<llo_original>
// kernel: fine_encoder_forward.10
$region0: #{fine_encoder_forward.10}
  #allocation0 [shape = 'u32[]', space=smem, size = 0x4, offset = 0x4, fixed_abs, tag = 'smem constant byte address 0x4 - core index']
  #allocation1 [shape = 'u32[72,128]{1,0:T(1,128)}', space=vmem, size = 0x9000, scoped, tag = 'internal scratch']
  %s0 = inlined_call_operand.vmem [shape: bf16[128,32], index: 0, kind: input, shape index: {}]
  %s1 = inlined_call_operand.vmem [shape: bf16[32,32], index: 1, kind: input, shape index: {}]
  %s2 = inlined_call_operand.vmem [shape: f32[1,32], index: 2, kind: input, shape index: {}]
  %s3 = inlined_call_operand.vmem [shape: f32[1,32], index: 3, kind: input, shape index: {}]
  %s4 = inlined_call_operand.vmem [shape: f32[1,32], index: 4, kind: input, shape index: {}]
  %s5 = inlined_call_operand.vmem [shape: bf16[128,32], index: 5, kind: output, shape index: {0}]
  %s6 = inlined_call_operand.vmem [shape: f32[128,32], index: 6, kind: output, shape index: {1}]
  %7 = xla_tuple %s5, %s6
  %s8 = sld [smem:[#allocation0]]
  $region38: #{fine_encoder_forward.10} parent=0
    _
  %s10 = ssub.s32 1, %s8
  %s11 = scalar_select 0, %s10, %s8
  // Predicated region
  $region2: #{fine_encoder_forward.10} parent=0 // pred_check
    _
  $region3: #{fine_encoder_forward.10} parent=0 // pred_check_branch
    %13 = sbr.rel (0) target = $region5
  $region4: #{fine_encoder_forward.10} parent=0 // pred_region
    _
  $region5: #{fine_encoder_forward.10} parent=0 // pred_fallthru
    _
  // Predicated region
  $region6: #{fine_encoder_forward.10} parent=0 // pred_check
    _
  $region7: #{fine_encoder_forward.10} parent=0 // pred_check_branch
    %15 = sbr.rel (0) target = $region9
  $region8: #{fine_encoder_forward.10} parent=0 // pred_region
    _
  $region9: #{fine_encoder_forward.10} parent=0 // pred_fallthru
    _
  // Predicated region
  $region10: #{fine_encoder_forward.10} parent=0 // pred_check
    _
  $region11: #{fine_encoder_forward.10} parent=0 // pred_check_branch
    %17 = sbr.rel (0) target = $region13
  $region12: #{fine_encoder_forward.10} parent=0 // pred_region
    _
  $region13: #{fine_encoder_forward.10} parent=0 // pred_fallthru
    _
  // Predicated region
  $region14: #{fine_encoder_forward.10} parent=0 // pred_check
    _
  $region15: #{fine_encoder_forward.10} parent=0 // pred_check_branch
    %19 = sbr.rel (0) target = $region17
  $region16: #{fine_encoder_forward.10} parent=0 // pred_region
    _
  $region17: #{fine_encoder_forward.10} parent=0 // pred_fallthru
    _
  // Predicated region
  $region18: #{fine_encoder_forward.10} parent=0 // pred_check
    _
  $region19: #{fine_encoder_forward.10} parent=0 // pred_check_branch
    %21 = sbr.rel (0) target = $region21
  $region20: #{fine_encoder_forward.10} parent=0 // pred_region
    _
  $region21: #{fine_encoder_forward.10} parent=0 // pred_fallthru
    _
  %v23 = vld [vmem:[%s0] sm:$0xf]
  %v24 = vld [vmem:[%s0 + $0x4] sm:$0xf]
  %v25 = vld [vmem:[%s0 + $0x8] sm:$0xf]
  %v26 = vld [vmem:[%s0 + $0xc] sm:$0xf]
  %v27 = vld [vmem:[%s0 + $0x10] sm:$0xf]
  %v28 = vld [vmem:[%s0 + $0x14] sm:$0xf]
  %v29 = vld [vmem:[%s0 + $0x18] sm:$0xf]
  %v30 = vld [vmem:[%s0 + $0x1c] sm:$0xf]
  %v31 = vld [vmem:[%s0 + $0x20] sm:$0xf]
  %v32 = vld [vmem:[%s0 + $0x24] sm:$0xf]
  %v33 = vld [vmem:[%s0 + $0x28] sm:$0xf]
  %v34 = vld [vmem:[%s0 + $0x2c] sm:$0xf]
  %v35 = vld [vmem:[%s0 + $0x30] sm:$0xf]
  %v36 = vld [vmem:[%s0 + $0x34] sm:$0xf]
  %v37 = vld [vmem:[%s0 + $0x38] sm:$0xf]
  %v38 = vld [vmem:[%s0 + $0x3c] sm:$0xf]
  %v39 = vld [vmem:[%s1] sm:$0xf]
  %v40 = vld [vmem:[%s1 + $0x4] sm:$0xf]
  %v41 = vld [vmem:[%s1 + $0x8] sm:$0xf]
  %v42 = vld [vmem:[%s1 + $0xc] sm:$0xf]
  %v43 = vld [vmem:[%s2] sm:$0x1]
  %v45 = vperm.slane %v43, 0
  %v63 = vunpack.c.l.b16 %v23
  %v64 = vunpack.c.l.b16 %v24
  %v65 = vunpack.c.l.b16 %v25
  %v66 = vunpack.c.l.b16 %v26
  %v67 = vunpack.c.l.b16 %v27
  %v68 = vunpack.c.l.b16 %v28
  %v69 = vunpack.c.l.b16 %v29
  %v70 = vunpack.c.l.b16 %v30
  %v71 = vunpack.c.l.b16 %v31
  %v72 = vunpack.c.l.b16 %v32
  %v73 = vunpack.c.l.b16 %v33
  %v74 = vunpack.c.l.b16 %v34
  %v75 = vunpack.c.l.b16 %v35
  %v76 = vunpack.c.l.b16 %v36
  %v77 = vunpack.c.l.b16 %v37
  %v78 = vunpack.c.l.b16 %v38
  %v79 = vpack.c.b16 %v64, %v63
  %v80 = vpack.c.b16 %v66, %v65
  %v81 = vpack.c.b16 %v68, %v67
  %v82 = vpack.c.b16 %v70, %v69
  %v83 = vpack.c.b16 %v72, %v71
  %v84 = vpack.c.b16 %v74, %v73
  %v85 = vpack.c.b16 %v76, %v75
  %v86 = vpack.c.b16 %v78, %v77
  %v91 = vunpack.c.l.b16 %v39
  %v92 = vunpack.c.l.b16 %v40
  %v93 = vunpack.c.l.b16 %v41
  %v94 = vunpack.c.l.b16 %v42
  %v95 = vpack.c.b16 %v92, %v91
  %v96 = vpack.c.b16 %v94, %v93
  %vm99 = vcmask 261120
  %v101 = vsel %vm99, %v79, 0
  %v104 = vsel %vm99, %v80, 0
  %v107 = vsel %vm99, %v81, 0
  %v110 = vsel %vm99, %v82, 0
  %v113 = vsel %vm99, %v83, 0
  %v116 = vsel %vm99, %v84, 0
  %v119 = vsel %vm99, %v85, 0
  %v122 = vsel %vm99, %v86, 0
  %124 = vmatpush.bf16.msra.mxu0 0
  %125 = vmatpush.bf16.msra.mxu0 0
  %126 = vmatpush.bf16.msra.mxu0 0
  %127 = vmatpush.bf16.msra.mxu0 0
  %128 = vmatpush.bf16.msra.mxu0 0
  %129 = vmatpush.bf16.msra.mxu0 0
  %130 = vmatpush.bf16.msra.mxu0 %v96
  %131 = vmatpush.bf16.msra.mxu0 %v95
  %132 = vmatmul.bf16.gmra.mxu0 %v101
  %v133 = vpop.f32.mrf.mxu0
  %v134 = vadd.f32 %v45, %v133
  %v135 = vpop.f32.mrf.mxu0
  %v136 = vadd.f32 %v45, %v135
  %137 = vmatmul.bf16.gmra.mxu0 %v104
  %v138 = vpop.f32.mrf.mxu0
  %v139 = vadd.f32 %v45, %v138
  %v140 = vpop.f32.mrf.mxu0
  %v141 = vadd.f32 %v45, %v140
  %142 = vmatmul.bf16.gmra.mxu0 %v107
  %v143 = vpop.f32.mrf.mxu0
  %v144 = vadd.f32 %v45, %v143
  %v145 = vpop.f32.mrf.mxu0
  %v146 = vadd.f32 %v45, %v145
  %147 = vmatmul.bf16.gmra.mxu0 %v110
  %v148 = vpop.f32.mrf.mxu0
  %v149 = vadd.f32 %v45, %v148
  %v150 = vpop.f32.mrf.mxu0
  %v151 = vadd.f32 %v45, %v150
  %152 = vmatmul.bf16.gmra.mxu0 %v113
  %v153 = vpop.f32.mrf.mxu0
  %v154 = vadd.f32 %v45, %v153
  %v155 = vpop.f32.mrf.mxu0
  %v156 = vadd.f32 %v45, %v155
  %157 = vmatmul.bf16.gmra.mxu0 %v116
  %v158 = vpop.f32.mrf.mxu0
  %v159 = vadd.f32 %v45, %v158
  %v160 = vpop.f32.mrf.mxu0
  %v161 = vadd.f32 %v45, %v160
  %162 = vmatmul.bf16.gmra.mxu0 %v119
  %v163 = vpop.f32.mrf.mxu0
  %v164 = vadd.f32 %v45, %v163
  %v165 = vpop.f32.mrf.mxu0
  %v166 = vadd.f32 %v45, %v165
  %167 = vmatmul.bf16.gmra.mxu0 %v122
  %v168 = vpop.f32.mrf.mxu0
  %v169 = vadd.f32 %v45, %v168
  %v170 = vpop.f32.mrf.mxu0
  %v171 = vadd.f32 %v45, %v170
  %172 = vdwg.mxu0
  %v173 = vpack.c.bf16 %v134, %v134
  %v174 = vpack.c.bf16 %v136, %v136
  %v175 = vpack.c.bf16 %v139, %v139
  %v176 = vpack.c.bf16 %v141, %v141
  %v177 = vpack.c.bf16 %v144, %v144
  %v178 = vpack.c.bf16 %v146, %v146
  %v179 = vpack.c.bf16 %v149, %v149
  %v180 = vpack.c.bf16 %v151, %v151
  %v181 = vpack.c.bf16 %v154, %v154
  %v182 = vpack.c.bf16 %v156, %v156
  %v183 = vpack.c.bf16 %v159, %v159
  %v184 = vpack.c.bf16 %v161, %v161
  %v185 = vpack.c.bf16 %v164, %v164
  %v186 = vpack.c.bf16 %v166, %v166
  %v187 = vpack.c.bf16 %v169, %v169
  %v188 = vpack.c.bf16 %v171, %v171
  %vm189 = vcmask 257024
  %190 = vst.msk [vmem:[%s5] sm:$0xf] %vm189, %v173
  %191 = vst.msk [vmem:[%s5 + $0x4] sm:$0xf] %vm189, %v174
  %192 = vst.msk [vmem:[%s5 + $0x8] sm:$0xf] %vm189, %v175
  %193 = vst.msk [vmem:[%s5 + $0xc] sm:$0xf] %vm189, %v176
  %194 = vst.msk [vmem:[%s5 + $0x10] sm:$0xf] %vm189, %v177
  %195 = vst.msk [vmem:[%s5 + $0x14] sm:$0xf] %vm189, %v178
  %196 = vst.msk [vmem:[%s5 + $0x18] sm:$0xf] %vm189, %v179
  %197 = vst.msk [vmem:[%s5 + $0x1c] sm:$0xf] %vm189, %v180
  %198 = vst.msk [vmem:[%s5 + $0x20] sm:$0xf] %vm189, %v181
  %199 = vst.msk [vmem:[%s5 + $0x24] sm:$0xf] %vm189, %v182
  %200 = vst.msk [vmem:[%s5 + $0x28] sm:$0xf] %vm189, %v183
  %201 = vst.msk [vmem:[%s5 + $0x2c] sm:$0xf] %vm189, %v184
  %202 = vst.msk [vmem:[%s5 + $0x30] sm:$0xf] %vm189, %v185
  %203 = vst.msk [vmem:[%s5 + $0x34] sm:$0xf] %vm189, %v186
  %204 = vst.msk [vmem:[%s5 + $0x38] sm:$0xf] %vm189, %v187
  %205 = vst.msk [vmem:[%s5 + $0x3c] sm:$0xf] %vm189, %v188
  %v206 = vsel %vm99, %v134, 0.0
  %207 = vadd.xlane.f32.xlu0 %v206
  %v208 = vpop.xlane.xlu0 %207
  %v209 = vsel %vm99, %v136, 0.0
  %210 = vadd.xlane.f32.xlu0 %v209
  %v211 = vpop.xlane.xlu0 %210
  %v212 = vsel %vm99, %v139, 0.0
  %213 = vadd.xlane.f32.xlu0 %v212
  %v214 = vpop.xlane.xlu0 %213
  %v215 = vsel %vm99, %v141, 0.0
  %216 = vadd.xlane.f32.xlu0 %v215
  %v217 = vpop.xlane.xlu0 %216
  %v218 = vsel %vm99, %v144, 0.0
  %219 = vadd.xlane.f32.xlu0 %v218
  %v220 = vpop.xlane.xlu0 %219
  %v221 = vsel %vm99, %v146, 0.0
  %222 = vadd.xlane.f32.xlu0 %v221
  %v223 = vpop.xlane.xlu0 %222
  %v224 = vsel %vm99, %v149, 0.0
  %225 = vadd.xlane.f32.xlu0 %v224
  %v226 = vpop.xlane.xlu0 %225
  %v227 = vsel %vm99, %v151, 0.0
  %228 = vadd.xlane.f32.xlu0 %v227
  %v229 = vpop.xlane.xlu0 %228
  %v230 = vsel %vm99, %v154, 0.0
  %231 = vadd.xlane.f32.xlu0 %v230
  %v232 = vpop.xlane.xlu0 %231
  %v233 = vsel %vm99, %v156, 0.0
  %234 = vadd.xlane.f32.xlu0 %v233
  %v235 = vpop.xlane.xlu0 %234
  %v236 = vsel %vm99, %v159, 0.0
  %237 = vadd.xlane.f32.xlu0 %v236
  %v238 = vpop.xlane.xlu0 %237
  %v239 = vsel %vm99, %v161, 0.0
  %240 = vadd.xlane.f32.xlu0 %v239
  %v241 = vpop.xlane.xlu0 %240
  %v242 = vsel %vm99, %v164, 0.0
  %243 = vadd.xlane.f32.xlu0 %v242
  %v244 = vpop.xlane.xlu0 %243
  %v245 = vsel %vm99, %v166, 0.0
  %246 = vadd.xlane.f32.xlu0 %v245
  %v247 = vpop.xlane.xlu0 %246
  %v248 = vsel %vm99, %v169, 0.0
  %249 = vadd.xlane.f32.xlu0 %v248
  %v250 = vpop.xlane.xlu0 %249
  %v251 = vsel %vm99, %v171, 0.0
  %252 = vadd.xlane.f32.xlu0 %v251
  %v253 = vpop.xlane.xlu0 %252
  %v254 = vrcp.pop 32.0
  %v255 = vmul.f32 32.0, %v254
  %v256 = vsub.f32 1.0, %v255
  %v257 = vmul.f32 %v254, %v256
  %v258 = vadd.f32 %v254, %v257
  %vm259 = vweird.f32 %v254
  %v260 = vsel %vm259, %v254, %v258
  %v261 = vmul.f32 %v208, %v260
  %v262 = vmul.f32 %v211, %v260
  %v263 = vmul.f32 %v214, %v260
  %v264 = vmul.f32 %v217, %v260
  %v265 = vmul.f32 %v220, %v260
  %v266 = vmul.f32 %v223, %v260
  %v267 = vmul.f32 %v226, %v260
  %v268 = vmul.f32 %v229, %v260
  %v269 = vmul.f32 %v232, %v260
  %v270 = vmul.f32 %v235, %v260
  %v271 = vmul.f32 %v238, %v260
  %v272 = vmul.f32 %v241, %v260
  %v273 = vmul.f32 %v244, %v260
  %v274 = vmul.f32 %v247, %v260
  %v275 = vmul.f32 %v250, %v260
  %v276 = vmul.f32 %v253, %v260
  %v277 = vsub.f32 %v134, %v261
  %v278 = vsub.f32 %v136, %v262
  %v279 = vsub.f32 %v139, %v263
  %v280 = vsub.f32 %v141, %v264
  %v281 = vsub.f32 %v144, %v265
  %v282 = vsub.f32 %v146, %v266
  %v283 = vsub.f32 %v149, %v267
  %v284 = vsub.f32 %v151, %v268
  %v285 = vsub.f32 %v154, %v269
  %v286 = vsub.f32 %v156, %v270
  %v287 = vsub.f32 %v159, %v271
  %v288 = vsub.f32 %v161, %v272
  %v289 = vsub.f32 %v164, %v273
  %v290 = vsub.f32 %v166, %v274
  %v291 = vsub.f32 %v169, %v275
  %v292 = vsub.f32 %v171, %v276
  %v293 = vmul.f32 %v277, %v277
  %v294 = vmul.f32 %v278, %v278
  %v295 = vmul.f32 %v279, %v279
  %v296 = vmul.f32 %v280, %v280
  %v297 = vmul.f32 %v281, %v281
  %v298 = vmul.f32 %v282, %v282
  %v299 = vmul.f32 %v283, %v283
  %v300 = vmul.f32 %v284, %v284
  %v301 = vmul.f32 %v285, %v285
  %v302 = vmul.f32 %v286, %v286
  %v303 = vmul.f32 %v287, %v287
  %v304 = vmul.f32 %v288, %v288
  %v305 = vmul.f32 %v289, %v289
  %v306 = vmul.f32 %v290, %v290
  %v307 = vmul.f32 %v291, %v291
  %v308 = vmul.f32 %v292, %v292
  %v309 = vsel %vm99, %v293, 0.0
  %310 = vadd.xlane.f32.xlu0 %v309
  %v311 = vpop.xlane.xlu0 %310
  %v312 = vsel %vm99, %v294, 0.0
  %313 = vadd.xlane.f32.xlu0 %v312
  %v314 = vpop.xlane.xlu0 %313
  %v315 = vsel %vm99, %v295, 0.0
  %316 = vadd.xlane.f32.xlu0 %v315
  %v317 = vpop.xlane.xlu0 %316
  %v318 = vsel %vm99, %v296, 0.0
  %319 = vadd.xlane.f32.xlu0 %v318
  %v320 = vpop.xlane.xlu0 %319
  %v321 = vsel %vm99, %v297, 0.0
  %322 = vadd.xlane.f32.xlu0 %v321
  %v323 = vpop.xlane.xlu0 %322
  %v324 = vsel %vm99, %v298, 0.0
  %325 = vadd.xlane.f32.xlu0 %v324
  %v326 = vpop.xlane.xlu0 %325
  %v327 = vsel %vm99, %v299, 0.0
  %328 = vadd.xlane.f32.xlu0 %v327
  %v329 = vpop.xlane.xlu0 %328
  %v330 = vsel %vm99, %v300, 0.0
  %331 = vadd.xlane.f32.xlu0 %v330
  %v332 = vpop.xlane.xlu0 %331
  %v333 = vsel %vm99, %v301, 0.0
  %334 = vadd.xlane.f32.xlu0 %v333
  %v335 = vpop.xlane.xlu0 %334
  %v336 = vsel %vm99, %v302, 0.0
  %337 = vadd.xlane.f32.xlu0 %v336
  %v338 = vpop.xlane.xlu0 %337
  %v339 = vsel %vm99, %v303, 0.0
  %340 = vadd.xlane.f32.xlu0 %v339
  %v341 = vpop.xlane.xlu0 %340
  %v342 = vsel %vm99, %v304, 0.0
  %343 = vadd.xlane.f32.xlu0 %v342
  %v344 = vpop.xlane.xlu0 %343
  %v345 = vsel %vm99, %v305, 0.0
  %346 = vadd.xlane.f32.xlu0 %v345
  %v347 = vpop.xlane.xlu0 %346
  %v348 = vsel %vm99, %v306, 0.0
  %349 = vadd.xlane.f32.xlu0 %v348
  %v350 = vpop.xlane.xlu0 %349
  %v351 = vsel %vm99, %v307, 0.0
  %352 = vadd.xlane.f32.xlu0 %v351
  %v353 = vpop.xlane.xlu0 %352
  %v354 = vsel %vm99, %v308, 0.0
  %355 = vadd.xlane.f32.xlu0 %v354
  %v356 = vpop.xlane.xlu0 %355
  %v357 = vmul.f32 %v311, %v260
  %v358 = vmul.f32 %v314, %v260
  %v359 = vmul.f32 %v317, %v260
  %v360 = vmul.f32 %v320, %v260
  %v361 = vmul.f32 %v323, %v260
  %v362 = vmul.f32 %v326, %v260
  %v363 = vmul.f32 %v329, %v260
  %v364 = vmul.f32 %v332, %v260
  %v365 = vmul.f32 %v335, %v260
  %v366 = vmul.f32 %v338, %v260
  %v367 = vmul.f32 %v341, %v260
  %v368 = vmul.f32 %v344, %v260
  %v369 = vmul.f32 %v347, %v260
  %v370 = vmul.f32 %v350, %v260
  %v371 = vmul.f32 %v353, %v260
  %v372 = vmul.f32 %v356, %v260
  %v373 = vadd.f32 %v357, 1e-05
  %v374 = vadd.f32 %v358, 1e-05
  %v375 = vadd.f32 %v359, 1e-05
  %v376 = vadd.f32 %v360, 1e-05
  %v377 = vadd.f32 %v361, 1e-05
  %v378 = vadd.f32 %v362, 1e-05
  %v379 = vadd.f32 %v363, 1e-05
  %v380 = vadd.f32 %v364, 1e-05
  %v381 = vadd.f32 %v365, 1e-05
  %v382 = vadd.f32 %v366, 1e-05
  %v383 = vadd.f32 %v367, 1e-05
  %v384 = vadd.f32 %v368, 1e-05
  %v385 = vadd.f32 %v369, 1e-05
  %v386 = vadd.f32 %v370, 1e-05
  %v387 = vadd.f32 %v371, 1e-05
  %v388 = vadd.f32 %v372, 1e-05
  %v389 = vrsqrt.pop %v373
  %v390 = vmul.f32 %v389, %v373
  %v391 = vmul.f32 %v390, %v389
  %v392 = vmul.f32 0.5, %v391
  %v393 = vsub.f32 1.5, %v392
  %v394 = vmul.f32 %v389, %v393
  %vm395 = vweird.f32 %v373
  %vm396 = vweird.f32 %v389
  %vm397 = vmor %vm395, %vm396
  %v398 = vsel %vm397, %v389, %v394
  %v399 = vrsqrt.pop %v374
  %v400 = vmul.f32 %v399, %v374
  %v401 = vmul.f32 %v400, %v399
  %v402 = vmul.f32 0.5, %v401
  %v403 = vsub.f32 1.5, %v402
  %v404 = vmul.f32 %v399, %v403
  %vm405 = vweird.f32 %v374
  %vm406 = vweird.f32 %v399
  %vm407 = vmor %vm405, %vm406
  %v408 = vsel %vm407, %v399, %v404
  %v409 = vrsqrt.pop %v375
  %v410 = vmul.f32 %v409, %v375
  %v411 = vmul.f32 %v410, %v409
  %v412 = vmul.f32 0.5, %v411
  %v413 = vsub.f32 1.5, %v412
  %v414 = vmul.f32 %v409, %v413
  %vm415 = vweird.f32 %v375
  %vm416 = vweird.f32 %v409
  %vm417 = vmor %vm415, %vm416
  %v418 = vsel %vm417, %v409, %v414
  %v419 = vrsqrt.pop %v376
  %v420 = vmul.f32 %v419, %v376
  %v421 = vmul.f32 %v420, %v419
  %v422 = vmul.f32 0.5, %v421
  %v423 = vsub.f32 1.5, %v422
  %v424 = vmul.f32 %v419, %v423
  %vm425 = vweird.f32 %v376
  %vm426 = vweird.f32 %v419
  %vm427 = vmor %vm425, %vm426
  %v428 = vsel %vm427, %v419, %v424
  %v429 = vrsqrt.pop %v377
  %v430 = vmul.f32 %v429, %v377
  %v431 = vmul.f32 %v430, %v429
  %v432 = vmul.f32 0.5, %v431
  %v433 = vsub.f32 1.5, %v432
  %v434 = vmul.f32 %v429, %v433
  %vm435 = vweird.f32 %v377
  %vm436 = vweird.f32 %v429
  %vm437 = vmor %vm435, %vm436
  %v438 = vsel %vm437, %v429, %v434
  %v439 = vrsqrt.pop %v378
  %v440 = vmul.f32 %v439, %v378
  %v441 = vmul.f32 %v440, %v439
  %v442 = vmul.f32 0.5, %v441
  %v443 = vsub.f32 1.5, %v442
  %v444 = vmul.f32 %v439, %v443
  %vm445 = vweird.f32 %v378
  %vm446 = vweird.f32 %v439
  %vm447 = vmor %vm445, %vm446
  %v448 = vsel %vm447, %v439, %v444
  %v449 = vrsqrt.pop %v379
  %v450 = vmul.f32 %v449, %v379
  %v451 = vmul.f32 %v450, %v449
  %v452 = vmul.f32 0.5, %v451
  %v453 = vsub.f32 1.5, %v452
  %v454 = vmul.f32 %v449, %v453
  %vm455 = vweird.f32 %v379
  %vm456 = vweird.f32 %v449
  %vm457 = vmor %vm455, %vm456
  %v458 = vsel %vm457, %v449, %v454
  %v459 = vrsqrt.pop %v380
  %v460 = vmul.f32 %v459, %v380
  %v461 = vmul.f32 %v460, %v459
  %v462 = vmul.f32 0.5, %v461
  %v463 = vsub.f32 1.5, %v462
  %v464 = vmul.f32 %v459, %v463
  %vm465 = vweird.f32 %v380
  %vm466 = vweird.f32 %v459
  %vm467 = vmor %vm465, %vm466
  %v468 = vsel %vm467, %v459, %v464
  %v469 = vrsqrt.pop %v381
  %v470 = vmul.f32 %v469, %v381
  %v471 = vmul.f32 %v470, %v469
  %v472 = vmul.f32 0.5, %v471
  %v473 = vsub.f32 1.5, %v472
  %v474 = vmul.f32 %v469, %v473
  %vm475 = vweird.f32 %v381
  %vm476 = vweird.f32 %v469
  %vm477 = vmor %vm475, %vm476
  %v478 = vsel %vm477, %v469, %v474
  %v479 = vrsqrt.pop %v382
  %v480 = vmul.f32 %v479, %v382
  %v481 = vmul.f32 %v480, %v479
  %v482 = vmul.f32 0.5, %v481
  %v483 = vsub.f32 1.5, %v482
  %v484 = vmul.f32 %v479, %v483
  %vm485 = vweird.f32 %v382
  %vm486 = vweird.f32 %v479
  %vm487 = vmor %vm485, %vm486
  %v488 = vsel %vm487, %v479, %v484
  %v489 = vrsqrt.pop %v383
  %v490 = vmul.f32 %v489, %v383
  %v491 = vmul.f32 %v490, %v489
  %v492 = vmul.f32 0.5, %v491
  %v493 = vsub.f32 1.5, %v492
  %v494 = vmul.f32 %v489, %v493
  %vm495 = vweird.f32 %v383
  %vm496 = vweird.f32 %v489
  %vm497 = vmor %vm495, %vm496
  %v498 = vsel %vm497, %v489, %v494
  %v499 = vrsqrt.pop %v384
  %v500 = vmul.f32 %v499, %v384
  %v501 = vmul.f32 %v500, %v499
  %v502 = vmul.f32 0.5, %v501
  %v503 = vsub.f32 1.5, %v502
  %v504 = vmul.f32 %v499, %v503
  %vm505 = vweird.f32 %v384
  %vm506 = vweird.f32 %v499
  %vm507 = vmor %vm505, %vm506
  %v508 = vsel %vm507, %v499, %v504
  %v509 = vrsqrt.pop %v385
  %v510 = vmul.f32 %v509, %v385
  %v511 = vmul.f32 %v510, %v509
  %v512 = vmul.f32 0.5, %v511
  %v513 = vsub.f32 1.5, %v512
  %v514 = vmul.f32 %v509, %v513
  %vm515 = vweird.f32 %v385
  %vm516 = vweird.f32 %v509
  %vm517 = vmor %vm515, %vm516
  %v518 = vsel %vm517, %v509, %v514
  %v519 = vrsqrt.pop %v386
  %v520 = vmul.f32 %v519, %v386
  %v521 = vmul.f32 %v520, %v519
  %v522 = vmul.f32 0.5, %v521
  %v523 = vsub.f32 1.5, %v522
  %v524 = vmul.f32 %v519, %v523
  %vm525 = vweird.f32 %v386
  %vm526 = vweird.f32 %v519
  %vm527 = vmor %vm525, %vm526
  %v528 = vsel %vm527, %v519, %v524
  %v529 = vrsqrt.pop %v387
  %v530 = vmul.f32 %v529, %v387
  %v531 = vmul.f32 %v530, %v529
  %v532 = vmul.f32 0.5, %v531
  %v533 = vsub.f32 1.5, %v532
  %v534 = vmul.f32 %v529, %v533
  %vm535 = vweird.f32 %v387
  %vm536 = vweird.f32 %v529
  %vm537 = vmor %vm535, %vm536
  %v538 = vsel %vm537, %v529, %v534
  %v539 = vrsqrt.pop %v388
  %v540 = vmul.f32 %v539, %v388
  %v541 = vmul.f32 %v540, %v539
  %v542 = vmul.f32 0.5, %v541
  %v543 = vsub.f32 1.5, %v542
  %v544 = vmul.f32 %v539, %v543
  %vm545 = vweird.f32 %v388
  %vm546 = vweird.f32 %v539
  %vm547 = vmor %vm545, %vm546
  %v548 = vsel %vm547, %v539, %v544
  %v549 = vmul.f32 %v277, %v398
  %v550 = vmul.f32 %v278, %v408
  %v551 = vmul.f32 %v279, %v418
  %v552 = vmul.f32 %v280, %v428
  %v553 = vmul.f32 %v281, %v438
  %v554 = vmul.f32 %v282, %v448
  %v555 = vmul.f32 %v283, %v458
  %v556 = vmul.f32 %v284, %v468
  %v557 = vmul.f32 %v285, %v478
  %v558 = vmul.f32 %v286, %v488
  %v559 = vmul.f32 %v287, %v498
  %v560 = vmul.f32 %v288, %v508
  %v561 = vmul.f32 %v289, %v518
  %v562 = vmul.f32 %v290, %v528
  %v563 = vmul.f32 %v291, %v538
  %v564 = vmul.f32 %v292, %v548
  %v565 = vld [vmem:[%s3] sm:$0x1]
  %v567 = vperm.slane %v565, 0
  %v569 = vmul.f32 %v549, %v567
  %v570 = vmul.f32 %v550, %v567
  %v571 = vmul.f32 %v551, %v567
  %v572 = vmul.f32 %v552, %v567
  %v573 = vmul.f32 %v553, %v567
  %v574 = vmul.f32 %v554, %v567
  %v575 = vmul.f32 %v555, %v567
  %v576 = vmul.f32 %v556, %v567
  %v577 = vmul.f32 %v557, %v567
  %v578 = vmul.f32 %v558, %v567
  %v579 = vmul.f32 %v559, %v567
  %v580 = vmul.f32 %v560, %v567
  %v581 = vmul.f32 %v561, %v567
  %v582 = vmul.f32 %v562, %v567
  %v583 = vmul.f32 %v563, %v567
  %v584 = vmul.f32 %v564, %v567
  %v585 = vld [vmem:[%s4] sm:$0x1]
  %v587 = vperm.slane %v585, 0
  %v589 = vadd.f32 %v569, %v587
  %v590 = vadd.f32 %v570, %v587
  %v591 = vadd.f32 %v571, %v587
  %v592 = vadd.f32 %v572, %v587
  %v593 = vadd.f32 %v573, %v587
  %v594 = vadd.f32 %v574, %v587
  %v595 = vadd.f32 %v575, %v587
  %v596 = vadd.f32 %v576, %v587
  %v597 = vadd.f32 %v577, %v587
  %v598 = vadd.f32 %v578, %v587
  %v599 = vadd.f32 %v579, %v587
  %v600 = vadd.f32 %v580, %v587
  %v601 = vadd.f32 %v581, %v587
  %v602 = vadd.f32 %v582, %v587
  %v603 = vadd.f32 %v583, %v587
  %v604 = vadd.f32 %v584, %v587
  %605 = vst.msk [vmem:[%s6] sm:$0xff] %vm99, %v589
  %606 = vst.msk [vmem:[%s6 + $0x8] sm:$0xff] %vm99, %v590
  %607 = vst.msk [vmem:[%s6 + $0x10] sm:$0xff] %vm99, %v591
  %608 = vst.msk [vmem:[%s6 + $0x18] sm:$0xff] %vm99, %v592
  %609 = vst.msk [vmem:[%s6 + $0x20] sm:$0xff] %vm99, %v593
  %610 = vst.msk [vmem:[%s6 + $0x28] sm:$0xff] %vm99, %v594
  %611 = vst.msk [vmem:[%s6 + $0x30] sm:$0xff] %vm99, %v595
  %612 = vst.msk [vmem:[%s6 + $0x38] sm:$0xff] %vm99, %v596
  %613 = vst.msk [vmem:[%s6 + $0x40] sm:$0xff] %vm99, %v597
  %614 = vst.msk [vmem:[%s6 + $0x48] sm:$0xff] %vm99, %v598
  %615 = vst.msk [vmem:[%s6 + $0x50] sm:$0xff] %vm99, %v599
  %616 = vst.msk [vmem:[%s6 + $0x58] sm:$0xff] %vm99, %v600
  %617 = vst.msk [vmem:[%s6 + $0x60] sm:$0xff] %vm99, %v601
  %618 = vst.msk [vmem:[%s6 + $0x68] sm:$0xff] %vm99, %v602
  %619 = vst.msk [vmem:[%s6 + $0x70] sm:$0xff] %vm99, %v603
  %620 = vst.msk [vmem:[%s6 + $0x78] sm:$0xff] %vm99, %v604
  // Predicated region
  $region22: #{fine_encoder_forward.10} parent=0 // pred_check
    _
  $region23: #{fine_encoder_forward.10} parent=0 // pred_check_branch
    %622 = sbr.rel (0) target = $region25
  $region24: #{fine_encoder_forward.10} parent=0 // pred_region
    _
  $region25: #{fine_encoder_forward.10} parent=0 // pred_fallthru
    _
  // Predicated region
  $region26: #{fine_encoder_forward.10} parent=0 // pred_check
    _
  $region27: #{fine_encoder_forward.10} parent=0 // pred_check_branch
    %624 = sbr.rel (0) target = $region29
  $region28: #{fine_encoder_forward.10} parent=0 // pred_region
    _
  $region29: #{fine_encoder_forward.10} parent=0 // pred_fallthru
    _
  // Predicated region
  $region30: #{fine_encoder_forward.10} parent=0 // pred_check
    _
  $region31: #{fine_encoder_forward.10} parent=0 // pred_check_branch
    %626 = sbr.rel (0) target = $region33
  $region32: #{fine_encoder_forward.10} parent=0 // pred_region
    _
  $region33: #{fine_encoder_forward.10} parent=0 // pred_fallthru
    _
  // Predicated region
  $region34: #{fine_encoder_forward.10} parent=0 // pred_check
    _
  $region35: #{fine_encoder_forward.10} parent=0 // pred_check_branch
    %628 = sbr.rel (0) target = $region37
  $region36: #{fine_encoder_forward.10} parent=0 // pred_region
    _
  $region37: #{fine_encoder_forward.10} parent=0 // pred_fallthru
    _

// kernel: fine_encoder_forward.9
$region0: #{fine_encoder_forward.9}
  #allocation0 [shape = 'u32[]', space=smem, size = 0x4, offset = 0x4, fixed_abs, tag = 'smem constant byte address 0x4 - core index']
  #allocation1 [shape = 'u32[72,128]{1,0:T(1,128)}', space=vmem, size = 0x9000, scoped, tag = 'internal scratch']
  #allocation2 [shape = 'f32[128,32]{1,0:T(8,128)}', space=vmem, size = 0x10000, scoped, tag = 'scratch operand']
  %s0 = inlined_call_operand.vmem [shape: bf16[128,512], index: 0, kind: input, shape index: {}]
  %s1 = inlined_call_operand.vmem [shape: bf16[512,32], index: 1, kind: input, shape index: {}]
  %s2 = inlined_call_operand.vmem [shape: f32[1,32], index: 2, kind: input, shape index: {}]
  %s3 = inlined_call_operand.vmem [shape: bf16[128,32], index: 3, kind: output, shape index: {}]
  %s4 = sld [smem:[#allocation0]]
  $region30: #{fine_encoder_forward.9} parent=0
    _
  %s6 = ssub.s32 1, %s4
  %s7 = scalar_select 0, %s6, %s4
  // Predicated region
  $region2: #{fine_encoder_forward.9} parent=0 // pred_check
    _
  $region3: #{fine_encoder_forward.9} parent=0 // pred_check_branch
    %9 = sbr.rel (0) target = $region5
  $region4: #{fine_encoder_forward.9} parent=0 // pred_region
    _
  $region5: #{fine_encoder_forward.9} parent=0 // pred_fallthru
    _
  // Predicated region
  $region6: #{fine_encoder_forward.9} parent=0 // pred_check
    _
  $region7: #{fine_encoder_forward.9} parent=0 // pred_check_branch
    %11 = sbr.rel (0) target = $region9
  $region8: #{fine_encoder_forward.9} parent=0 // pred_region
    _
  $region9: #{fine_encoder_forward.9} parent=0 // pred_fallthru
    _
  // Predicated region
  $region10: #{fine_encoder_forward.9} parent=0 // pred_check
    _
  $region11: #{fine_encoder_forward.9} parent=0 // pred_check_branch
    %13 = sbr.rel (0) target = $region13
  $region12: #{fine_encoder_forward.9} parent=0 // pred_region
    _
  $region13: #{fine_encoder_forward.9} parent=0 // pred_fallthru
    _
  %p14 = scmp.eq.s32.totalorder 0, 0
  // Predicated region
  $region14: #{fine_encoder_forward.9} parent=0 // pred_check
    %p15 = pneg %p14
  $region15: #{fine_encoder_forward.9} parent=0 // pred_check_branch
    %17 = sbr.rel (%p15) target = $region17
  $region16: #{fine_encoder_forward.9} parent=0 // pred_region
    %vm18 = vcmask 261120
    %19 = vst.msk [vmem:[#allocation2] sm:$0xff] %vm18, 0.0
    %20 = vst.msk [vmem:[#allocation2 + $0x8] sm:$0xff] %vm18, 0.0
    %21 = vst.msk [vmem:[#allocation2 + $0x10] sm:$0xff] %vm18, 0.0
    %22 = vst.msk [vmem:[#allocation2 + $0x18] sm:$0xff] %vm18, 0.0
    %23 = vst.msk [vmem:[#allocation2 + $0x20] sm:$0xff] %vm18, 0.0
    %24 = vst.msk [vmem:[#allocation2 + $0x28] sm:$0xff] %vm18, 0.0
    %25 = vst.msk [vmem:[#allocation2 + $0x30] sm:$0xff] %vm18, 0.0
    %26 = vst.msk [vmem:[#allocation2 + $0x38] sm:$0xff] %vm18, 0.0
    %27 = vst.msk [vmem:[#allocation2 + $0x40] sm:$0xff] %vm18, 0.0
    %28 = vst.msk [vmem:[#allocation2 + $0x48] sm:$0xff] %vm18, 0.0
    %29 = vst.msk [vmem:[#allocation2 + $0x50] sm:$0xff] %vm18, 0.0
    %30 = vst.msk [vmem:[#allocation2 + $0x58] sm:$0xff] %vm18, 0.0
    %31 = vst.msk [vmem:[#allocation2 + $0x60] sm:$0xff] %vm18, 0.0
    %32 = vst.msk [vmem:[#allocation2 + $0x68] sm:$0xff] %vm18, 0.0
    %33 = vst.msk [vmem:[#allocation2 + $0x70] sm:$0xff] %vm18, 0.0
    %34 = vst.msk [vmem:[#allocation2 + $0x78] sm:$0xff] %vm18, 0.0
  $region17: #{fine_encoder_forward.9} parent=0 // pred_fallthru
    _
  %v35 = vld [vmem:[#allocation2] sm:$0xff]
  %v36 = vld [vmem:[#allocation2 + $0x8] sm:$0xff]
  %v37 = vld [vmem:[#allocation2 + $0x10] sm:$0xff]
  %v38 = vld [vmem:[#allocation2 + $0x18] sm:$0xff]
  %v39 = vld [vmem:[#allocation2 + $0x20] sm:$0xff]
  %v40 = vld [vmem:[#allocation2 + $0x28] sm:$0xff]
  %v41 = vld [vmem:[#allocation2 + $0x30] sm:$0xff]
  %v42 = vld [vmem:[#allocation2 + $0x38] sm:$0xff]
  %v43 = vld [vmem:[#allocation2 + $0x40] sm:$0xff]
  %v44 = vld [vmem:[#allocation2 + $0x48] sm:$0xff]
  %v45 = vld [vmem:[#allocation2 + $0x50] sm:$0xff]
  %v46 = vld [vmem:[#allocation2 + $0x58] sm:$0xff]
  %v47 = vld [vmem:[#allocation2 + $0x60] sm:$0xff]
  %v48 = vld [vmem:[#allocation2 + $0x68] sm:$0xff]
  %v49 = vld [vmem:[#allocation2 + $0x70] sm:$0xff]
  %v50 = vld [vmem:[#allocation2 + $0x78] sm:$0xff]
  %v51 = vld [vmem:[%s0] sm:$0xff]
  %v52 = vld [vmem:[%s0 + $0x8] sm:$0xff]
  %v53 = vld [vmem:[%s0 + $0x10] sm:$0xff]
  %v54 = vld [vmem:[%s0 + $0x18] sm:$0xff]
  %v55 = vld [vmem:[%s0 + $0x20] sm:$0xff]
  %v56 = vld [vmem:[%s0 + $0x28] sm:$0xff]
  %v57 = vld [vmem:[%s0 + $0x30] sm:$0xff]
  %v58 = vld [vmem:[%s0 + $0x38] sm:$0xff]
  %v59 = vld [vmem:[%s0 + $0x40] sm:$0xff]
  %v60 = vld [vmem:[%s0 + $0x48] sm:$0xff]
  %v61 = vld [vmem:[%s0 + $0x50] sm:$0xff]
  %v62 = vld [vmem:[%s0 + $0x58] sm:$0xff]
  %v63 = vld [vmem:[%s0 + $0x60] sm:$0xff]
  %v64 = vld [vmem:[%s0 + $0x68] sm:$0xff]
  %v65 = vld [vmem:[%s0 + $0x70] sm:$0xff]
  %v66 = vld [vmem:[%s0 + $0x78] sm:$0xff]
  %v67 = vld [vmem:[%s0 + $0x80] sm:$0xff]
  %v68 = vld [vmem:[%s0 + $0x88] sm:$0xff]
  %v69 = vld [vmem:[%s0 + $0x90] sm:$0xff]
  %v70 = vld [vmem:[%s0 + $0x98] sm:$0xff]
  %v71 = vld [vmem:[%s0 + $0xa0] sm:$0xff]
  %v72 = vld [vmem:[%s0 + $0xa8] sm:$0xff]
  %v73 = vld [vmem:[%s0 + $0xb0] sm:$0xff]
  %v74 = vld [vmem:[%s0 + $0xb8] sm:$0xff]
  %v75 = vld [vmem:[%s0 + $0xc0] sm:$0xff]
  %v76 = vld [vmem:[%s0 + $0xc8] sm:$0xff]
  %v77 = vld [vmem:[%s0 + $0xd0] sm:$0xff]
  %v78 = vld [vmem:[%s0 + $0xd8] sm:$0xff]
  %v79 = vld [vmem:[%s0 + $0xe0] sm:$0xff]
  %v80 = vld [vmem:[%s0 + $0xe8] sm:$0xff]
  %v81 = vld [vmem:[%s0 + $0xf0] sm:$0xff]
  %v82 = vld [vmem:[%s0 + $0xf8] sm:$0xff]
  %v83 = vld [vmem:[%s1] sm:$0xf]
  %v84 = vld [vmem:[%s1 + $0x4] sm:$0xf]
  %v85 = vld [vmem:[%s1 + $0x8] sm:$0xf]
  %v86 = vld [vmem:[%s1 + $0xc] sm:$0xf]
  %v87 = vld [vmem:[%s1 + $0x10] sm:$0xf]
  %v88 = vld [vmem:[%s1 + $0x14] sm:$0xf]
  %v89 = vld [vmem:[%s1 + $0x18] sm:$0xf]
  %v90 = vld [vmem:[%s1 + $0x1c] sm:$0xf]
  %v91 = vld [vmem:[%s1 + $0x20] sm:$0xf]
  %v92 = vld [vmem:[%s1 + $0x24] sm:$0xf]
  %v93 = vld [vmem:[%s1 + $0x28] sm:$0xf]
  %v94 = vld [vmem:[%s1 + $0x2c] sm:$0xf]
  %v95 = vld [vmem:[%s1 + $0x30] sm:$0xf]
  %v96 = vld [vmem:[%s1 + $0x34] sm:$0xf]
  %v97 = vld [vmem:[%s1 + $0x38] sm:$0xf]
  %v98 = vld [vmem:[%s1 + $0x3c] sm:$0xf]
  %v99 = vld [vmem:[%s1 + $0x40] sm:$0xf]
  %v100 = vld [vmem:[%s1 + $0x44] sm:$0xf]
  %v101 = vld [vmem:[%s1 + $0x48] sm:$0xf]
  %v102 = vld [vmem:[%s1 + $0x4c] sm:$0xf]
  %v103 = vld [vmem:[%s1 + $0x50] sm:$0xf]
  %v104 = vld [vmem:[%s1 + $0x54] sm:$0xf]
  %v105 = vld [vmem:[%s1 + $0x58] sm:$0xf]
  %v106 = vld [vmem:[%s1 + $0x5c] sm:$0xf]
  %v107 = vld [vmem:[%s1 + $0x60] sm:$0xf]
  %v108 = vld [vmem:[%s1 + $0x64] sm:$0xf]
  %v109 = vld [vmem:[%s1 + $0x68] sm:$0xf]
  %v110 = vld [vmem:[%s1 + $0x6c] sm:$0xf]
  %v111 = vld [vmem:[%s1 + $0x70] sm:$0xf]
  %v112 = vld [vmem:[%s1 + $0x74] sm:$0xf]
  %v113 = vld [vmem:[%s1 + $0x78] sm:$0xf]
  %v114 = vld [vmem:[%s1 + $0x7c] sm:$0xf]
  %v115 = vld [vmem:[%s1 + $0x80] sm:$0xf]
  %v116 = vld [vmem:[%s1 + $0x84] sm:$0xf]
  %v117 = vld [vmem:[%s1 + $0x88] sm:$0xf]
  %v118 = vld [vmem:[%s1 + $0x8c] sm:$0xf]
  %v119 = vld [vmem:[%s1 + $0x90] sm:$0xf]
  %v120 = vld [vmem:[%s1 + $0x94] sm:$0xf]
  %v121 = vld [vmem:[%s1 + $0x98] sm:$0xf]
  %v122 = vld [vmem:[%s1 + $0x9c] sm:$0xf]
  %v123 = vld [vmem:[%s1 + $0xa0] sm:$0xf]
  %v124 = vld [vmem:[%s1 + $0xa4] sm:$0xf]
  %v125 = vld [vmem:[%s1 + $0xa8] sm:$0xf]
  %v126 = vld [vmem:[%s1 + $0xac] sm:$0xf]
  %v127 = vld [vmem:[%s1 + $0xb0] sm:$0xf]
  %v128 = vld [vmem:[%s1 + $0xb4] sm:$0xf]
  %v129 = vld [vmem:[%s1 + $0xb8] sm:$0xf]
  %v130 = vld [vmem:[%s1 + $0xbc] sm:$0xf]
  %v131 = vld [vmem:[%s1 + $0xc0] sm:$0xf]
  %v132 = vld [vmem:[%s1 + $0xc4] sm:$0xf]
  %v133 = vld [vmem:[%s1 + $0xc8] sm:$0xf]
  %v134 = vld [vmem:[%s1 + $0xcc] sm:$0xf]
  %v135 = vld [vmem:[%s1 + $0xd0] sm:$0xf]
  %v136 = vld [vmem:[%s1 + $0xd4] sm:$0xf]
  %v137 = vld [vmem:[%s1 + $0xd8] sm:$0xf]
  %v138 = vld [vmem:[%s1 + $0xdc] sm:$0xf]
  %v139 = vld [vmem:[%s1 + $0xe0] sm:$0xf]
  %v140 = vld [vmem:[%s1 + $0xe4] sm:$0xf]
  %v141 = vld [vmem:[%s1 + $0xe8] sm:$0xf]
  %v142 = vld [vmem:[%s1 + $0xec] sm:$0xf]
  %v143 = vld [vmem:[%s1 + $0xf0] sm:$0xf]
  %v144 = vld [vmem:[%s1 + $0xf4] sm:$0xf]
  %v145 = vld [vmem:[%s1 + $0xf8] sm:$0xf]
  %v146 = vld [vmem:[%s1 + $0xfc] sm:$0xf]
  %v179 = vunpack.c.l.b16 %v51
  %v180 = vunpack.c.h.b16 %v51
  %v181 = vunpack.c.l.b16 %v52
  %v182 = vunpack.c.h.b16 %v52
  %v183 = vunpack.c.l.b16 %v53
  %v184 = vunpack.c.h.b16 %v53
  %v185 = vunpack.c.l.b16 %v54
  %v186 = vunpack.c.h.b16 %v54
  %v187 = vunpack.c.l.b16 %v55
  %v188 = vunpack.c.h.b16 %v55
  %v189 = vunpack.c.l.b16 %v56
  %v190 = vunpack.c.h.b16 %v56
  %v191 = vunpack.c.l.b16 %v57
  %v192 = vunpack.c.h.b16 %v57
  %v193 = vunpack.c.l.b16 %v58
  %v194 = vunpack.c.h.b16 %v58
  %v195 = vunpack.c.l.b16 %v59
  %v196 = vunpack.c.h.b16 %v59
  %v197 = vunpack.c.l.b16 %v60
  %v198 = vunpack.c.h.b16 %v60
  %v199 = vunpack.c.l.b16 %v61
  %v200 = vunpack.c.h.b16 %v61
  %v201 = vunpack.c.l.b16 %v62
  %v202 = vunpack.c.h.b16 %v62
  %v203 = vunpack.c.l.b16 %v63
  %v204 = vunpack.c.h.b16 %v63
  %v205 = vunpack.c.l.b16 %v64
  %v206 = vunpack.c.h.b16 %v64
  %v207 = vunpack.c.l.b16 %v65
  %v208 = vunpack.c.h.b16 %v65
  %v209 = vunpack.c.l.b16 %v66
  %v210 = vunpack.c.h.b16 %v66
  %v211 = vunpack.c.l.b16 %v67
  %v212 = vunpack.c.h.b16 %v67
  %v213 = vunpack.c.l.b16 %v68
  %v214 = vunpack.c.h.b16 %v68
  %v215 = vunpack.c.l.b16 %v69
  %v216 = vunpack.c.h.b16 %v69
  %v217 = vunpack.c.l.b16 %v70
  %v218 = vunpack.c.h.b16 %v70
  %v219 = vunpack.c.l.b16 %v71
  %v220 = vunpack.c.h.b16 %v71
  %v221 = vunpack.c.l.b16 %v72
  %v222 = vunpack.c.h.b16 %v72
  %v223 = vunpack.c.l.b16 %v73
  %v224 = vunpack.c.h.b16 %v73
  %v225 = vunpack.c.l.b16 %v74
  %v226 = vunpack.c.h.b16 %v74
  %v227 = vunpack.c.l.b16 %v75
  %v228 = vunpack.c.h.b16 %v75
  %v229 = vunpack.c.l.b16 %v76
  %v230 = vunpack.c.h.b16 %v76
  %v231 = vunpack.c.l.b16 %v77
  %v232 = vunpack.c.h.b16 %v77
  %v233 = vunpack.c.l.b16 %v78
  %v234 = vunpack.c.h.b16 %v78
  %v235 = vunpack.c.l.b16 %v79
  %v236 = vunpack.c.h.b16 %v79
  %v237 = vunpack.c.l.b16 %v80
  %v238 = vunpack.c.h.b16 %v80
  %v239 = vunpack.c.l.b16 %v81
  %v240 = vunpack.c.h.b16 %v81
  %v241 = vunpack.c.l.b16 %v82
  %v242 = vunpack.c.h.b16 %v82
  %v243 = vpack.c.b16 %v183, %v179
  %v244 = vpack.c.b16 %v184, %v180
  %v245 = vpack.c.b16 %v185, %v181
  %v246 = vpack.c.b16 %v186, %v182
  %v247 = vpack.c.b16 %v191, %v187
  %v248 = vpack.c.b16 %v192, %v188
  %v249 = vpack.c.b16 %v193, %v189
  %v250 = vpack.c.b16 %v194, %v190
  %v251 = vpack.c.b16 %v199, %v195
  %v252 = vpack.c.b16 %v200, %v196
  %v253 = vpack.c.b16 %v201, %v197
  %v254 = vpack.c.b16 %v202, %v198
  %v255 = vpack.c.b16 %v207, %v203
  %v256 = vpack.c.b16 %v208, %v204
  %v257 = vpack.c.b16 %v209, %v205
  %v258 = vpack.c.b16 %v210, %v206
  %v259 = vpack.c.b16 %v215, %v211
  %v260 = vpack.c.b16 %v216, %v212
  %v261 = vpack.c.b16 %v217, %v213
  %v262 = vpack.c.b16 %v218, %v214
  %v263 = vpack.c.b16 %v223, %v219
  %v264 = vpack.c.b16 %v224, %v220
  %v265 = vpack.c.b16 %v225, %v221
  %v266 = vpack.c.b16 %v226, %v222
  %v267 = vpack.c.b16 %v231, %v227
  %v268 = vpack.c.b16 %v232, %v228
  %v269 = vpack.c.b16 %v233, %v229
  %v270 = vpack.c.b16 %v234, %v230
  %v271 = vpack.c.b16 %v239, %v235
  %v272 = vpack.c.b16 %v240, %v236
  %v273 = vpack.c.b16 %v241, %v237
  %v274 = vpack.c.b16 %v242, %v238
  %v371 = vunpack.c.l.b16 %v83
  %v372 = vunpack.c.l.b16 %v84
  %v373 = vunpack.c.l.b16 %v85
  %v374 = vunpack.c.l.b16 %v86
  %v375 = vunpack.c.l.b16 %v87
  %v376 = vunpack.c.l.b16 %v88
  %v377 = vunpack.c.l.b16 %v89
  %v378 = vunpack.c.l.b16 %v90
  %v379 = vunpack.c.l.b16 %v91
  %v380 = vunpack.c.l.b16 %v92
  %v381 = vunpack.c.l.b16 %v93
  %v382 = vunpack.c.l.b16 %v94
  %v383 = vunpack.c.l.b16 %v95
  %v384 = vunpack.c.l.b16 %v96
  %v385 = vunpack.c.l.b16 %v97
  %v386 = vunpack.c.l.b16 %v98
  %v387 = vunpack.c.l.b16 %v99
  %v388 = vunpack.c.l.b16 %v100
  %v389 = vunpack.c.l.b16 %v101
  %v390 = vunpack.c.l.b16 %v102
  %v391 = vunpack.c.l.b16 %v103
  %v392 = vunpack.c.l.b16 %v104
  %v393 = vunpack.c.l.b16 %v105
  %v394 = vunpack.c.l.b16 %v106
  %v395 = vunpack.c.l.b16 %v107
  %v396 = vunpack.c.l.b16 %v108
  %v397 = vunpack.c.l.b16 %v109
  %v398 = vunpack.c.l.b16 %v110
  %v399 = vunpack.c.l.b16 %v111
  %v400 = vunpack.c.l.b16 %v112
  %v401 = vunpack.c.l.b16 %v113
  %v402 = vunpack.c.l.b16 %v114
  %v403 = vunpack.c.l.b16 %v115
  %v404 = vunpack.c.l.b16 %v116
  %v405 = vunpack.c.l.b16 %v117
  %v406 = vunpack.c.l.b16 %v118
  %v407 = vunpack.c.l.b16 %v119
  %v408 = vunpack.c.l.b16 %v120
  %v409 = vunpack.c.l.b16 %v121
  %v410 = vunpack.c.l.b16 %v122
  %v411 = vunpack.c.l.b16 %v123
  %v412 = vunpack.c.l.b16 %v124
  %v413 = vunpack.c.l.b16 %v125
  %v414 = vunpack.c.l.b16 %v126
  %v415 = vunpack.c.l.b16 %v127
  %v416 = vunpack.c.l.b16 %v128
  %v417 = vunpack.c.l.b16 %v129
  %v418 = vunpack.c.l.b16 %v130
  %v419 = vunpack.c.l.b16 %v131
  %v420 = vunpack.c.l.b16 %v132
  %v421 = vunpack.c.l.b16 %v133
  %v422 = vunpack.c.l.b16 %v134
  %v423 = vunpack.c.l.b16 %v135
  %v424 = vunpack.c.l.b16 %v136
  %v425 = vunpack.c.l.b16 %v137
  %v426 = vunpack.c.l.b16 %v138
  %v427 = vunpack.c.l.b16 %v139
  %v428 = vunpack.c.l.b16 %v140
  %v429 = vunpack.c.l.b16 %v141
  %v430 = vunpack.c.l.b16 %v142
  %v431 = vunpack.c.l.b16 %v143
  %v432 = vunpack.c.l.b16 %v144
  %v433 = vunpack.c.l.b16 %v145
  %v434 = vunpack.c.l.b16 %v146
  %v435 = vpack.c.b16 %v372, %v371
  %v436 = vpack.c.b16 %v374, %v373
  %v437 = vpack.c.b16 %v376, %v375
  %v438 = vpack.c.b16 %v378, %v377
  %v439 = vpack.c.b16 %v380, %v379
  %v440 = vpack.c.b16 %v382, %v381
  %v441 = vpack.c.b16 %v384, %v383
  %v442 = vpack.c.b16 %v386, %v385
  %v443 = vpack.c.b16 %v388, %v387
  %v444 = vpack.c.b16 %v390, %v389
  %v445 = vpack.c.b16 %v392, %v391
  %v446 = vpack.c.b16 %v394, %v393
  %v447 = vpack.c.b16 %v396, %v395
  %v448 = vpack.c.b16 %v398, %v397
  %v449 = vpack.c.b16 %v400, %v399
  %v450 = vpack.c.b16 %v402, %v401
  %v451 = vpack.c.b16 %v404, %v403
  %v452 = vpack.c.b16 %v406, %v405
  %v453 = vpack.c.b16 %v408, %v407
  %v454 = vpack.c.b16 %v410, %v409
  %v455 = vpack.c.b16 %v412, %v411
  %v456 = vpack.c.b16 %v414, %v413
  %v457 = vpack.c.b16 %v416, %v415
  %v458 = vpack.c.b16 %v418, %v417
  %v459 = vpack.c.b16 %v420, %v419
  %v460 = vpack.c.b16 %v422, %v421
  %v461 = vpack.c.b16 %v424, %v423
  %v462 = vpack.c.b16 %v426, %v425
  %v463 = vpack.c.b16 %v428, %v427
  %v464 = vpack.c.b16 %v430, %v429
  %v465 = vpack.c.b16 %v432, %v431
  %v466 = vpack.c.b16 %v434, %v433
  %499 = vmatpush.bf16.msra.mxu0 %v442
  %500 = vmatpush.bf16.msra.mxu0 %v441
  %501 = vmatpush.bf16.msra.mxu0 %v440
  %502 = vmatpush.bf16.msra.mxu0 %v439
  %503 = vmatpush.bf16.msra.mxu0 %v438
  %504 = vmatpush.bf16.msra.mxu0 %v437
  %505 = vmatpush.bf16.msra.mxu0 %v436
  %506 = vmatpush.bf16.msra.mxu0 %v435
  %507 = vmatmul.bf16.gmra.mxu0 %v243
  %v508 = vpop.f32.mrf.mxu0
  %v509 = vadd.f32 0.0, %v508
  %v510 = vpop.f32.mrf.mxu0
  %v511 = vadd.f32 0.0, %v510
  %512 = vmatmul.bf16.gmra.mxu0 %v247
  %v513 = vpop.f32.mrf.mxu0
  %v514 = vadd.f32 0.0, %v513
  %v515 = vpop.f32.mrf.mxu0
  %v516 = vadd.f32 0.0, %v515
  %517 = vmatmul.bf16.gmra.mxu0 %v251
  %v518 = vpop.f32.mrf.mxu0
  %v519 = vadd.f32 0.0, %v518
  %v520 = vpop.f32.mrf.mxu0
  %v521 = vadd.f32 0.0, %v520
  %522 = vmatmul.bf16.gmra.mxu0 %v255
  %v523 = vpop.f32.mrf.mxu0
  %v524 = vadd.f32 0.0, %v523
  %v525 = vpop.f32.mrf.mxu0
  %v526 = vadd.f32 0.0, %v525
  %527 = vmatmul.bf16.gmra.mxu0 %v259
  %v528 = vpop.f32.mrf.mxu0
  %v529 = vadd.f32 0.0, %v528
  %v530 = vpop.f32.mrf.mxu0
  %v531 = vadd.f32 0.0, %v530
  %532 = vmatmul.bf16.gmra.mxu0 %v263
  %v533 = vpop.f32.mrf.mxu0
  %v534 = vadd.f32 0.0, %v533
  %v535 = vpop.f32.mrf.mxu0
  %v536 = vadd.f32 0.0, %v535
  %537 = vmatmul.bf16.gmra.mxu0 %v267
  %v538 = vpop.f32.mrf.mxu0
  %v539 = vadd.f32 0.0, %v538
  %v540 = vpop.f32.mrf.mxu0
  %v541 = vadd.f32 0.0, %v540
  %542 = vmatmul.bf16.gmra.mxu0 %v271
  %v543 = vpop.f32.mrf.mxu0
  %v544 = vadd.f32 0.0, %v543
  %v545 = vpop.f32.mrf.mxu0
  %v546 = vadd.f32 0.0, %v545
  %547 = vdwg.mxu0
  %548 = vmatpush.bf16.msra.mxu0 %v450
  %549 = vmatpush.bf16.msra.mxu0 %v449
  %550 = vmatpush.bf16.msra.mxu0 %v448
  %551 = vmatpush.bf16.msra.mxu0 %v447
  %552 = vmatpush.bf16.msra.mxu0 %v446
  %553 = vmatpush.bf16.msra.mxu0 %v445
  %554 = vmatpush.bf16.msra.mxu0 %v444
  %555 = vmatpush.bf16.msra.mxu0 %v443
  %556 = vmatmul.bf16.gmra.mxu0 %v244
  %v557 = vpop.f32.mrf.mxu0
  %v558 = vadd.f32 %v509, %v557
  %v559 = vpop.f32.mrf.mxu0
  %v560 = vadd.f32 %v511, %v559
  %561 = vmatmul.bf16.gmra.mxu0 %v248
  %v562 = vpop.f32.mrf.mxu0
  %v563 = vadd.f32 %v514, %v562
  %v564 = vpop.f32.mrf.mxu0
  %v565 = vadd.f32 %v516, %v564
  %566 = vmatmul.bf16.gmra.mxu0 %v252
  %v567 = vpop.f32.mrf.mxu0
  %v568 = vadd.f32 %v519, %v567
  %v569 = vpop.f32.mrf.mxu0
  %v570 = vadd.f32 %v521, %v569
  %571 = vmatmul.bf16.gmra.mxu0 %v256
  %v572 = vpop.f32.mrf.mxu0
  %v573 = vadd.f32 %v524, %v572
  %v574 = vpop.f32.mrf.mxu0
  %v575 = vadd.f32 %v526, %v574
  %576 = vmatmul.bf16.gmra.mxu0 %v260
  %v577 = vpop.f32.mrf.mxu0
  %v578 = vadd.f32 %v529, %v577
  %v579 = vpop.f32.mrf.mxu0
  %v580 = vadd.f32 %v531, %v579
  %581 = vmatmul.bf16.gmra.mxu0 %v264
  %v582 = vpop.f32.mrf.mxu0
  %v583 = vadd.f32 %v534, %v582
  %v584 = vpop.f32.mrf.mxu0
  %v585 = vadd.f32 %v536, %v584
  %586 = vmatmul.bf16.gmra.mxu0 %v268
  %v587 = vpop.f32.mrf.mxu0
  %v588 = vadd.f32 %v539, %v587
  %v589 = vpop.f32.mrf.mxu0
  %v590 = vadd.f32 %v541, %v589
  %591 = vmatmul.bf16.gmra.mxu0 %v272
  %v592 = vpop.f32.mrf.mxu0
  %v593 = vadd.f32 %v544, %v592
  %v594 = vpop.f32.mrf.mxu0
  %v595 = vadd.f32 %v546, %v594
  %596 = vdwg.mxu0
  %597 = vmatpush.bf16.msra.mxu0 %v458
  %598 = vmatpush.bf16.msra.mxu0 %v457
  %599 = vmatpush.bf16.msra.mxu0 %v456
  %600 = vmatpush.bf16.msra.mxu0 %v455
  %601 = vmatpush.bf16.msra.mxu0 %v454
  %602 = vmatpush.bf16.msra.mxu0 %v453
  %603 = vmatpush.bf16.msra.mxu0 %v452
  %604 = vmatpush.bf16.msra.mxu0 %v451
  %605 = vmatmul.bf16.gmra.mxu0 %v245
  %v606 = vpop.f32.mrf.mxu0
  %v607 = vadd.f32 %v558, %v606
  %v608 = vpop.f32.mrf.mxu0
  %v609 = vadd.f32 %v560, %v608
  %610 = vmatmul.bf16.gmra.mxu0 %v249
  %v611 = vpop.f32.mrf.mxu0
  %v612 = vadd.f32 %v563, %v611
  %v613 = vpop.f32.mrf.mxu0
  %v614 = vadd.f32 %v565, %v613
  %615 = vmatmul.bf16.gmra.mxu0 %v253
  %v616 = vpop.f32.mrf.mxu0
  %v617 = vadd.f32 %v568, %v616
  %v618 = vpop.f32.mrf.mxu0
  %v619 = vadd.f32 %v570, %v618
  %620 = vmatmul.bf16.gmra.mxu0 %v257
  %v621 = vpop.f32.mrf.mxu0
  %v622 = vadd.f32 %v573, %v621
  %v623 = vpop.f32.mrf.mxu0
  %v624 = vadd.f32 %v575, %v623
  %625 = vmatmul.bf16.gmra.mxu0 %v261
  %v626 = vpop.f32.mrf.mxu0
  %v627 = vadd.f32 %v578, %v626
  %v628 = vpop.f32.mrf.mxu0
  %v629 = vadd.f32 %v580, %v628
  %630 = vmatmul.bf16.gmra.mxu0 %v265
  %v631 = vpop.f32.mrf.mxu0
  %v632 = vadd.f32 %v583, %v631
  %v633 = vpop.f32.mrf.mxu0
  %v634 = vadd.f32 %v585, %v633
  %635 = vmatmul.bf16.gmra.mxu0 %v269
  %v636 = vpop.f32.mrf.mxu0
  %v637 = vadd.f32 %v588, %v636
  %v638 = vpop.f32.mrf.mxu0
  %v639 = vadd.f32 %v590, %v638
  %640 = vmatmul.bf16.gmra.mxu0 %v273
  %v641 = vpop.f32.mrf.mxu0
  %v642 = vadd.f32 %v593, %v641
  %v643 = vpop.f32.mrf.mxu0
  %v644 = vadd.f32 %v595, %v643
  %645 = vdwg.mxu0
  %646 = vmatpush.bf16.msra.mxu0 %v466
  %647 = vmatpush.bf16.msra.mxu0 %v465
  %648 = vmatpush.bf16.msra.mxu0 %v464
  %649 = vmatpush.bf16.msra.mxu0 %v463
  %650 = vmatpush.bf16.msra.mxu0 %v462
  %651 = vmatpush.bf16.msra.mxu0 %v461
  %652 = vmatpush.bf16.msra.mxu0 %v460
  %653 = vmatpush.bf16.msra.mxu0 %v459
  %654 = vmatmul.bf16.gmra.mxu0 %v246
  %v655 = vpop.f32.mrf.mxu0
  %v656 = vadd.f32 %v607, %v655
  %v657 = vpop.f32.mrf.mxu0
  %v658 = vadd.f32 %v609, %v657
  %659 = vmatmul.bf16.gmra.mxu0 %v250
  %v660 = vpop.f32.mrf.mxu0
  %v661 = vadd.f32 %v612, %v660
  %v662 = vpop.f32.mrf.mxu0
  %v663 = vadd.f32 %v614, %v662
  %664 = vmatmul.bf16.gmra.mxu0 %v254
  %v665 = vpop.f32.mrf.mxu0
  %v666 = vadd.f32 %v617, %v665
  %v667 = vpop.f32.mrf.mxu0
  %v668 = vadd.f32 %v619, %v667
  %669 = vmatmul.bf16.gmra.mxu0 %v258
  %v670 = vpop.f32.mrf.mxu0
  %v671 = vadd.f32 %v622, %v670
  %v672 = vpop.f32.mrf.mxu0
  %v673 = vadd.f32 %v624, %v672
  %674 = vmatmul.bf16.gmra.mxu0 %v262
  %v675 = vpop.f32.mrf.mxu0
  %v676 = vadd.f32 %v627, %v675
  %v677 = vpop.f32.mrf.mxu0
  %v678 = vadd.f32 %v629, %v677
  %679 = vmatmul.bf16.gmra.mxu0 %v266
  %v680 = vpop.f32.mrf.mxu0
  %v681 = vadd.f32 %v632, %v680
  %v682 = vpop.f32.mrf.mxu0
  %v683 = vadd.f32 %v634, %v682
  %684 = vmatmul.bf16.gmra.mxu0 %v270
  %v685 = vpop.f32.mrf.mxu0
  %v686 = vadd.f32 %v637, %v685
  %v687 = vpop.f32.mrf.mxu0
  %v688 = vadd.f32 %v639, %v687
  %689 = vmatmul.bf16.gmra.mxu0 %v274
  %v690 = vpop.f32.mrf.mxu0
  %v691 = vadd.f32 %v642, %v690
  %v692 = vpop.f32.mrf.mxu0
  %v693 = vadd.f32 %v644, %v692
  %694 = vdwg.mxu0
  %v695 = vadd.f32 %v35, %v656
  %v696 = vadd.f32 %v36, %v658
  %v697 = vadd.f32 %v37, %v661
  %v698 = vadd.f32 %v38, %v663
  %v699 = vadd.f32 %v39, %v666
  %v700 = vadd.f32 %v40, %v668
  %v701 = vadd.f32 %v41, %v671
  %v702 = vadd.f32 %v42, %v673
  %v703 = vadd.f32 %v43, %v676
  %v704 = vadd.f32 %v44, %v678
  %v705 = vadd.f32 %v45, %v681
  %v706 = vadd.f32 %v46, %v683
  %v707 = vadd.f32 %v47, %v686
  %v708 = vadd.f32 %v48, %v688
  %v709 = vadd.f32 %v49, %v691
  %v710 = vadd.f32 %v50, %v693
  %vm711 = vcmask 261120
  %712 = vst.msk [vmem:[#allocation2] sm:$0xff] %vm711, %v695
  %713 = vst.msk [vmem:[#allocation2 + $0x8] sm:$0xff] %vm711, %v696
  %714 = vst.msk [vmem:[#allocation2 + $0x10] sm:$0xff] %vm711, %v697
  %715 = vst.msk [vmem:[#allocation2 + $0x18] sm:$0xff] %vm711, %v698
  %716 = vst.msk [vmem:[#allocation2 + $0x20] sm:$0xff] %vm711, %v699
  %717 = vst.msk [vmem:[#allocation2 + $0x28] sm:$0xff] %vm711, %v700
  %718 = vst.msk [vmem:[#allocation2 + $0x30] sm:$0xff] %vm711, %v701
  %719 = vst.msk [vmem:[#allocation2 + $0x38] sm:$0xff] %vm711, %v702
  %720 = vst.msk [vmem:[#allocation2 + $0x40] sm:$0xff] %vm711, %v703
  %721 = vst.msk [vmem:[#allocation2 + $0x48] sm:$0xff] %vm711, %v704
  %722 = vst.msk [vmem:[#allocation2 + $0x50] sm:$0xff] %vm711, %v705
  %723 = vst.msk [vmem:[#allocation2 + $0x58] sm:$0xff] %vm711, %v706
  %724 = vst.msk [vmem:[#allocation2 + $0x60] sm:$0xff] %vm711, %v707
  %725 = vst.msk [vmem:[#allocation2 + $0x68] sm:$0xff] %vm711, %v708
  %726 = vst.msk [vmem:[#allocation2 + $0x70] sm:$0xff] %vm711, %v709
  %727 = vst.msk [vmem:[#allocation2 + $0x78] sm:$0xff] %vm711, %v710
  // Predicated region
  $region18: #{fine_encoder_forward.9} parent=0 // pred_check
    %p728 = pneg %p14
  $region19: #{fine_encoder_forward.9} parent=0 // pred_check_branch
    %730 = sbr.rel (%p728) target = $region21
  $region20: #{fine_encoder_forward.9} parent=0 // pred_region
    %v731 = vld [vmem:[#allocation2] sm:$0xff]
    %v732 = vld [vmem:[#allocation2 + $0x8] sm:$0xff]
    %v733 = vld [vmem:[#allocation2 + $0x10] sm:$0xff]
    %v734 = vld [vmem:[#allocation2 + $0x18] sm:$0xff]
    %v735 = vld [vmem:[#allocation2 + $0x20] sm:$0xff]
    %v736 = vld [vmem:[#allocation2 + $0x28] sm:$0xff]
    %v737 = vld [vmem:[#allocation2 + $0x30] sm:$0xff]
    %v738 = vld [vmem:[#allocation2 + $0x38] sm:$0xff]
    %v739 = vld [vmem:[#allocation2 + $0x40] sm:$0xff]
    %v740 = vld [vmem:[#allocation2 + $0x48] sm:$0xff]
    %v741 = vld [vmem:[#allocation2 + $0x50] sm:$0xff]
    %v742 = vld [vmem:[#allocation2 + $0x58] sm:$0xff]
    %v743 = vld [vmem:[#allocation2 + $0x60] sm:$0xff]
    %v744 = vld [vmem:[#allocation2 + $0x68] sm:$0xff]
    %v745 = vld [vmem:[#allocation2 + $0x70] sm:$0xff]
    %v746 = vld [vmem:[#allocation2 + $0x78] sm:$0xff]
    %v747 = vld [vmem:[%s2] sm:$0x1]
    %v749 = vperm.slane %v747, 0
    %v751 = vadd.f32 %v731, %v749
    %v752 = vadd.f32 %v732, %v749
    %v753 = vadd.f32 %v733, %v749
    %v754 = vadd.f32 %v734, %v749
    %v755 = vadd.f32 %v735, %v749
    %v756 = vadd.f32 %v736, %v749
    %v757 = vadd.f32 %v737, %v749
    %v758 = vadd.f32 %v738, %v749
    %v759 = vadd.f32 %v739, %v749
    %v760 = vadd.f32 %v740, %v749
    %v761 = vadd.f32 %v741, %v749
    %v762 = vadd.f32 %v742, %v749
    %v763 = vadd.f32 %v743, %v749
    %v764 = vadd.f32 %v744, %v749
    %v765 = vadd.f32 %v745, %v749
    %v766 = vadd.f32 %v746, %v749
    %v767 = vpack.c.bf16 %v751, %v751
    %v768 = vpack.c.bf16 %v752, %v752
    %v769 = vpack.c.bf16 %v753, %v753
    %v770 = vpack.c.bf16 %v754, %v754
    %v771 = vpack.c.bf16 %v755, %v755
    %v772 = vpack.c.bf16 %v756, %v756
    %v773 = vpack.c.bf16 %v757, %v757
    %v774 = vpack.c.bf16 %v758, %v758
    %v775 = vpack.c.bf16 %v759, %v759
    %v776 = vpack.c.bf16 %v760, %v760
    %v777 = vpack.c.bf16 %v761, %v761
    %v778 = vpack.c.bf16 %v762, %v762
    %v779 = vpack.c.bf16 %v763, %v763
    %v780 = vpack.c.bf16 %v764, %v764
    %v781 = vpack.c.bf16 %v765, %v765
    %v782 = vpack.c.bf16 %v766, %v766
    %vm783 = vcmask 257024
    %784 = vst.msk [vmem:[%s3] sm:$0xf] %vm783, %v767
    %785 = vst.msk [vmem:[%s3 + $0x4] sm:$0xf] %vm783, %v768
    %786 = vst.msk [vmem:[%s3 + $0x8] sm:$0xf] %vm783, %v769
    %787 = vst.msk [vmem:[%s3 + $0xc] sm:$0xf] %vm783, %v770
    %788 = vst.msk [vmem:[%s3 + $0x10] sm:$0xf] %vm783, %v771
    %789 = vst.msk [vmem:[%s3 + $0x14] sm:$0xf] %vm783, %v772
    %790 = vst.msk [vmem:[%s3 + $0x18] sm:$0xf] %vm783, %v773
    %791 = vst.msk [vmem:[%s3 + $0x1c] sm:$0xf] %vm783, %v774
    %792 = vst.msk [vmem:[%s3 + $0x20] sm:$0xf] %vm783, %v775
    %793 = vst.msk [vmem:[%s3 + $0x24] sm:$0xf] %vm783, %v776
    %794 = vst.msk [vmem:[%s3 + $0x28] sm:$0xf] %vm783, %v777
    %795 = vst.msk [vmem:[%s3 + $0x2c] sm:$0xf] %vm783, %v778
    %796 = vst.msk [vmem:[%s3 + $0x30] sm:$0xf] %vm783, %v779
    %797 = vst.msk [vmem:[%s3 + $0x34] sm:$0xf] %vm783, %v780
    %798 = vst.msk [vmem:[%s3 + $0x38] sm:$0xf] %vm783, %v781
    %799 = vst.msk [vmem:[%s3 + $0x3c] sm:$0xf] %vm783, %v782
  $region21: #{fine_encoder_forward.9} parent=0 // pred_fallthru
    _
  // Predicated region
  $region22: #{fine_encoder_forward.9} parent=0 // pred_check
    _
  $region23: #{fine_encoder_forward.9} parent=0 // pred_check_branch
    %801 = sbr.rel (0) target = $region25
  $region24: #{fine_encoder_forward.9} parent=0 // pred_region
    _
  $region25: #{fine_encoder_forward.9} parent=0 // pred_fallthru
    _
  // Predicated region
  $region26: #{fine_encoder_forward.9} parent=0 // pred_check
    _
  $region27: #{fine_encoder_forward.9} parent=0 // pred_check_branch
    %803 = sbr.rel (0) target = $region29
  $region28: #{fine_encoder_forward.9} parent=0 // pred_region
    _
  $region29: #{fine_encoder_forward.9} parent=0 // pred_fallthru
    _

// kernel: tile.20
$region0: #{tile.20}
  %s0 = inlined_call_operand.vmem [shape: f32[27,4,32], index: 0, kind: input, shape index: {}]
  %s1 = inlined_call_operand.vmem [shape: f32[27,128], index: 1, kind: output, shape index: {}]
  $region1: #{tile.20} parent=0
    #allocation0 [shape = 'u8[110592]{0}', space=vmem, size = 0x1b000, scoped, tag = 'scoped mem for input reshape']
    %s3 = ssub.s32 16, 1
    %s4 = scalar_lea.vmem %s0, 104
    %v5 = vld [vmem:[%s4] sm:%s3]
    %s6 = scalar_lea.vmem [#allocation0], 208
    %7 = vst [vmem:[%s6] sm:%s3] %v5
    %s8 = scalar_lea.vmem %s0, 100
    %v9 = vld [vmem:[%s8] sm:%s3]
    %s10 = scalar_lea.vmem [#allocation0], 200
    %11 = vst [vmem:[%s10] sm:%s3] %v9
    %s12 = scalar_lea.vmem %s0, 96
    %v13 = vld [vmem:[%s12] sm:%s3]
    %s14 = scalar_lea.vmem [#allocation0], 192
    %15 = vst [vmem:[%s14] sm:%s3] %v13
    %s16 = scalar_lea.vmem %s0, 92
    %v17 = vld [vmem:[%s16] sm:%s3]
    %s18 = scalar_lea.vmem [#allocation0], 184
    %19 = vst [vmem:[%s18] sm:%s3] %v17
    %s20 = scalar_lea.vmem %s0, 88
    %v21 = vld [vmem:[%s20] sm:%s3]
    %s22 = scalar_lea.vmem [#allocation0], 176
    %23 = vst [vmem:[%s22] sm:%s3] %v21
    %s24 = scalar_lea.vmem %s0, 84
    %v25 = vld [vmem:[%s24] sm:%s3]
    %s26 = scalar_lea.vmem [#allocation0], 168
    %27 = vst [vmem:[%s26] sm:%s3] %v25
    %s28 = scalar_lea.vmem %s0, 80
    %v29 = vld [vmem:[%s28] sm:%s3]
    %s30 = scalar_lea.vmem [#allocation0], 160
    %31 = vst [vmem:[%s30] sm:%s3] %v29
    %s32 = scalar_lea.vmem %s0, 76
    %v33 = vld [vmem:[%s32] sm:%s3]
    %s34 = scalar_lea.vmem [#allocation0], 152
    %35 = vst [vmem:[%s34] sm:%s3] %v33
    %s36 = scalar_lea.vmem %s0, 72
    %v37 = vld [vmem:[%s36] sm:%s3]
    %s38 = scalar_lea.vmem [#allocation0], 144
    %39 = vst [vmem:[%s38] sm:%s3] %v37
    %s40 = scalar_lea.vmem %s0, 68
    %v41 = vld [vmem:[%s40] sm:%s3]
    %s42 = scalar_lea.vmem [#allocation0], 136
    %43 = vst [vmem:[%s42] sm:%s3] %v41
    %s44 = scalar_lea.vmem %s0, 64
    %v45 = vld [vmem:[%s44] sm:%s3]
    %s46 = scalar_lea.vmem [#allocation0], 128
    %47 = vst [vmem:[%s46] sm:%s3] %v45
    %s48 = scalar_lea.vmem %s0, 60
    %v49 = vld [vmem:[%s48] sm:%s3]
    %s50 = scalar_lea.vmem [#allocation0], 120
    %51 = vst [vmem:[%s50] sm:%s3] %v49
    %s52 = scalar_lea.vmem %s0, 56
    %v53 = vld [vmem:[%s52] sm:%s3]
    %s54 = scalar_lea.vmem [#allocation0], 112
    %55 = vst [vmem:[%s54] sm:%s3] %v53
    %s56 = scalar_lea.vmem %s0, 52
    %v57 = vld [vmem:[%s56] sm:%s3]
    %s58 = scalar_lea.vmem [#allocation0], 104
    %59 = vst [vmem:[%s58] sm:%s3] %v57
    %s60 = scalar_lea.vmem %s0, 48
    %v61 = vld [vmem:[%s60] sm:%s3]
    %s62 = scalar_lea.vmem [#allocation0], 96
    %63 = vst [vmem:[%s62] sm:%s3] %v61
    %s64 = scalar_lea.vmem %s0, 44
    %v65 = vld [vmem:[%s64] sm:%s3]
    %s66 = scalar_lea.vmem [#allocation0], 88
    %67 = vst [vmem:[%s66] sm:%s3] %v65
    %s68 = scalar_lea.vmem %s0, 40
    %v69 = vld [vmem:[%s68] sm:%s3]
    %s70 = scalar_lea.vmem [#allocation0], 80
    %71 = vst [vmem:[%s70] sm:%s3] %v69
    %s72 = scalar_lea.vmem %s0, 36
    %v73 = vld [vmem:[%s72] sm:%s3]
    %s74 = scalar_lea.vmem [#allocation0], 72
    %75 = vst [vmem:[%s74] sm:%s3] %v73
    %s76 = scalar_lea.vmem %s0, 32
    %v77 = vld [vmem:[%s76] sm:%s3]
    %s78 = scalar_lea.vmem [#allocation0], 64
    %79 = vst [vmem:[%s78] sm:%s3] %v77
    %s80 = scalar_lea.vmem %s0, 28
    %v81 = vld [vmem:[%s80] sm:%s3]
    %s82 = scalar_lea.vmem [#allocation0], 56
    %83 = vst [vmem:[%s82] sm:%s3] %v81
    %s84 = scalar_lea.vmem %s0, 24
    %v85 = vld [vmem:[%s84] sm:%s3]
    %s86 = scalar_lea.vmem [#allocation0], 48
    %87 = vst [vmem:[%s86] sm:%s3] %v85
    %s88 = scalar_lea.vmem %s0, 20
    %v89 = vld [vmem:[%s88] sm:%s3]
    %s90 = scalar_lea.vmem [#allocation0], 40
    %91 = vst [vmem:[%s90] sm:%s3] %v89
    %s92 = scalar_lea.vmem %s0, 16
    %v93 = vld [vmem:[%s92] sm:%s3]
    %s94 = scalar_lea.vmem [#allocation0], 32
    %95 = vst [vmem:[%s94] sm:%s3] %v93
    %s96 = scalar_lea.vmem %s0, 12
    %v97 = vld [vmem:[%s96] sm:%s3]
    %s98 = scalar_lea.vmem [#allocation0], 24
    %99 = vst [vmem:[%s98] sm:%s3] %v97
    %s100 = scalar_lea.vmem %s0, 8
    %v101 = vld [vmem:[%s100] sm:%s3]
    %s102 = scalar_lea.vmem [#allocation0], 16
    %103 = vst [vmem:[%s102] sm:%s3] %v101
    %s104 = scalar_lea.vmem %s0, 4
    %v105 = vld [vmem:[%s104] sm:%s3]
    %s106 = scalar_lea.vmem [#allocation0], 8
    %107 = vst [vmem:[%s106] sm:%s3] %v105
    %v108 = vld [vmem:[%s0] sm:%s3]
    %109 = vst [vmem:[#allocation0] sm:%s3] %v108
    %v110 = vld [vmem:[#allocation0] ss:$8 sm:$0xf]
    %v111 = vld [vmem:[#allocation0] ss:$8 sm:$0xf0]
    %vm112 = vcmask 1047556
    %v113 = vsel %vm112, %v111, %v110
    %vm114 = vcmask 261120
    %115 = vst.msk [vmem:[%s1] sm:$0xff] %vm114, %v113
    %s116 = scalar_lea.vmem [#allocation0], 64
    %v117 = vld [vmem:[%s116] ss:$8 sm:$0xf]
    %s118 = scalar_lea.vmem [#allocation0], 64
    %v119 = vld [vmem:[%s118] ss:$8 sm:$0xf0]
    %vm120 = vcmask 1047556
    %v121 = vsel %vm120, %v119, %v117
    %vm122 = vcmask 261120
    %s123 = scalar_lea.vmem %s1, 8
    %124 = vst.msk [vmem:[%s123] sm:$0xff] %vm122, %v121
    %s125 = scalar_lea.vmem [#allocation0], 128
    %v126 = vld [vmem:[%s125] ss:$8 sm:$0xf]
    %s127 = scalar_lea.vmem [#allocation0], 128
    %v128 = vld [vmem:[%s127] ss:$8 sm:$0xf0]
    %vm129 = vcmask 1047556
    %v130 = vsel %vm129, %v128, %v126
    %vm131 = vcmask 261120
    %s132 = scalar_lea.vmem %s1, 16
    %133 = vst.msk [vmem:[%s132] sm:$0xff] %vm131, %v130
    %s134 = scalar_lea.vmem [#allocation0], 192
    %v135 = vld [vmem:[%s134] ss:$8 sm:$0x7]
    %vm136 = vcmask 261120
    %s137 = scalar_lea.vmem %s1, 24
    %138 = vst.msk [vmem:[%s137] sm:$0x7] %vm136, %v135
    %s139 = scalar_lea.vmem [#allocation0], 3
    %v140 = vld [vmem:[%s139] ss:$8 sm:$0xf]
    %s141 = scalar_lea.vmem [#allocation0], 3
    %v142 = vld [vmem:[%s141] ss:$8 sm:$0xf0]
    %vm143 = vcmask 1047556
    %v144 = vsel %vm143, %v142, %v140
    %145 = vrot.lane.b32.xlu0 %v144, 96
    %v146 = vpop.permute.xlu0 %145
    %vm147 = vcmask 1048320
    %148 = vst.msk [vmem:[%s1] sm:$0xff] %vm147, %v146
    %s149 = scalar_lea.vmem [#allocation0], 67
    %v150 = vld [vmem:[%s149] ss:$8 sm:$0xf]
    %s151 = scalar_lea.vmem [#allocation0], 67
    %v152 = vld [vmem:[%s151] ss:$8 sm:$0xf0]
    %vm153 = vcmask 1047556
    %v154 = vsel %vm153, %v152, %v150
    %155 = vrot.lane.b32.xlu0 %v154, 96
    %v156 = vpop.permute.xlu0 %155
    %vm157 = vcmask 1048320
    %s158 = scalar_lea.vmem %s1, 8
    %159 = vst.msk [vmem:[%s158] sm:$0xff] %vm157, %v156
    %s160 = scalar_lea.vmem [#allocation0], 131
    %v161 = vld [vmem:[%s160] ss:$8 sm:$0xf]
    %s162 = scalar_lea.vmem [#allocation0], 131
    %v163 = vld [vmem:[%s162] ss:$8 sm:$0xf0]
    %vm164 = vcmask 1047556
    %v165 = vsel %vm164, %v163, %v161
    %166 = vrot.lane.b32.xlu0 %v165, 96
    %v167 = vpop.permute.xlu0 %166
    %vm168 = vcmask 1048320
    %s169 = scalar_lea.vmem %s1, 16
    %170 = vst.msk [vmem:[%s169] sm:$0xff] %vm168, %v167
    %s171 = scalar_lea.vmem [#allocation0], 195
    %v172 = vld [vmem:[%s171] ss:$8 sm:$0x7]
    %173 = vrot.lane.b32.xlu0 %v172, 96
    %v174 = vpop.permute.xlu0 %173
    %vm175 = vcmask 1048320
    %s176 = scalar_lea.vmem %s1, 24
    %177 = vst.msk [vmem:[%s176] sm:$0x7] %vm175, %v174
    %s178 = scalar_lea.vmem [#allocation0], 2
    %v179 = vld [vmem:[%s178] ss:$8 sm:$0xf]
    %s180 = scalar_lea.vmem [#allocation0], 2
    %v181 = vld [vmem:[%s180] ss:$8 sm:$0xf0]
    %vm182 = vcmask 1047556
    %v183 = vsel %vm182, %v181, %v179
    %184 = vrot.lane.b32.xlu0 %v183, 64
    %v185 = vpop.permute.xlu0 %184
    %vm186 = vcmask 785920
    %187 = vst.msk [vmem:[%s1] sm:$0xff] %vm186, %v185
    %s188 = scalar_lea.vmem [#allocation0], 66
    %v189 = vld [vmem:[%s188] ss:$8 sm:$0xf]
    %s190 = scalar_lea.vmem [#allocation0], 66
    %v191 = vld [vmem:[%s190] ss:$8 sm:$0xf0]
    %vm192 = vcmask 1047556
    %v193 = vsel %vm192, %v191, %v189
    %194 = vrot.lane.b32.xlu0 %v193, 64
    %v195 = vpop.permute.xlu0 %194
    %vm196 = vcmask 785920
    %s197 = scalar_lea.vmem %s1, 8
    %198 = vst.msk [vmem:[%s197] sm:$0xff] %vm196, %v195
    %s199 = scalar_lea.vmem [#allocation0], 130
    %v200 = vld [vmem:[%s199] ss:$8 sm:$0xf]
    %s201 = scalar_lea.vmem [#allocation0], 130
    %v202 = vld [vmem:[%s201] ss:$8 sm:$0xf0]
    %vm203 = vcmask 1047556
    %v204 = vsel %vm203, %v202, %v200
    %205 = vrot.lane.b32.xlu0 %v204, 64
    %v206 = vpop.permute.xlu0 %205
    %vm207 = vcmask 785920
    %s208 = scalar_lea.vmem %s1, 16
    %209 = vst.msk [vmem:[%s208] sm:$0xff] %vm207, %v206
    %s210 = scalar_lea.vmem [#allocation0], 194
    %v211 = vld [vmem:[%s210] ss:$8 sm:$0x7]
    %212 = vrot.lane.b32.xlu0 %v211, 64
    %v213 = vpop.permute.xlu0 %212
    %vm214 = vcmask 785920
    %s215 = scalar_lea.vmem %s1, 24
    %216 = vst.msk [vmem:[%s215] sm:$0x7] %vm214, %v213
    %s217 = scalar_lea.vmem [#allocation0], 1
    %v218 = vld [vmem:[%s217] ss:$8 sm:$0xf]
    %s219 = scalar_lea.vmem [#allocation0], 1
    %v220 = vld [vmem:[%s219] ss:$8 sm:$0xf0]
    %vm221 = vcmask 1047556
    %v222 = vsel %vm221, %v220, %v218
    %223 = vrot.lane.b32.xlu0 %v222, 32
    %v224 = vpop.permute.xlu0 %223
    %vm225 = vcmask 523520
    %226 = vst.msk [vmem:[%s1] sm:$0xff] %vm225, %v224
    %s227 = scalar_lea.vmem [#allocation0], 65
    %v228 = vld [vmem:[%s227] ss:$8 sm:$0xf]
    %s229 = scalar_lea.vmem [#allocation0], 65
    %v230 = vld [vmem:[%s229] ss:$8 sm:$0xf0]
    %vm231 = vcmask 1047556
    %v232 = vsel %vm231, %v230, %v228
    %233 = vrot.lane.b32.xlu0 %v232, 32
    %v234 = vpop.permute.xlu0 %233
    %vm235 = vcmask 523520
    %s236 = scalar_lea.vmem %s1, 8
    %237 = vst.msk [vmem:[%s236] sm:$0xff] %vm235, %v234
    %s238 = scalar_lea.vmem [#allocation0], 129
    %v239 = vld [vmem:[%s238] ss:$8 sm:$0xf]
    %s240 = scalar_lea.vmem [#allocation0], 129
    %v241 = vld [vmem:[%s240] ss:$8 sm:$0xf0]
    %vm242 = vcmask 1047556
    %v243 = vsel %vm242, %v241, %v239
    %244 = vrot.lane.b32.xlu0 %v243, 32
    %v245 = vpop.permute.xlu0 %244
    %vm246 = vcmask 523520
    %s247 = scalar_lea.vmem %s1, 16
    %248 = vst.msk [vmem:[%s247] sm:$0xff] %vm246, %v245
    %s249 = scalar_lea.vmem [#allocation0], 193
    %v250 = vld [vmem:[%s249] ss:$8 sm:$0x7]
    %251 = vrot.lane.b32.xlu0 %v250, 32
    %v252 = vpop.permute.xlu0 %251
    %vm253 = vcmask 523520
    %s254 = scalar_lea.vmem %s1, 24
    %255 = vst.msk [vmem:[%s254] sm:$0x7] %vm253, %v252

// kernel: fine_encoder_forward.14
$region0: #{fine_encoder_forward.14}
  #allocation0 [shape = 'u32[]', space=smem, size = 0x4, offset = 0x4, fixed_abs, tag = 'smem constant byte address 0x4 - core index']
  #allocation1 [shape = 'u32[72,128]{1,0:T(1,128)}', space=vmem, size = 0x9000, scoped, tag = 'internal scratch']
  %s0 = inlined_call_operand.vmem [shape: bf16[27,32,128], index: 0, kind: input, shape index: {}]
  %s1 = inlined_call_operand.vmem [shape: f32[27,128], index: 1, kind: input, shape index: {}]
  %s2 = inlined_call_operand.vmem [shape: f32[1,128], index: 2, kind: input, shape index: {}]
  %s3 = inlined_call_operand.vmem [shape: f32[32,128], index: 3, kind: input, shape index: {}]
  %s4 = inlined_call_operand.vmem [shape: bf16[32,128], index: 4, kind: output, shape index: {}]
  %s5 = sld [smem:[#allocation0]]
  $region26: #{fine_encoder_forward.14} parent=0
    _
  %s7 = ssub.s32 1, %s5
  %s8 = scalar_select 0, %s7, %s5
  // Predicated region
  $region2: #{fine_encoder_forward.14} parent=0 // pred_check
    _
  $region3: #{fine_encoder_forward.14} parent=0 // pred_check_branch
    %10 = sbr.rel (0) target = $region5
  $region4: #{fine_encoder_forward.14} parent=0 // pred_region
    _
  $region5: #{fine_encoder_forward.14} parent=0 // pred_fallthru
    _
  // Predicated region
  $region6: #{fine_encoder_forward.14} parent=0 // pred_check
    _
  $region7: #{fine_encoder_forward.14} parent=0 // pred_check_branch
    %12 = sbr.rel (0) target = $region9
  $region8: #{fine_encoder_forward.14} parent=0 // pred_region
    _
  $region9: #{fine_encoder_forward.14} parent=0 // pred_fallthru
    _
  // Predicated region
  $region10: #{fine_encoder_forward.14} parent=0 // pred_check
    _
  $region11: #{fine_encoder_forward.14} parent=0 // pred_check_branch
    %14 = sbr.rel (0) target = $region13
  $region12: #{fine_encoder_forward.14} parent=0 // pred_region
    _
  $region13: #{fine_encoder_forward.14} parent=0 // pred_fallthru
    _
  // Predicated region
  $region14: #{fine_encoder_forward.14} parent=0 // pred_check
    _
  $region15: #{fine_encoder_forward.14} parent=0 // pred_check_branch
    %16 = sbr.rel (0) target = $region17
  $region16: #{fine_encoder_forward.14} parent=0 // pred_region
    _
  $region17: #{fine_encoder_forward.14} parent=0 // pred_fallthru
    _
  %v17 = vld [vmem:[%s1] sm:$0xff]
  %v18 = vld [vmem:[%s1 + $0x8] sm:$0xff]
  %v19 = vld [vmem:[%s1 + $0x10] sm:$0xff]
  %v20 = vld [vmem:[%s1 + $0x18] sm:$0x7]
  %v21 = vld [vmem:[%s0] sm:$0xf]
  %v22 = vld [vmem:[%s0 + $0x4] sm:$0xf]
  %v23 = vld [vmem:[%s0 + $0x8] sm:$0xf]
  %v24 = vld [vmem:[%s0 + $0xc] sm:$0xf]
  %v25 = vunpack.c.l.bf16 %v21
  %v26 = vunpack.c.l.bf16 %v22
  %v27 = vunpack.c.l.bf16 %v23
  %v28 = vunpack.c.l.bf16 %v24
  %v29 = vperm.slane %v17, 0
  %v30 = vmul.f32 %v25, %v29
  %v31 = vmul.f32 %v26, %v29
  %v32 = vmul.f32 %v27, %v29
  %v33 = vmul.f32 %v28, %v29
  %v34 = vadd.f32 %v30, 0.0
  %v35 = vadd.f32 %v31, 0.0
  %v36 = vadd.f32 %v32, 0.0
  %v37 = vadd.f32 %v33, 0.0
  %s38 = scalar_lea.vmem %s0, 16
  %v39 = vld [vmem:[%s38] sm:$0xf]
  %v40 = vld [vmem:[%s38 + $0x4] sm:$0xf]
  %v41 = vld [vmem:[%s38 + $0x8] sm:$0xf]
  %v42 = vld [vmem:[%s38 + $0xc] sm:$0xf]
  %v43 = vunpack.c.l.bf16 %v39
  %v44 = vunpack.c.l.bf16 %v40
  %v45 = vunpack.c.l.bf16 %v41
  %v46 = vunpack.c.l.bf16 %v42
  %v47 = vperm.slane %v17, 1
  %v48 = vmul.f32 %v43, %v47
  %v49 = vmul.f32 %v44, %v47
  %v50 = vmul.f32 %v45, %v47
  %v51 = vmul.f32 %v46, %v47
  %v52 = vadd.f32 %v34, %v48
  %v53 = vadd.f32 %v35, %v49
  %v54 = vadd.f32 %v36, %v50
  %v55 = vadd.f32 %v37, %v51
  %s56 = scalar_lea.vmem %s0, 32
  %v57 = vld [vmem:[%s56] sm:$0xf]
  %v58 = vld [vmem:[%s56 + $0x4] sm:$0xf]
  %v59 = vld [vmem:[%s56 + $0x8] sm:$0xf]
  %v60 = vld [vmem:[%s56 + $0xc] sm:$0xf]
  %v61 = vunpack.c.l.bf16 %v57
  %v62 = vunpack.c.l.bf16 %v58
  %v63 = vunpack.c.l.bf16 %v59
  %v64 = vunpack.c.l.bf16 %v60
  %v65 = vperm.slane %v17, 2
  %v66 = vmul.f32 %v61, %v65
  %v67 = vmul.f32 %v62, %v65
  %v68 = vmul.f32 %v63, %v65
  %v69 = vmul.f32 %v64, %v65
  %v70 = vadd.f32 %v52, %v66
  %v71 = vadd.f32 %v53, %v67
  %v72 = vadd.f32 %v54, %v68
  %v73 = vadd.f32 %v55, %v69
  %s74 = scalar_lea.vmem %s0, 48
  %v75 = vld [vmem:[%s74] sm:$0xf]
  %v76 = vld [vmem:[%s74 + $0x4] sm:$0xf]
  %v77 = vld [vmem:[%s74 + $0x8] sm:$0xf]
  %v78 = vld [vmem:[%s74 + $0xc] sm:$0xf]
  %v79 = vunpack.c.l.bf16 %v75
  %v80 = vunpack.c.l.bf16 %v76
  %v81 = vunpack.c.l.bf16 %v77
  %v82 = vunpack.c.l.bf16 %v78
  %v83 = vperm.slane %v17, 3
  %v84 = vmul.f32 %v79, %v83
  %v85 = vmul.f32 %v80, %v83
  %v86 = vmul.f32 %v81, %v83
  %v87 = vmul.f32 %v82, %v83
  %v88 = vadd.f32 %v70, %v84
  %v89 = vadd.f32 %v71, %v85
  %v90 = vadd.f32 %v72, %v86
  %v91 = vadd.f32 %v73, %v87
  %s92 = scalar_lea.vmem %s0, 64
  %v93 = vld [vmem:[%s92] sm:$0xf]
  %v94 = vld [vmem:[%s92 + $0x4] sm:$0xf]
  %v95 = vld [vmem:[%s92 + $0x8] sm:$0xf]
  %v96 = vld [vmem:[%s92 + $0xc] sm:$0xf]
  %v97 = vunpack.c.l.bf16 %v93
  %v98 = vunpack.c.l.bf16 %v94
  %v99 = vunpack.c.l.bf16 %v95
  %v100 = vunpack.c.l.bf16 %v96
  %v101 = vperm.slane %v17, 4
  %v102 = vmul.f32 %v97, %v101
  %v103 = vmul.f32 %v98, %v101
  %v104 = vmul.f32 %v99, %v101
  %v105 = vmul.f32 %v100, %v101
  %v106 = vadd.f32 %v88, %v102
  %v107 = vadd.f32 %v89, %v103
  %v108 = vadd.f32 %v90, %v104
  %v109 = vadd.f32 %v91, %v105
  %s110 = scalar_lea.vmem %s0, 80
  %v111 = vld [vmem:[%s110] sm:$0xf]
  %v112 = vld [vmem:[%s110 + $0x4] sm:$0xf]
  %v113 = vld [vmem:[%s110 + $0x8] sm:$0xf]
  %v114 = vld [vmem:[%s110 + $0xc] sm:$0xf]
  %v115 = vunpack.c.l.bf16 %v111
  %v116 = vunpack.c.l.bf16 %v112
  %v117 = vunpack.c.l.bf16 %v113
  %v118 = vunpack.c.l.bf16 %v114
  %v119 = vperm.slane %v17, 5
  %v120 = vmul.f32 %v115, %v119
  %v121 = vmul.f32 %v116, %v119
  %v122 = vmul.f32 %v117, %v119
  %v123 = vmul.f32 %v118, %v119
  %v124 = vadd.f32 %v106, %v120
  %v125 = vadd.f32 %v107, %v121
  %v126 = vadd.f32 %v108, %v122
  %v127 = vadd.f32 %v109, %v123
  %s128 = scalar_lea.vmem %s0, 96
  %v129 = vld [vmem:[%s128] sm:$0xf]
  %v130 = vld [vmem:[%s128 + $0x4] sm:$0xf]
  %v131 = vld [vmem:[%s128 + $0x8] sm:$0xf]
  %v132 = vld [vmem:[%s128 + $0xc] sm:$0xf]
  %v133 = vunpack.c.l.bf16 %v129
  %v134 = vunpack.c.l.bf16 %v130
  %v135 = vunpack.c.l.bf16 %v131
  %v136 = vunpack.c.l.bf16 %v132
  %v137 = vperm.slane %v17, 6
  %v138 = vmul.f32 %v133, %v137
  %v139 = vmul.f32 %v134, %v137
  %v140 = vmul.f32 %v135, %v137
  %v141 = vmul.f32 %v136, %v137
  %v142 = vadd.f32 %v124, %v138
  %v143 = vadd.f32 %v125, %v139
  %v144 = vadd.f32 %v126, %v140
  %v145 = vadd.f32 %v127, %v141
  %s146 = scalar_lea.vmem %s0, 112
  %v147 = vld [vmem:[%s146] sm:$0xf]
  %v148 = vld [vmem:[%s146 + $0x4] sm:$0xf]
  %v149 = vld [vmem:[%s146 + $0x8] sm:$0xf]
  %v150 = vld [vmem:[%s146 + $0xc] sm:$0xf]
  %v151 = vunpack.c.l.bf16 %v147
  %v152 = vunpack.c.l.bf16 %v148
  %v153 = vunpack.c.l.bf16 %v149
  %v154 = vunpack.c.l.bf16 %v150
  %v155 = vperm.slane %v17, 7
  %v156 = vmul.f32 %v151, %v155
  %v157 = vmul.f32 %v152, %v155
  %v158 = vmul.f32 %v153, %v155
  %v159 = vmul.f32 %v154, %v155
  %v160 = vadd.f32 %v142, %v156
  %v161 = vadd.f32 %v143, %v157
  %v162 = vadd.f32 %v144, %v158
  %v163 = vadd.f32 %v145, %v159
  %s164 = scalar_lea.vmem %s0, 128
  %v165 = vld [vmem:[%s164] sm:$0xf]
  %v166 = vld [vmem:[%s164 + $0x4] sm:$0xf]
  %v167 = vld [vmem:[%s164 + $0x8] sm:$0xf]
  %v168 = vld [vmem:[%s164 + $0xc] sm:$0xf]
  %v169 = vunpack.c.l.bf16 %v165
  %v170 = vunpack.c.l.bf16 %v166
  %v171 = vunpack.c.l.bf16 %v167
  %v172 = vunpack.c.l.bf16 %v168
  %v173 = vperm.slane %v18, 0
  %v174 = vmul.f32 %v169, %v173
  %v175 = vmul.f32 %v170, %v173
  %v176 = vmul.f32 %v171, %v173
  %v177 = vmul.f32 %v172, %v173
  %v178 = vadd.f32 %v160, %v174
  %v179 = vadd.f32 %v161, %v175
  %v180 = vadd.f32 %v162, %v176
  %v181 = vadd.f32 %v163, %v177
  %s182 = scalar_lea.vmem %s0, 144
  %v183 = vld [vmem:[%s182] sm:$0xf]
  %v184 = vld [vmem:[%s182 + $0x4] sm:$0xf]
  %v185 = vld [vmem:[%s182 + $0x8] sm:$0xf]
  %v186 = vld [vmem:[%s182 + $0xc] sm:$0xf]
  %v187 = vunpack.c.l.bf16 %v183
  %v188 = vunpack.c.l.bf16 %v184
  %v189 = vunpack.c.l.bf16 %v185
  %v190 = vunpack.c.l.bf16 %v186
  %v191 = vperm.slane %v18, 1
  %v192 = vmul.f32 %v187, %v191
  %v193 = vmul.f32 %v188, %v191
  %v194 = vmul.f32 %v189, %v191
  %v195 = vmul.f32 %v190, %v191
  %v196 = vadd.f32 %v178, %v192
  %v197 = vadd.f32 %v179, %v193
  %v198 = vadd.f32 %v180, %v194
  %v199 = vadd.f32 %v181, %v195
  %s200 = scalar_lea.vmem %s0, 160
  %v201 = vld [vmem:[%s200] sm:$0xf]
  %v202 = vld [vmem:[%s200 + $0x4] sm:$0xf]
  %v203 = vld [vmem:[%s200 + $0x8] sm:$0xf]
  %v204 = vld [vmem:[%s200 + $0xc] sm:$0xf]
  %v205 = vunpack.c.l.bf16 %v201
  %v206 = vunpack.c.l.bf16 %v202
  %v207 = vunpack.c.l.bf16 %v203
  %v208 = vunpack.c.l.bf16 %v204
  %v209 = vperm.slane %v18, 2
  %v210 = vmul.f32 %v205, %v209
  %v211 = vmul.f32 %v206, %v209
  %v212 = vmul.f32 %v207, %v209
  %v213 = vmul.f32 %v208, %v209
  %v214 = vadd.f32 %v196, %v210
  %v215 = vadd.f32 %v197, %v211
  %v216 = vadd.f32 %v198, %v212
  %v217 = vadd.f32 %v199, %v213
  %s218 = scalar_lea.vmem %s0, 176
  %v219 = vld [vmem:[%s218] sm:$0xf]
  %v220 = vld [vmem:[%s218 + $0x4] sm:$0xf]
  %v221 = vld [vmem:[%s218 + $0x8] sm:$0xf]
  %v222 = vld [vmem:[%s218 + $0xc] sm:$0xf]
  %v223 = vunpack.c.l.bf16 %v219
  %v224 = vunpack.c.l.bf16 %v220
  %v225 = vunpack.c.l.bf16 %v221
  %v226 = vunpack.c.l.bf16 %v222
  %v227 = vperm.slane %v18, 3
  %v228 = vmul.f32 %v223, %v227
  %v229 = vmul.f32 %v224, %v227
  %v230 = vmul.f32 %v225, %v227
  %v231 = vmul.f32 %v226, %v227
  %v232 = vadd.f32 %v214, %v228
  %v233 = vadd.f32 %v215, %v229
  %v234 = vadd.f32 %v216, %v230
  %v235 = vadd.f32 %v217, %v231
  %s236 = scalar_lea.vmem %s0, 192
  %v237 = vld [vmem:[%s236] sm:$0xf]
  %v238 = vld [vmem:[%s236 + $0x4] sm:$0xf]
  %v239 = vld [vmem:[%s236 + $0x8] sm:$0xf]
  %v240 = vld [vmem:[%s236 + $0xc] sm:$0xf]
  %v241 = vunpack.c.l.bf16 %v237
  %v242 = vunpack.c.l.bf16 %v238
  %v243 = vunpack.c.l.bf16 %v239
  %v244 = vunpack.c.l.bf16 %v240
  %v245 = vperm.slane %v18, 4
  %v246 = vmul.f32 %v241, %v245
  %v247 = vmul.f32 %v242, %v245
  %v248 = vmul.f32 %v243, %v245
  %v249 = vmul.f32 %v244, %v245
  %v250 = vadd.f32 %v232, %v246
  %v251 = vadd.f32 %v233, %v247
  %v252 = vadd.f32 %v234, %v248
  %v253 = vadd.f32 %v235, %v249
  %s254 = scalar_lea.vmem %s0, 208
  %v255 = vld [vmem:[%s254] sm:$0xf]
  %v256 = vld [vmem:[%s254 + $0x4] sm:$0xf]
  %v257 = vld [vmem:[%s254 + $0x8] sm:$0xf]
  %v258 = vld [vmem:[%s254 + $0xc] sm:$0xf]
  %v259 = vunpack.c.l.bf16 %v255
  %v260 = vunpack.c.l.bf16 %v256
  %v261 = vunpack.c.l.bf16 %v257
  %v262 = vunpack.c.l.bf16 %v258
  %v263 = vperm.slane %v18, 5
  %v264 = vmul.f32 %v259, %v263
  %v265 = vmul.f32 %v260, %v263
  %v266 = vmul.f32 %v261, %v263
  %v267 = vmul.f32 %v262, %v263
  %v268 = vadd.f32 %v250, %v264
  %v269 = vadd.f32 %v251, %v265
  %v270 = vadd.f32 %v252, %v266
  %v271 = vadd.f32 %v253, %v267
  %s272 = scalar_lea.vmem %s0, 224
  %v273 = vld [vmem:[%s272] sm:$0xf]
  %v274 = vld [vmem:[%s272 + $0x4] sm:$0xf]
  %v275 = vld [vmem:[%s272 + $0x8] sm:$0xf]
  %v276 = vld [vmem:[%s272 + $0xc] sm:$0xf]
  %v277 = vunpack.c.l.bf16 %v273
  %v278 = vunpack.c.l.bf16 %v274
  %v279 = vunpack.c.l.bf16 %v275
  %v280 = vunpack.c.l.bf16 %v276
  %v281 = vperm.slane %v18, 6
  %v282 = vmul.f32 %v277, %v281
  %v283 = vmul.f32 %v278, %v281
  %v284 = vmul.f32 %v279, %v281
  %v285 = vmul.f32 %v280, %v281
  %v286 = vadd.f32 %v268, %v282
  %v287 = vadd.f32 %v269, %v283
  %v288 = vadd.f32 %v270, %v284
  %v289 = vadd.f32 %v271, %v285
  %s290 = scalar_lea.vmem %s0, 240
  %v291 = vld [vmem:[%s290] sm:$0xf]
  %v292 = vld [vmem:[%s290 + $0x4] sm:$0xf]
  %v293 = vld [vmem:[%s290 + $0x8] sm:$0xf]
  %v294 = vld [vmem:[%s290 + $0xc] sm:$0xf]
  %v295 = vunpack.c.l.bf16 %v291
  %v296 = vunpack.c.l.bf16 %v292
  %v297 = vunpack.c.l.bf16 %v293
  %v298 = vunpack.c.l.bf16 %v294
  %v299 = vperm.slane %v18, 7
  %v300 = vmul.f32 %v295, %v299
  %v301 = vmul.f32 %v296, %v299
  %v302 = vmul.f32 %v297, %v299
  %v303 = vmul.f32 %v298, %v299
  %v304 = vadd.f32 %v286, %v300
  %v305 = vadd.f32 %v287, %v301
  %v306 = vadd.f32 %v288, %v302
  %v307 = vadd.f32 %v289, %v303
  %s308 = scalar_lea.vmem %s0, 256
  %v309 = vld [vmem:[%s308] sm:$0xf]
  %v310 = vld [vmem:[%s308 + $0x4] sm:$0xf]
  %v311 = vld [vmem:[%s308 + $0x8] sm:$0xf]
  %v312 = vld [vmem:[%s308 + $0xc] sm:$0xf]
  %v313 = vunpack.c.l.bf16 %v309
  %v314 = vunpack.c.l.bf16 %v310
  %v315 = vunpack.c.l.bf16 %v311
  %v316 = vunpack.c.l.bf16 %v312
  %v317 = vperm.slane %v19, 0
  %v318 = vmul.f32 %v313, %v317
  %v319 = vmul.f32 %v314, %v317
  %v320 = vmul.f32 %v315, %v317
  %v321 = vmul.f32 %v316, %v317
  %v322 = vadd.f32 %v304, %v318
  %v323 = vadd.f32 %v305, %v319
  %v324 = vadd.f32 %v306, %v320
  %v325 = vadd.f32 %v307, %v321
  %s326 = scalar_lea.vmem %s0, 272
  %v327 = vld [vmem:[%s326] sm:$0xf]
  %v328 = vld [vmem:[%s326 + $0x4] sm:$0xf]
  %v329 = vld [vmem:[%s326 + $0x8] sm:$0xf]
  %v330 = vld [vmem:[%s326 + $0xc] sm:$0xf]
  %v331 = vunpack.c.l.bf16 %v327
  %v332 = vunpack.c.l.bf16 %v328
  %v333 = vunpack.c.l.bf16 %v329
  %v334 = vunpack.c.l.bf16 %v330
  %v335 = vperm.slane %v19, 1
  %v336 = vmul.f32 %v331, %v335
  %v337 = vmul.f32 %v332, %v335
  %v338 = vmul.f32 %v333, %v335
  %v339 = vmul.f32 %v334, %v335
  %v340 = vadd.f32 %v322, %v336
  %v341 = vadd.f32 %v323, %v337
  %v342 = vadd.f32 %v324, %v338
  %v343 = vadd.f32 %v325, %v339
  %s344 = scalar_lea.vmem %s0, 288
  %v345 = vld [vmem:[%s344] sm:$0xf]
  %v346 = vld [vmem:[%s344 + $0x4] sm:$0xf]
  %v347 = vld [vmem:[%s344 + $0x8] sm:$0xf]
  %v348 = vld [vmem:[%s344 + $0xc] sm:$0xf]
  %v349 = vunpack.c.l.bf16 %v345
  %v350 = vunpack.c.l.bf16 %v346
  %v351 = vunpack.c.l.bf16 %v347
  %v352 = vunpack.c.l.bf16 %v348
  %v353 = vperm.slane %v19, 2
  %v354 = vmul.f32 %v349, %v353
  %v355 = vmul.f32 %v350, %v353
  %v356 = vmul.f32 %v351, %v353
  %v357 = vmul.f32 %v352, %v353
  %v358 = vadd.f32 %v340, %v354
  %v359 = vadd.f32 %v341, %v355
  %v360 = vadd.f32 %v342, %v356
  %v361 = vadd.f32 %v343, %v357
  %s362 = scalar_lea.vmem %s0, 304
  %v363 = vld [vmem:[%s362] sm:$0xf]
  %v364 = vld [vmem:[%s362 + $0x4] sm:$0xf]
  %v365 = vld [vmem:[%s362 + $0x8] sm:$0xf]
  %v366 = vld [vmem:[%s362 + $0xc] sm:$0xf]
  %v367 = vunpack.c.l.bf16 %v363
  %v368 = vunpack.c.l.bf16 %v364
  %v369 = vunpack.c.l.bf16 %v365
  %v370 = vunpack.c.l.bf16 %v366
  %v371 = vperm.slane %v19, 3
  %v372 = vmul.f32 %v367, %v371
  %v373 = vmul.f32 %v368, %v371
  %v374 = vmul.f32 %v369, %v371
  %v375 = vmul.f32 %v370, %v371
  %v376 = vadd.f32 %v358, %v372
  %v377 = vadd.f32 %v359, %v373
  %v378 = vadd.f32 %v360, %v374
  %v379 = vadd.f32 %v361, %v375
  %s380 = scalar_lea.vmem %s0, 320
  %v381 = vld [vmem:[%s380] sm:$0xf]
  %v382 = vld [vmem:[%s380 + $0x4] sm:$0xf]
  %v383 = vld [vmem:[%s380 + $0x8] sm:$0xf]
  %v384 = vld [vmem:[%s380 + $0xc] sm:$0xf]
  %v385 = vunpack.c.l.bf16 %v381
  %v386 = vunpack.c.l.bf16 %v382
  %v387 = vunpack.c.l.bf16 %v383
  %v388 = vunpack.c.l.bf16 %v384
  %v389 = vperm.slane %v19, 4
  %v390 = vmul.f32 %v385, %v389
  %v391 = vmul.f32 %v386, %v389
  %v392 = vmul.f32 %v387, %v389
  %v393 = vmul.f32 %v388, %v389
  %v394 = vadd.f32 %v376, %v390
  %v395 = vadd.f32 %v377, %v391
  %v396 = vadd.f32 %v378, %v392
  %v397 = vadd.f32 %v379, %v393
  %s398 = scalar_lea.vmem %s0, 336
  %v399 = vld [vmem:[%s398] sm:$0xf]
  %v400 = vld [vmem:[%s398 + $0x4] sm:$0xf]
  %v401 = vld [vmem:[%s398 + $0x8] sm:$0xf]
  %v402 = vld [vmem:[%s398 + $0xc] sm:$0xf]
  %v403 = vunpack.c.l.bf16 %v399
  %v404 = vunpack.c.l.bf16 %v400
  %v405 = vunpack.c.l.bf16 %v401
  %v406 = vunpack.c.l.bf16 %v402
  %v407 = vperm.slane %v19, 5
  %v408 = vmul.f32 %v403, %v407
  %v409 = vmul.f32 %v404, %v407
  %v410 = vmul.f32 %v405, %v407
  %v411 = vmul.f32 %v406, %v407
  %v412 = vadd.f32 %v394, %v408
  %v413 = vadd.f32 %v395, %v409
  %v414 = vadd.f32 %v396, %v410
  %v415 = vadd.f32 %v397, %v411
  %s416 = scalar_lea.vmem %s0, 352
  %v417 = vld [vmem:[%s416] sm:$0xf]
  %v418 = vld [vmem:[%s416 + $0x4] sm:$0xf]
  %v419 = vld [vmem:[%s416 + $0x8] sm:$0xf]
  %v420 = vld [vmem:[%s416 + $0xc] sm:$0xf]
  %v421 = vunpack.c.l.bf16 %v417
  %v422 = vunpack.c.l.bf16 %v418
  %v423 = vunpack.c.l.bf16 %v419
  %v424 = vunpack.c.l.bf16 %v420
  %v425 = vperm.slane %v19, 6
  %v426 = vmul.f32 %v421, %v425
  %v427 = vmul.f32 %v422, %v425
  %v428 = vmul.f32 %v423, %v425
  %v429 = vmul.f32 %v424, %v425
  %v430 = vadd.f32 %v412, %v426
  %v431 = vadd.f32 %v413, %v427
  %v432 = vadd.f32 %v414, %v428
  %v433 = vadd.f32 %v415, %v429
  %s434 = scalar_lea.vmem %s0, 368
  %v435 = vld [vmem:[%s434] sm:$0xf]
  %v436 = vld [vmem:[%s434 + $0x4] sm:$0xf]
  %v437 = vld [vmem:[%s434 + $0x8] sm:$0xf]
  %v438 = vld [vmem:[%s434 + $0xc] sm:$0xf]
  %v439 = vunpack.c.l.bf16 %v435
  %v440 = vunpack.c.l.bf16 %v436
  %v441 = vunpack.c.l.bf16 %v437
  %v442 = vunpack.c.l.bf16 %v438
  %v443 = vperm.slane %v19, 7
  %v444 = vmul.f32 %v439, %v443
  %v445 = vmul.f32 %v440, %v443
  %v446 = vmul.f32 %v441, %v443
  %v447 = vmul.f32 %v442, %v443
  %v448 = vadd.f32 %v430, %v444
  %v449 = vadd.f32 %v431, %v445
  %v450 = vadd.f32 %v432, %v446
  %v451 = vadd.f32 %v433, %v447
  %s452 = scalar_lea.vmem %s0, 384
  %v453 = vld [vmem:[%s452] sm:$0xf]
  %v454 = vld [vmem:[%s452 + $0x4] sm:$0xf]
  %v455 = vld [vmem:[%s452 + $0x8] sm:$0xf]
  %v456 = vld [vmem:[%s452 + $0xc] sm:$0xf]
  %v457 = vunpack.c.l.bf16 %v453
  %v458 = vunpack.c.l.bf16 %v454
  %v459 = vunpack.c.l.bf16 %v455
  %v460 = vunpack.c.l.bf16 %v456
  %v461 = vperm.slane %v20, 0
  %v462 = vmul.f32 %v457, %v461
  %v463 = vmul.f32 %v458, %v461
  %v464 = vmul.f32 %v459, %v461
  %v465 = vmul.f32 %v460, %v461
  %v466 = vadd.f32 %v448, %v462
  %v467 = vadd.f32 %v449, %v463
  %v468 = vadd.f32 %v450, %v464
  %v469 = vadd.f32 %v451, %v465
  %s470 = scalar_lea.vmem %s0, 400
  %v471 = vld [vmem:[%s470] sm:$0xf]
  %v472 = vld [vmem:[%s470 + $0x4] sm:$0xf]
  %v473 = vld [vmem:[%s470 + $0x8] sm:$0xf]
  %v474 = vld [vmem:[%s470 + $0xc] sm:$0xf]
  %v475 = vunpack.c.l.bf16 %v471
  %v476 = vunpack.c.l.bf16 %v472
  %v477 = vunpack.c.l.bf16 %v473
  %v478 = vunpack.c.l.bf16 %v474
  %v479 = vperm.slane %v20, 1
  %v480 = vmul.f32 %v475, %v479
  %v481 = vmul.f32 %v476, %v479
  %v482 = vmul.f32 %v477, %v479
  %v483 = vmul.f32 %v478, %v479
  %v484 = vadd.f32 %v466, %v480
  %v485 = vadd.f32 %v467, %v481
  %v486 = vadd.f32 %v468, %v482
  %v487 = vadd.f32 %v469, %v483
  %s488 = scalar_lea.vmem %s0, 416
  %v489 = vld [vmem:[%s488] sm:$0xf]
  %v490 = vld [vmem:[%s488 + $0x4] sm:$0xf]
  %v491 = vld [vmem:[%s488 + $0x8] sm:$0xf]
  %v492 = vld [vmem:[%s488 + $0xc] sm:$0xf]
  %v493 = vunpack.c.l.bf16 %v489
  %v494 = vunpack.c.l.bf16 %v490
  %v495 = vunpack.c.l.bf16 %v491
  %v496 = vunpack.c.l.bf16 %v492
  %v497 = vperm.slane %v20, 2
  %v498 = vmul.f32 %v493, %v497
  %v499 = vmul.f32 %v494, %v497
  %v500 = vmul.f32 %v495, %v497
  %v501 = vmul.f32 %v496, %v497
  %v502 = vadd.f32 %v484, %v498
  %v503 = vadd.f32 %v485, %v499
  %v504 = vadd.f32 %v486, %v500
  %v505 = vadd.f32 %v487, %v501
  %v506 = vld [vmem:[%s2] sm:$0x1]
  %v508 = vperm.slane %v506, 0
  %v510 = vadd.f32 %v502, %v508
  %v511 = vadd.f32 %v503, %v508
  %v512 = vadd.f32 %v504, %v508
  %v513 = vadd.f32 %v505, %v508
  %v514 = vmul.f32 %v510, 0.5
  %v515 = vmul.f32 %v511, 0.5
  %v516 = vmul.f32 %v512, 0.5
  %v517 = vmul.f32 %v513, 0.5
  %v518 = vmul.f32 %v510, 0.044715
  %v519 = vmul.f32 %v511, 0.044715
  %v520 = vmul.f32 %v512, 0.044715
  %v521 = vmul.f32 %v513, 0.044715
  %v522 = vmul.f32 %v518, %v510
  %v523 = vmul.f32 %v519, %v511
  %v524 = vmul.f32 %v520, %v512
  %v525 = vmul.f32 %v521, %v513
  %v526 = vmul.f32 %v522, %v510
  %v527 = vmul.f32 %v523, %v511
  %v528 = vmul.f32 %v524, %v512
  %v529 = vmul.f32 %v525, %v513
  %v530 = vadd.f32 %v510, %v526
  %v531 = vadd.f32 %v511, %v527
  %v532 = vadd.f32 %v512, %v528
  %v533 = vadd.f32 %v513, %v529
  %v534 = vmul.f32 %v530, 0.7978846
  %v535 = vmul.f32 %v531, 0.7978846
  %v536 = vmul.f32 %v532, 0.7978846
  %v537 = vmul.f32 %v533, 0.7978846
  %v538 = vtanh.pop %v534
  %v539 = vtanh.pop %v535
  %v540 = vtanh.pop %v536
  %v541 = vtanh.pop %v537
  %v542 = vadd.f32 %v538, 1.0
  %v543 = vadd.f32 %v539, 1.0
  %v544 = vadd.f32 %v540, 1.0
  %v545 = vadd.f32 %v541, 1.0
  %v546 = vmul.f32 %v514, %v542
  %v547 = vmul.f32 %v515, %v543
  %v548 = vmul.f32 %v516, %v544
  %v549 = vmul.f32 %v517, %v545
  %v550 = vld [vmem:[%s3] sm:$0xff]
  %v551 = vld [vmem:[%s3 + $0x8] sm:$0xff]
  %v552 = vld [vmem:[%s3 + $0x10] sm:$0xff]
  %v553 = vld [vmem:[%s3 + $0x18] sm:$0xff]
  %v554 = vadd.f32 %v546, %v550
  %v555 = vadd.f32 %v547, %v551
  %v556 = vadd.f32 %v548, %v552
  %v557 = vadd.f32 %v549, %v553
  %v558 = vpack.c.bf16 %v554, %v554
  %v559 = vpack.c.bf16 %v555, %v555
  %v560 = vpack.c.bf16 %v556, %v556
  %v561 = vpack.c.bf16 %v557, %v557
  %562 = vst [vmem:[%s4] sm:$0xf] %v558
  %563 = vst [vmem:[%s4 + $0x4] sm:$0xf] %v559
  %564 = vst [vmem:[%s4 + $0x8] sm:$0xf] %v560
  %565 = vst [vmem:[%s4 + $0xc] sm:$0xf] %v561
  // Predicated region
  $region18: #{fine_encoder_forward.14} parent=0 // pred_check
    _
  $region19: #{fine_encoder_forward.14} parent=0 // pred_check_branch
    %567 = sbr.rel (0) target = $region21
  $region20: #{fine_encoder_forward.14} parent=0 // pred_region
    _
  $region21: #{fine_encoder_forward.14} parent=0 // pred_fallthru
    _
  // Predicated region
  $region22: #{fine_encoder_forward.14} parent=0 // pred_check
    _
  $region23: #{fine_encoder_forward.14} parent=0 // pred_check_branch
    %569 = sbr.rel (0) target = $region25
  $region24: #{fine_encoder_forward.14} parent=0 // pred_region
    _
  $region25: #{fine_encoder_forward.14} parent=0 // pred_fallthru
    _

// kernel: fine_encoder_forward.15
$region0: #{fine_encoder_forward.15}
  #allocation0 [shape = 'u32[]', space=smem, size = 0x4, offset = 0x4, fixed_abs, tag = 'smem constant byte address 0x4 - core index']
  #allocation1 [shape = 'u32[72,128]{1,0:T(1,128)}', space=vmem, size = 0x9000, scoped, tag = 'internal scratch']
  #allocation2 [shape = 'f32[128,32]{1,0:T(8,128)}', space=vmem, size = 0x10000, scoped, tag = 'scratch operand']
  %s0 = inlined_call_operand.vmem [shape: bf16[128,896], index: 0, kind: input, shape index: {}]
  %s1 = inlined_call_operand.vmem [shape: bf16[896,32], index: 1, kind: input, shape index: {}]
  %s2 = inlined_call_operand.vmem [shape: f32[1,32], index: 2, kind: input, shape index: {}]
  %s3 = inlined_call_operand.vmem [shape: bf16[128,32], index: 3, kind: output, shape index: {}]
  %s4 = sld [smem:[#allocation0]]
  $region30: #{fine_encoder_forward.15} parent=0
    _
  %s6 = ssub.s32 1, %s4
  %s7 = scalar_select 0, %s6, %s4
  // Predicated region
  $region2: #{fine_encoder_forward.15} parent=0 // pred_check
    _
  $region3: #{fine_encoder_forward.15} parent=0 // pred_check_branch
    %9 = sbr.rel (0) target = $region5
  $region4: #{fine_encoder_forward.15} parent=0 // pred_region
    _
  $region5: #{fine_encoder_forward.15} parent=0 // pred_fallthru
    _
  // Predicated region
  $region6: #{fine_encoder_forward.15} parent=0 // pred_check
    _
  $region7: #{fine_encoder_forward.15} parent=0 // pred_check_branch
    %11 = sbr.rel (0) target = $region9
  $region8: #{fine_encoder_forward.15} parent=0 // pred_region
    _
  $region9: #{fine_encoder_forward.15} parent=0 // pred_fallthru
    _
  // Predicated region
  $region10: #{fine_encoder_forward.15} parent=0 // pred_check
    _
  $region11: #{fine_encoder_forward.15} parent=0 // pred_check_branch
    %13 = sbr.rel (0) target = $region13
  $region12: #{fine_encoder_forward.15} parent=0 // pred_region
    _
  $region13: #{fine_encoder_forward.15} parent=0 // pred_fallthru
    _
  %p14 = scmp.eq.s32.totalorder 0, 0
  // Predicated region
  $region14: #{fine_encoder_forward.15} parent=0 // pred_check
    %p15 = pneg %p14
  $region15: #{fine_encoder_forward.15} parent=0 // pred_check_branch
    %17 = sbr.rel (%p15) target = $region17
  $region16: #{fine_encoder_forward.15} parent=0 // pred_region
    %vm18 = vcmask 261120
    %19 = vst.msk [vmem:[#allocation2] sm:$0xff] %vm18, 0.0
    %20 = vst.msk [vmem:[#allocation2 + $0x8] sm:$0xff] %vm18, 0.0
    %21 = vst.msk [vmem:[#allocation2 + $0x10] sm:$0xff] %vm18, 0.0
    %22 = vst.msk [vmem:[#allocation2 + $0x18] sm:$0xff] %vm18, 0.0
    %23 = vst.msk [vmem:[#allocation2 + $0x20] sm:$0xff] %vm18, 0.0
    %24 = vst.msk [vmem:[#allocation2 + $0x28] sm:$0xff] %vm18, 0.0
    %25 = vst.msk [vmem:[#allocation2 + $0x30] sm:$0xff] %vm18, 0.0
    %26 = vst.msk [vmem:[#allocation2 + $0x38] sm:$0xff] %vm18, 0.0
    %27 = vst.msk [vmem:[#allocation2 + $0x40] sm:$0xff] %vm18, 0.0
    %28 = vst.msk [vmem:[#allocation2 + $0x48] sm:$0xff] %vm18, 0.0
    %29 = vst.msk [vmem:[#allocation2 + $0x50] sm:$0xff] %vm18, 0.0
    %30 = vst.msk [vmem:[#allocation2 + $0x58] sm:$0xff] %vm18, 0.0
    %31 = vst.msk [vmem:[#allocation2 + $0x60] sm:$0xff] %vm18, 0.0
    %32 = vst.msk [vmem:[#allocation2 + $0x68] sm:$0xff] %vm18, 0.0
    %33 = vst.msk [vmem:[#allocation2 + $0x70] sm:$0xff] %vm18, 0.0
    %34 = vst.msk [vmem:[#allocation2 + $0x78] sm:$0xff] %vm18, 0.0
  $region17: #{fine_encoder_forward.15} parent=0 // pred_fallthru
    _
  %v35 = vld [vmem:[#allocation2] sm:$0xff]
  %v36 = vld [vmem:[#allocation2 + $0x8] sm:$0xff]
  %v37 = vld [vmem:[#allocation2 + $0x10] sm:$0xff]
  %v38 = vld [vmem:[#allocation2 + $0x18] sm:$0xff]
  %v39 = vld [vmem:[#allocation2 + $0x20] sm:$0xff]
  %v40 = vld [vmem:[#allocation2 + $0x28] sm:$0xff]
  %v41 = vld [vmem:[#allocation2 + $0x30] sm:$0xff]
  %v42 = vld [vmem:[#allocation2 + $0x38] sm:$0xff]
  %v43 = vld [vmem:[#allocation2 + $0x40] sm:$0xff]
  %v44 = vld [vmem:[#allocation2 + $0x48] sm:$0xff]
  %v45 = vld [vmem:[#allocation2 + $0x50] sm:$0xff]
  %v46 = vld [vmem:[#allocation2 + $0x58] sm:$0xff]
  %v47 = vld [vmem:[#allocation2 + $0x60] sm:$0xff]
  %v48 = vld [vmem:[#allocation2 + $0x68] sm:$0xff]
  %v49 = vld [vmem:[#allocation2 + $0x70] sm:$0xff]
  %v50 = vld [vmem:[#allocation2 + $0x78] sm:$0xff]
  %v51 = vld [vmem:[%s0] sm:$0xff]
  %v52 = vld [vmem:[%s0 + $0x8] sm:$0xff]
  %v53 = vld [vmem:[%s0 + $0x10] sm:$0xff]
  %v54 = vld [vmem:[%s0 + $0x18] sm:$0xf]
  %v55 = vld [vmem:[%s0 + $0x1c] sm:$0xff]
  %v56 = vld [vmem:[%s0 + $0x24] sm:$0xff]
  %v57 = vld [vmem:[%s0 + $0x2c] sm:$0xff]
  %v58 = vld [vmem:[%s0 + $0x34] sm:$0xf]
  %v59 = vld [vmem:[%s0 + $0x38] sm:$0xff]
  %v60 = vld [vmem:[%s0 + $0x40] sm:$0xff]
  %v61 = vld [vmem:[%s0 + $0x48] sm:$0xff]
  %v62 = vld [vmem:[%s0 + $0x50] sm:$0xf]
  %v63 = vld [vmem:[%s0 + $0x54] sm:$0xff]
  %v64 = vld [vmem:[%s0 + $0x5c] sm:$0xff]
  %v65 = vld [vmem:[%s0 + $0x64] sm:$0xff]
  %v66 = vld [vmem:[%s0 + $0x6c] sm:$0xf]
  %v67 = vld [vmem:[%s0 + $0x70] sm:$0xff]
  %v68 = vld [vmem:[%s0 + $0x78] sm:$0xff]
  %v69 = vld [vmem:[%s0 + $0x80] sm:$0xff]
  %v70 = vld [vmem:[%s0 + $0x88] sm:$0xf]
  %v71 = vld [vmem:[%s0 + $0x8c] sm:$0xff]
  %v72 = vld [vmem:[%s0 + $0x94] sm:$0xff]
  %v73 = vld [vmem:[%s0 + $0x9c] sm:$0xff]
  %v74 = vld [vmem:[%s0 + $0xa4] sm:$0xf]
  %v75 = vld [vmem:[%s0 + $0xa8] sm:$0xff]
  %v76 = vld [vmem:[%s0 + $0xb0] sm:$0xff]
  %v77 = vld [vmem:[%s0 + $0xb8] sm:$0xff]
  %v78 = vld [vmem:[%s0 + $0xc0] sm:$0xf]
  %v79 = vld [vmem:[%s0 + $0xc4] sm:$0xff]
  %v80 = vld [vmem:[%s0 + $0xcc] sm:$0xff]
  %v81 = vld [vmem:[%s0 + $0xd4] sm:$0xff]
  %v82 = vld [vmem:[%s0 + $0xdc] sm:$0xf]
  %v83 = vld [vmem:[%s0 + $0xe0] sm:$0xff]
  %v84 = vld [vmem:[%s0 + $0xe8] sm:$0xff]
  %v85 = vld [vmem:[%s0 + $0xf0] sm:$0xff]
  %v86 = vld [vmem:[%s0 + $0xf8] sm:$0xf]
  %v87 = vld [vmem:[%s0 + $0xfc] sm:$0xff]
  %v88 = vld [vmem:[%s0 + $0x104] sm:$0xff]
  %v89 = vld [vmem:[%s0 + $0x10c] sm:$0xff]
  %v90 = vld [vmem:[%s0 + $0x114] sm:$0xf]
  %v91 = vld [vmem:[%s0 + $0x118] sm:$0xff]
  %v92 = vld [vmem:[%s0 + $0x120] sm:$0xff]
  %v93 = vld [vmem:[%s0 + $0x128] sm:$0xff]
  %v94 = vld [vmem:[%s0 + $0x130] sm:$0xf]
  %v95 = vld [vmem:[%s0 + $0x134] sm:$0xff]
  %v96 = vld [vmem:[%s0 + $0x13c] sm:$0xff]
  %v97 = vld [vmem:[%s0 + $0x144] sm:$0xff]
  %v98 = vld [vmem:[%s0 + $0x14c] sm:$0xf]
  %v99 = vld [vmem:[%s0 + $0x150] sm:$0xff]
  %v100 = vld [vmem:[%s0 + $0x158] sm:$0xff]
  %v101 = vld [vmem:[%s0 + $0x160] sm:$0xff]
  %v102 = vld [vmem:[%s0 + $0x168] sm:$0xf]
  %v103 = vld [vmem:[%s0 + $0x16c] sm:$0xff]
  %v104 = vld [vmem:[%s0 + $0x174] sm:$0xff]
  %v105 = vld [vmem:[%s0 + $0x17c] sm:$0xff]
  %v106 = vld [vmem:[%s0 + $0x184] sm:$0xf]
  %v107 = vld [vmem:[%s0 + $0x188] sm:$0xff]
  %v108 = vld [vmem:[%s0 + $0x190] sm:$0xff]
  %v109 = vld [vmem:[%s0 + $0x198] sm:$0xff]
  %v110 = vld [vmem:[%s0 + $0x1a0] sm:$0xf]
  %v111 = vld [vmem:[%s0 + $0x1a4] sm:$0xff]
  %v112 = vld [vmem:[%s0 + $0x1ac] sm:$0xff]
  %v113 = vld [vmem:[%s0 + $0x1b4] sm:$0xff]
  %v114 = vld [vmem:[%s0 + $0x1bc] sm:$0xf]
  %v115 = vld [vmem:[%s1] sm:$0xf]
  %v116 = vld [vmem:[%s1 + $0x4] sm:$0xf]
  %v117 = vld [vmem:[%s1 + $0x8] sm:$0xf]
  %v118 = vld [vmem:[%s1 + $0xc] sm:$0xf]
  %v119 = vld [vmem:[%s1 + $0x10] sm:$0xf]
  %v120 = vld [vmem:[%s1 + $0x14] sm:$0xf]
  %v121 = vld [vmem:[%s1 + $0x18] sm:$0xf]
  %v122 = vld [vmem:[%s1 + $0x1c] sm:$0xf]
  %v123 = vld [vmem:[%s1 + $0x20] sm:$0xf]
  %v124 = vld [vmem:[%s1 + $0x24] sm:$0xf]
  %v125 = vld [vmem:[%s1 + $0x28] sm:$0xf]
  %v126 = vld [vmem:[%s1 + $0x2c] sm:$0xf]
  %v127 = vld [vmem:[%s1 + $0x30] sm:$0xf]
  %v128 = vld [vmem:[%s1 + $0x34] sm:$0xf]
  %v129 = vld [vmem:[%s1 + $0x38] sm:$0xf]
  %v130 = vld [vmem:[%s1 + $0x3c] sm:$0xf]
  %v131 = vld [vmem:[%s1 + $0x40] sm:$0xf]
  %v132 = vld [vmem:[%s1 + $0x44] sm:$0xf]
  %v133 = vld [vmem:[%s1 + $0x48] sm:$0xf]
  %v134 = vld [vmem:[%s1 + $0x4c] sm:$0xf]
  %v135 = vld [vmem:[%s1 + $0x50] sm:$0xf]
  %v136 = vld [vmem:[%s1 + $0x54] sm:$0xf]
  %v137 = vld [vmem:[%s1 + $0x58] sm:$0xf]
  %v138 = vld [vmem:[%s1 + $0x5c] sm:$0xf]
  %v139 = vld [vmem:[%s1 + $0x60] sm:$0xf]
  %v140 = vld [vmem:[%s1 + $0x64] sm:$0xf]
  %v141 = vld [vmem:[%s1 + $0x68] sm:$0xf]
  %v142 = vld [vmem:[%s1 + $0x6c] sm:$0xf]
  %v143 = vld [vmem:[%s1 + $0x70] sm:$0xf]
  %v144 = vld [vmem:[%s1 + $0x74] sm:$0xf]
  %v145 = vld [vmem:[%s1 + $0x78] sm:$0xf]
  %v146 = vld [vmem:[%s1 + $0x7c] sm:$0xf]
  %v147 = vld [vmem:[%s1 + $0x80] sm:$0xf]
  %v148 = vld [vmem:[%s1 + $0x84] sm:$0xf]
  %v149 = vld [vmem:[%s1 + $0x88] sm:$0xf]
  %v150 = vld [vmem:[%s1 + $0x8c] sm:$0xf]
  %v151 = vld [vmem:[%s1 + $0x90] sm:$0xf]
  %v152 = vld [vmem:[%s1 + $0x94] sm:$0xf]
  %v153 = vld [vmem:[%s1 + $0x98] sm:$0xf]
  %v154 = vld [vmem:[%s1 + $0x9c] sm:$0xf]
  %v155 = vld [vmem:[%s1 + $0xa0] sm:$0xf]
  %v156 = vld [vmem:[%s1 + $0xa4] sm:$0xf]
  %v157 = vld [vmem:[%s1 + $0xa8] sm:$0xf]
  %v158 = vld [vmem:[%s1 + $0xac] sm:$0xf]
  %v159 = vld [vmem:[%s1 + $0xb0] sm:$0xf]
  %v160 = vld [vmem:[%s1 + $0xb4] sm:$0xf]
  %v161 = vld [vmem:[%s1 + $0xb8] sm:$0xf]
  %v162 = vld [vmem:[%s1 + $0xbc] sm:$0xf]
  %v163 = vld [vmem:[%s1 + $0xc0] sm:$0xf]
  %v164 = vld [vmem:[%s1 + $0xc4] sm:$0xf]
  %v165 = vld [vmem:[%s1 + $0xc8] sm:$0xf]
  %v166 = vld [vmem:[%s1 + $0xcc] sm:$0xf]
  %v167 = vld [vmem:[%s1 + $0xd0] sm:$0xf]
  %v168 = vld [vmem:[%s1 + $0xd4] sm:$0xf]
  %v169 = vld [vmem:[%s1 + $0xd8] sm:$0xf]
  %v170 = vld [vmem:[%s1 + $0xdc] sm:$0xf]
  %v171 = vld [vmem:[%s1 + $0xe0] sm:$0xf]
  %v172 = vld [vmem:[%s1 + $0xe4] sm:$0xf]
  %v173 = vld [vmem:[%s1 + $0xe8] sm:$0xf]
  %v174 = vld [vmem:[%s1 + $0xec] sm:$0xf]
  %v175 = vld [vmem:[%s1 + $0xf0] sm:$0xf]
  %v176 = vld [vmem:[%s1 + $0xf4] sm:$0xf]
  %v177 = vld [vmem:[%s1 + $0xf8] sm:$0xf]
  %v178 = vld [vmem:[%s1 + $0xfc] sm:$0xf]
  %v179 = vld [vmem:[%s1 + $0x100] sm:$0xf]
  %v180 = vld [vmem:[%s1 + $0x104] sm:$0xf]
  %v181 = vld [vmem:[%s1 + $0x108] sm:$0xf]
  %v182 = vld [vmem:[%s1 + $0x10c] sm:$0xf]
  %v183 = vld [vmem:[%s1 + $0x110] sm:$0xf]
  %v184 = vld [vmem:[%s1 + $0x114] sm:$0xf]
  %v185 = vld [vmem:[%s1 + $0x118] sm:$0xf]
  %v186 = vld [vmem:[%s1 + $0x11c] sm:$0xf]
  %v187 = vld [vmem:[%s1 + $0x120] sm:$0xf]
  %v188 = vld [vmem:[%s1 + $0x124] sm:$0xf]
  %v189 = vld [vmem:[%s1 + $0x128] sm:$0xf]
  %v190 = vld [vmem:[%s1 + $0x12c] sm:$0xf]
  %v191 = vld [vmem:[%s1 + $0x130] sm:$0xf]
  %v192 = vld [vmem:[%s1 + $0x134] sm:$0xf]
  %v193 = vld [vmem:[%s1 + $0x138] sm:$0xf]
  %v194 = vld [vmem:[%s1 + $0x13c] sm:$0xf]
  %v195 = vld [vmem:[%s1 + $0x140] sm:$0xf]
  %v196 = vld [vmem:[%s1 + $0x144] sm:$0xf]
  %v197 = vld [vmem:[%s1 + $0x148] sm:$0xf]
  %v198 = vld [vmem:[%s1 + $0x14c] sm:$0xf]
  %v199 = vld [vmem:[%s1 + $0x150] sm:$0xf]
  %v200 = vld [vmem:[%s1 + $0x154] sm:$0xf]
  %v201 = vld [vmem:[%s1 + $0x158] sm:$0xf]
  %v202 = vld [vmem:[%s1 + $0x15c] sm:$0xf]
  %v203 = vld [vmem:[%s1 + $0x160] sm:$0xf]
  %v204 = vld [vmem:[%s1 + $0x164] sm:$0xf]
  %v205 = vld [vmem:[%s1 + $0x168] sm:$0xf]
  %v206 = vld [vmem:[%s1 + $0x16c] sm:$0xf]
  %v207 = vld [vmem:[%s1 + $0x170] sm:$0xf]
  %v208 = vld [vmem:[%s1 + $0x174] sm:$0xf]
  %v209 = vld [vmem:[%s1 + $0x178] sm:$0xf]
  %v210 = vld [vmem:[%s1 + $0x17c] sm:$0xf]
  %v211 = vld [vmem:[%s1 + $0x180] sm:$0xf]
  %v212 = vld [vmem:[%s1 + $0x184] sm:$0xf]
  %v213 = vld [vmem:[%s1 + $0x188] sm:$0xf]
  %v214 = vld [vmem:[%s1 + $0x18c] sm:$0xf]
  %v215 = vld [vmem:[%s1 + $0x190] sm:$0xf]
  %v216 = vld [vmem:[%s1 + $0x194] sm:$0xf]
  %v217 = vld [vmem:[%s1 + $0x198] sm:$0xf]
  %v218 = vld [vmem:[%s1 + $0x19c] sm:$0xf]
  %v219 = vld [vmem:[%s1 + $0x1a0] sm:$0xf]
  %v220 = vld [vmem:[%s1 + $0x1a4] sm:$0xf]
  %v221 = vld [vmem:[%s1 + $0x1a8] sm:$0xf]
  %v222 = vld [vmem:[%s1 + $0x1ac] sm:$0xf]
  %v223 = vld [vmem:[%s1 + $0x1b0] sm:$0xf]
  %v224 = vld [vmem:[%s1 + $0x1b4] sm:$0xf]
  %v225 = vld [vmem:[%s1 + $0x1b8] sm:$0xf]
  %v226 = vld [vmem:[%s1 + $0x1bc] sm:$0xf]
  %v291 = vunpack.c.l.b16 %v51
  %v292 = vunpack.c.h.b16 %v51
  %v293 = vunpack.c.l.b16 %v52
  %v294 = vunpack.c.h.b16 %v52
  %v295 = vunpack.c.l.b16 %v53
  %v296 = vunpack.c.h.b16 %v53
  %v297 = vunpack.c.l.b16 %v54
  %v298 = vunpack.c.l.b16 %v55
  %v299 = vunpack.c.h.b16 %v55
  %v300 = vunpack.c.l.b16 %v56
  %v301 = vunpack.c.h.b16 %v56
  %v302 = vunpack.c.l.b16 %v57
  %v303 = vunpack.c.h.b16 %v57
  %v304 = vunpack.c.l.b16 %v58
  %v305 = vunpack.c.l.b16 %v59
  %v306 = vunpack.c.h.b16 %v59
  %v307 = vunpack.c.l.b16 %v60
  %v308 = vunpack.c.h.b16 %v60
  %v309 = vunpack.c.l.b16 %v61
  %v310 = vunpack.c.h.b16 %v61
  %v311 = vunpack.c.l.b16 %v62
  %v312 = vunpack.c.l.b16 %v63
  %v313 = vunpack.c.h.b16 %v63
  %v314 = vunpack.c.l.b16 %v64
  %v315 = vunpack.c.h.b16 %v64
  %v316 = vunpack.c.l.b16 %v65
  %v317 = vunpack.c.h.b16 %v65
  %v318 = vunpack.c.l.b16 %v66
  %v319 = vunpack.c.l.b16 %v67
  %v320 = vunpack.c.h.b16 %v67
  %v321 = vunpack.c.l.b16 %v68
  %v322 = vunpack.c.h.b16 %v68
  %v323 = vunpack.c.l.b16 %v69
  %v324 = vunpack.c.h.b16 %v69
  %v325 = vunpack.c.l.b16 %v70
  %v326 = vunpack.c.l.b16 %v71
  %v327 = vunpack.c.h.b16 %v71
  %v328 = vunpack.c.l.b16 %v72
  %v329 = vunpack.c.h.b16 %v72
  %v330 = vunpack.c.l.b16 %v73
  %v331 = vunpack.c.h.b16 %v73
  %v332 = vunpack.c.l.b16 %v74
  %v333 = vunpack.c.l.b16 %v75
  %v334 = vunpack.c.h.b16 %v75
  %v335 = vunpack.c.l.b16 %v76
  %v336 = vunpack.c.h.b16 %v76
  %v337 = vunpack.c.l.b16 %v77
  %v338 = vunpack.c.h.b16 %v77
  %v339 = vunpack.c.l.b16 %v78
  %v340 = vunpack.c.l.b16 %v79
  %v341 = vunpack.c.h.b16 %v79
  %v342 = vunpack.c.l.b16 %v80
  %v343 = vunpack.c.h.b16 %v80
  %v344 = vunpack.c.l.b16 %v81
  %v345 = vunpack.c.h.b16 %v81
  %v346 = vunpack.c.l.b16 %v82
  %v347 = vunpack.c.l.b16 %v83
  %v348 = vunpack.c.h.b16 %v83
  %v349 = vunpack.c.l.b16 %v84
  %v350 = vunpack.c.h.b16 %v84
  %v351 = vunpack.c.l.b16 %v85
  %v352 = vunpack.c.h.b16 %v85
  %v353 = vunpack.c.l.b16 %v86
  %v354 = vunpack.c.l.b16 %v87
  %v355 = vunpack.c.h.b16 %v87
  %v356 = vunpack.c.l.b16 %v88
  %v357 = vunpack.c.h.b16 %v88
  %v358 = vunpack.c.l.b16 %v89
  %v359 = vunpack.c.h.b16 %v89
  %v360 = vunpack.c.l.b16 %v90
  %v361 = vunpack.c.l.b16 %v91
  %v362 = vunpack.c.h.b16 %v91
  %v363 = vunpack.c.l.b16 %v92
  %v364 = vunpack.c.h.b16 %v92
  %v365 = vunpack.c.l.b16 %v93
  %v366 = vunpack.c.h.b16 %v93
  %v367 = vunpack.c.l.b16 %v94
  %v368 = vunpack.c.l.b16 %v95
  %v369 = vunpack.c.h.b16 %v95
  %v370 = vunpack.c.l.b16 %v96
  %v371 = vunpack.c.h.b16 %v96
  %v372 = vunpack.c.l.b16 %v97
  %v373 = vunpack.c.h.b16 %v97
  %v374 = vunpack.c.l.b16 %v98
  %v375 = vunpack.c.l.b16 %v99
  %v376 = vunpack.c.h.b16 %v99
  %v377 = vunpack.c.l.b16 %v100
  %v378 = vunpack.c.h.b16 %v100
  %v379 = vunpack.c.l.b16 %v101
  %v380 = vunpack.c.h.b16 %v101
  %v381 = vunpack.c.l.b16 %v102
  %v382 = vunpack.c.l.b16 %v103
  %v383 = vunpack.c.h.b16 %v103
  %v384 = vunpack.c.l.b16 %v104
  %v385 = vunpack.c.h.b16 %v104
  %v386 = vunpack.c.l.b16 %v105
  %v387 = vunpack.c.h.b16 %v105
  %v388 = vunpack.c.l.b16 %v106
  %v389 = vunpack.c.l.b16 %v107
  %v390 = vunpack.c.h.b16 %v107
  %v391 = vunpack.c.l.b16 %v108
  %v392 = vunpack.c.h.b16 %v108
  %v393 = vunpack.c.l.b16 %v109
  %v394 = vunpack.c.h.b16 %v109
  %v395 = vunpack.c.l.b16 %v110
  %v396 = vunpack.c.l.b16 %v111
  %v397 = vunpack.c.h.b16 %v111
  %v398 = vunpack.c.l.b16 %v112
  %v399 = vunpack.c.h.b16 %v112
  %v400 = vunpack.c.l.b16 %v113
  %v401 = vunpack.c.h.b16 %v113
  %v402 = vunpack.c.l.b16 %v114
  %v403 = vpack.c.b16 %v298, %v291
  %v404 = vpack.c.b16 %v299, %v292
  %v405 = vpack.c.b16 %v300, %v293
  %v406 = vpack.c.b16 %v301, %v294
  %v407 = vpack.c.b16 %v302, %v295
  %v408 = vpack.c.b16 %v303, %v296
  %v409 = vpack.c.b16 %v304, %v297
  %v410 = vpack.c.b16 %v312, %v305
  %v411 = vpack.c.b16 %v313, %v306
  %v412 = vpack.c.b16 %v314, %v307
  %v413 = vpack.c.b16 %v315, %v308
  %v414 = vpack.c.b16 %v316, %v309
  %v415 = vpack.c.b16 %v317, %v310
  %v416 = vpack.c.b16 %v318, %v311
  %v417 = vpack.c.b16 %v326, %v319
  %v418 = vpack.c.b16 %v327, %v320
  %v419 = vpack.c.b16 %v328, %v321
  %v420 = vpack.c.b16 %v329, %v322
  %v421 = vpack.c.b16 %v330, %v323
  %v422 = vpack.c.b16 %v331, %v324
  %v423 = vpack.c.b16 %v332, %v325
  %v424 = vpack.c.b16 %v340, %v333
  %v425 = vpack.c.b16 %v341, %v334
  %v426 = vpack.c.b16 %v342, %v335
  %v427 = vpack.c.b16 %v343, %v336
  %v428 = vpack.c.b16 %v344, %v337
  %v429 = vpack.c.b16 %v345, %v338
  %v430 = vpack.c.b16 %v346, %v339
  %v431 = vpack.c.b16 %v354, %v347
  %v432 = vpack.c.b16 %v355, %v348
  %v433 = vpack.c.b16 %v356, %v349
  %v434 = vpack.c.b16 %v357, %v350
  %v435 = vpack.c.b16 %v358, %v351
  %v436 = vpack.c.b16 %v359, %v352
  %v437 = vpack.c.b16 %v360, %v353
  %v438 = vpack.c.b16 %v368, %v361
  %v439 = vpack.c.b16 %v369, %v362
  %v440 = vpack.c.b16 %v370, %v363
  %v441 = vpack.c.b16 %v371, %v364
  %v442 = vpack.c.b16 %v372, %v365
  %v443 = vpack.c.b16 %v373, %v366
  %v444 = vpack.c.b16 %v374, %v367
  %v445 = vpack.c.b16 %v382, %v375
  %v446 = vpack.c.b16 %v383, %v376
  %v447 = vpack.c.b16 %v384, %v377
  %v448 = vpack.c.b16 %v385, %v378
  %v449 = vpack.c.b16 %v386, %v379
  %v450 = vpack.c.b16 %v387, %v380
  %v451 = vpack.c.b16 %v388, %v381
  %v452 = vpack.c.b16 %v396, %v389
  %v453 = vpack.c.b16 %v397, %v390
  %v454 = vpack.c.b16 %v398, %v391
  %v455 = vpack.c.b16 %v399, %v392
  %v456 = vpack.c.b16 %v400, %v393
  %v457 = vpack.c.b16 %v401, %v394
  %v458 = vpack.c.b16 %v402, %v395
  %v627 = vunpack.c.l.b16 %v115
  %v628 = vunpack.c.l.b16 %v116
  %v629 = vunpack.c.l.b16 %v117
  %v630 = vunpack.c.l.b16 %v118
  %v631 = vunpack.c.l.b16 %v119
  %v632 = vunpack.c.l.b16 %v120
  %v633 = vunpack.c.l.b16 %v121
  %v634 = vunpack.c.l.b16 %v122
  %v635 = vunpack.c.l.b16 %v123
  %v636 = vunpack.c.l.b16 %v124
  %v637 = vunpack.c.l.b16 %v125
  %v638 = vunpack.c.l.b16 %v126
  %v639 = vunpack.c.l.b16 %v127
  %v640 = vunpack.c.l.b16 %v128
  %v641 = vunpack.c.l.b16 %v129
  %v642 = vunpack.c.l.b16 %v130
  %v643 = vunpack.c.l.b16 %v131
  %v644 = vunpack.c.l.b16 %v132
  %v645 = vunpack.c.l.b16 %v133
  %v646 = vunpack.c.l.b16 %v134
  %v647 = vunpack.c.l.b16 %v135
  %v648 = vunpack.c.l.b16 %v136
  %v649 = vunpack.c.l.b16 %v137
  %v650 = vunpack.c.l.b16 %v138
  %v651 = vunpack.c.l.b16 %v139
  %v652 = vunpack.c.l.b16 %v140
  %v653 = vunpack.c.l.b16 %v141
  %v654 = vunpack.c.l.b16 %v142
  %v655 = vunpack.c.l.b16 %v143
  %v656 = vunpack.c.l.b16 %v144
  %v657 = vunpack.c.l.b16 %v145
  %v658 = vunpack.c.l.b16 %v146
  %v659 = vunpack.c.l.b16 %v147
  %v660 = vunpack.c.l.b16 %v148
  %v661 = vunpack.c.l.b16 %v149
  %v662 = vunpack.c.l.b16 %v150
  %v663 = vunpack.c.l.b16 %v151
  %v664 = vunpack.c.l.b16 %v152
  %v665 = vunpack.c.l.b16 %v153
  %v666 = vunpack.c.l.b16 %v154
  %v667 = vunpack.c.l.b16 %v155
  %v668 = vunpack.c.l.b16 %v156
  %v669 = vunpack.c.l.b16 %v157
  %v670 = vunpack.c.l.b16 %v158
  %v671 = vunpack.c.l.b16 %v159
  %v672 = vunpack.c.l.b16 %v160
  %v673 = vunpack.c.l.b16 %v161
  %v674 = vunpack.c.l.b16 %v162
  %v675 = vunpack.c.l.b16 %v163
  %v676 = vunpack.c.l.b16 %v164
  %v677 = vunpack.c.l.b16 %v165
  %v678 = vunpack.c.l.b16 %v166
  %v679 = vunpack.c.l.b16 %v167
  %v680 = vunpack.c.l.b16 %v168
  %v681 = vunpack.c.l.b16 %v169
  %v682 = vunpack.c.l.b16 %v170
  %v683 = vunpack.c.l.b16 %v171
  %v684 = vunpack.c.l.b16 %v172
  %v685 = vunpack.c.l.b16 %v173
  %v686 = vunpack.c.l.b16 %v174
  %v687 = vunpack.c.l.b16 %v175
  %v688 = vunpack.c.l.b16 %v176
  %v689 = vunpack.c.l.b16 %v177
  %v690 = vunpack.c.l.b16 %v178
  %v691 = vunpack.c.l.b16 %v179
  %v692 = vunpack.c.l.b16 %v180
  %v693 = vunpack.c.l.b16 %v181
  %v694 = vunpack.c.l.b16 %v182
  %v695 = vunpack.c.l.b16 %v183
  %v696 = vunpack.c.l.b16 %v184
  %v697 = vunpack.c.l.b16 %v185
  %v698 = vunpack.c.l.b16 %v186
  %v699 = vunpack.c.l.b16 %v187
  %v700 = vunpack.c.l.b16 %v188
  %v701 = vunpack.c.l.b16 %v189
  %v702 = vunpack.c.l.b16 %v190
  %v703 = vunpack.c.l.b16 %v191
  %v704 = vunpack.c.l.b16 %v192
  %v705 = vunpack.c.l.b16 %v193
  %v706 = vunpack.c.l.b16 %v194
  %v707 = vunpack.c.l.b16 %v195
  %v708 = vunpack.c.l.b16 %v196
  %v709 = vunpack.c.l.b16 %v197
  %v710 = vunpack.c.l.b16 %v198
  %v711 = vunpack.c.l.b16 %v199
  %v712 = vunpack.c.l.b16 %v200
  %v713 = vunpack.c.l.b16 %v201
  %v714 = vunpack.c.l.b16 %v202
  %v715 = vunpack.c.l.b16 %v203
  %v716 = vunpack.c.l.b16 %v204
  %v717 = vunpack.c.l.b16 %v205
  %v718 = vunpack.c.l.b16 %v206
  %v719 = vunpack.c.l.b16 %v207
  %v720 = vunpack.c.l.b16 %v208
  %v721 = vunpack.c.l.b16 %v209
  %v722 = vunpack.c.l.b16 %v210
  %v723 = vunpack.c.l.b16 %v211
  %v724 = vunpack.c.l.b16 %v212
  %v725 = vunpack.c.l.b16 %v213
  %v726 = vunpack.c.l.b16 %v214
  %v727 = vunpack.c.l.b16 %v215
  %v728 = vunpack.c.l.b16 %v216
  %v729 = vunpack.c.l.b16 %v217
  %v730 = vunpack.c.l.b16 %v218
  %v731 = vunpack.c.l.b16 %v219
  %v732 = vunpack.c.l.b16 %v220
  %v733 = vunpack.c.l.b16 %v221
  %v734 = vunpack.c.l.b16 %v222
  %v735 = vunpack.c.l.b16 %v223
  %v736 = vunpack.c.l.b16 %v224
  %v737 = vunpack.c.l.b16 %v225
  %v738 = vunpack.c.l.b16 %v226
  %v739 = vpack.c.b16 %v628, %v627
  %v740 = vpack.c.b16 %v630, %v629
  %v741 = vpack.c.b16 %v632, %v631
  %v742 = vpack.c.b16 %v634, %v633
  %v743 = vpack.c.b16 %v636, %v635
  %v744 = vpack.c.b16 %v638, %v637
  %v745 = vpack.c.b16 %v640, %v639
  %v746 = vpack.c.b16 %v642, %v641
  %v747 = vpack.c.b16 %v644, %v643
  %v748 = vpack.c.b16 %v646, %v645
  %v749 = vpack.c.b16 %v648, %v647
  %v750 = vpack.c.b16 %v650, %v649
  %v751 = vpack.c.b16 %v652, %v651
  %v752 = vpack.c.b16 %v654, %v653
  %v753 = vpack.c.b16 %v656, %v655
  %v754 = vpack.c.b16 %v658, %v657
  %v755 = vpack.c.b16 %v660, %v659
  %v756 = vpack.c.b16 %v662, %v661
  %v757 = vpack.c.b16 %v664, %v663
  %v758 = vpack.c.b16 %v666, %v665
  %v759 = vpack.c.b16 %v668, %v667
  %v760 = vpack.c.b16 %v670, %v669
  %v761 = vpack.c.b16 %v672, %v671
  %v762 = vpack.c.b16 %v674, %v673
  %v763 = vpack.c.b16 %v676, %v675
  %v764 = vpack.c.b16 %v678, %v677
  %v765 = vpack.c.b16 %v680, %v679
  %v766 = vpack.c.b16 %v682, %v681
  %v767 = vpack.c.b16 %v684, %v683
  %v768 = vpack.c.b16 %v686, %v685
  %v769 = vpack.c.b16 %v688, %v687
  %v770 = vpack.c.b16 %v690, %v689
  %v771 = vpack.c.b16 %v692, %v691
  %v772 = vpack.c.b16 %v694, %v693
  %v773 = vpack.c.b16 %v696, %v695
  %v774 = vpack.c.b16 %v698, %v697
  %v775 = vpack.c.b16 %v700, %v699
  %v776 = vpack.c.b16 %v702, %v701
  %v777 = vpack.c.b16 %v704, %v703
  %v778 = vpack.c.b16 %v706, %v705
  %v779 = vpack.c.b16 %v708, %v707
  %v780 = vpack.c.b16 %v710, %v709
  %v781 = vpack.c.b16 %v712, %v711
  %v782 = vpack.c.b16 %v714, %v713
  %v783 = vpack.c.b16 %v716, %v715
  %v784 = vpack.c.b16 %v718, %v717
  %v785 = vpack.c.b16 %v720, %v719
  %v786 = vpack.c.b16 %v722, %v721
  %v787 = vpack.c.b16 %v724, %v723
  %v788 = vpack.c.b16 %v726, %v725
  %v789 = vpack.c.b16 %v728, %v727
  %v790 = vpack.c.b16 %v730, %v729
  %v791 = vpack.c.b16 %v732, %v731
  %v792 = vpack.c.b16 %v734, %v733
  %v793 = vpack.c.b16 %v736, %v735
  %v794 = vpack.c.b16 %v738, %v737
  %851 = vmatpush.bf16.msra.mxu0 %v746
  %852 = vmatpush.bf16.msra.mxu0 %v745
  %853 = vmatpush.bf16.msra.mxu0 %v744
  %854 = vmatpush.bf16.msra.mxu0 %v743
  %855 = vmatpush.bf16.msra.mxu0 %v742
  %856 = vmatpush.bf16.msra.mxu0 %v741
  %857 = vmatpush.bf16.msra.mxu0 %v740
  %858 = vmatpush.bf16.msra.mxu0 %v739
  %859 = vmatmul.bf16.gmra.mxu0 %v403
  %v860 = vpop.f32.mrf.mxu0
  %v861 = vadd.f32 0.0, %v860
  %v862 = vpop.f32.mrf.mxu0
  %v863 = vadd.f32 0.0, %v862
  %864 = vmatmul.bf16.gmra.mxu0 %v410
  %v865 = vpop.f32.mrf.mxu0
  %v866 = vadd.f32 0.0, %v865
  %v867 = vpop.f32.mrf.mxu0
  %v868 = vadd.f32 0.0, %v867
  %869 = vmatmul.bf16.gmra.mxu0 %v417
  %v870 = vpop.f32.mrf.mxu0
  %v871 = vadd.f32 0.0, %v870
  %v872 = vpop.f32.mrf.mxu0
  %v873 = vadd.f32 0.0, %v872
  %874 = vmatmul.bf16.gmra.mxu0 %v424
  %v875 = vpop.f32.mrf.mxu0
  %v876 = vadd.f32 0.0, %v875
  %v877 = vpop.f32.mrf.mxu0
  %v878 = vadd.f32 0.0, %v877
  %879 = vmatmul.bf16.gmra.mxu0 %v431
  %v880 = vpop.f32.mrf.mxu0
  %v881 = vadd.f32 0.0, %v880
  %v882 = vpop.f32.mrf.mxu0
  %v883 = vadd.f32 0.0, %v882
  %884 = vmatmul.bf16.gmra.mxu0 %v438
  %v885 = vpop.f32.mrf.mxu0
  %v886 = vadd.f32 0.0, %v885
  %v887 = vpop.f32.mrf.mxu0
  %v888 = vadd.f32 0.0, %v887
  %889 = vmatmul.bf16.gmra.mxu0 %v445
  %v890 = vpop.f32.mrf.mxu0
  %v891 = vadd.f32 0.0, %v890
  %v892 = vpop.f32.mrf.mxu0
  %v893 = vadd.f32 0.0, %v892
  %894 = vmatmul.bf16.gmra.mxu0 %v452
  %v895 = vpop.f32.mrf.mxu0
  %v896 = vadd.f32 0.0, %v895
  %v897 = vpop.f32.mrf.mxu0
  %v898 = vadd.f32 0.0, %v897
  %899 = vdwg.mxu0
  %900 = vmatpush.bf16.msra.mxu0 %v754
  %901 = vmatpush.bf16.msra.mxu0 %v753
  %902 = vmatpush.bf16.msra.mxu0 %v752
  %903 = vmatpush.bf16.msra.mxu0 %v751
  %904 = vmatpush.bf16.msra.mxu0 %v750
  %905 = vmatpush.bf16.msra.mxu0 %v749
  %906 = vmatpush.bf16.msra.mxu0 %v748
  %907 = vmatpush.bf16.msra.mxu0 %v747
  %908 = vmatmul.bf16.gmra.mxu0 %v404
  %v909 = vpop.f32.mrf.mxu0
  %v910 = vadd.f32 %v861, %v909
  %v911 = vpop.f32.mrf.mxu0
  %v912 = vadd.f32 %v863, %v911
  %913 = vmatmul.bf16.gmra.mxu0 %v411
  %v914 = vpop.f32.mrf.mxu0
  %v915 = vadd.f32 %v866, %v914
  %v916 = vpop.f32.mrf.mxu0
  %v917 = vadd.f32 %v868, %v916
  %918 = vmatmul.bf16.gmra.mxu0 %v418
  %v919 = vpop.f32.mrf.mxu0
  %v920 = vadd.f32 %v871, %v919
  %v921 = vpop.f32.mrf.mxu0
  %v922 = vadd.f32 %v873, %v921
  %923 = vmatmul.bf16.gmra.mxu0 %v425
  %v924 = vpop.f32.mrf.mxu0
  %v925 = vadd.f32 %v876, %v924
  %v926 = vpop.f32.mrf.mxu0
  %v927 = vadd.f32 %v878, %v926
  %928 = vmatmul.bf16.gmra.mxu0 %v432
  %v929 = vpop.f32.mrf.mxu0
  %v930 = vadd.f32 %v881, %v929
  %v931 = vpop.f32.mrf.mxu0
  %v932 = vadd.f32 %v883, %v931
  %933 = vmatmul.bf16.gmra.mxu0 %v439
  %v934 = vpop.f32.mrf.mxu0
  %v935 = vadd.f32 %v886, %v934
  %v936 = vpop.f32.mrf.mxu0
  %v937 = vadd.f32 %v888, %v936
  %938 = vmatmul.bf16.gmra.mxu0 %v446
  %v939 = vpop.f32.mrf.mxu0
  %v940 = vadd.f32 %v891, %v939
  %v941 = vpop.f32.mrf.mxu0
  %v942 = vadd.f32 %v893, %v941
  %943 = vmatmul.bf16.gmra.mxu0 %v453
  %v944 = vpop.f32.mrf.mxu0
  %v945 = vadd.f32 %v896, %v944
  %v946 = vpop.f32.mrf.mxu0
  %v947 = vadd.f32 %v898, %v946
  %948 = vdwg.mxu0
  %949 = vmatpush.bf16.msra.mxu0 %v762
  %950 = vmatpush.bf16.msra.mxu0 %v761
  %951 = vmatpush.bf16.msra.mxu0 %v760
  %952 = vmatpush.bf16.msra.mxu0 %v759
  %953 = vmatpush.bf16.msra.mxu0 %v758
  %954 = vmatpush.bf16.msra.mxu0 %v757
  %955 = vmatpush.bf16.msra.mxu0 %v756
  %956 = vmatpush.bf16.msra.mxu0 %v755
  %957 = vmatmul.bf16.gmra.mxu0 %v405
  %v958 = vpop.f32.mrf.mxu0
  %v959 = vadd.f32 %v910, %v958
  %v960 = vpop.f32.mrf.mxu0
  %v961 = vadd.f32 %v912, %v960
  %962 = vmatmul.bf16.gmra.mxu0 %v412
  %v963 = vpop.f32.mrf.mxu0
  %v964 = vadd.f32 %v915, %v963
  %v965 = vpop.f32.mrf.mxu0
  %v966 = vadd.f32 %v917, %v965
  %967 = vmatmul.bf16.gmra.mxu0 %v419
  %v968 = vpop.f32.mrf.mxu0
  %v969 = vadd.f32 %v920, %v968
  %v970 = vpop.f32.mrf.mxu0
  %v971 = vadd.f32 %v922, %v970
  %972 = vmatmul.bf16.gmra.mxu0 %v426
  %v973 = vpop.f32.mrf.mxu0
  %v974 = vadd.f32 %v925, %v973
  %v975 = vpop.f32.mrf.mxu0
  %v976 = vadd.f32 %v927, %v975
  %977 = vmatmul.bf16.gmra.mxu0 %v433
  %v978 = vpop.f32.mrf.mxu0
  %v979 = vadd.f32 %v930, %v978
  %v980 = vpop.f32.mrf.mxu0
  %v981 = vadd.f32 %v932, %v980
  %982 = vmatmul.bf16.gmra.mxu0 %v440
  %v983 = vpop.f32.mrf.mxu0
  %v984 = vadd.f32 %v935, %v983
  %v985 = vpop.f32.mrf.mxu0
  %v986 = vadd.f32 %v937, %v985
  %987 = vmatmul.bf16.gmra.mxu0 %v447
  %v988 = vpop.f32.mrf.mxu0
  %v989 = vadd.f32 %v940, %v988
  %v990 = vpop.f32.mrf.mxu0
  %v991 = vadd.f32 %v942, %v990
  %992 = vmatmul.bf16.gmra.mxu0 %v454
  %v993 = vpop.f32.mrf.mxu0
  %v994 = vadd.f32 %v945, %v993
  %v995 = vpop.f32.mrf.mxu0
  %v996 = vadd.f32 %v947, %v995
  %997 = vdwg.mxu0
  %998 = vmatpush.bf16.msra.mxu0 %v770
  %999 = vmatpush.bf16.msra.mxu0 %v769
  %1000 = vmatpush.bf16.msra.mxu0 %v768
  %1001 = vmatpush.bf16.msra.mxu0 %v767
  %1002 = vmatpush.bf16.msra.mxu0 %v766
  %1003 = vmatpush.bf16.msra.mxu0 %v765
  %1004 = vmatpush.bf16.msra.mxu0 %v764
  %1005 = vmatpush.bf16.msra.mxu0 %v763
  %1006 = vmatmul.bf16.gmra.mxu0 %v406
  %v1007 = vpop.f32.mrf.mxu0
  %v1008 = vadd.f32 %v959, %v1007
  %v1009 = vpop.f32.mrf.mxu0
  %v1010 = vadd.f32 %v961, %v1009
  %1011 = vmatmul.bf16.gmra.mxu0 %v413
  %v1012 = vpop.f32.mrf.mxu0
  %v1013 = vadd.f32 %v964, %v1012
  %v1014 = vpop.f32.mrf.mxu0
  %v1015 = vadd.f32 %v966, %v1014
  %1016 = vmatmul.bf16.gmra.mxu0 %v420
  %v1017 = vpop.f32.mrf.mxu0
  %v1018 = vadd.f32 %v969, %v1017
  %v1019 = vpop.f32.mrf.mxu0
  %v1020 = vadd.f32 %v971, %v1019
  %1021 = vmatmul.bf16.gmra.mxu0 %v427
  %v1022 = vpop.f32.mrf.mxu0
  %v1023 = vadd.f32 %v974, %v1022
  %v1024 = vpop.f32.mrf.mxu0
  %v1025 = vadd.f32 %v976, %v1024
  %1026 = vmatmul.bf16.gmra.mxu0 %v434
  %v1027 = vpop.f32.mrf.mxu0
  %v1028 = vadd.f32 %v979, %v1027
  %v1029 = vpop.f32.mrf.mxu0
  %v1030 = vadd.f32 %v981, %v1029
  %1031 = vmatmul.bf16.gmra.mxu0 %v441
  %v1032 = vpop.f32.mrf.mxu0
  %v1033 = vadd.f32 %v984, %v1032
  %v1034 = vpop.f32.mrf.mxu0
  %v1035 = vadd.f32 %v986, %v1034
  %1036 = vmatmul.bf16.gmra.mxu0 %v448
  %v1037 = vpop.f32.mrf.mxu0
  %v1038 = vadd.f32 %v989, %v1037
  %v1039 = vpop.f32.mrf.mxu0
  %v1040 = vadd.f32 %v991, %v1039
  %1041 = vmatmul.bf16.gmra.mxu0 %v455
  %v1042 = vpop.f32.mrf.mxu0
  %v1043 = vadd.f32 %v994, %v1042
  %v1044 = vpop.f32.mrf.mxu0
  %v1045 = vadd.f32 %v996, %v1044
  %1046 = vdwg.mxu0
  %1047 = vmatpush.bf16.msra.mxu0 %v778
  %1048 = vmatpush.bf16.msra.mxu0 %v777
  %1049 = vmatpush.bf16.msra.mxu0 %v776
  %1050 = vmatpush.bf16.msra.mxu0 %v775
  %1051 = vmatpush.bf16.msra.mxu0 %v774
  %1052 = vmatpush.bf16.msra.mxu0 %v773
  %1053 = vmatpush.bf16.msra.mxu0 %v772
  %1054 = vmatpush.bf16.msra.mxu0 %v771
  %1055 = vmatmul.bf16.gmra.mxu0 %v407
  %v1056 = vpop.f32.mrf.mxu0
  %v1057 = vadd.f32 %v1008, %v1056
  %v1058 = vpop.f32.mrf.mxu0
  %v1059 = vadd.f32 %v1010, %v1058
  %1060 = vmatmul.bf16.gmra.mxu0 %v414
  %v1061 = vpop.f32.mrf.mxu0
  %v1062 = vadd.f32 %v1013, %v1061
  %v1063 = vpop.f32.mrf.mxu0
  %v1064 = vadd.f32 %v1015, %v1063
  %1065 = vmatmul.bf16.gmra.mxu0 %v421
  %v1066 = vpop.f32.mrf.mxu0
  %v1067 = vadd.f32 %v1018, %v1066
  %v1068 = vpop.f32.mrf.mxu0
  %v1069 = vadd.f32 %v1020, %v1068
  %1070 = vmatmul.bf16.gmra.mxu0 %v428
  %v1071 = vpop.f32.mrf.mxu0
  %v1072 = vadd.f32 %v1023, %v1071
  %v1073 = vpop.f32.mrf.mxu0
  %v1074 = vadd.f32 %v1025, %v1073
  %1075 = vmatmul.bf16.gmra.mxu0 %v435
  %v1076 = vpop.f32.mrf.mxu0
  %v1077 = vadd.f32 %v1028, %v1076
  %v1078 = vpop.f32.mrf.mxu0
  %v1079 = vadd.f32 %v1030, %v1078
  %1080 = vmatmul.bf16.gmra.mxu0 %v442
  %v1081 = vpop.f32.mrf.mxu0
  %v1082 = vadd.f32 %v1033, %v1081
  %v1083 = vpop.f32.mrf.mxu0
  %v1084 = vadd.f32 %v1035, %v1083
  %1085 = vmatmul.bf16.gmra.mxu0 %v449
  %v1086 = vpop.f32.mrf.mxu0
  %v1087 = vadd.f32 %v1038, %v1086
  %v1088 = vpop.f32.mrf.mxu0
  %v1089 = vadd.f32 %v1040, %v1088
  %1090 = vmatmul.bf16.gmra.mxu0 %v456
  %v1091 = vpop.f32.mrf.mxu0
  %v1092 = vadd.f32 %v1043, %v1091
  %v1093 = vpop.f32.mrf.mxu0
  %v1094 = vadd.f32 %v1045, %v1093
  %1095 = vdwg.mxu0
  %1096 = vmatpush.bf16.msra.mxu0 %v786
  %1097 = vmatpush.bf16.msra.mxu0 %v785
  %1098 = vmatpush.bf16.msra.mxu0 %v784
  %1099 = vmatpush.bf16.msra.mxu0 %v783
  %1100 = vmatpush.bf16.msra.mxu0 %v782
  %1101 = vmatpush.bf16.msra.mxu0 %v781
  %1102 = vmatpush.bf16.msra.mxu0 %v780
  %1103 = vmatpush.bf16.msra.mxu0 %v779
  %1104 = vmatmul.bf16.gmra.mxu0 %v408
  %v1105 = vpop.f32.mrf.mxu0
  %v1106 = vadd.f32 %v1057, %v1105
  %v1107 = vpop.f32.mrf.mxu0
  %v1108 = vadd.f32 %v1059, %v1107
  %1109 = vmatmul.bf16.gmra.mxu0 %v415
  %v1110 = vpop.f32.mrf.mxu0
  %v1111 = vadd.f32 %v1062, %v1110
  %v1112 = vpop.f32.mrf.mxu0
  %v1113 = vadd.f32 %v1064, %v1112
  %1114 = vmatmul.bf16.gmra.mxu0 %v422
  %v1115 = vpop.f32.mrf.mxu0
  %v1116 = vadd.f32 %v1067, %v1115
  %v1117 = vpop.f32.mrf.mxu0
  %v1118 = vadd.f32 %v1069, %v1117
  %1119 = vmatmul.bf16.gmra.mxu0 %v429
  %v1120 = vpop.f32.mrf.mxu0
  %v1121 = vadd.f32 %v1072, %v1120
  %v1122 = vpop.f32.mrf.mxu0
  %v1123 = vadd.f32 %v1074, %v1122
  %1124 = vmatmul.bf16.gmra.mxu0 %v436
  %v1125 = vpop.f32.mrf.mxu0
  %v1126 = vadd.f32 %v1077, %v1125
  %v1127 = vpop.f32.mrf.mxu0
  %v1128 = vadd.f32 %v1079, %v1127
  %1129 = vmatmul.bf16.gmra.mxu0 %v443
  %v1130 = vpop.f32.mrf.mxu0
  %v1131 = vadd.f32 %v1082, %v1130
  %v1132 = vpop.f32.mrf.mxu0
  %v1133 = vadd.f32 %v1084, %v1132
  %1134 = vmatmul.bf16.gmra.mxu0 %v450
  %v1135 = vpop.f32.mrf.mxu0
  %v1136 = vadd.f32 %v1087, %v1135
  %v1137 = vpop.f32.mrf.mxu0
  %v1138 = vadd.f32 %v1089, %v1137
  %1139 = vmatmul.bf16.gmra.mxu0 %v457
  %v1140 = vpop.f32.mrf.mxu0
  %v1141 = vadd.f32 %v1092, %v1140
  %v1142 = vpop.f32.mrf.mxu0
  %v1143 = vadd.f32 %v1094, %v1142
  %1144 = vdwg.mxu0
  %1145 = vmatpush.bf16.msra.mxu0 %v794
  %1146 = vmatpush.bf16.msra.mxu0 %v793
  %1147 = vmatpush.bf16.msra.mxu0 %v792
  %1148 = vmatpush.bf16.msra.mxu0 %v791
  %1149 = vmatpush.bf16.msra.mxu0 %v790
  %1150 = vmatpush.bf16.msra.mxu0 %v789
  %1151 = vmatpush.bf16.msra.mxu0 %v788
  %1152 = vmatpush.bf16.msra.mxu0 %v787
  %1153 = vmatmul.bf16.gmra.mxu0 %v409
  %v1154 = vpop.f32.mrf.mxu0
  %v1155 = vadd.f32 %v1106, %v1154
  %v1156 = vpop.f32.mrf.mxu0
  %v1157 = vadd.f32 %v1108, %v1156
  %1158 = vmatmul.bf16.gmra.mxu0 %v416
  %v1159 = vpop.f32.mrf.mxu0
  %v1160 = vadd.f32 %v1111, %v1159
  %v1161 = vpop.f32.mrf.mxu0
  %v1162 = vadd.f32 %v1113, %v1161
  %1163 = vmatmul.bf16.gmra.mxu0 %v423
  %v1164 = vpop.f32.mrf.mxu0
  %v1165 = vadd.f32 %v1116, %v1164
  %v1166 = vpop.f32.mrf.mxu0
  %v1167 = vadd.f32 %v1118, %v1166
  %1168 = vmatmul.bf16.gmra.mxu0 %v430
  %v1169 = vpop.f32.mrf.mxu0
  %v1170 = vadd.f32 %v1121, %v1169
  %v1171 = vpop.f32.mrf.mxu0
  %v1172 = vadd.f32 %v1123, %v1171
  %1173 = vmatmul.bf16.gmra.mxu0 %v437
  %v1174 = vpop.f32.mrf.mxu0
  %v1175 = vadd.f32 %v1126, %v1174
  %v1176 = vpop.f32.mrf.mxu0
  %v1177 = vadd.f32 %v1128, %v1176
  %1178 = vmatmul.bf16.gmra.mxu0 %v444
  %v1179 = vpop.f32.mrf.mxu0
  %v1180 = vadd.f32 %v1131, %v1179
  %v1181 = vpop.f32.mrf.mxu0
  %v1182 = vadd.f32 %v1133, %v1181
  %1183 = vmatmul.bf16.gmra.mxu0 %v451
  %v1184 = vpop.f32.mrf.mxu0
  %v1185 = vadd.f32 %v1136, %v1184
  %v1186 = vpop.f32.mrf.mxu0
  %v1187 = vadd.f32 %v1138, %v1186
  %1188 = vmatmul.bf16.gmra.mxu0 %v458
  %v1189 = vpop.f32.mrf.mxu0
  %v1190 = vadd.f32 %v1141, %v1189
  %v1191 = vpop.f32.mrf.mxu0
  %v1192 = vadd.f32 %v1143, %v1191
  %1193 = vdwg.mxu0
  %v1194 = vadd.f32 %v35, %v1155
  %v1195 = vadd.f32 %v36, %v1157
  %v1196 = vadd.f32 %v37, %v1160
  %v1197 = vadd.f32 %v38, %v1162
  %v1198 = vadd.f32 %v39, %v1165
  %v1199 = vadd.f32 %v40, %v1167
  %v1200 = vadd.f32 %v41, %v1170
  %v1201 = vadd.f32 %v42, %v1172
  %v1202 = vadd.f32 %v43, %v1175
  %v1203 = vadd.f32 %v44, %v1177
  %v1204 = vadd.f32 %v45, %v1180
  %v1205 = vadd.f32 %v46, %v1182
  %v1206 = vadd.f32 %v47, %v1185
  %v1207 = vadd.f32 %v48, %v1187
  %v1208 = vadd.f32 %v49, %v1190
  %v1209 = vadd.f32 %v50, %v1192
  %vm1210 = vcmask 261120
  %1211 = vst.msk [vmem:[#allocation2] sm:$0xff] %vm1210, %v1194
  %1212 = vst.msk [vmem:[#allocation2 + $0x8] sm:$0xff] %vm1210, %v1195
  %1213 = vst.msk [vmem:[#allocation2 + $0x10] sm:$0xff] %vm1210, %v1196
  %1214 = vst.msk [vmem:[#allocation2 + $0x18] sm:$0xff] %vm1210, %v1197
  %1215 = vst.msk [vmem:[#allocation2 + $0x20] sm:$0xff] %vm1210, %v1198
  %1216 = vst.msk [vmem:[#allocation2 + $0x28] sm:$0xff] %vm1210, %v1199
  %1217 = vst.msk [vmem:[#allocation2 + $0x30] sm:$0xff] %vm1210, %v1200
  %1218 = vst.msk [vmem:[#allocation2 + $0x38] sm:$0xff] %vm1210, %v1201
  %1219 = vst.msk [vmem:[#allocation2 + $0x40] sm:$0xff] %vm1210, %v1202
  %1220 = vst.msk [vmem:[#allocation2 + $0x48] sm:$0xff] %vm1210, %v1203
  %1221 = vst.msk [vmem:[#allocation2 + $0x50] sm:$0xff] %vm1210, %v1204
  %1222 = vst.msk [vmem:[#allocation2 + $0x58] sm:$0xff] %vm1210, %v1205
  %1223 = vst.msk [vmem:[#allocation2 + $0x60] sm:$0xff] %vm1210, %v1206
  %1224 = vst.msk [vmem:[#allocation2 + $0x68] sm:$0xff] %vm1210, %v1207
  %1225 = vst.msk [vmem:[#allocation2 + $0x70] sm:$0xff] %vm1210, %v1208
  %1226 = vst.msk [vmem:[#allocation2 + $0x78] sm:$0xff] %vm1210, %v1209
  // Predicated region
  $region18: #{fine_encoder_forward.15} parent=0 // pred_check
    %p1227 = pneg %p14
  $region19: #{fine_encoder_forward.15} parent=0 // pred_check_branch
    %1229 = sbr.rel (%p1227) target = $region21
  $region20: #{fine_encoder_forward.15} parent=0 // pred_region
    %v1230 = vld [vmem:[#allocation2] sm:$0xff]
    %v1231 = vld [vmem:[#allocation2 + $0x8] sm:$0xff]
    %v1232 = vld [vmem:[#allocation2 + $0x10] sm:$0xff]
    %v1233 = vld [vmem:[#allocation2 + $0x18] sm:$0xff]
    %v1234 = vld [vmem:[#allocation2 + $0x20] sm:$0xff]
    %v1235 = vld [vmem:[#allocation2 + $0x28] sm:$0xff]
    %v1236 = vld [vmem:[#allocation2 + $0x30] sm:$0xff]
    %v1237 = vld [vmem:[#allocation2 + $0x38] sm:$0xff]
    %v1238 = vld [vmem:[#allocation2 + $0x40] sm:$0xff]
    %v1239 = vld [vmem:[#allocation2 + $0x48] sm:$0xff]
    %v1240 = vld [vmem:[#allocation2 + $0x50] sm:$0xff]
    %v1241 = vld [vmem:[#allocation2 + $0x58] sm:$0xff]
    %v1242 = vld [vmem:[#allocation2 + $0x60] sm:$0xff]
    %v1243 = vld [vmem:[#allocation2 + $0x68] sm:$0xff]
    %v1244 = vld [vmem:[#allocation2 + $0x70] sm:$0xff]
    %v1245 = vld [vmem:[#allocation2 + $0x78] sm:$0xff]
    %v1246 = vld [vmem:[%s2] sm:$0x1]
    %v1248 = vperm.slane %v1246, 0
    %v1250 = vadd.f32 %v1230, %v1248
    %v1251 = vadd.f32 %v1231, %v1248
    %v1252 = vadd.f32 %v1232, %v1248
    %v1253 = vadd.f32 %v1233, %v1248
    %v1254 = vadd.f32 %v1234, %v1248
    %v1255 = vadd.f32 %v1235, %v1248
    %v1256 = vadd.f32 %v1236, %v1248
    %v1257 = vadd.f32 %v1237, %v1248
    %v1258 = vadd.f32 %v1238, %v1248
    %v1259 = vadd.f32 %v1239, %v1248
    %v1260 = vadd.f32 %v1240, %v1248
    %v1261 = vadd.f32 %v1241, %v1248
    %v1262 = vadd.f32 %v1242, %v1248
    %v1263 = vadd.f32 %v1243, %v1248
    %v1264 = vadd.f32 %v1244, %v1248
    %v1265 = vadd.f32 %v1245, %v1248
    %v1266 = vmax.f32 %v1250, 0.0
    %v1267 = vmax.f32 %v1251, 0.0
    %v1268 = vmax.f32 %v1252, 0.0
    %v1269 = vmax.f32 %v1253, 0.0
    %v1270 = vmax.f32 %v1254, 0.0
    %v1271 = vmax.f32 %v1255, 0.0
    %v1272 = vmax.f32 %v1256, 0.0
    %v1273 = vmax.f32 %v1257, 0.0
    %v1274 = vmax.f32 %v1258, 0.0
    %v1275 = vmax.f32 %v1259, 0.0
    %v1276 = vmax.f32 %v1260, 0.0
    %v1277 = vmax.f32 %v1261, 0.0
    %v1278 = vmax.f32 %v1262, 0.0
    %v1279 = vmax.f32 %v1263, 0.0
    %v1280 = vmax.f32 %v1264, 0.0
    %v1281 = vmax.f32 %v1265, 0.0
    %v1282 = vpack.c.bf16 %v1266, %v1266
    %v1283 = vpack.c.bf16 %v1267, %v1267
    %v1284 = vpack.c.bf16 %v1268, %v1268
    %v1285 = vpack.c.bf16 %v1269, %v1269
    %v1286 = vpack.c.bf16 %v1270, %v1270
    %v1287 = vpack.c.bf16 %v1271, %v1271
    %v1288 = vpack.c.bf16 %v1272, %v1272
    %v1289 = vpack.c.bf16 %v1273, %v1273
    %v1290 = vpack.c.bf16 %v1274, %v1274
    %v1291 = vpack.c.bf16 %v1275, %v1275
    %v1292 = vpack.c.bf16 %v1276, %v1276
    %v1293 = vpack.c.bf16 %v1277, %v1277
    %v1294 = vpack.c.bf16 %v1278, %v1278
    %v1295 = vpack.c.bf16 %v1279, %v1279
    %v1296 = vpack.c.bf16 %v1280, %v1280
    %v1297 = vpack.c.bf16 %v1281, %v1281
    %vm1298 = vcmask 257024
    %1299 = vst.msk [vmem:[%s3] sm:$0xf] %vm1298, %v1282
    %1300 = vst.msk [vmem:[%s3 + $0x4] sm:$0xf] %vm1298, %v1283
    %1301 = vst.msk [vmem:[%s3 + $0x8] sm:$0xf] %vm1298, %v1284
    %1302 = vst.msk [vmem:[%s3 + $0xc] sm:$0xf] %vm1298, %v1285
    %1303 = vst.msk [vmem:[%s3 + $0x10] sm:$0xf] %vm1298, %v1286
    %1304 = vst.msk [vmem:[%s3 + $0x14] sm:$0xf] %vm1298, %v1287
    %1305 = vst.msk [vmem:[%s3 + $0x18] sm:$0xf] %vm1298, %v1288
    %1306 = vst.msk [vmem:[%s3 + $0x1c] sm:$0xf] %vm1298, %v1289
    %1307 = vst.msk [vmem:[%s3 + $0x20] sm:$0xf] %vm1298, %v1290
    %1308 = vst.msk [vmem:[%s3 + $0x24] sm:$0xf] %vm1298, %v1291
    %1309 = vst.msk [vmem:[%s3 + $0x28] sm:$0xf] %vm1298, %v1292
    %1310 = vst.msk [vmem:[%s3 + $0x2c] sm:$0xf] %vm1298, %v1293
    %1311 = vst.msk [vmem:[%s3 + $0x30] sm:$0xf] %vm1298, %v1294
    %1312 = vst.msk [vmem:[%s3 + $0x34] sm:$0xf] %vm1298, %v1295
    %1313 = vst.msk [vmem:[%s3 + $0x38] sm:$0xf] %vm1298, %v1296
    %1314 = vst.msk [vmem:[%s3 + $0x3c] sm:$0xf] %vm1298, %v1297
  $region21: #{fine_encoder_forward.15} parent=0 // pred_fallthru
    _
  // Predicated region
  $region22: #{fine_encoder_forward.15} parent=0 // pred_check
    _
  $region23: #{fine_encoder_forward.15} parent=0 // pred_check_branch
    %1316 = sbr.rel (0) target = $region25
  $region24: #{fine_encoder_forward.15} parent=0 // pred_region
    _
  $region25: #{fine_encoder_forward.15} parent=0 // pred_fallthru
    _
  // Predicated region
  $region26: #{fine_encoder_forward.15} parent=0 // pred_check
    _
  $region27: #{fine_encoder_forward.15} parent=0 // pred_check_branch
    %1318 = sbr.rel (0) target = $region29
  $region28: #{fine_encoder_forward.15} parent=0 // pred_region
    _
  $region29: #{fine_encoder_forward.15} parent=0 // pred_fallthru
    _

// kernel: fine_encoder_forward.11
$region0: #{fine_encoder_forward.11}
  #allocation0 [shape = 'u32[]', space=smem, size = 0x4, offset = 0x4, fixed_abs, tag = 'smem constant byte address 0x4 - core index']
  #allocation1 [shape = 'u32[72,128]{1,0:T(1,128)}', space=vmem, size = 0x9000, scoped, tag = 'internal scratch']
  #allocation2 [shape = 'f32[512,32]{1,0:T(8,128)}', space=vmem, size = 0x40000, scoped, tag = 'scratch operand']
  %s0 = inlined_call_operand.vmem [shape: bf16[1024,512], index: 0, kind: input, shape index: {}]
  %s1 = inlined_call_operand.vmem [shape: bf16[512,32], index: 1, kind: input, shape index: {}]
  %s2 = inlined_call_operand.vmem [shape: f32[1,32], index: 2, kind: input, shape index: {}]
  %s3 = inlined_call_operand.vmem [shape: bf16[1024,32], index: 3, kind: output, shape index: {}]
  %s4 = sld [smem:[#allocation0]]
  $region53: #{fine_encoder_forward.11} parent=0
    _
  %s6 = ssub.s32 1, %s4
  %s7 = scalar_select 0, %s6, %s4
  loop: start=0, step=1, limit=4
  $region2: #{fine_encoder_forward.11} parent=0 // loop_pre_header
    _
  $region3: #{fine_encoder_forward.11} parent=0 // loop_header
    %s9 = sphi 0, %s13
    %p10 = scmp.ge.s32.totalorder %s9, 4
    %s16 = sphi 0, %s28
    %s17 = sphi 0, %s24
    %s18 = sphi 0, %s16
    %s19 = sphi 0, %s17
    %s20 = sphi 0, %s18
    %s21 = sphi 0, %s19
    %s33 = sphi 0, %s35
    %s36 = sphi 0, %s33
    %s37 = sphi 0, %s36
    %s53 = sphi 0, %s37
    %s59 = sphi 0, %s61
    %s62 = sphi 0, %s59
    %s63 = sphi 0, %s62
    %s79 = sphi 0, %s63
    %s83 = sphi 0, %s83
    %s85 = sphi 0, %s83
    %s86 = sphi 0, %s85
    %s100 = sphi 0, %s86
    %s106 = sphi 0, %s108
    %s109 = sphi 0, %s106
    %s110 = sphi 0, %s109
    %s126 = sphi 0, %s110
  $region4: #{fine_encoder_forward.11} parent=0 // loop_header_branch
    %12 = sbr.rel (%p10) target = $region8
  $region5: #{fine_encoder_forward.11} parent=0 // loop_body
    %s14 = ssub.s32 %s9, 1
    %s15 = ssub.s32 %s9, 2
    %s22 = sadd.s32 1, %s17
    %p23 = scmp.ge.s32.totalorder %s22, 1
    %s24 = scalar_select %p23, 0, %s22
    %s25 = sadd.s32 1, %s16
    %s26 = scalar_select %p23, %s25, %s16
    %p27 = scmp.ge.s32.totalorder %s26, 2
    %s28 = scalar_select %p27, 0, %s26
    %s29 = ssub.s32 %s16, %s28
    %s30 = ssub.s32 %s17, %s24
    %s31 = sor.u32 %s29, %s30
    %p32 = scmp.eq.s32.totalorder %s31, 0
    %s34 = sadd.s32 %s33, 1
    %s35 = scalar_select %p32, %s33, %s34
    %p38 = pneg %p32
    %p39 = scmp.eq.s32.totalorder %s9, 1
    %p40 = por %p38, %p39
    %p41 = scmp.ne.s32.totalorder %s33, %s36
    %p42 = scmp.eq.s32.totalorder %s9, 0
    %p43 = por %p41, %p42
    %p44 = scmp.ne.s32.totalorder %s33, %s36
    %p45 = scmp.eq.s32.totalorder %s14, 1
    %p46 = por %p44, %p45
    %p47 = scmp.ne.s32.totalorder %s36, %s37
    %p48 = scmp.eq.s32.totalorder %s14, 0
    %p49 = por %p47, %p48
    %p50 = scmp.ne.s32.totalorder %s36, %s37
    %p51 = scmp.eq.s32.totalorder %s15, 1
    %p52 = por %p50, %p51
    %p54 = scmp.ne.s32.totalorder %s37, %s53
    %p55 = scmp.eq.s32.totalorder %s15, 0
    %p56 = por %p54, %p55
    %s57 = ssub.s32 %s17, %s24
    %p58 = scmp.eq.s32.totalorder %s57, 0
    %s60 = sadd.s32 %s59, 1
    %s61 = scalar_select %p58, %s59, %s60
    %p64 = pneg %p58
    %p65 = scmp.eq.s32.totalorder %s9, 1
    %p66 = por %p64, %p65
    %p67 = scmp.ne.s32.totalorder %s59, %s62
    %p68 = scmp.eq.s32.totalorder %s9, 0
    %p69 = por %p67, %p68
    %p70 = scmp.ne.s32.totalorder %s59, %s62
    %p71 = scmp.eq.s32.totalorder %s14, 1
    %p72 = por %p70, %p71
    %p73 = scmp.ne.s32.totalorder %s62, %s63
    %p74 = scmp.eq.s32.totalorder %s14, 0
    %p75 = por %p73, %p74
    %p76 = scmp.ne.s32.totalorder %s62, %s63
    %p77 = scmp.eq.s32.totalorder %s15, 1
    %p78 = por %p76, %p77
    %p80 = scmp.ne.s32.totalorder %s63, %s79
    %p81 = scmp.eq.s32.totalorder %s15, 0
    %p82 = por %p80, %p81
    %s84 = sadd.s32 %s83, 1
    %p87 = scmp.eq.s32.totalorder %s9, 1
    %p88 = scmp.ne.s32.totalorder %s83, %s85
    %p89 = scmp.eq.s32.totalorder %s9, 0
    %p90 = por %p88, %p89
    %p91 = scmp.ne.s32.totalorder %s83, %s85
    %p92 = scmp.eq.s32.totalorder %s14, 1
    %p93 = por %p91, %p92
    %p94 = scmp.ne.s32.totalorder %s85, %s86
    %p95 = scmp.eq.s32.totalorder %s14, 0
    %p96 = por %p94, %p95
    %p97 = scmp.ne.s32.totalorder %s85, %s86
    %p98 = scmp.eq.s32.totalorder %s15, 1
    %p99 = por %p97, %p98
    %p101 = scmp.ne.s32.totalorder %s86, %s100
    %p102 = scmp.eq.s32.totalorder %s15, 0
    %p103 = por %p101, %p102
    %s104 = ssub.s32 %s16, %s28
    %p105 = scmp.eq.s32.totalorder %s104, 0
    %s107 = sadd.s32 %s106, 1
    %s108 = scalar_select %p105, %s106, %s107
    %p111 = pneg %p105
    %p112 = scmp.eq.s32.totalorder %s9, 1
    %p113 = por %p111, %p112
    %p114 = scmp.ne.s32.totalorder %s106, %s109
    %p115 = scmp.eq.s32.totalorder %s9, 0
    %p116 = por %p114, %p115
    %p117 = scmp.ne.s32.totalorder %s106, %s109
    %p118 = scmp.eq.s32.totalorder %s14, 1
    %p119 = por %p117, %p118
    %p120 = scmp.ne.s32.totalorder %s109, %s110
    %p121 = scmp.eq.s32.totalorder %s14, 0
    %p122 = por %p120, %p121
    %p123 = scmp.ne.s32.totalorder %s109, %s110
    %p124 = scmp.eq.s32.totalorder %s15, 1
    %p125 = por %p123, %p124
    %p127 = scmp.ne.s32.totalorder %s110, %s126
    %p128 = scmp.eq.s32.totalorder %s15, 0
    %p129 = por %p127, %p128
    %p130 = scmp.le.s32.totalorder 1, %s9
    %p131 = scmp.lt.s32.totalorder %s9, 3
    %p132 = pnand %p130, %p131
    %p133 = pneg %p132
    // Predicated region
    $region9: #{fine_encoder_forward.11} parent=5 // pred_check
      _
    $region10: #{fine_encoder_forward.11} parent=5 // pred_check_branch
      %135 = sbr.rel (%p132) target = $region12
    $region11: #{fine_encoder_forward.11} parent=5 // pred_region
      %s136 = ssub.s32 %s9, 1
      // Predicated region
      $region13: #{fine_encoder_forward.11} parent=11 // pred_check
        %p137 = pneg %p75
      $region14: #{fine_encoder_forward.11} parent=11 // pred_check_branch
        %139 = sbr.rel (%p137) target = $region16
      $region15: #{fine_encoder_forward.11} parent=11 // pred_region
        %s140 = smul.u32 64, %s19
        %p141 = scmp.lt.s32.totalorder %s140, 63
        %s142 = scalar_select %p141, %s140, 63
        %s143 = smul.addr %s142, 4
        %s144 = scalar_lea.vmem %s1, %s143
        %s145 = smul.u32 64, %s19
      $region16: #{fine_encoder_forward.11} parent=11 // pred_fallthru
        _
      // Predicated region
      $region17: #{fine_encoder_forward.11} parent=11 // pred_check
        %p146 = pneg %p96
      $region18: #{fine_encoder_forward.11} parent=11 // pred_check_branch
        %148 = sbr.rel (%p146) target = $region20
      $region19: #{fine_encoder_forward.11} parent=11 // pred_region
        _
      $region20: #{fine_encoder_forward.11} parent=11 // pred_fallthru
        _
    $region12: #{fine_encoder_forward.11} parent=5 // pred_fallthru
      _
    %p149 = scmp.lt.s32.totalorder %s9, 2
    // Predicated region
    $region21: #{fine_encoder_forward.11} parent=5 // pred_check
      %p150 = pneg %p149
    $region22: #{fine_encoder_forward.11} parent=5 // pred_check_branch
      %152 = sbr.rel (%p150) target = $region24
    $region23: #{fine_encoder_forward.11} parent=5 // pred_region
      // Predicated region
      $region25: #{fine_encoder_forward.11} parent=23 // pred_check
        %p153 = pneg %p43
      $region26: #{fine_encoder_forward.11} parent=23 // pred_check_branch
        %155 = sbr.rel (%p153) target = $region28
      $region27: #{fine_encoder_forward.11} parent=23 // pred_region
        %s156 = smul.u32 64, %s16
        %s157 = smul.u32 4, %s17
        %p158 = scmp.lt.s32.totalorder %s156, 127
        %s159 = scalar_select %p158, %s156, 127
        %p160 = scmp.lt.s32.totalorder %s157, 3
        %s161 = scalar_select %p160, %s157, 3
        %s162 = smul.addr %s159, 4
        %s163 = sadd.s32 %s161, %s162
        %s164 = smul.addr %s163, 4
        %s165 = scalar_lea.vmem %s0, %s164
        %s166 = smul.u32 64, %s16
        %s167 = smul.u32 4, %s17
      $region28: #{fine_encoder_forward.11} parent=23 // pred_fallthru
        _
    $region24: #{fine_encoder_forward.11} parent=5 // pred_fallthru
      _
    %p168 = scmp.le.s32.totalorder 1, %s9
    %p169 = scmp.lt.s32.totalorder %s9, 3
    %p170 = pnand %p168, %p169
    %p171 = pneg %p170
    // Predicated region
    $region29: #{fine_encoder_forward.11} parent=5 // pred_check
      _
    $region30: #{fine_encoder_forward.11} parent=5 // pred_check_branch
      %173 = sbr.rel (%p170) target = $region32
    $region31: #{fine_encoder_forward.11} parent=5 // pred_region
      %s174 = ssub.s32 %s9, 1
      %s175 = smul.u32 64, %s18
      %s176 = smul.u32 4, %s19
      %p177 = scmp.lt.s32.totalorder %s175, 127
      %s178 = scalar_select %p177, %s175, 127
      %p179 = scmp.lt.s32.totalorder %s176, 3
      %s180 = scalar_select %p179, %s176, 3
      %s181 = smul.addr %s178, 4
      %s182 = sadd.s32 %s180, %s181
      %s183 = smul.addr %s182, 4
      %s184 = scalar_lea.vmem %s0, %s183
      %p185 = pneg %p49
      %p186 = pneg %p46
      %s187 = smul.u32 64, %s19
      %p188 = scmp.lt.s32.totalorder %s187, 63
      %s189 = scalar_select %p188, %s187, 63
      %s190 = smul.addr %s189, 4
      %s191 = scalar_lea.vmem %s1, %s190
      %p192 = pneg %p75
      %p193 = pneg %p72
      %p194 = pneg %p96
      %p195 = pneg %p93
      %p196 = pneg %p122
      %p197 = pneg %p119
      %s198 = smul.u32 64, %s18
      %p199 = scmp.lt.s32.totalorder %s198, 127
      %s200 = scalar_select %p199, %s198, 127
      %s201 = smul.addr %s200, 4
      %s202 = scalar_lea.vmem %s3, %s201
      %s203 = smul.u32 64, %s18
      %s204 = smul.u32 4, %s19
      %p205 = scmp.lt.s32.totalorder %s203, 127
      %s206 = scalar_select %p205, %s203, 127
      %p207 = scmp.lt.s32.totalorder %s204, 3
      %s208 = scalar_select %p207, %s204, 3
      %s209 = smul.addr %s206, 4
      %s210 = sadd.s32 %s208, %s209
      %s211 = smul.addr %s210, 4
      %s212 = scalar_lea.vmem %s0, %s211
      %s213 = smul.u32 64, %s18
      %s214 = smul.u32 4, %s19
      %s215 = smul.u32 64, %s19
      %p216 = scmp.lt.s32.totalorder %s215, 63
      %s217 = scalar_select %p216, %s215, 63
      %s218 = smul.addr %s217, 4
      %s219 = scalar_lea.vmem %s1, %s218
      %s220 = smul.u32 64, %s19
      %s221 = smul.u32 64, %s18
      %p222 = scmp.lt.s32.totalorder %s221, 127
      %s223 = scalar_select %p222, %s221, 127
      %s224 = smul.addr %s223, 4
      %s225 = scalar_lea.vmem %s3, %s224
      %s226 = smul.u32 64, %s18
      %p227 = scmp.eq.s32.totalorder %s19, 0
      // Predicated region
      $region33: #{fine_encoder_forward.11} parent=31 // pred_check
        %p228 = pneg %p227
      $region34: #{fine_encoder_forward.11} parent=31 // pred_check_branch
        %230 = sbr.rel (%p228) target = $region36
      $region35: #{fine_encoder_forward.11} parent=31 // pred_region
        %vm231 = vcmask 261120
        %232 = vst.msk [vmem:[#allocation2] sm:$0xff] %vm231, 0.0
        %233 = vst.msk [vmem:[#allocation2 + $0x8] sm:$0xff] %vm231, 0.0
        %234 = vst.msk [vmem:[#allocation2 + $0x10] sm:$0xff] %vm231, 0.0
        %235 = vst.msk [vmem:[#allocation2 + $0x18] sm:$0xff] %vm231, 0.0
        %236 = vst.msk [vmem:[#allocation2 + $0x20] sm:$0xff] %vm231, 0.0
        %237 = vst.msk [vmem:[#allocation2 + $0x28] sm:$0xff] %vm231, 0.0
        %238 = vst.msk [vmem:[#allocation2 + $0x30] sm:$0xff] %vm231, 0.0
        %239 = vst.msk [vmem:[#allocation2 + $0x38] sm:$0xff] %vm231, 0.0
        %240 = vst.msk [vmem:[#allocation2 + $0x40] sm:$0xff] %vm231, 0.0
        %241 = vst.msk [vmem:[#allocation2 + $0x48] sm:$0xff] %vm231, 0.0
        %242 = vst.msk [vmem:[#allocation2 + $0x50] sm:$0xff] %vm231, 0.0
        %243 = vst.msk [vmem:[#allocation2 + $0x58] sm:$0xff] %vm231, 0.0
        %244 = vst.msk [vmem:[#allocation2 + $0x60] sm:$0xff] %vm231, 0.0
        %245 = vst.msk [vmem:[#allocation2 + $0x68] sm:$0xff] %vm231, 0.0
        %246 = vst.msk [vmem:[#allocation2 + $0x70] sm:$0xff] %vm231, 0.0
        %247 = vst.msk [vmem:[#allocation2 + $0x78] sm:$0xff] %vm231, 0.0
        %248 = vst.msk [vmem:[#allocation2 + $0x80] sm:$0xff] %vm231, 0.0
        %249 = vst.msk [vmem:[#allocation2 + $0x88] sm:$0xff] %vm231, 0.0
        %250 = vst.msk [vmem:[#allocation2 + $0x90] sm:$0xff] %vm231, 0.0
        %251 = vst.msk [vmem:[#allocation2 + $0x98] sm:$0xff] %vm231, 0.0
        %252 = vst.msk [vmem:[#allocation2 + $0xa0] sm:$0xff] %vm231, 0.0
        %253 = vst.msk [vmem:[#allocation2 + $0xa8] sm:$0xff] %vm231, 0.0
        %254 = vst.msk [vmem:[#allocation2 + $0xb0] sm:$0xff] %vm231, 0.0
        %255 = vst.msk [vmem:[#allocation2 + $0xb8] sm:$0xff] %vm231, 0.0
        %256 = vst.msk [vmem:[#allocation2 + $0xc0] sm:$0xff] %vm231, 0.0
        %257 = vst.msk [vmem:[#allocation2 + $0xc8] sm:$0xff] %vm231, 0.0
        %258 = vst.msk [vmem:[#allocation2 + $0xd0] sm:$0xff] %vm231, 0.0
        %259 = vst.msk [vmem:[#allocation2 + $0xd8] sm:$0xff] %vm231, 0.0
        %260 = vst.msk [vmem:[#allocation2 + $0xe0] sm:$0xff] %vm231, 0.0
        %261 = vst.msk [vmem:[#allocation2 + $0xe8] sm:$0xff] %vm231, 0.0
        %262 = vst.msk [vmem:[#allocation2 + $0xf0] sm:$0xff] %vm231, 0.0
        %263 = vst.msk [vmem:[#allocation2 + $0xf8] sm:$0xff] %vm231, 0.0
        %264 = vst.msk [vmem:[#allocation2 + $0x100] sm:$0xff] %vm231, 0.0
        %265 = vst.msk [vmem:[#allocation2 + $0x108] sm:$0xff] %vm231, 0.0
        %266 = vst.msk [vmem:[#allocation2 + $0x110] sm:$0xff] %vm231, 0.0
        %267 = vst.msk [vmem:[#allocation2 + $0x118] sm:$0xff] %vm231, 0.0
        %268 = vst.msk [vmem:[#allocation2 + $0x120] sm:$0xff] %vm231, 0.0
        %269 = vst.msk [vmem:[#allocation2 + $0x128] sm:$0xff] %vm231, 0.0
        %270 = vst.msk [vmem:[#allocation2 + $0x130] sm:$0xff] %vm231, 0.0
        %271 = vst.msk [vmem:[#allocation2 + $0x138] sm:$0xff] %vm231, 0.0
        %272 = vst.msk [vmem:[#allocation2 + $0x140] sm:$0xff] %vm231, 0.0
        %273 = vst.msk [vmem:[#allocation2 + $0x148] sm:$0xff] %vm231, 0.0
        %274 = vst.msk [vmem:[#allocation2 + $0x150] sm:$0xff] %vm231, 0.0
        %275 = vst.msk [vmem:[#allocation2 + $0x158] sm:$0xff] %vm231, 0.0
        %276 = vst.msk [vmem:[#allocation2 + $0x160] sm:$0xff] %vm231, 0.0
        %277 = vst.msk [vmem:[#allocation2 + $0x168] sm:$0xff] %vm231, 0.0
        %278 = vst.msk [vmem:[#allocation2 + $0x170] sm:$0xff] %vm231, 0.0
        %279 = vst.msk [vmem:[#allocation2 + $0x178] sm:$0xff] %vm231, 0.0
        %280 = vst.msk [vmem:[#allocation2 + $0x180] sm:$0xff] %vm231, 0.0
        %281 = vst.msk [vmem:[#allocation2 + $0x188] sm:$0xff] %vm231, 0.0
        %282 = vst.msk [vmem:[#allocation2 + $0x190] sm:$0xff] %vm231, 0.0
        %283 = vst.msk [vmem:[#allocation2 + $0x198] sm:$0xff] %vm231, 0.0
        %284 = vst.msk [vmem:[#allocation2 + $0x1a0] sm:$0xff] %vm231, 0.0
        %285 = vst.msk [vmem:[#allocation2 + $0x1a8] sm:$0xff] %vm231, 0.0
        %286 = vst.msk [vmem:[#allocation2 + $0x1b0] sm:$0xff] %vm231, 0.0
        %287 = vst.msk [vmem:[#allocation2 + $0x1b8] sm:$0xff] %vm231, 0.0
        %288 = vst.msk [vmem:[#allocation2 + $0x1c0] sm:$0xff] %vm231, 0.0
        %289 = vst.msk [vmem:[#allocation2 + $0x1c8] sm:$0xff] %vm231, 0.0
        %290 = vst.msk [vmem:[#allocation2 + $0x1d0] sm:$0xff] %vm231, 0.0
        %291 = vst.msk [vmem:[#allocation2 + $0x1d8] sm:$0xff] %vm231, 0.0
        %292 = vst.msk [vmem:[#allocation2 + $0x1e0] sm:$0xff] %vm231, 0.0
        %293 = vst.msk [vmem:[#allocation2 + $0x1e8] sm:$0xff] %vm231, 0.0
        %294 = vst.msk [vmem:[#allocation2 + $0x1f0] sm:$0xff] %vm231, 0.0
        %295 = vst.msk [vmem:[#allocation2 + $0x1f8] sm:$0xff] %vm231, 0.0
      $region36: #{fine_encoder_forward.11} parent=31 // pred_fallthru
        _
      %v296 = vld [vmem:[#allocation2] sm:$0xff]
      %v297 = vld [vmem:[#allocation2 + $0x8] sm:$0xff]
      %v298 = vld [vmem:[#allocation2 + $0x10] sm:$0xff]
      %v299 = vld [vmem:[#allocation2 + $0x18] sm:$0xff]
      %v300 = vld [vmem:[#allocation2 + $0x20] sm:$0xff]
      %v301 = vld [vmem:[#allocation2 + $0x28] sm:$0xff]
      %v302 = vld [vmem:[#allocation2 + $0x30] sm:$0xff]
      %v303 = vld [vmem:[#allocation2 + $0x38] sm:$0xff]
      %v304 = vld [vmem:[#allocation2 + $0x40] sm:$0xff]
      %v305 = vld [vmem:[#allocation2 + $0x48] sm:$0xff]
      %v306 = vld [vmem:[#allocation2 + $0x50] sm:$0xff]
      %v307 = vld [vmem:[#allocation2 + $0x58] sm:$0xff]
      %v308 = vld [vmem:[#allocation2 + $0x60] sm:$0xff]
      %v309 = vld [vmem:[#allocation2 + $0x68] sm:$0xff]
      %v310 = vld [vmem:[#allocation2 + $0x70] sm:$0xff]
      %v311 = vld [vmem:[#allocation2 + $0x78] sm:$0xff]
      %v312 = vld [vmem:[#allocation2 + $0x80] sm:$0xff]
      %v313 = vld [vmem:[#allocation2 + $0x88] sm:$0xff]
      %v314 = vld [vmem:[#allocation2 + $0x90] sm:$0xff]
      %v315 = vld [vmem:[#allocation2 + $0x98] sm:$0xff]
      %v316 = vld [vmem:[#allocation2 + $0xa0] sm:$0xff]
      %v317 = vld [vmem:[#allocation2 + $0xa8] sm:$0xff]
      %v318 = vld [vmem:[#allocation2 + $0xb0] sm:$0xff]
      %v319 = vld [vmem:[#allocation2 + $0xb8] sm:$0xff]
      %v320 = vld [vmem:[#allocation2 + $0xc0] sm:$0xff]
      %v321 = vld [vmem:[#allocation2 + $0xc8] sm:$0xff]
      %v322 = vld [vmem:[#allocation2 + $0xd0] sm:$0xff]
      %v323 = vld [vmem:[#allocation2 + $0xd8] sm:$0xff]
      %v324 = vld [vmem:[#allocation2 + $0xe0] sm:$0xff]
      %v325 = vld [vmem:[#allocation2 + $0xe8] sm:$0xff]
      %v326 = vld [vmem:[#allocation2 + $0xf0] sm:$0xff]
      %v327 = vld [vmem:[#allocation2 + $0xf8] sm:$0xff]
      %v328 = vld [vmem:[#allocation2 + $0x100] sm:$0xff]
      %v329 = vld [vmem:[#allocation2 + $0x108] sm:$0xff]
      %v330 = vld [vmem:[#allocation2 + $0x110] sm:$0xff]
      %v331 = vld [vmem:[#allocation2 + $0x118] sm:$0xff]
      %v332 = vld [vmem:[#allocation2 + $0x120] sm:$0xff]
      %v333 = vld [vmem:[#allocation2 + $0x128] sm:$0xff]
      %v334 = vld [vmem:[#allocation2 + $0x130] sm:$0xff]
      %v335 = vld [vmem:[#allocation2 + $0x138] sm:$0xff]
      %v336 = vld [vmem:[#allocation2 + $0x140] sm:$0xff]
      %v337 = vld [vmem:[#allocation2 + $0x148] sm:$0xff]
      %v338 = vld [vmem:[#allocation2 + $0x150] sm:$0xff]
      %v339 = vld [vmem:[#allocation2 + $0x158] sm:$0xff]
      %v340 = vld [vmem:[#allocation2 + $0x160] sm:$0xff]
      %v341 = vld [vmem:[#allocation2 + $0x168] sm:$0xff]
      %v342 = vld [vmem:[#allocation2 + $0x170] sm:$0xff]
      %v343 = vld [vmem:[#allocation2 + $0x178] sm:$0xff]
      %v344 = vld [vmem:[#allocation2 + $0x180] sm:$0xff]
      %v345 = vld [vmem:[#allocation2 + $0x188] sm:$0xff]
      %v346 = vld [vmem:[#allocation2 + $0x190] sm:$0xff]
      %v347 = vld [vmem:[#allocation2 + $0x198] sm:$0xff]
      %v348 = vld [vmem:[#allocation2 + $0x1a0] sm:$0xff]
      %v349 = vld [vmem:[#allocation2 + $0x1a8] sm:$0xff]
      %v350 = vld [vmem:[#allocation2 + $0x1b0] sm:$0xff]
      %v351 = vld [vmem:[#allocation2 + $0x1b8] sm:$0xff]
      %v352 = vld [vmem:[#allocation2 + $0x1c0] sm:$0xff]
      %v353 = vld [vmem:[#allocation2 + $0x1c8] sm:$0xff]
      %v354 = vld [vmem:[#allocation2 + $0x1d0] sm:$0xff]
      %v355 = vld [vmem:[#allocation2 + $0x1d8] sm:$0xff]
      %v356 = vld [vmem:[#allocation2 + $0x1e0] sm:$0xff]
      %v357 = vld [vmem:[#allocation2 + $0x1e8] sm:$0xff]
      %v358 = vld [vmem:[#allocation2 + $0x1f0] sm:$0xff]
      %v359 = vld [vmem:[#allocation2 + $0x1f8] sm:$0xff]
      %v360 = vld [vmem:[%s212] sm:$0xff]
      %v361 = vld [vmem:[%s212 + $0x8] sm:$0xff]
      %v362 = vld [vmem:[%s212 + $0x10] sm:$0xff]
      %v363 = vld [vmem:[%s212 + $0x18] sm:$0xff]
      %v364 = vld [vmem:[%s212 + $0x20] sm:$0xff]
      %v365 = vld [vmem:[%s212 + $0x28] sm:$0xff]
      %v366 = vld [vmem:[%s212 + $0x30] sm:$0xff]
      %v367 = vld [vmem:[%s212 + $0x38] sm:$0xff]
      %v368 = vld [vmem:[%s212 + $0x40] sm:$0xff]
      %v369 = vld [vmem:[%s212 + $0x48] sm:$0xff]
      %v370 = vld [vmem:[%s212 + $0x50] sm:$0xff]
      %v371 = vld [vmem:[%s212 + $0x58] sm:$0xff]
      %v372 = vld [vmem:[%s212 + $0x60] sm:$0xff]
      %v373 = vld [vmem:[%s212 + $0x68] sm:$0xff]
      %v374 = vld [vmem:[%s212 + $0x70] sm:$0xff]
      %v375 = vld [vmem:[%s212 + $0x78] sm:$0xff]
      %v376 = vld [vmem:[%s212 + $0x80] sm:$0xff]
      %v377 = vld [vmem:[%s212 + $0x88] sm:$0xff]
      %v378 = vld [vmem:[%s212 + $0x90] sm:$0xff]
      %v379 = vld [vmem:[%s212 + $0x98] sm:$0xff]
      %v380 = vld [vmem:[%s212 + $0xa0] sm:$0xff]
      %v381 = vld [vmem:[%s212 + $0xa8] sm:$0xff]
      %v382 = vld [vmem:[%s212 + $0xb0] sm:$0xff]
      %v383 = vld [vmem:[%s212 + $0xb8] sm:$0xff]
      %v384 = vld [vmem:[%s212 + $0xc0] sm:$0xff]
      %v385 = vld [vmem:[%s212 + $0xc8] sm:$0xff]
      %v386 = vld [vmem:[%s212 + $0xd0] sm:$0xff]
      %v387 = vld [vmem:[%s212 + $0xd8] sm:$0xff]
      %v388 = vld [vmem:[%s212 + $0xe0] sm:$0xff]
      %v389 = vld [vmem:[%s212 + $0xe8] sm:$0xff]
      %v390 = vld [vmem:[%s212 + $0xf0] sm:$0xff]
      %v391 = vld [vmem:[%s212 + $0xf8] sm:$0xff]
      %v392 = vld [vmem:[%s212 + $0x100] sm:$0xff]
      %v393 = vld [vmem:[%s212 + $0x108] sm:$0xff]
      %v394 = vld [vmem:[%s212 + $0x110] sm:$0xff]
      %v395 = vld [vmem:[%s212 + $0x118] sm:$0xff]
      %v396 = vld [vmem:[%s212 + $0x120] sm:$0xff]
      %v397 = vld [vmem:[%s212 + $0x128] sm:$0xff]
      %v398 = vld [vmem:[%s212 + $0x130] sm:$0xff]
      %v399 = vld [vmem:[%s212 + $0x138] sm:$0xff]
      %v400 = vld [vmem:[%s212 + $0x140] sm:$0xff]
      %v401 = vld [vmem:[%s212 + $0x148] sm:$0xff]
      %v402 = vld [vmem:[%s212 + $0x150] sm:$0xff]
      %v403 = vld [vmem:[%s212 + $0x158] sm:$0xff]
      %v404 = vld [vmem:[%s212 + $0x160] sm:$0xff]
      %v405 = vld [vmem:[%s212 + $0x168] sm:$0xff]
      %v406 = vld [vmem:[%s212 + $0x170] sm:$0xff]
      %v407 = vld [vmem:[%s212 + $0x178] sm:$0xff]
      %v408 = vld [vmem:[%s212 + $0x180] sm:$0xff]
      %v409 = vld [vmem:[%s212 + $0x188] sm:$0xff]
      %v410 = vld [vmem:[%s212 + $0x190] sm:$0xff]
      %v411 = vld [vmem:[%s212 + $0x198] sm:$0xff]
      %v412 = vld [vmem:[%s212 + $0x1a0] sm:$0xff]
      %v413 = vld [vmem:[%s212 + $0x1a8] sm:$0xff]
      %v414 = vld [vmem:[%s212 + $0x1b0] sm:$0xff]
      %v415 = vld [vmem:[%s212 + $0x1b8] sm:$0xff]
      %v416 = vld [vmem:[%s212 + $0x1c0] sm:$0xff]
      %v417 = vld [vmem:[%s212 + $0x1c8] sm:$0xff]
      %v418 = vld [vmem:[%s212 + $0x1d0] sm:$0xff]
      %v419 = vld [vmem:[%s212 + $0x1d8] sm:$0xff]
      %v420 = vld [vmem:[%s212 + $0x1e0] sm:$0xff]
      %v421 = vld [vmem:[%s212 + $0x1e8] sm:$0xff]
      %v422 = vld [vmem:[%s212 + $0x1f0] sm:$0xff]
      %v423 = vld [vmem:[%s212 + $0x1f8] sm:$0xff]
      %v424 = vld [vmem:[%s212 + $0x200] sm:$0xff]
      %v425 = vld [vmem:[%s212 + $0x208] sm:$0xff]
      %v426 = vld [vmem:[%s212 + $0x210] sm:$0xff]
      %v427 = vld [vmem:[%s212 + $0x218] sm:$0xff]
      %v428 = vld [vmem:[%s212 + $0x220] sm:$0xff]
      %v429 = vld [vmem:[%s212 + $0x228] sm:$0xff]
      %v430 = vld [vmem:[%s212 + $0x230] sm:$0xff]
      %v431 = vld [vmem:[%s212 + $0x238] sm:$0xff]
      %v432 = vld [vmem:[%s212 + $0x240] sm:$0xff]
      %v433 = vld [vmem:[%s212 + $0x248] sm:$0xff]
      %v434 = vld [vmem:[%s212 + $0x250] sm:$0xff]
      %v435 = vld [vmem:[%s212 + $0x258] sm:$0xff]
      %v436 = vld [vmem:[%s212 + $0x260] sm:$0xff]
      %v437 = vld [vmem:[%s212 + $0x268] sm:$0xff]
      %v438 = vld [vmem:[%s212 + $0x270] sm:$0xff]
      %v439 = vld [vmem:[%s212 + $0x278] sm:$0xff]
      %v440 = vld [vmem:[%s212 + $0x280] sm:$0xff]
      %v441 = vld [vmem:[%s212 + $0x288] sm:$0xff]
      %v442 = vld [vmem:[%s212 + $0x290] sm:$0xff]
      %v443 = vld [vmem:[%s212 + $0x298] sm:$0xff]
      %v444 = vld [vmem:[%s212 + $0x2a0] sm:$0xff]
      %v445 = vld [vmem:[%s212 + $0x2a8] sm:$0xff]
      %v446 = vld [vmem:[%s212 + $0x2b0] sm:$0xff]
      %v447 = vld [vmem:[%s212 + $0x2b8] sm:$0xff]
      %v448 = vld [vmem:[%s212 + $0x2c0] sm:$0xff]
      %v449 = vld [vmem:[%s212 + $0x2c8] sm:$0xff]
      %v450 = vld [vmem:[%s212 + $0x2d0] sm:$0xff]
      %v451 = vld [vmem:[%s212 + $0x2d8] sm:$0xff]
      %v452 = vld [vmem:[%s212 + $0x2e0] sm:$0xff]
      %v453 = vld [vmem:[%s212 + $0x2e8] sm:$0xff]
      %v454 = vld [vmem:[%s212 + $0x2f0] sm:$0xff]
      %v455 = vld [vmem:[%s212 + $0x2f8] sm:$0xff]
      %v456 = vld [vmem:[%s212 + $0x300] sm:$0xff]
      %v457 = vld [vmem:[%s212 + $0x308] sm:$0xff]
      %v458 = vld [vmem:[%s212 + $0x310] sm:$0xff]
      %v459 = vld [vmem:[%s212 + $0x318] sm:$0xff]
      %v460 = vld [vmem:[%s212 + $0x320] sm:$0xff]
      %v461 = vld [vmem:[%s212 + $0x328] sm:$0xff]
      %v462 = vld [vmem:[%s212 + $0x330] sm:$0xff]
      %v463 = vld [vmem:[%s212 + $0x338] sm:$0xff]
      %v464 = vld [vmem:[%s212 + $0x340] sm:$0xff]
      %v465 = vld [vmem:[%s212 + $0x348] sm:$0xff]
      %v466 = vld [vmem:[%s212 + $0x350] sm:$0xff]
      %v467 = vld [vmem:[%s212 + $0x358] sm:$0xff]
      %v468 = vld [vmem:[%s212 + $0x360] sm:$0xff]
      %v469 = vld [vmem:[%s212 + $0x368] sm:$0xff]
      %v470 = vld [vmem:[%s212 + $0x370] sm:$0xff]
      %v471 = vld [vmem:[%s212 + $0x378] sm:$0xff]
      %v472 = vld [vmem:[%s212 + $0x380] sm:$0xff]
      %v473 = vld [vmem:[%s212 + $0x388] sm:$0xff]
      %v474 = vld [vmem:[%s212 + $0x390] sm:$0xff]
      %v475 = vld [vmem:[%s212 + $0x398] sm:$0xff]
      %v476 = vld [vmem:[%s212 + $0x3a0] sm:$0xff]
      %v477 = vld [vmem:[%s212 + $0x3a8] sm:$0xff]
      %v478 = vld [vmem:[%s212 + $0x3b0] sm:$0xff]
      %v479 = vld [vmem:[%s212 + $0x3b8] sm:$0xff]
      %v480 = vld [vmem:[%s212 + $0x3c0] sm:$0xff]
      %v481 = vld [vmem:[%s212 + $0x3c8] sm:$0xff]
      %v482 = vld [vmem:[%s212 + $0x3d0] sm:$0xff]
      %v483 = vld [vmem:[%s212 + $0x3d8] sm:$0xff]
      %v484 = vld [vmem:[%s212 + $0x3e0] sm:$0xff]
      %v485 = vld [vmem:[%s212 + $0x3e8] sm:$0xff]
      %v486 = vld [vmem:[%s212 + $0x3f0] sm:$0xff]
      %v487 = vld [vmem:[%s212 + $0x3f8] sm:$0xff]
      %v488 = vld [vmem:[%s219] sm:$0xf]
      %v489 = vld [vmem:[%s219 + $0x4] sm:$0xf]
      %v490 = vld [vmem:[%s219 + $0x8] sm:$0xf]
      %v491 = vld [vmem:[%s219 + $0xc] sm:$0xf]
      %v492 = vld [vmem:[%s219 + $0x10] sm:$0xf]
      %v493 = vld [vmem:[%s219 + $0x14] sm:$0xf]
      %v494 = vld [vmem:[%s219 + $0x18] sm:$0xf]
      %v495 = vld [vmem:[%s219 + $0x1c] sm:$0xf]
      %v496 = vld [vmem:[%s219 + $0x20] sm:$0xf]
      %v497 = vld [vmem:[%s219 + $0x24] sm:$0xf]
      %v498 = vld [vmem:[%s219 + $0x28] sm:$0xf]
      %v499 = vld [vmem:[%s219 + $0x2c] sm:$0xf]
      %v500 = vld [vmem:[%s219 + $0x30] sm:$0xf]
      %v501 = vld [vmem:[%s219 + $0x34] sm:$0xf]
      %v502 = vld [vmem:[%s219 + $0x38] sm:$0xf]
      %v503 = vld [vmem:[%s219 + $0x3c] sm:$0xf]
      %v504 = vld [vmem:[%s219 + $0x40] sm:$0xf]
      %v505 = vld [vmem:[%s219 + $0x44] sm:$0xf]
      %v506 = vld [vmem:[%s219 + $0x48] sm:$0xf]
      %v507 = vld [vmem:[%s219 + $0x4c] sm:$0xf]
      %v508 = vld [vmem:[%s219 + $0x50] sm:$0xf]
      %v509 = vld [vmem:[%s219 + $0x54] sm:$0xf]
      %v510 = vld [vmem:[%s219 + $0x58] sm:$0xf]
      %v511 = vld [vmem:[%s219 + $0x5c] sm:$0xf]
      %v512 = vld [vmem:[%s219 + $0x60] sm:$0xf]
      %v513 = vld [vmem:[%s219 + $0x64] sm:$0xf]
      %v514 = vld [vmem:[%s219 + $0x68] sm:$0xf]
      %v515 = vld [vmem:[%s219 + $0x6c] sm:$0xf]
      %v516 = vld [vmem:[%s219 + $0x70] sm:$0xf]
      %v517 = vld [vmem:[%s219 + $0x74] sm:$0xf]
      %v518 = vld [vmem:[%s219 + $0x78] sm:$0xf]
      %v519 = vld [vmem:[%s219 + $0x7c] sm:$0xf]
      %v520 = vld [vmem:[%s219 + $0x80] sm:$0xf]
      %v521 = vld [vmem:[%s219 + $0x84] sm:$0xf]
      %v522 = vld [vmem:[%s219 + $0x88] sm:$0xf]
      %v523 = vld [vmem:[%s219 + $0x8c] sm:$0xf]
      %v524 = vld [vmem:[%s219 + $0x90] sm:$0xf]
      %v525 = vld [vmem:[%s219 + $0x94] sm:$0xf]
      %v526 = vld [vmem:[%s219 + $0x98] sm:$0xf]
      %v527 = vld [vmem:[%s219 + $0x9c] sm:$0xf]
      %v528 = vld [vmem:[%s219 + $0xa0] sm:$0xf]
      %v529 = vld [vmem:[%s219 + $0xa4] sm:$0xf]
      %v530 = vld [vmem:[%s219 + $0xa8] sm:$0xf]
      %v531 = vld [vmem:[%s219 + $0xac] sm:$0xf]
      %v532 = vld [vmem:[%s219 + $0xb0] sm:$0xf]
      %v533 = vld [vmem:[%s219 + $0xb4] sm:$0xf]
      %v534 = vld [vmem:[%s219 + $0xb8] sm:$0xf]
      %v535 = vld [vmem:[%s219 + $0xbc] sm:$0xf]
      %v536 = vld [vmem:[%s219 + $0xc0] sm:$0xf]
      %v537 = vld [vmem:[%s219 + $0xc4] sm:$0xf]
      %v538 = vld [vmem:[%s219 + $0xc8] sm:$0xf]
      %v539 = vld [vmem:[%s219 + $0xcc] sm:$0xf]
      %v540 = vld [vmem:[%s219 + $0xd0] sm:$0xf]
      %v541 = vld [vmem:[%s219 + $0xd4] sm:$0xf]
      %v542 = vld [vmem:[%s219 + $0xd8] sm:$0xf]
      %v543 = vld [vmem:[%s219 + $0xdc] sm:$0xf]
      %v544 = vld [vmem:[%s219 + $0xe0] sm:$0xf]
      %v545 = vld [vmem:[%s219 + $0xe4] sm:$0xf]
      %v546 = vld [vmem:[%s219 + $0xe8] sm:$0xf]
      %v547 = vld [vmem:[%s219 + $0xec] sm:$0xf]
      %v548 = vld [vmem:[%s219 + $0xf0] sm:$0xf]
      %v549 = vld [vmem:[%s219 + $0xf4] sm:$0xf]
      %v550 = vld [vmem:[%s219 + $0xf8] sm:$0xf]
      %v551 = vld [vmem:[%s219 + $0xfc] sm:$0xf]
      %v680 = vunpack.c.l.b16 %v360
      %v681 = vunpack.c.h.b16 %v360
      %v682 = vunpack.c.l.b16 %v361
      %v683 = vunpack.c.h.b16 %v361
      %v684 = vunpack.c.l.b16 %v362
      %v685 = vunpack.c.h.b16 %v362
      %v686 = vunpack.c.l.b16 %v363
      %v687 = vunpack.c.h.b16 %v363
      %v688 = vunpack.c.l.b16 %v364
      %v689 = vunpack.c.h.b16 %v364
      %v690 = vunpack.c.l.b16 %v365
      %v691 = vunpack.c.h.b16 %v365
      %v692 = vunpack.c.l.b16 %v366
      %v693 = vunpack.c.h.b16 %v366
      %v694 = vunpack.c.l.b16 %v367
      %v695 = vunpack.c.h.b16 %v367
      %v696 = vunpack.c.l.b16 %v368
      %v697 = vunpack.c.h.b16 %v368
      %v698 = vunpack.c.l.b16 %v369
      %v699 = vunpack.c.h.b16 %v369
      %v700 = vunpack.c.l.b16 %v370
      %v701 = vunpack.c.h.b16 %v370
      %v702 = vunpack.c.l.b16 %v371
      %v703 = vunpack.c.h.b16 %v371
      %v704 = vunpack.c.l.b16 %v372
      %v705 = vunpack.c.h.b16 %v372
      %v706 = vunpack.c.l.b16 %v373
      %v707 = vunpack.c.h.b16 %v373
      %v708 = vunpack.c.l.b16 %v374
      %v709 = vunpack.c.h.b16 %v374
      %v710 = vunpack.c.l.b16 %v375
      %v711 = vunpack.c.h.b16 %v375
      %v712 = vunpack.c.l.b16 %v376
      %v713 = vunpack.c.h.b16 %v376
      %v714 = vunpack.c.l.b16 %v377
      %v715 = vunpack.c.h.b16 %v377
      %v716 = vunpack.c.l.b16 %v378
      %v717 = vunpack.c.h.b16 %v378
      %v718 = vunpack.c.l.b16 %v379
      %v719 = vunpack.c.h.b16 %v379
      %v720 = vunpack.c.l.b16 %v380
      %v721 = vunpack.c.h.b16 %v380
      %v722 = vunpack.c.l.b16 %v381
      %v723 = vunpack.c.h.b16 %v381
      %v724 = vunpack.c.l.b16 %v382
      %v725 = vunpack.c.h.b16 %v382
      %v726 = vunpack.c.l.b16 %v383
      %v727 = vunpack.c.h.b16 %v383
      %v728 = vunpack.c.l.b16 %v384
      %v729 = vunpack.c.h.b16 %v384
      %v730 = vunpack.c.l.b16 %v385
      %v731 = vunpack.c.h.b16 %v385
      %v732 = vunpack.c.l.b16 %v386
      %v733 = vunpack.c.h.b16 %v386
      %v734 = vunpack.c.l.b16 %v387
      %v735 = vunpack.c.h.b16 %v387
      %v736 = vunpack.c.l.b16 %v388
      %v737 = vunpack.c.h.b16 %v388
      %v738 = vunpack.c.l.b16 %v389
      %v739 = vunpack.c.h.b16 %v389
      %v740 = vunpack.c.l.b16 %v390
      %v741 = vunpack.c.h.b16 %v390
      %v742 = vunpack.c.l.b16 %v391
      %v743 = vunpack.c.h.b16 %v391
      %v744 = vunpack.c.l.b16 %v392
      %v745 = vunpack.c.h.b16 %v392
      %v746 = vunpack.c.l.b16 %v393
      %v747 = vunpack.c.h.b16 %v393
      %v748 = vunpack.c.l.b16 %v394
      %v749 = vunpack.c.h.b16 %v394
      %v750 = vunpack.c.l.b16 %v395
      %v751 = vunpack.c.h.b16 %v395
      %v752 = vunpack.c.l.b16 %v396
      %v753 = vunpack.c.h.b16 %v396
      %v754 = vunpack.c.l.b16 %v397
      %v755 = vunpack.c.h.b16 %v397
      %v756 = vunpack.c.l.b16 %v398
      %v757 = vunpack.c.h.b16 %v398
      %v758 = vunpack.c.l.b16 %v399
      %v759 = vunpack.c.h.b16 %v399
      %v760 = vunpack.c.l.b16 %v400
      %v761 = vunpack.c.h.b16 %v400
      %v762 = vunpack.c.l.b16 %v401
      %v763 = vunpack.c.h.b16 %v401
      %v764 = vunpack.c.l.b16 %v402
      %v765 = vunpack.c.h.b16 %v402
      %v766 = vunpack.c.l.b16 %v403
      %v767 = vunpack.c.h.b16 %v403
      %v768 = vunpack.c.l.b16 %v404
      %v769 = vunpack.c.h.b16 %v404
      %v770 = vunpack.c.l.b16 %v405
      %v771 = vunpack.c.h.b16 %v405
      %v772 = vunpack.c.l.b16 %v406
      %v773 = vunpack.c.h.b16 %v406
      %v774 = vunpack.c.l.b16 %v407
      %v775 = vunpack.c.h.b16 %v407
      %v776 = vunpack.c.l.b16 %v408
      %v777 = vunpack.c.h.b16 %v408
      %v778 = vunpack.c.l.b16 %v409
      %v779 = vunpack.c.h.b16 %v409
      %v780 = vunpack.c.l.b16 %v410
      %v781 = vunpack.c.h.b16 %v410
      %v782 = vunpack.c.l.b16 %v411
      %v783 = vunpack.c.h.b16 %v411
      %v784 = vunpack.c.l.b16 %v412
      %v785 = vunpack.c.h.b16 %v412
      %v786 = vunpack.c.l.b16 %v413
      %v787 = vunpack.c.h.b16 %v413
      %v788 = vunpack.c.l.b16 %v414
      %v789 = vunpack.c.h.b16 %v414
      %v790 = vunpack.c.l.b16 %v415
      %v791 = vunpack.c.h.b16 %v415
      %v792 = vunpack.c.l.b16 %v416
      %v793 = vunpack.c.h.b16 %v416
      %v794 = vunpack.c.l.b16 %v417
      %v795 = vunpack.c.h.b16 %v417
      %v796 = vunpack.c.l.b16 %v418
      %v797 = vunpack.c.h.b16 %v418
      %v798 = vunpack.c.l.b16 %v419
      %v799 = vunpack.c.h.b16 %v419
      %v800 = vunpack.c.l.b16 %v420
      %v801 = vunpack.c.h.b16 %v420
      %v802 = vunpack.c.l.b16 %v421
      %v803 = vunpack.c.h.b16 %v421
      %v804 = vunpack.c.l.b16 %v422
      %v805 = vunpack.c.h.b16 %v422
      %v806 = vunpack.c.l.b16 %v423
      %v807 = vunpack.c.h.b16 %v423
      %v808 = vunpack.c.l.b16 %v424
      %v809 = vunpack.c.h.b16 %v424
      %v810 = vunpack.c.l.b16 %v425
      %v811 = vunpack.c.h.b16 %v425
      %v812 = vunpack.c.l.b16 %v426
      %v813 = vunpack.c.h.b16 %v426
      %v814 = vunpack.c.l.b16 %v427
      %v815 = vunpack.c.h.b16 %v427
      %v816 = vunpack.c.l.b16 %v428
      %v817 = vunpack.c.h.b16 %v428
      %v818 = vunpack.c.l.b16 %v429
      %v819 = vunpack.c.h.b16 %v429
      %v820 = vunpack.c.l.b16 %v430
      %v821 = vunpack.c.h.b16 %v430
      %v822 = vunpack.c.l.b16 %v431
      %v823 = vunpack.c.h.b16 %v431
      %v824 = vunpack.c.l.b16 %v432
      %v825 = vunpack.c.h.b16 %v432
      %v826 = vunpack.c.l.b16 %v433
      %v827 = vunpack.c.h.b16 %v433
      %v828 = vunpack.c.l.b16 %v434
      %v829 = vunpack.c.h.b16 %v434
      %v830 = vunpack.c.l.b16 %v435
      %v831 = vunpack.c.h.b16 %v435
      %v832 = vunpack.c.l.b16 %v436
      %v833 = vunpack.c.h.b16 %v436
      %v834 = vunpack.c.l.b16 %v437
      %v835 = vunpack.c.h.b16 %v437
      %v836 = vunpack.c.l.b16 %v438
      %v837 = vunpack.c.h.b16 %v438
      %v838 = vunpack.c.l.b16 %v439
      %v839 = vunpack.c.h.b16 %v439
      %v840 = vunpack.c.l.b16 %v440
      %v841 = vunpack.c.h.b16 %v440
      %v842 = vunpack.c.l.b16 %v441
      %v843 = vunpack.c.h.b16 %v441
      %v844 = vunpack.c.l.b16 %v442
      %v845 = vunpack.c.h.b16 %v442
      %v846 = vunpack.c.l.b16 %v443
      %v847 = vunpack.c.h.b16 %v443
      %v848 = vunpack.c.l.b16 %v444
      %v849 = vunpack.c.h.b16 %v444
      %v850 = vunpack.c.l.b16 %v445
      %v851 = vunpack.c.h.b16 %v445
      %v852 = vunpack.c.l.b16 %v446
      %v853 = vunpack.c.h.b16 %v446
      %v854 = vunpack.c.l.b16 %v447
      %v855 = vunpack.c.h.b16 %v447
      %v856 = vunpack.c.l.b16 %v448
      %v857 = vunpack.c.h.b16 %v448
      %v858 = vunpack.c.l.b16 %v449
      %v859 = vunpack.c.h.b16 %v449
      %v860 = vunpack.c.l.b16 %v450
      %v861 = vunpack.c.h.b16 %v450
      %v862 = vunpack.c.l.b16 %v451
      %v863 = vunpack.c.h.b16 %v451
      %v864 = vunpack.c.l.b16 %v452
      %v865 = vunpack.c.h.b16 %v452
      %v866 = vunpack.c.l.b16 %v453
      %v867 = vunpack.c.h.b16 %v453
      %v868 = vunpack.c.l.b16 %v454
      %v869 = vunpack.c.h.b16 %v454
      %v870 = vunpack.c.l.b16 %v455
      %v871 = vunpack.c.h.b16 %v455
      %v872 = vunpack.c.l.b16 %v456
      %v873 = vunpack.c.h.b16 %v456
      %v874 = vunpack.c.l.b16 %v457
      %v875 = vunpack.c.h.b16 %v457
      %v876 = vunpack.c.l.b16 %v458
      %v877 = vunpack.c.h.b16 %v458
      %v878 = vunpack.c.l.b16 %v459
      %v879 = vunpack.c.h.b16 %v459
      %v880 = vunpack.c.l.b16 %v460
      %v881 = vunpack.c.h.b16 %v460
      %v882 = vunpack.c.l.b16 %v461
      %v883 = vunpack.c.h.b16 %v461
      %v884 = vunpack.c.l.b16 %v462
      %v885 = vunpack.c.h.b16 %v462
      %v886 = vunpack.c.l.b16 %v463
      %v887 = vunpack.c.h.b16 %v463
      %v888 = vunpack.c.l.b16 %v464
      %v889 = vunpack.c.h.b16 %v464
      %v890 = vunpack.c.l.b16 %v465
      %v891 = vunpack.c.h.b16 %v465
      %v892 = vunpack.c.l.b16 %v466
      %v893 = vunpack.c.h.b16 %v466
      %v894 = vunpack.c.l.b16 %v467
      %v895 = vunpack.c.h.b16 %v467
      %v896 = vunpack.c.l.b16 %v468
      %v897 = vunpack.c.h.b16 %v468
      %v898 = vunpack.c.l.b16 %v469
      %v899 = vunpack.c.h.b16 %v469
      %v900 = vunpack.c.l.b16 %v470
      %v901 = vunpack.c.h.b16 %v470
      %v902 = vunpack.c.l.b16 %v471
      %v903 = vunpack.c.h.b16 %v471
      %v904 = vunpack.c.l.b16 %v472
      %v905 = vunpack.c.h.b16 %v472
      %v906 = vunpack.c.l.b16 %v473
      %v907 = vunpack.c.h.b16 %v473
      %v908 = vunpack.c.l.b16 %v474
      %v909 = vunpack.c.h.b16 %v474
      %v910 = vunpack.c.l.b16 %v475
      %v911 = vunpack.c.h.b16 %v475
      %v912 = vunpack.c.l.b16 %v476
      %v913 = vunpack.c.h.b16 %v476
      %v914 = vunpack.c.l.b16 %v477
      %v915 = vunpack.c.h.b16 %v477
      %v916 = vunpack.c.l.b16 %v478
      %v917 = vunpack.c.h.b16 %v478
      %v918 = vunpack.c.l.b16 %v479
      %v919 = vunpack.c.h.b16 %v479
      %v920 = vunpack.c.l.b16 %v480
      %v921 = vunpack.c.h.b16 %v480
      %v922 = vunpack.c.l.b16 %v481
      %v923 = vunpack.c.h.b16 %v481
      %v924 = vunpack.c.l.b16 %v482
      %v925 = vunpack.c.h.b16 %v482
      %v926 = vunpack.c.l.b16 %v483
      %v927 = vunpack.c.h.b16 %v483
      %v928 = vunpack.c.l.b16 %v484
      %v929 = vunpack.c.h.b16 %v484
      %v930 = vunpack.c.l.b16 %v485
      %v931 = vunpack.c.h.b16 %v485
      %v932 = vunpack.c.l.b16 %v486
      %v933 = vunpack.c.h.b16 %v486
      %v934 = vunpack.c.l.b16 %v487
      %v935 = vunpack.c.h.b16 %v487
      %v936 = vpack.c.b16 %v684, %v680
      %v937 = vpack.c.b16 %v685, %v681
      %v938 = vpack.c.b16 %v686, %v682
      %v939 = vpack.c.b16 %v687, %v683
      %v940 = vpack.c.b16 %v692, %v688
      %v941 = vpack.c.b16 %v693, %v689
      %v942 = vpack.c.b16 %v694, %v690
      %v943 = vpack.c.b16 %v695, %v691
      %v944 = vpack.c.b16 %v700, %v696
      %v945 = vpack.c.b16 %v701, %v697
      %v946 = vpack.c.b16 %v702, %v698
      %v947 = vpack.c.b16 %v703, %v699
      %v948 = vpack.c.b16 %v708, %v704
      %v949 = vpack.c.b16 %v709, %v705
      %v950 = vpack.c.b16 %v710, %v706
      %v951 = vpack.c.b16 %v711, %v707
      %v952 = vpack.c.b16 %v716, %v712
      %v953 = vpack.c.b16 %v717, %v713
      %v954 = vpack.c.b16 %v718, %v714
      %v955 = vpack.c.b16 %v719, %v715
      %v956 = vpack.c.b16 %v724, %v720
      %v957 = vpack.c.b16 %v725, %v721
      %v958 = vpack.c.b16 %v726, %v722
      %v959 = vpack.c.b16 %v727, %v723
      %v960 = vpack.c.b16 %v732, %v728
      %v961 = vpack.c.b16 %v733, %v729
      %v962 = vpack.c.b16 %v734, %v730
      %v963 = vpack.c.b16 %v735, %v731
      %v964 = vpack.c.b16 %v740, %v736
      %v965 = vpack.c.b16 %v741, %v737
      %v966 = vpack.c.b16 %v742, %v738
      %v967 = vpack.c.b16 %v743, %v739
      %v968 = vpack.c.b16 %v748, %v744
      %v969 = vpack.c.b16 %v749, %v745
      %v970 = vpack.c.b16 %v750, %v746
      %v971 = vpack.c.b16 %v751, %v747
      %v972 = vpack.c.b16 %v756, %v752
      %v973 = vpack.c.b16 %v757, %v753
      %v974 = vpack.c.b16 %v758, %v754
      %v975 = vpack.c.b16 %v759, %v755
      %v976 = vpack.c.b16 %v764, %v760
      %v977 = vpack.c.b16 %v765, %v761
      %v978 = vpack.c.b16 %v766, %v762
      %v979 = vpack.c.b16 %v767, %v763
      %v980 = vpack.c.b16 %v772, %v768
      %v981 = vpack.c.b16 %v773, %v769
      %v982 = vpack.c.b16 %v774, %v770
      %v983 = vpack.c.b16 %v775, %v771
      %v984 = vpack.c.b16 %v780, %v776
      %v985 = vpack.c.b16 %v781, %v777
      %v986 = vpack.c.b16 %v782, %v778
      %v987 = vpack.c.b16 %v783, %v779
      %v988 = vpack.c.b16 %v788, %v784
      %v989 = vpack.c.b16 %v789, %v785
      %v990 = vpack.c.b16 %v790, %v786
      %v991 = vpack.c.b16 %v791, %v787
      %v992 = vpack.c.b16 %v796, %v792
      %v993 = vpack.c.b16 %v797, %v793
      %v994 = vpack.c.b16 %v798, %v794
      %v995 = vpack.c.b16 %v799, %v795
      %v996 = vpack.c.b16 %v804, %v800
      %v997 = vpack.c.b16 %v805, %v801
      %v998 = vpack.c.b16 %v806, %v802
      %v999 = vpack.c.b16 %v807, %v803
      %v1000 = vpack.c.b16 %v812, %v808
      %v1001 = vpack.c.b16 %v813, %v809
      %v1002 = vpack.c.b16 %v814, %v810
      %v1003 = vpack.c.b16 %v815, %v811
      %v1004 = vpack.c.b16 %v820, %v816
      %v1005 = vpack.c.b16 %v821, %v817
      %v1006 = vpack.c.b16 %v822, %v818
      %v1007 = vpack.c.b16 %v823, %v819
      %v1008 = vpack.c.b16 %v828, %v824
      %v1009 = vpack.c.b16 %v829, %v825
      %v1010 = vpack.c.b16 %v830, %v826
      %v1011 = vpack.c.b16 %v831, %v827
      %v1012 = vpack.c.b16 %v836, %v832
      %v1013 = vpack.c.b16 %v837, %v833
      %v1014 = vpack.c.b16 %v838, %v834
      %v1015 = vpack.c.b16 %v839, %v835
      %v1016 = vpack.c.b16 %v844, %v840
      %v1017 = vpack.c.b16 %v845, %v841
      %v1018 = vpack.c.b16 %v846, %v842
      %v1019 = vpack.c.b16 %v847, %v843
      %v1020 = vpack.c.b16 %v852, %v848
      %v1021 = vpack.c.b16 %v853, %v849
      %v1022 = vpack.c.b16 %v854, %v850
      %v1023 = vpack.c.b16 %v855, %v851
      %v1024 = vpack.c.b16 %v860, %v856
      %v1025 = vpack.c.b16 %v861, %v857
      %v1026 = vpack.c.b16 %v862, %v858
      %v1027 = vpack.c.b16 %v863, %v859
      %v1028 = vpack.c.b16 %v868, %v864
      %v1029 = vpack.c.b16 %v869, %v865
      %v1030 = vpack.c.b16 %v870, %v866
      %v1031 = vpack.c.b16 %v871, %v867
      %v1032 = vpack.c.b16 %v876, %v872
      %v1033 = vpack.c.b16 %v877, %v873
      %v1034 = vpack.c.b16 %v878, %v874
      %v1035 = vpack.c.b16 %v879, %v875
      %v1036 = vpack.c.b16 %v884, %v880
      %v1037 = vpack.c.b16 %v885, %v881
      %v1038 = vpack.c.b16 %v886, %v882
      %v1039 = vpack.c.b16 %v887, %v883
      %v1040 = vpack.c.b16 %v892, %v888
      %v1041 = vpack.c.b16 %v893, %v889
      %v1042 = vpack.c.b16 %v894, %v890
      %v1043 = vpack.c.b16 %v895, %v891
      %v1044 = vpack.c.b16 %v900, %v896
      %v1045 = vpack.c.b16 %v901, %v897
      %v1046 = vpack.c.b16 %v902, %v898
      %v1047 = vpack.c.b16 %v903, %v899
      %v1048 = vpack.c.b16 %v908, %v904
      %v1049 = vpack.c.b16 %v909, %v905
      %v1050 = vpack.c.b16 %v910, %v906
      %v1051 = vpack.c.b16 %v911, %v907
      %v1052 = vpack.c.b16 %v916, %v912
      %v1053 = vpack.c.b16 %v917, %v913
      %v1054 = vpack.c.b16 %v918, %v914
      %v1055 = vpack.c.b16 %v919, %v915
      %v1056 = vpack.c.b16 %v924, %v920
      %v1057 = vpack.c.b16 %v925, %v921
      %v1058 = vpack.c.b16 %v926, %v922
      %v1059 = vpack.c.b16 %v927, %v923
      %v1060 = vpack.c.b16 %v932, %v928
      %v1061 = vpack.c.b16 %v933, %v929
      %v1062 = vpack.c.b16 %v934, %v930
      %v1063 = vpack.c.b16 %v935, %v931
      %v1256 = vunpack.c.l.b16 %v488
      %v1257 = vunpack.c.l.b16 %v489
      %v1258 = vunpack.c.l.b16 %v490
      %v1259 = vunpack.c.l.b16 %v491
      %v1260 = vunpack.c.l.b16 %v492
      %v1261 = vunpack.c.l.b16 %v493
      %v1262 = vunpack.c.l.b16 %v494
      %v1263 = vunpack.c.l.b16 %v495
      %v1264 = vunpack.c.l.b16 %v496
      %v1265 = vunpack.c.l.b16 %v497
      %v1266 = vunpack.c.l.b16 %v498
      %v1267 = vunpack.c.l.b16 %v499
      %v1268 = vunpack.c.l.b16 %v500
      %v1269 = vunpack.c.l.b16 %v501
      %v1270 = vunpack.c.l.b16 %v502
      %v1271 = vunpack.c.l.b16 %v503
      %v1272 = vunpack.c.l.b16 %v504
      %v1273 = vunpack.c.l.b16 %v505
      %v1274 = vunpack.c.l.b16 %v506
      %v1275 = vunpack.c.l.b16 %v507
      %v1276 = vunpack.c.l.b16 %v508
      %v1277 = vunpack.c.l.b16 %v509
      %v1278 = vunpack.c.l.b16 %v510
      %v1279 = vunpack.c.l.b16 %v511
      %v1280 = vunpack.c.l.b16 %v512
      %v1281 = vunpack.c.l.b16 %v513
      %v1282 = vunpack.c.l.b16 %v514
      %v1283 = vunpack.c.l.b16 %v515
      %v1284 = vunpack.c.l.b16 %v516
      %v1285 = vunpack.c.l.b16 %v517
      %v1286 = vunpack.c.l.b16 %v518
      %v1287 = vunpack.c.l.b16 %v519
      %v1288 = vunpack.c.l.b16 %v520
      %v1289 = vunpack.c.l.b16 %v521
      %v1290 = vunpack.c.l.b16 %v522
      %v1291 = vunpack.c.l.b16 %v523
      %v1292 = vunpack.c.l.b16 %v524
      %v1293 = vunpack.c.l.b16 %v525
      %v1294 = vunpack.c.l.b16 %v526
      %v1295 = vunpack.c.l.b16 %v527
      %v1296 = vunpack.c.l.b16 %v528
      %v1297 = vunpack.c.l.b16 %v529
      %v1298 = vunpack.c.l.b16 %v530
      %v1299 = vunpack.c.l.b16 %v531
      %v1300 = vunpack.c.l.b16 %v532
      %v1301 = vunpack.c.l.b16 %v533
      %v1302 = vunpack.c.l.b16 %v534
      %v1303 = vunpack.c.l.b16 %v535
      %v1304 = vunpack.c.l.b16 %v536
      %v1305 = vunpack.c.l.b16 %v537
      %v1306 = vunpack.c.l.b16 %v538
      %v1307 = vunpack.c.l.b16 %v539
      %v1308 = vunpack.c.l.b16 %v540
      %v1309 = vunpack.c.l.b16 %v541
      %v1310 = vunpack.c.l.b16 %v542
      %v1311 = vunpack.c.l.b16 %v543
      %v1312 = vunpack.c.l.b16 %v544
      %v1313 = vunpack.c.l.b16 %v545
      %v1314 = vunpack.c.l.b16 %v546
      %v1315 = vunpack.c.l.b16 %v547
      %v1316 = vunpack.c.l.b16 %v548
      %v1317 = vunpack.c.l.b16 %v549
      %v1318 = vunpack.c.l.b16 %v550
      %v1319 = vunpack.c.l.b16 %v551
      %v1320 = vpack.c.b16 %v1257, %v1256
      %v1321 = vpack.c.b16 %v1259, %v1258
      %v1322 = vpack.c.b16 %v1261, %v1260
      %v1323 = vpack.c.b16 %v1263, %v1262
      %v1324 = vpack.c.b16 %v1265, %v1264
      %v1325 = vpack.c.b16 %v1267, %v1266
      %v1326 = vpack.c.b16 %v1269, %v1268
      %v1327 = vpack.c.b16 %v1271, %v1270
      %v1328 = vpack.c.b16 %v1273, %v1272
      %v1329 = vpack.c.b16 %v1275, %v1274
      %v1330 = vpack.c.b16 %v1277, %v1276
      %v1331 = vpack.c.b16 %v1279, %v1278
      %v1332 = vpack.c.b16 %v1281, %v1280
      %v1333 = vpack.c.b16 %v1283, %v1282
      %v1334 = vpack.c.b16 %v1285, %v1284
      %v1335 = vpack.c.b16 %v1287, %v1286
      %v1336 = vpack.c.b16 %v1289, %v1288
      %v1337 = vpack.c.b16 %v1291, %v1290
      %v1338 = vpack.c.b16 %v1293, %v1292
      %v1339 = vpack.c.b16 %v1295, %v1294
      %v1340 = vpack.c.b16 %v1297, %v1296
      %v1341 = vpack.c.b16 %v1299, %v1298
      %v1342 = vpack.c.b16 %v1301, %v1300
      %v1343 = vpack.c.b16 %v1303, %v1302
      %v1344 = vpack.c.b16 %v1305, %v1304
      %v1345 = vpack.c.b16 %v1307, %v1306
      %v1346 = vpack.c.b16 %v1309, %v1308
      %v1347 = vpack.c.b16 %v1311, %v1310
      %v1348 = vpack.c.b16 %v1313, %v1312
      %v1349 = vpack.c.b16 %v1315, %v1314
      %v1350 = vpack.c.b16 %v1317, %v1316
      %v1351 = vpack.c.b16 %v1319, %v1318
      %1384 = vmatpush.bf16.msra.mxu0 %v1327
      %1385 = vmatpush.bf16.msra.mxu0 %v1326
      %1386 = vmatpush.bf16.msra.mxu0 %v1325
      %1387 = vmatpush.bf16.msra.mxu0 %v1324
      %1388 = vmatpush.bf16.msra.mxu0 %v1323
      %1389 = vmatpush.bf16.msra.mxu0 %v1322
      %1390 = vmatpush.bf16.msra.mxu0 %v1321
      %1391 = vmatpush.bf16.msra.mxu0 %v1320
      %1392 = vmatmul.bf16.gmra.mxu0 %v936
      %v1393 = vpop.f32.mrf.mxu0
      %v1394 = vadd.f32 0.0, %v1393
      %v1395 = vpop.f32.mrf.mxu0
      %v1396 = vadd.f32 0.0, %v1395
      %1397 = vmatmul.bf16.gmra.mxu0 %v940
      %v1398 = vpop.f32.mrf.mxu0
      %v1399 = vadd.f32 0.0, %v1398
      %v1400 = vpop.f32.mrf.mxu0
      %v1401 = vadd.f32 0.0, %v1400
      %1402 = vmatmul.bf16.gmra.mxu0 %v944
      %v1403 = vpop.f32.mrf.mxu0
      %v1404 = vadd.f32 0.0, %v1403
      %v1405 = vpop.f32.mrf.mxu0
      %v1406 = vadd.f32 0.0, %v1405
      %1407 = vmatmul.bf16.gmra.mxu0 %v948
      %v1408 = vpop.f32.mrf.mxu0
      %v1409 = vadd.f32 0.0, %v1408
      %v1410 = vpop.f32.mrf.mxu0
      %v1411 = vadd.f32 0.0, %v1410
      %1412 = vmatmul.bf16.gmra.mxu0 %v952
      %v1413 = vpop.f32.mrf.mxu0
      %v1414 = vadd.f32 0.0, %v1413
      %v1415 = vpop.f32.mrf.mxu0
      %v1416 = vadd.f32 0.0, %v1415
      %1417 = vmatmul.bf16.gmra.mxu0 %v956
      %v1418 = vpop.f32.mrf.mxu0
      %v1419 = vadd.f32 0.0, %v1418
      %v1420 = vpop.f32.mrf.mxu0
      %v1421 = vadd.f32 0.0, %v1420
      %1422 = vmatmul.bf16.gmra.mxu0 %v960
      %v1423 = vpop.f32.mrf.mxu0
      %v1424 = vadd.f32 0.0, %v1423
      %v1425 = vpop.f32.mrf.mxu0
      %v1426 = vadd.f32 0.0, %v1425
      %1427 = vmatmul.bf16.gmra.mxu0 %v964
      %v1428 = vpop.f32.mrf.mxu0
      %v1429 = vadd.f32 0.0, %v1428
      %v1430 = vpop.f32.mrf.mxu0
      %v1431 = vadd.f32 0.0, %v1430
      %1432 = vmatmul.bf16.gmra.mxu0 %v968
      %v1433 = vpop.f32.mrf.mxu0
      %v1434 = vadd.f32 0.0, %v1433
      %v1435 = vpop.f32.mrf.mxu0
      %v1436 = vadd.f32 0.0, %v1435
      %1437 = vmatmul.bf16.gmra.mxu0 %v972
      %v1438 = vpop.f32.mrf.mxu0
      %v1439 = vadd.f32 0.0, %v1438
      %v1440 = vpop.f32.mrf.mxu0
      %v1441 = vadd.f32 0.0, %v1440
      %1442 = vmatmul.bf16.gmra.mxu0 %v976
      %v1443 = vpop.f32.mrf.mxu0
      %v1444 = vadd.f32 0.0, %v1443
      %v1445 = vpop.f32.mrf.mxu0
      %v1446 = vadd.f32 0.0, %v1445
      %1447 = vmatmul.bf16.gmra.mxu0 %v980
      %v1448 = vpop.f32.mrf.mxu0
      %v1449 = vadd.f32 0.0, %v1448
      %v1450 = vpop.f32.mrf.mxu0
      %v1451 = vadd.f32 0.0, %v1450
      %1452 = vmatmul.bf16.gmra.mxu0 %v984
      %v1453 = vpop.f32.mrf.mxu0
      %v1454 = vadd.f32 0.0, %v1453
      %v1455 = vpop.f32.mrf.mxu0
      %v1456 = vadd.f32 0.0, %v1455
      %1457 = vmatmul.bf16.gmra.mxu0 %v988
      %v1458 = vpop.f32.mrf.mxu0
      %v1459 = vadd.f32 0.0, %v1458
      %v1460 = vpop.f32.mrf.mxu0
      %v1461 = vadd.f32 0.0, %v1460
      %1462 = vmatmul.bf16.gmra.mxu0 %v992
      %v1463 = vpop.f32.mrf.mxu0
      %v1464 = vadd.f32 0.0, %v1463
      %v1465 = vpop.f32.mrf.mxu0
      %v1466 = vadd.f32 0.0, %v1465
      %1467 = vmatmul.bf16.gmra.mxu0 %v996
      %v1468 = vpop.f32.mrf.mxu0
      %v1469 = vadd.f32 0.0, %v1468
      %v1470 = vpop.f32.mrf.mxu0
      %v1471 = vadd.f32 0.0, %v1470
      %1472 = vmatmul.bf16.gmra.mxu0 %v1000
      %v1473 = vpop.f32.mrf.mxu0
      %v1474 = vadd.f32 0.0, %v1473
      %v1475 = vpop.f32.mrf.mxu0
      %v1476 = vadd.f32 0.0, %v1475
      %1477 = vmatmul.bf16.gmra.mxu0 %v1004
      %v1478 = vpop.f32.mrf.mxu0
      %v1479 = vadd.f32 0.0, %v1478
      %v1480 = vpop.f32.mrf.mxu0
      %v1481 = vadd.f32 0.0, %v1480
      %1482 = vmatmul.bf16.gmra.mxu0 %v1008
      %v1483 = vpop.f32.mrf.mxu0
      %v1484 = vadd.f32 0.0, %v1483
      %v1485 = vpop.f32.mrf.mxu0
      %v1486 = vadd.f32 0.0, %v1485
      %1487 = vmatmul.bf16.gmra.mxu0 %v1012
      %v1488 = vpop.f32.mrf.mxu0
      %v1489 = vadd.f32 0.0, %v1488
      %v1490 = vpop.f32.mrf.mxu0
      %v1491 = vadd.f32 0.0, %v1490
      %1492 = vmatmul.bf16.gmra.mxu0 %v1016
      %v1493 = vpop.f32.mrf.mxu0
      %v1494 = vadd.f32 0.0, %v1493
      %v1495 = vpop.f32.mrf.mxu0
      %v1496 = vadd.f32 0.0, %v1495
      %1497 = vmatmul.bf16.gmra.mxu0 %v1020
      %v1498 = vpop.f32.mrf.mxu0
      %v1499 = vadd.f32 0.0, %v1498
      %v1500 = vpop.f32.mrf.mxu0
      %v1501 = vadd.f32 0.0, %v1500
      %1502 = vmatmul.bf16.gmra.mxu0 %v1024
      %v1503 = vpop.f32.mrf.mxu0
      %v1504 = vadd.f32 0.0, %v1503
      %v1505 = vpop.f32.mrf.mxu0
      %v1506 = vadd.f32 0.0, %v1505
      %1507 = vmatmul.bf16.gmra.mxu0 %v1028
      %v1508 = vpop.f32.mrf.mxu0
      %v1509 = vadd.f32 0.0, %v1508
      %v1510 = vpop.f32.mrf.mxu0
      %v1511 = vadd.f32 0.0, %v1510
      %1512 = vmatmul.bf16.gmra.mxu0 %v1032
      %v1513 = vpop.f32.mrf.mxu0
      %v1514 = vadd.f32 0.0, %v1513
      %v1515 = vpop.f32.mrf.mxu0
      %v1516 = vadd.f32 0.0, %v1515
      %1517 = vmatmul.bf16.gmra.mxu0 %v1036
      %v1518 = vpop.f32.mrf.mxu0
      %v1519 = vadd.f32 0.0, %v1518
      %v1520 = vpop.f32.mrf.mxu0
      %v1521 = vadd.f32 0.0, %v1520
      %1522 = vmatmul.bf16.gmra.mxu0 %v1040
      %v1523 = vpop.f32.mrf.mxu0
      %v1524 = vadd.f32 0.0, %v1523
      %v1525 = vpop.f32.mrf.mxu0
      %v1526 = vadd.f32 0.0, %v1525
      %1527 = vmatmul.bf16.gmra.mxu0 %v1044
      %v1528 = vpop.f32.mrf.mxu0
      %v1529 = vadd.f32 0.0, %v1528
      %v1530 = vpop.f32.mrf.mxu0
      %v1531 = vadd.f32 0.0, %v1530
      %1532 = vmatmul.bf16.gmra.mxu0 %v1048
      %v1533 = vpop.f32.mrf.mxu0
      %v1534 = vadd.f32 0.0, %v1533
      %v1535 = vpop.f32.mrf.mxu0
      %v1536 = vadd.f32 0.0, %v1535
      %1537 = vmatmul.bf16.gmra.mxu0 %v1052
      %v1538 = vpop.f32.mrf.mxu0
      %v1539 = vadd.f32 0.0, %v1538
      %v1540 = vpop.f32.mrf.mxu0
      %v1541 = vadd.f32 0.0, %v1540
      %1542 = vmatmul.bf16.gmra.mxu0 %v1056
      %v1543 = vpop.f32.mrf.mxu0
      %v1544 = vadd.f32 0.0, %v1543
      %v1545 = vpop.f32.mrf.mxu0
      %v1546 = vadd.f32 0.0, %v1545
      %1547 = vmatmul.bf16.gmra.mxu0 %v1060
      %v1548 = vpop.f32.mrf.mxu0
      %v1549 = vadd.f32 0.0, %v1548
      %v1550 = vpop.f32.mrf.mxu0
      %v1551 = vadd.f32 0.0, %v1550
      %1552 = vdwg.mxu0
      %1553 = vmatpush.bf16.msra.mxu0 %v1335
      %1554 = vmatpush.bf16.msra.mxu0 %v1334
      %1555 = vmatpush.bf16.msra.mxu0 %v1333
      %1556 = vmatpush.bf16.msra.mxu0 %v1332
      %1557 = vmatpush.bf16.msra.mxu0 %v1331
      %1558 = vmatpush.bf16.msra.mxu0 %v1330
      %1559 = vmatpush.bf16.msra.mxu0 %v1329
      %1560 = vmatpush.bf16.msra.mxu0 %v1328
      %1561 = vmatmul.bf16.gmra.mxu0 %v937
      %v1562 = vpop.f32.mrf.mxu0
      %v1563 = vadd.f32 %v1394, %v1562
      %v1564 = vpop.f32.mrf.mxu0
      %v1565 = vadd.f32 %v1396, %v1564
      %1566 = vmatmul.bf16.gmra.mxu0 %v941
      %v1567 = vpop.f32.mrf.mxu0
      %v1568 = vadd.f32 %v1399, %v1567
      %v1569 = vpop.f32.mrf.mxu0
      %v1570 = vadd.f32 %v1401, %v1569
      %1571 = vmatmul.bf16.gmra.mxu0 %v945
      %v1572 = vpop.f32.mrf.mxu0
      %v1573 = vadd.f32 %v1404, %v1572
      %v1574 = vpop.f32.mrf.mxu0
      %v1575 = vadd.f32 %v1406, %v1574
      %1576 = vmatmul.bf16.gmra.mxu0 %v949
      %v1577 = vpop.f32.mrf.mxu0
      %v1578 = vadd.f32 %v1409, %v1577
      %v1579 = vpop.f32.mrf.mxu0
      %v1580 = vadd.f32 %v1411, %v1579
      %1581 = vmatmul.bf16.gmra.mxu0 %v953
      %v1582 = vpop.f32.mrf.mxu0
      %v1583 = vadd.f32 %v1414, %v1582
      %v1584 = vpop.f32.mrf.mxu0
      %v1585 = vadd.f32 %v1416, %v1584
      %1586 = vmatmul.bf16.gmra.mxu0 %v957
      %v1587 = vpop.f32.mrf.mxu0
      %v1588 = vadd.f32 %v1419, %v1587
      %v1589 = vpop.f32.mrf.mxu0
      %v1590 = vadd.f32 %v1421, %v1589
      %1591 = vmatmul.bf16.gmra.mxu0 %v961
      %v1592 = vpop.f32.mrf.mxu0
      %v1593 = vadd.f32 %v1424, %v1592
      %v1594 = vpop.f32.mrf.mxu0
      %v1595 = vadd.f32 %v1426, %v1594
      %1596 = vmatmul.bf16.gmra.mxu0 %v965
      %v1597 = vpop.f32.mrf.mxu0
      %v1598 = vadd.f32 %v1429, %v1597
      %v1599 = vpop.f32.mrf.mxu0
      %v1600 = vadd.f32 %v1431, %v1599
      %1601 = vmatmul.bf16.gmra.mxu0 %v969
      %v1602 = vpop.f32.mrf.mxu0
      %v1603 = vadd.f32 %v1434, %v1602
      %v1604 = vpop.f32.mrf.mxu0
      %v1605 = vadd.f32 %v1436, %v1604
      %1606 = vmatmul.bf16.gmra.mxu0 %v973
      %v1607 = vpop.f32.mrf.mxu0
      %v1608 = vadd.f32 %v1439, %v1607
      %v1609 = vpop.f32.mrf.mxu0
      %v1610 = vadd.f32 %v1441, %v1609
      %1611 = vmatmul.bf16.gmra.mxu0 %v977
      %v1612 = vpop.f32.mrf.mxu0
      %v1613 = vadd.f32 %v1444, %v1612
      %v1614 = vpop.f32.mrf.mxu0
      %v1615 = vadd.f32 %v1446, %v1614
      %1616 = vmatmul.bf16.gmra.mxu0 %v981
      %v1617 = vpop.f32.mrf.mxu0
      %v1618 = vadd.f32 %v1449, %v1617
      %v1619 = vpop.f32.mrf.mxu0
      %v1620 = vadd.f32 %v1451, %v1619
      %1621 = vmatmul.bf16.gmra.mxu0 %v985
      %v1622 = vpop.f32.mrf.mxu0
      %v1623 = vadd.f32 %v1454, %v1622
      %v1624 = vpop.f32.mrf.mxu0
      %v1625 = vadd.f32 %v1456, %v1624
      %1626 = vmatmul.bf16.gmra.mxu0 %v989
      %v1627 = vpop.f32.mrf.mxu0
      %v1628 = vadd.f32 %v1459, %v1627
      %v1629 = vpop.f32.mrf.mxu0
      %v1630 = vadd.f32 %v1461, %v1629
      %1631 = vmatmul.bf16.gmra.mxu0 %v993
      %v1632 = vpop.f32.mrf.mxu0
      %v1633 = vadd.f32 %v1464, %v1632
      %v1634 = vpop.f32.mrf.mxu0
      %v1635 = vadd.f32 %v1466, %v1634
      %1636 = vmatmul.bf16.gmra.mxu0 %v997
      %v1637 = vpop.f32.mrf.mxu0
      %v1638 = vadd.f32 %v1469, %v1637
      %v1639 = vpop.f32.mrf.mxu0
      %v1640 = vadd.f32 %v1471, %v1639
      %1641 = vmatmul.bf16.gmra.mxu0 %v1001
      %v1642 = vpop.f32.mrf.mxu0
      %v1643 = vadd.f32 %v1474, %v1642
      %v1644 = vpop.f32.mrf.mxu0
      %v1645 = vadd.f32 %v1476, %v1644
      %1646 = vmatmul.bf16.gmra.mxu0 %v1005
      %v1647 = vpop.f32.mrf.mxu0
      %v1648 = vadd.f32 %v1479, %v1647
      %v1649 = vpop.f32.mrf.mxu0
      %v1650 = vadd.f32 %v1481, %v1649
      %1651 = vmatmul.bf16.gmra.mxu0 %v1009
      %v1652 = vpop.f32.mrf.mxu0
      %v1653 = vadd.f32 %v1484, %v1652
      %v1654 = vpop.f32.mrf.mxu0
      %v1655 = vadd.f32 %v1486, %v1654
      %1656 = vmatmul.bf16.gmra.mxu0 %v1013
      %v1657 = vpop.f32.mrf.mxu0
      %v1658 = vadd.f32 %v1489, %v1657
      %v1659 = vpop.f32.mrf.mxu0
      %v1660 = vadd.f32 %v1491, %v1659
      %1661 = vmatmul.bf16.gmra.mxu0 %v1017
      %v1662 = vpop.f32.mrf.mxu0
      %v1663 = vadd.f32 %v1494, %v1662
      %v1664 = vpop.f32.mrf.mxu0
      %v1665 = vadd.f32 %v1496, %v1664
      %1666 = vmatmul.bf16.gmra.mxu0 %v1021
      %v1667 = vpop.f32.mrf.mxu0
      %v1668 = vadd.f32 %v1499, %v1667
      %v1669 = vpop.f32.mrf.mxu0
      %v1670 = vadd.f32 %v1501, %v1669
      %1671 = vmatmul.bf16.gmra.mxu0 %v1025
      %v1672 = vpop.f32.mrf.mxu0
      %v1673 = vadd.f32 %v1504, %v1672
      %v1674 = vpop.f32.mrf.mxu0
      %v1675 = vadd.f32 %v1506, %v1674
      %1676 = vmatmul.bf16.gmra.mxu0 %v1029
      %v1677 = vpop.f32.mrf.mxu0
      %v1678 = vadd.f32 %v1509, %v1677
      %v1679 = vpop.f32.mrf.mxu0
      %v1680 = vadd.f32 %v1511, %v1679
      %1681 = vmatmul.bf16.gmra.mxu0 %v1033
      %v1682 = vpop.f32.mrf.mxu0
      %v1683 = vadd.f32 %v1514, %v1682
      %v1684 = vpop.f32.mrf.mxu0
      %v1685 = vadd.f32 %v1516, %v1684
      %1686 = vmatmul.bf16.gmra.mxu0 %v1037
      %v1687 = vpop.f32.mrf.mxu0
      %v1688 = vadd.f32 %v1519, %v1687
      %v1689 = vpop.f32.mrf.mxu0
      %v1690 = vadd.f32 %v1521, %v1689
      %1691 = vmatmul.bf16.gmra.mxu0 %v1041
      %v1692 = vpop.f32.mrf.mxu0
      %v1693 = vadd.f32 %v1524, %v1692
      %v1694 = vpop.f32.mrf.mxu0
      %v1695 = vadd.f32 %v1526, %v1694
      %1696 = vmatmul.bf16.gmra.mxu0 %v1045
      %v1697 = vpop.f32.mrf.mxu0
      %v1698 = vadd.f32 %v1529, %v1697
      %v1699 = vpop.f32.mrf.mxu0
      %v1700 = vadd.f32 %v1531, %v1699
      %1701 = vmatmul.bf16.gmra.mxu0 %v1049
      %v1702 = vpop.f32.mrf.mxu0
      %v1703 = vadd.f32 %v1534, %v1702
      %v1704 = vpop.f32.mrf.mxu0
      %v1705 = vadd.f32 %v1536, %v1704
      %1706 = vmatmul.bf16.gmra.mxu0 %v1053
      %v1707 = vpop.f32.mrf.mxu0
      %v1708 = vadd.f32 %v1539, %v1707
      %v1709 = vpop.f32.mrf.mxu0
      %v1710 = vadd.f32 %v1541, %v1709
      %1711 = vmatmul.bf16.gmra.mxu0 %v1057
      %v1712 = vpop.f32.mrf.mxu0
      %v1713 = vadd.f32 %v1544, %v1712
      %v1714 = vpop.f32.mrf.mxu0
      %v1715 = vadd.f32 %v1546, %v1714
      %1716 = vmatmul.bf16.gmra.mxu0 %v1061
      %v1717 = vpop.f32.mrf.mxu0
      %v1718 = vadd.f32 %v1549, %v1717
      %v1719 = vpop.f32.mrf.mxu0
      %v1720 = vadd.f32 %v1551, %v1719
      %1721 = vdwg.mxu0
      %1722 = vmatpush.bf16.msra.mxu0 %v1343
      %1723 = vmatpush.bf16.msra.mxu0 %v1342
      %1724 = vmatpush.bf16.msra.mxu0 %v1341
      %1725 = vmatpush.bf16.msra.mxu0 %v1340
      %1726 = vmatpush.bf16.msra.mxu0 %v1339
      %1727 = vmatpush.bf16.msra.mxu0 %v1338
      %1728 = vmatpush.bf16.msra.mxu0 %v1337
      %1729 = vmatpush.bf16.msra.mxu0 %v1336
      %1730 = vmatmul.bf16.gmra.mxu0 %v938
      %v1731 = vpop.f32.mrf.mxu0
      %v1732 = vadd.f32 %v1563, %v1731
      %v1733 = vpop.f32.mrf.mxu0
      %v1734 = vadd.f32 %v1565, %v1733
      %1735 = vmatmul.bf16.gmra.mxu0 %v942
      %v1736 = vpop.f32.mrf.mxu0
      %v1737 = vadd.f32 %v1568, %v1736
      %v1738 = vpop.f32.mrf.mxu0
      %v1739 = vadd.f32 %v1570, %v1738
      %1740 = vmatmul.bf16.gmra.mxu0 %v946
      %v1741 = vpop.f32.mrf.mxu0
      %v1742 = vadd.f32 %v1573, %v1741
      %v1743 = vpop.f32.mrf.mxu0
      %v1744 = vadd.f32 %v1575, %v1743
      %1745 = vmatmul.bf16.gmra.mxu0 %v950
      %v1746 = vpop.f32.mrf.mxu0
      %v1747 = vadd.f32 %v1578, %v1746
      %v1748 = vpop.f32.mrf.mxu0
      %v1749 = vadd.f32 %v1580, %v1748
      %1750 = vmatmul.bf16.gmra.mxu0 %v954
      %v1751 = vpop.f32.mrf.mxu0
      %v1752 = vadd.f32 %v1583, %v1751
      %v1753 = vpop.f32.mrf.mxu0
      %v1754 = vadd.f32 %v1585, %v1753
      %1755 = vmatmul.bf16.gmra.mxu0 %v958
      %v1756 = vpop.f32.mrf.mxu0
      %v1757 = vadd.f32 %v1588, %v1756
      %v1758 = vpop.f32.mrf.mxu0
      %v1759 = vadd.f32 %v1590, %v1758
      %1760 = vmatmul.bf16.gmra.mxu0 %v962
      %v1761 = vpop.f32.mrf.mxu0
      %v1762 = vadd.f32 %v1593, %v1761
      %v1763 = vpop.f32.mrf.mxu0
      %v1764 = vadd.f32 %v1595, %v1763
      %1765 = vmatmul.bf16.gmra.mxu0 %v966
      %v1766 = vpop.f32.mrf.mxu0
      %v1767 = vadd.f32 %v1598, %v1766
      %v1768 = vpop.f32.mrf.mxu0
      %v1769 = vadd.f32 %v1600, %v1768
      %1770 = vmatmul.bf16.gmra.mxu0 %v970
      %v1771 = vpop.f32.mrf.mxu0
      %v1772 = vadd.f32 %v1603, %v1771
      %v1773 = vpop.f32.mrf.mxu0
      %v1774 = vadd.f32 %v1605, %v1773
      %1775 = vmatmul.bf16.gmra.mxu0 %v974
      %v1776 = vpop.f32.mrf.mxu0
      %v1777 = vadd.f32 %v1608, %v1776
      %v1778 = vpop.f32.mrf.mxu0
      %v1779 = vadd.f32 %v1610, %v1778
      %1780 = vmatmul.bf16.gmra.mxu0 %v978
      %v1781 = vpop.f32.mrf.mxu0
      %v1782 = vadd.f32 %v1613, %v1781
      %v1783 = vpop.f32.mrf.mxu0
      %v1784 = vadd.f32 %v1615, %v1783
      %1785 = vmatmul.bf16.gmra.mxu0 %v982
      %v1786 = vpop.f32.mrf.mxu0
      %v1787 = vadd.f32 %v1618, %v1786
      %v1788 = vpop.f32.mrf.mxu0
      %v1789 = vadd.f32 %v1620, %v1788
      %1790 = vmatmul.bf16.gmra.mxu0 %v986
      %v1791 = vpop.f32.mrf.mxu0
      %v1792 = vadd.f32 %v1623, %v1791
      %v1793 = vpop.f32.mrf.mxu0
      %v1794 = vadd.f32 %v1625, %v1793
      %1795 = vmatmul.bf16.gmra.mxu0 %v990
      %v1796 = vpop.f32.mrf.mxu0
      %v1797 = vadd.f32 %v1628, %v1796
      %v1798 = vpop.f32.mrf.mxu0
      %v1799 = vadd.f32 %v1630, %v1798
      %1800 = vmatmul.bf16.gmra.mxu0 %v994
      %v1801 = vpop.f32.mrf.mxu0
      %v1802 = vadd.f32 %v1633, %v1801
      %v1803 = vpop.f32.mrf.mxu0
      %v1804 = vadd.f32 %v1635, %v1803
      %1805 = vmatmul.bf16.gmra.mxu0 %v998
      %v1806 = vpop.f32.mrf.mxu0
      %v1807 = vadd.f32 %v1638, %v1806
      %v1808 = vpop.f32.mrf.mxu0
      %v1809 = vadd.f32 %v1640, %v1808
      %1810 = vmatmul.bf16.gmra.mxu0 %v1002
      %v1811 = vpop.f32.mrf.mxu0
      %v1812 = vadd.f32 %v1643, %v1811
      %v1813 = vpop.f32.mrf.mxu0
      %v1814 = vadd.f32 %v1645, %v1813
      %1815 = vmatmul.bf16.gmra.mxu0 %v1006
      %v1816 = vpop.f32.mrf.mxu0
      %v1817 = vadd.f32 %v1648, %v1816
      %v1818 = vpop.f32.mrf.mxu0
      %v1819 = vadd.f32 %v1650, %v1818
      %1820 = vmatmul.bf16.gmra.mxu0 %v1010
      %v1821 = vpop.f32.mrf.mxu0
      %v1822 = vadd.f32 %v1653, %v1821
      %v1823 = vpop.f32.mrf.mxu0
      %v1824 = vadd.f32 %v1655, %v1823
      %1825 = vmatmul.bf16.gmra.mxu0 %v1014
      %v1826 = vpop.f32.mrf.mxu0
      %v1827 = vadd.f32 %v1658, %v1826
      %v1828 = vpop.f32.mrf.mxu0
      %v1829 = vadd.f32 %v1660, %v1828
      %1830 = vmatmul.bf16.gmra.mxu0 %v1018
      %v1831 = vpop.f32.mrf.mxu0
      %v1832 = vadd.f32 %v1663, %v1831
      %v1833 = vpop.f32.mrf.mxu0
      %v1834 = vadd.f32 %v1665, %v1833
      %1835 = vmatmul.bf16.gmra.mxu0 %v1022
      %v1836 = vpop.f32.mrf.mxu0
      %v1837 = vadd.f32 %v1668, %v1836
      %v1838 = vpop.f32.mrf.mxu0
      %v1839 = vadd.f32 %v1670, %v1838
      %1840 = vmatmul.bf16.gmra.mxu0 %v1026
      %v1841 = vpop.f32.mrf.mxu0
      %v1842 = vadd.f32 %v1673, %v1841
      %v1843 = vpop.f32.mrf.mxu0
      %v1844 = vadd.f32 %v1675, %v1843
      %1845 = vmatmul.bf16.gmra.mxu0 %v1030
      %v1846 = vpop.f32.mrf.mxu0
      %v1847 = vadd.f32 %v1678, %v1846
      %v1848 = vpop.f32.mrf.mxu0
      %v1849 = vadd.f32 %v1680, %v1848
      %1850 = vmatmul.bf16.gmra.mxu0 %v1034
      %v1851 = vpop.f32.mrf.mxu0
      %v1852 = vadd.f32 %v1683, %v1851
      %v1853 = vpop.f32.mrf.mxu0
      %v1854 = vadd.f32 %v1685, %v1853
      %1855 = vmatmul.bf16.gmra.mxu0 %v1038
      %v1856 = vpop.f32.mrf.mxu0
      %v1857 = vadd.f32 %v1688, %v1856
      %v1858 = vpop.f32.mrf.mxu0
      %v1859 = vadd.f32 %v1690, %v1858
      %1860 = vmatmul.bf16.gmra.mxu0 %v1042
      %v1861 = vpop.f32.mrf.mxu0
      %v1862 = vadd.f32 %v1693, %v1861
      %v1863 = vpop.f32.mrf.mxu0
      %v1864 = vadd.f32 %v1695, %v1863
      %1865 = vmatmul.bf16.gmra.mxu0 %v1046
      %v1866 = vpop.f32.mrf.mxu0
      %v1867 = vadd.f32 %v1698, %v1866
      %v1868 = vpop.f32.mrf.mxu0
      %v1869 = vadd.f32 %v1700, %v1868
      %1870 = vmatmul.bf16.gmra.mxu0 %v1050
      %v1871 = vpop.f32.mrf.mxu0
      %v1872 = vadd.f32 %v1703, %v1871
      %v1873 = vpop.f32.mrf.mxu0
      %v1874 = vadd.f32 %v1705, %v1873
      %1875 = vmatmul.bf16.gmra.mxu0 %v1054
      %v1876 = vpop.f32.mrf.mxu0
      %v1877 = vadd.f32 %v1708, %v1876
      %v1878 = vpop.f32.mrf.mxu0
      %v1879 = vadd.f32 %v1710, %v1878
      %1880 = vmatmul.bf16.gmra.mxu0 %v1058
      %v1881 = vpop.f32.mrf.mxu0
      %v1882 = vadd.f32 %v1713, %v1881
      %v1883 = vpop.f32.mrf.mxu0
      %v1884 = vadd.f32 %v1715, %v1883
      %1885 = vmatmul.bf16.gmra.mxu0 %v1062
      %v1886 = vpop.f32.mrf.mxu0
      %v1887 = vadd.f32 %v1718, %v1886
      %v1888 = vpop.f32.mrf.mxu0
      %v1889 = vadd.f32 %v1720, %v1888
      %1890 = vdwg.mxu0
      %1891 = vmatpush.bf16.msra.mxu0 %v1351
      %1892 = vmatpush.bf16.msra.mxu0 %v1350
      %1893 = vmatpush.bf16.msra.mxu0 %v1349
      %1894 = vmatpush.bf16.msra.mxu0 %v1348
      %1895 = vmatpush.bf16.msra.mxu0 %v1347
      %1896 = vmatpush.bf16.msra.mxu0 %v1346
      %1897 = vmatpush.bf16.msra.mxu0 %v1345
      %1898 = vmatpush.bf16.msra.mxu0 %v1344
      %1899 = vmatmul.bf16.gmra.mxu0 %v939
      %v1900 = vpop.f32.mrf.mxu0
      %v1901 = vadd.f32 %v1732, %v1900
      %v1902 = vpop.f32.mrf.mxu0
      %v1903 = vadd.f32 %v1734, %v1902
      %1904 = vmatmul.bf16.gmra.mxu0 %v943
      %v1905 = vpop.f32.mrf.mxu0
      %v1906 = vadd.f32 %v1737, %v1905
      %v1907 = vpop.f32.mrf.mxu0
      %v1908 = vadd.f32 %v1739, %v1907
      %1909 = vmatmul.bf16.gmra.mxu0 %v947
      %v1910 = vpop.f32.mrf.mxu0
      %v1911 = vadd.f32 %v1742, %v1910
      %v1912 = vpop.f32.mrf.mxu0
      %v1913 = vadd.f32 %v1744, %v1912
      %1914 = vmatmul.bf16.gmra.mxu0 %v951
      %v1915 = vpop.f32.mrf.mxu0
      %v1916 = vadd.f32 %v1747, %v1915
      %v1917 = vpop.f32.mrf.mxu0
      %v1918 = vadd.f32 %v1749, %v1917
      %1919 = vmatmul.bf16.gmra.mxu0 %v955
      %v1920 = vpop.f32.mrf.mxu0
      %v1921 = vadd.f32 %v1752, %v1920
      %v1922 = vpop.f32.mrf.mxu0
      %v1923 = vadd.f32 %v1754, %v1922
      %1924 = vmatmul.bf16.gmra.mxu0 %v959
      %v1925 = vpop.f32.mrf.mxu0
      %v1926 = vadd.f32 %v1757, %v1925
      %v1927 = vpop.f32.mrf.mxu0
      %v1928 = vadd.f32 %v1759, %v1927
      %1929 = vmatmul.bf16.gmra.mxu0 %v963
      %v1930 = vpop.f32.mrf.mxu0
      %v1931 = vadd.f32 %v1762, %v1930
      %v1932 = vpop.f32.mrf.mxu0
      %v1933 = vadd.f32 %v1764, %v1932
      %1934 = vmatmul.bf16.gmra.mxu0 %v967
      %v1935 = vpop.f32.mrf.mxu0
      %v1936 = vadd.f32 %v1767, %v1935
      %v1937 = vpop.f32.mrf.mxu0
      %v1938 = vadd.f32 %v1769, %v1937
      %1939 = vmatmul.bf16.gmra.mxu0 %v971
      %v1940 = vpop.f32.mrf.mxu0
      %v1941 = vadd.f32 %v1772, %v1940
      %v1942 = vpop.f32.mrf.mxu0
      %v1943 = vadd.f32 %v1774, %v1942
      %1944 = vmatmul.bf16.gmra.mxu0 %v975
      %v1945 = vpop.f32.mrf.mxu0
      %v1946 = vadd.f32 %v1777, %v1945
      %v1947 = vpop.f32.mrf.mxu0
      %v1948 = vadd.f32 %v1779, %v1947
      %1949 = vmatmul.bf16.gmra.mxu0 %v979
      %v1950 = vpop.f32.mrf.mxu0
      %v1951 = vadd.f32 %v1782, %v1950
      %v1952 = vpop.f32.mrf.mxu0
      %v1953 = vadd.f32 %v1784, %v1952
      %1954 = vmatmul.bf16.gmra.mxu0 %v983
      %v1955 = vpop.f32.mrf.mxu0
      %v1956 = vadd.f32 %v1787, %v1955
      %v1957 = vpop.f32.mrf.mxu0
      %v1958 = vadd.f32 %v1789, %v1957
      %1959 = vmatmul.bf16.gmra.mxu0 %v987
      %v1960 = vpop.f32.mrf.mxu0
      %v1961 = vadd.f32 %v1792, %v1960
      %v1962 = vpop.f32.mrf.mxu0
      %v1963 = vadd.f32 %v1794, %v1962
      %1964 = vmatmul.bf16.gmra.mxu0 %v991
      %v1965 = vpop.f32.mrf.mxu0
      %v1966 = vadd.f32 %v1797, %v1965
      %v1967 = vpop.f32.mrf.mxu0
      %v1968 = vadd.f32 %v1799, %v1967
      %1969 = vmatmul.bf16.gmra.mxu0 %v995
      %v1970 = vpop.f32.mrf.mxu0
      %v1971 = vadd.f32 %v1802, %v1970
      %v1972 = vpop.f32.mrf.mxu0
      %v1973 = vadd.f32 %v1804, %v1972
      %1974 = vmatmul.bf16.gmra.mxu0 %v999
      %v1975 = vpop.f32.mrf.mxu0
      %v1976 = vadd.f32 %v1807, %v1975
      %v1977 = vpop.f32.mrf.mxu0
      %v1978 = vadd.f32 %v1809, %v1977
      %1979 = vmatmul.bf16.gmra.mxu0 %v1003
      %v1980 = vpop.f32.mrf.mxu0
      %v1981 = vadd.f32 %v1812, %v1980
      %v1982 = vpop.f32.mrf.mxu0
      %v1983 = vadd.f32 %v1814, %v1982
      %1984 = vmatmul.bf16.gmra.mxu0 %v1007
      %v1985 = vpop.f32.mrf.mxu0
      %v1986 = vadd.f32 %v1817, %v1985
      %v1987 = vpop.f32.mrf.mxu0
      %v1988 = vadd.f32 %v1819, %v1987
      %1989 = vmatmul.bf16.gmra.mxu0 %v1011
      %v1990 = vpop.f32.mrf.mxu0
      %v1991 = vadd.f32 %v1822, %v1990
      %v1992 = vpop.f32.mrf.mxu0
      %v1993 = vadd.f32 %v1824, %v1992
      %1994 = vmatmul.bf16.gmra.mxu0 %v1015
      %v1995 = vpop.f32.mrf.mxu0
      %v1996 = vadd.f32 %v1827, %v1995
      %v1997 = vpop.f32.mrf.mxu0
      %v1998 = vadd.f32 %v1829, %v1997
      %1999 = vmatmul.bf16.gmra.mxu0 %v1019
      %v2000 = vpop.f32.mrf.mxu0
      %v2001 = vadd.f32 %v1832, %v2000
      %v2002 = vpop.f32.mrf.mxu0
      %v2003 = vadd.f32 %v1834, %v2002
      %2004 = vmatmul.bf16.gmra.mxu0 %v1023
      %v2005 = vpop.f32.mrf.mxu0
      %v2006 = vadd.f32 %v1837, %v2005
      %v2007 = vpop.f32.mrf.mxu0
      %v2008 = vadd.f32 %v1839, %v2007
      %2009 = vmatmul.bf16.gmra.mxu0 %v1027
      %v2010 = vpop.f32.mrf.mxu0
      %v2011 = vadd.f32 %v1842, %v2010
      %v2012 = vpop.f32.mrf.mxu0
      %v2013 = vadd.f32 %v1844, %v2012
      %2014 = vmatmul.bf16.gmra.mxu0 %v1031
      %v2015 = vpop.f32.mrf.mxu0
      %v2016 = vadd.f32 %v1847, %v2015
      %v2017 = vpop.f32.mrf.mxu0
      %v2018 = vadd.f32 %v1849, %v2017
      %2019 = vmatmul.bf16.gmra.mxu0 %v1035
      %v2020 = vpop.f32.mrf.mxu0
      %v2021 = vadd.f32 %v1852, %v2020
      %v2022 = vpop.f32.mrf.mxu0
      %v2023 = vadd.f32 %v1854, %v2022
      %2024 = vmatmul.bf16.gmra.mxu0 %v1039
      %v2025 = vpop.f32.mrf.mxu0
      %v2026 = vadd.f32 %v1857, %v2025
      %v2027 = vpop.f32.mrf.mxu0
      %v2028 = vadd.f32 %v1859, %v2027
      %2029 = vmatmul.bf16.gmra.mxu0 %v1043
      %v2030 = vpop.f32.mrf.mxu0
      %v2031 = vadd.f32 %v1862, %v2030
      %v2032 = vpop.f32.mrf.mxu0
      %v2033 = vadd.f32 %v1864, %v2032
      %2034 = vmatmul.bf16.gmra.mxu0 %v1047
      %v2035 = vpop.f32.mrf.mxu0
      %v2036 = vadd.f32 %v1867, %v2035
      %v2037 = vpop.f32.mrf.mxu0
      %v2038 = vadd.f32 %v1869, %v2037
      %2039 = vmatmul.bf16.gmra.mxu0 %v1051
      %v2040 = vpop.f32.mrf.mxu0
      %v2041 = vadd.f32 %v1872, %v2040
      %v2042 = vpop.f32.mrf.mxu0
      %v2043 = vadd.f32 %v1874, %v2042
      %2044 = vmatmul.bf16.gmra.mxu0 %v1055
      %v2045 = vpop.f32.mrf.mxu0
      %v2046 = vadd.f32 %v1877, %v2045
      %v2047 = vpop.f32.mrf.mxu0
      %v2048 = vadd.f32 %v1879, %v2047
      %2049 = vmatmul.bf16.gmra.mxu0 %v1059
      %v2050 = vpop.f32.mrf.mxu0
      %v2051 = vadd.f32 %v1882, %v2050
      %v2052 = vpop.f32.mrf.mxu0
      %v2053 = vadd.f32 %v1884, %v2052
      %2054 = vmatmul.bf16.gmra.mxu0 %v1063
      %v2055 = vpop.f32.mrf.mxu0
      %v2056 = vadd.f32 %v1887, %v2055
      %v2057 = vpop.f32.mrf.mxu0
      %v2058 = vadd.f32 %v1889, %v2057
      %2059 = vdwg.mxu0
      %v2060 = vadd.f32 %v296, %v1901
      %v2061 = vadd.f32 %v297, %v1903
      %v2062 = vadd.f32 %v298, %v1906
      %v2063 = vadd.f32 %v299, %v1908
      %v2064 = vadd.f32 %v300, %v1911
      %v2065 = vadd.f32 %v301, %v1913
      %v2066 = vadd.f32 %v302, %v1916
      %v2067 = vadd.f32 %v303, %v1918
      %v2068 = vadd.f32 %v304, %v1921
      %v2069 = vadd.f32 %v305, %v1923
      %v2070 = vadd.f32 %v306, %v1926
      %v2071 = vadd.f32 %v307, %v1928
      %v2072 = vadd.f32 %v308, %v1931
      %v2073 = vadd.f32 %v309, %v1933
      %v2074 = vadd.f32 %v310, %v1936
      %v2075 = vadd.f32 %v311, %v1938
      %v2076 = vadd.f32 %v312, %v1941
      %v2077 = vadd.f32 %v313, %v1943
      %v2078 = vadd.f32 %v314, %v1946
      %v2079 = vadd.f32 %v315, %v1948
      %v2080 = vadd.f32 %v316, %v1951
      %v2081 = vadd.f32 %v317, %v1953
      %v2082 = vadd.f32 %v318, %v1956
      %v2083 = vadd.f32 %v319, %v1958
      %v2084 = vadd.f32 %v320, %v1961
      %v2085 = vadd.f32 %v321, %v1963
      %v2086 = vadd.f32 %v322, %v1966
      %v2087 = vadd.f32 %v323, %v1968
      %v2088 = vadd.f32 %v324, %v1971
      %v2089 = vadd.f32 %v325, %v1973
      %v2090 = vadd.f32 %v326, %v1976
      %v2091 = vadd.f32 %v327, %v1978
      %v2092 = vadd.f32 %v328, %v1981
      %v2093 = vadd.f32 %v329, %v1983
      %v2094 = vadd.f32 %v330, %v1986
      %v2095 = vadd.f32 %v331, %v1988
      %v2096 = vadd.f32 %v332, %v1991
      %v2097 = vadd.f32 %v333, %v1993
      %v2098 = vadd.f32 %v334, %v1996
      %v2099 = vadd.f32 %v335, %v1998
      %v2100 = vadd.f32 %v336, %v2001
      %v2101 = vadd.f32 %v337, %v2003
      %v2102 = vadd.f32 %v338, %v2006
      %v2103 = vadd.f32 %v339, %v2008
      %v2104 = vadd.f32 %v340, %v2011
      %v2105 = vadd.f32 %v341, %v2013
      %v2106 = vadd.f32 %v342, %v2016
      %v2107 = vadd.f32 %v343, %v2018
      %v2108 = vadd.f32 %v344, %v2021
      %v2109 = vadd.f32 %v345, %v2023
      %v2110 = vadd.f32 %v346, %v2026
      %v2111 = vadd.f32 %v347, %v2028
      %v2112 = vadd.f32 %v348, %v2031
      %v2113 = vadd.f32 %v349, %v2033
      %v2114 = vadd.f32 %v350, %v2036
      %v2115 = vadd.f32 %v351, %v2038
      %v2116 = vadd.f32 %v352, %v2041
      %v2117 = vadd.f32 %v353, %v2043
      %v2118 = vadd.f32 %v354, %v2046
      %v2119 = vadd.f32 %v355, %v2048
      %v2120 = vadd.f32 %v356, %v2051
      %v2121 = vadd.f32 %v357, %v2053
      %v2122 = vadd.f32 %v358, %v2056
      %v2123 = vadd.f32 %v359, %v2058
      %vm2124 = vcmask 261120
      %2125 = vst.msk [vmem:[#allocation2] sm:$0xff] %vm2124, %v2060
      %2126 = vst.msk [vmem:[#allocation2 + $0x8] sm:$0xff] %vm2124, %v2061
      %2127 = vst.msk [vmem:[#allocation2 + $0x10] sm:$0xff] %vm2124, %v2062
      %2128 = vst.msk [vmem:[#allocation2 + $0x18] sm:$0xff] %vm2124, %v2063
      %2129 = vst.msk [vmem:[#allocation2 + $0x20] sm:$0xff] %vm2124, %v2064
      %2130 = vst.msk [vmem:[#allocation2 + $0x28] sm:$0xff] %vm2124, %v2065
      %2131 = vst.msk [vmem:[#allocation2 + $0x30] sm:$0xff] %vm2124, %v2066
      %2132 = vst.msk [vmem:[#allocation2 + $0x38] sm:$0xff] %vm2124, %v2067
      %2133 = vst.msk [vmem:[#allocation2 + $0x40] sm:$0xff] %vm2124, %v2068
      %2134 = vst.msk [vmem:[#allocation2 + $0x48] sm:$0xff] %vm2124, %v2069
      %2135 = vst.msk [vmem:[#allocation2 + $0x50] sm:$0xff] %vm2124, %v2070
      %2136 = vst.msk [vmem:[#allocation2 + $0x58] sm:$0xff] %vm2124, %v2071
      %2137 = vst.msk [vmem:[#allocation2 + $0x60] sm:$0xff] %vm2124, %v2072
      %2138 = vst.msk [vmem:[#allocation2 + $0x68] sm:$0xff] %vm2124, %v2073
      %2139 = vst.msk [vmem:[#allocation2 + $0x70] sm:$0xff] %vm2124, %v2074
      %2140 = vst.msk [vmem:[#allocation2 + $0x78] sm:$0xff] %vm2124, %v2075
      %2141 = vst.msk [vmem:[#allocation2 + $0x80] sm:$0xff] %vm2124, %v2076
      %2142 = vst.msk [vmem:[#allocation2 + $0x88] sm:$0xff] %vm2124, %v2077
      %2143 = vst.msk [vmem:[#allocation2 + $0x90] sm:$0xff] %vm2124, %v2078
      %2144 = vst.msk [vmem:[#allocation2 + $0x98] sm:$0xff] %vm2124, %v2079
      %2145 = vst.msk [vmem:[#allocation2 + $0xa0] sm:$0xff] %vm2124, %v2080
      %2146 = vst.msk [vmem:[#allocation2 + $0xa8] sm:$0xff] %vm2124, %v2081
      %2147 = vst.msk [vmem:[#allocation2 + $0xb0] sm:$0xff] %vm2124, %v2082
      %2148 = vst.msk [vmem:[#allocation2 + $0xb8] sm:$0xff] %vm2124, %v2083
      %2149 = vst.msk [vmem:[#allocation2 + $0xc0] sm:$0xff] %vm2124, %v2084
      %2150 = vst.msk [vmem:[#allocation2 + $0xc8] sm:$0xff] %vm2124, %v2085
      %2151 = vst.msk [vmem:[#allocation2 + $0xd0] sm:$0xff] %vm2124, %v2086
      %2152 = vst.msk [vmem:[#allocation2 + $0xd8] sm:$0xff] %vm2124, %v2087
      %2153 = vst.msk [vmem:[#allocation2 + $0xe0] sm:$0xff] %vm2124, %v2088
      %2154 = vst.msk [vmem:[#allocation2 + $0xe8] sm:$0xff] %vm2124, %v2089
      %2155 = vst.msk [vmem:[#allocation2 + $0xf0] sm:$0xff] %vm2124, %v2090
      %2156 = vst.msk [vmem:[#allocation2 + $0xf8] sm:$0xff] %vm2124, %v2091
      %2157 = vst.msk [vmem:[#allocation2 + $0x100] sm:$0xff] %vm2124, %v2092
      %2158 = vst.msk [vmem:[#allocation2 + $0x108] sm:$0xff] %vm2124, %v2093
      %2159 = vst.msk [vmem:[#allocation2 + $0x110] sm:$0xff] %vm2124, %v2094
      %2160 = vst.msk [vmem:[#allocation2 + $0x118] sm:$0xff] %vm2124, %v2095
      %2161 = vst.msk [vmem:[#allocation2 + $0x120] sm:$0xff] %vm2124, %v2096
      %2162 = vst.msk [vmem:[#allocation2 + $0x128] sm:$0xff] %vm2124, %v2097
      %2163 = vst.msk [vmem:[#allocation2 + $0x130] sm:$0xff] %vm2124, %v2098
      %2164 = vst.msk [vmem:[#allocation2 + $0x138] sm:$0xff] %vm2124, %v2099
      %2165 = vst.msk [vmem:[#allocation2 + $0x140] sm:$0xff] %vm2124, %v2100
      %2166 = vst.msk [vmem:[#allocation2 + $0x148] sm:$0xff] %vm2124, %v2101
      %2167 = vst.msk [vmem:[#allocation2 + $0x150] sm:$0xff] %vm2124, %v2102
      %2168 = vst.msk [vmem:[#allocation2 + $0x158] sm:$0xff] %vm2124, %v2103
      %2169 = vst.msk [vmem:[#allocation2 + $0x160] sm:$0xff] %vm2124, %v2104
      %2170 = vst.msk [vmem:[#allocation2 + $0x168] sm:$0xff] %vm2124, %v2105
      %2171 = vst.msk [vmem:[#allocation2 + $0x170] sm:$0xff] %vm2124, %v2106
      %2172 = vst.msk [vmem:[#allocation2 + $0x178] sm:$0xff] %vm2124, %v2107
      %2173 = vst.msk [vmem:[#allocation2 + $0x180] sm:$0xff] %vm2124, %v2108
      %2174 = vst.msk [vmem:[#allocation2 + $0x188] sm:$0xff] %vm2124, %v2109
      %2175 = vst.msk [vmem:[#allocation2 + $0x190] sm:$0xff] %vm2124, %v2110
      %2176 = vst.msk [vmem:[#allocation2 + $0x198] sm:$0xff] %vm2124, %v2111
      %2177 = vst.msk [vmem:[#allocation2 + $0x1a0] sm:$0xff] %vm2124, %v2112
      %2178 = vst.msk [vmem:[#allocation2 + $0x1a8] sm:$0xff] %vm2124, %v2113
      %2179 = vst.msk [vmem:[#allocation2 + $0x1b0] sm:$0xff] %vm2124, %v2114
      %2180 = vst.msk [vmem:[#allocation2 + $0x1b8] sm:$0xff] %vm2124, %v2115
      %2181 = vst.msk [vmem:[#allocation2 + $0x1c0] sm:$0xff] %vm2124, %v2116
      %2182 = vst.msk [vmem:[#allocation2 + $0x1c8] sm:$0xff] %vm2124, %v2117
      %2183 = vst.msk [vmem:[#allocation2 + $0x1d0] sm:$0xff] %vm2124, %v2118
      %2184 = vst.msk [vmem:[#allocation2 + $0x1d8] sm:$0xff] %vm2124, %v2119
      %2185 = vst.msk [vmem:[#allocation2 + $0x1e0] sm:$0xff] %vm2124, %v2120
      %2186 = vst.msk [vmem:[#allocation2 + $0x1e8] sm:$0xff] %vm2124, %v2121
      %2187 = vst.msk [vmem:[#allocation2 + $0x1f0] sm:$0xff] %vm2124, %v2122
      %2188 = vst.msk [vmem:[#allocation2 + $0x1f8] sm:$0xff] %vm2124, %v2123
      // Predicated region
      $region37: #{fine_encoder_forward.11} parent=31 // pred_check
        %p2189 = pneg %p227
      $region38: #{fine_encoder_forward.11} parent=31 // pred_check_branch
        %2191 = sbr.rel (%p2189) target = $region40
      $region39: #{fine_encoder_forward.11} parent=31 // pred_region
        %v2192 = vld [vmem:[#allocation2] sm:$0xff]
        %v2193 = vld [vmem:[#allocation2 + $0x8] sm:$0xff]
        %v2194 = vld [vmem:[#allocation2 + $0x10] sm:$0xff]
        %v2195 = vld [vmem:[#allocation2 + $0x18] sm:$0xff]
        %v2196 = vld [vmem:[#allocation2 + $0x20] sm:$0xff]
        %v2197 = vld [vmem:[#allocation2 + $0x28] sm:$0xff]
        %v2198 = vld [vmem:[#allocation2 + $0x30] sm:$0xff]
        %v2199 = vld [vmem:[#allocation2 + $0x38] sm:$0xff]
        %v2200 = vld [vmem:[#allocation2 + $0x40] sm:$0xff]
        %v2201 = vld [vmem:[#allocation2 + $0x48] sm:$0xff]
        %v2202 = vld [vmem:[#allocation2 + $0x50] sm:$0xff]
        %v2203 = vld [vmem:[#allocation2 + $0x58] sm:$0xff]
        %v2204 = vld [vmem:[#allocation2 + $0x60] sm:$0xff]
        %v2205 = vld [vmem:[#allocation2 + $0x68] sm:$0xff]
        %v2206 = vld [vmem:[#allocation2 + $0x70] sm:$0xff]
        %v2207 = vld [vmem:[#allocation2 + $0x78] sm:$0xff]
        %v2208 = vld [vmem:[#allocation2 + $0x80] sm:$0xff]
        %v2209 = vld [vmem:[#allocation2 + $0x88] sm:$0xff]
        %v2210 = vld [vmem:[#allocation2 + $0x90] sm:$0xff]
        %v2211 = vld [vmem:[#allocation2 + $0x98] sm:$0xff]
        %v2212 = vld [vmem:[#allocation2 + $0xa0] sm:$0xff]
        %v2213 = vld [vmem:[#allocation2 + $0xa8] sm:$0xff]
        %v2214 = vld [vmem:[#allocation2 + $0xb0] sm:$0xff]
        %v2215 = vld [vmem:[#allocation2 + $0xb8] sm:$0xff]
        %v2216 = vld [vmem:[#allocation2 + $0xc0] sm:$0xff]
        %v2217 = vld [vmem:[#allocation2 + $0xc8] sm:$0xff]
        %v2218 = vld [vmem:[#allocation2 + $0xd0] sm:$0xff]
        %v2219 = vld [vmem:[#allocation2 + $0xd8] sm:$0xff]
        %v2220 = vld [vmem:[#allocation2 + $0xe0] sm:$0xff]
        %v2221 = vld [vmem:[#allocation2 + $0xe8] sm:$0xff]
        %v2222 = vld [vmem:[#allocation2 + $0xf0] sm:$0xff]
        %v2223 = vld [vmem:[#allocation2 + $0xf8] sm:$0xff]
        %v2224 = vld [vmem:[#allocation2 + $0x100] sm:$0xff]
        %v2225 = vld [vmem:[#allocation2 + $0x108] sm:$0xff]
        %v2226 = vld [vmem:[#allocation2 + $0x110] sm:$0xff]
        %v2227 = vld [vmem:[#allocation2 + $0x118] sm:$0xff]
        %v2228 = vld [vmem:[#allocation2 + $0x120] sm:$0xff]
        %v2229 = vld [vmem:[#allocation2 + $0x128] sm:$0xff]
        %v2230 = vld [vmem:[#allocation2 + $0x130] sm:$0xff]
        %v2231 = vld [vmem:[#allocation2 + $0x138] sm:$0xff]
        %v2232 = vld [vmem:[#allocation2 + $0x140] sm:$0xff]
        %v2233 = vld [vmem:[#allocation2 + $0x148] sm:$0xff]
        %v2234 = vld [vmem:[#allocation2 + $0x150] sm:$0xff]
        %v2235 = vld [vmem:[#allocation2 + $0x158] sm:$0xff]
        %v2236 = vld [vmem:[#allocation2 + $0x160] sm:$0xff]
        %v2237 = vld [vmem:[#allocation2 + $0x168] sm:$0xff]
        %v2238 = vld [vmem:[#allocation2 + $0x170] sm:$0xff]
        %v2239 = vld [vmem:[#allocation2 + $0x178] sm:$0xff]
        %v2240 = vld [vmem:[#allocation2 + $0x180] sm:$0xff]
        %v2241 = vld [vmem:[#allocation2 + $0x188] sm:$0xff]
        %v2242 = vld [vmem:[#allocation2 + $0x190] sm:$0xff]
        %v2243 = vld [vmem:[#allocation2 + $0x198] sm:$0xff]
        %v2244 = vld [vmem:[#allocation2 + $0x1a0] sm:$0xff]
        %v2245 = vld [vmem:[#allocation2 + $0x1a8] sm:$0xff]
        %v2246 = vld [vmem:[#allocation2 + $0x1b0] sm:$0xff]
        %v2247 = vld [vmem:[#allocation2 + $0x1b8] sm:$0xff]
        %v2248 = vld [vmem:[#allocation2 + $0x1c0] sm:$0xff]
        %v2249 = vld [vmem:[#allocation2 + $0x1c8] sm:$0xff]
        %v2250 = vld [vmem:[#allocation2 + $0x1d0] sm:$0xff]
        %v2251 = vld [vmem:[#allocation2 + $0x1d8] sm:$0xff]
        %v2252 = vld [vmem:[#allocation2 + $0x1e0] sm:$0xff]
        %v2253 = vld [vmem:[#allocation2 + $0x1e8] sm:$0xff]
        %v2254 = vld [vmem:[#allocation2 + $0x1f0] sm:$0xff]
        %v2255 = vld [vmem:[#allocation2 + $0x1f8] sm:$0xff]
        %v2256 = vld [vmem:[%s2] sm:$0x1]
        %v2258 = vperm.slane %v2256, 0
        %v2260 = vadd.f32 %v2192, %v2258
        %v2261 = vadd.f32 %v2193, %v2258
        %v2262 = vadd.f32 %v2194, %v2258
        %v2263 = vadd.f32 %v2195, %v2258
        %v2264 = vadd.f32 %v2196, %v2258
        %v2265 = vadd.f32 %v2197, %v2258
        %v2266 = vadd.f32 %v2198, %v2258
        %v2267 = vadd.f32 %v2199, %v2258
        %v2268 = vadd.f32 %v2200, %v2258
        %v2269 = vadd.f32 %v2201, %v2258
        %v2270 = vadd.f32 %v2202, %v2258
        %v2271 = vadd.f32 %v2203, %v2258
        %v2272 = vadd.f32 %v2204, %v2258
        %v2273 = vadd.f32 %v2205, %v2258
        %v2274 = vadd.f32 %v2206, %v2258
        %v2275 = vadd.f32 %v2207, %v2258
        %v2276 = vadd.f32 %v2208, %v2258
        %v2277 = vadd.f32 %v2209, %v2258
        %v2278 = vadd.f32 %v2210, %v2258
        %v2279 = vadd.f32 %v2211, %v2258
        %v2280 = vadd.f32 %v2212, %v2258
        %v2281 = vadd.f32 %v2213, %v2258
        %v2282 = vadd.f32 %v2214, %v2258
        %v2283 = vadd.f32 %v2215, %v2258
        %v2284 = vadd.f32 %v2216, %v2258
        %v2285 = vadd.f32 %v2217, %v2258
        %v2286 = vadd.f32 %v2218, %v2258
        %v2287 = vadd.f32 %v2219, %v2258
        %v2288 = vadd.f32 %v2220, %v2258
        %v2289 = vadd.f32 %v2221, %v2258
        %v2290 = vadd.f32 %v2222, %v2258
        %v2291 = vadd.f32 %v2223, %v2258
        %v2292 = vadd.f32 %v2224, %v2258
        %v2293 = vadd.f32 %v2225, %v2258
        %v2294 = vadd.f32 %v2226, %v2258
        %v2295 = vadd.f32 %v2227, %v2258
        %v2296 = vadd.f32 %v2228, %v2258
        %v2297 = vadd.f32 %v2229, %v2258
        %v2298 = vadd.f32 %v2230, %v2258
        %v2299 = vadd.f32 %v2231, %v2258
        %v2300 = vadd.f32 %v2232, %v2258
        %v2301 = vadd.f32 %v2233, %v2258
        %v2302 = vadd.f32 %v2234, %v2258
        %v2303 = vadd.f32 %v2235, %v2258
        %v2304 = vadd.f32 %v2236, %v2258
        %v2305 = vadd.f32 %v2237, %v2258
        %v2306 = vadd.f32 %v2238, %v2258
        %v2307 = vadd.f32 %v2239, %v2258
        %v2308 = vadd.f32 %v2240, %v2258
        %v2309 = vadd.f32 %v2241, %v2258
        %v2310 = vadd.f32 %v2242, %v2258
        %v2311 = vadd.f32 %v2243, %v2258
        %v2312 = vadd.f32 %v2244, %v2258
        %v2313 = vadd.f32 %v2245, %v2258
        %v2314 = vadd.f32 %v2246, %v2258
        %v2315 = vadd.f32 %v2247, %v2258
        %v2316 = vadd.f32 %v2248, %v2258
        %v2317 = vadd.f32 %v2249, %v2258
        %v2318 = vadd.f32 %v2250, %v2258
        %v2319 = vadd.f32 %v2251, %v2258
        %v2320 = vadd.f32 %v2252, %v2258
        %v2321 = vadd.f32 %v2253, %v2258
        %v2322 = vadd.f32 %v2254, %v2258
        %v2323 = vadd.f32 %v2255, %v2258
        %v2324 = vpack.c.bf16 %v2260, %v2260
        %v2325 = vpack.c.bf16 %v2261, %v2261
        %v2326 = vpack.c.bf16 %v2262, %v2262
        %v2327 = vpack.c.bf16 %v2263, %v2263
        %v2328 = vpack.c.bf16 %v2264, %v2264
        %v2329 = vpack.c.bf16 %v2265, %v2265
        %v2330 = vpack.c.bf16 %v2266, %v2266
        %v2331 = vpack.c.bf16 %v2267, %v2267
        %v2332 = vpack.c.bf16 %v2268, %v2268
        %v2333 = vpack.c.bf16 %v2269, %v2269
        %v2334 = vpack.c.bf16 %v2270, %v2270
        %v2335 = vpack.c.bf16 %v2271, %v2271
        %v2336 = vpack.c.bf16 %v2272, %v2272
        %v2337 = vpack.c.bf16 %v2273, %v2273
        %v2338 = vpack.c.bf16 %v2274, %v2274
        %v2339 = vpack.c.bf16 %v2275, %v2275
        %v2340 = vpack.c.bf16 %v2276, %v2276
        %v2341 = vpack.c.bf16 %v2277, %v2277
        %v2342 = vpack.c.bf16 %v2278, %v2278
        %v2343 = vpack.c.bf16 %v2279, %v2279
        %v2344 = vpack.c.bf16 %v2280, %v2280
        %v2345 = vpack.c.bf16 %v2281, %v2281
        %v2346 = vpack.c.bf16 %v2282, %v2282
        %v2347 = vpack.c.bf16 %v2283, %v2283
        %v2348 = vpack.c.bf16 %v2284, %v2284
        %v2349 = vpack.c.bf16 %v2285, %v2285
        %v2350 = vpack.c.bf16 %v2286, %v2286
        %v2351 = vpack.c.bf16 %v2287, %v2287
        %v2352 = vpack.c.bf16 %v2288, %v2288
        %v2353 = vpack.c.bf16 %v2289, %v2289
        %v2354 = vpack.c.bf16 %v2290, %v2290
        %v2355 = vpack.c.bf16 %v2291, %v2291
        %v2356 = vpack.c.bf16 %v2292, %v2292
        %v2357 = vpack.c.bf16 %v2293, %v2293
        %v2358 = vpack.c.bf16 %v2294, %v2294
        %v2359 = vpack.c.bf16 %v2295, %v2295
        %v2360 = vpack.c.bf16 %v2296, %v2296
        %v2361 = vpack.c.bf16 %v2297, %v2297
        %v2362 = vpack.c.bf16 %v2298, %v2298
        %v2363 = vpack.c.bf16 %v2299, %v2299
        %v2364 = vpack.c.bf16 %v2300, %v2300
        %v2365 = vpack.c.bf16 %v2301, %v2301
        %v2366 = vpack.c.bf16 %v2302, %v2302
        %v2367 = vpack.c.bf16 %v2303, %v2303
        %v2368 = vpack.c.bf16 %v2304, %v2304
        %v2369 = vpack.c.bf16 %v2305, %v2305
        %v2370 = vpack.c.bf16 %v2306, %v2306
        %v2371 = vpack.c.bf16 %v2307, %v2307
        %v2372 = vpack.c.bf16 %v2308, %v2308
        %v2373 = vpack.c.bf16 %v2309, %v2309
        %v2374 = vpack.c.bf16 %v2310, %v2310
        %v2375 = vpack.c.bf16 %v2311, %v2311
        %v2376 = vpack.c.bf16 %v2312, %v2312
        %v2377 = vpack.c.bf16 %v2313, %v2313
        %v2378 = vpack.c.bf16 %v2314, %v2314
        %v2379 = vpack.c.bf16 %v2315, %v2315
        %v2380 = vpack.c.bf16 %v2316, %v2316
        %v2381 = vpack.c.bf16 %v2317, %v2317
        %v2382 = vpack.c.bf16 %v2318, %v2318
        %v2383 = vpack.c.bf16 %v2319, %v2319
        %v2384 = vpack.c.bf16 %v2320, %v2320
        %v2385 = vpack.c.bf16 %v2321, %v2321
        %v2386 = vpack.c.bf16 %v2322, %v2322
        %v2387 = vpack.c.bf16 %v2323, %v2323
        %vm2388 = vcmask 257024
        %2389 = vst.msk [vmem:[%s225] sm:$0xf] %vm2388, %v2324
        %2390 = vst.msk [vmem:[%s225 + $0x4] sm:$0xf] %vm2388, %v2325
        %2391 = vst.msk [vmem:[%s225 + $0x8] sm:$0xf] %vm2388, %v2326
        %2392 = vst.msk [vmem:[%s225 + $0xc] sm:$0xf] %vm2388, %v2327
        %2393 = vst.msk [vmem:[%s225 + $0x10] sm:$0xf] %vm2388, %v2328
        %2394 = vst.msk [vmem:[%s225 + $0x14] sm:$0xf] %vm2388, %v2329
        %2395 = vst.msk [vmem:[%s225 + $0x18] sm:$0xf] %vm2388, %v2330
        %2396 = vst.msk [vmem:[%s225 + $0x1c] sm:$0xf] %vm2388, %v2331
        %2397 = vst.msk [vmem:[%s225 + $0x20] sm:$0xf] %vm2388, %v2332
        %2398 = vst.msk [vmem:[%s225 + $0x24] sm:$0xf] %vm2388, %v2333
        %2399 = vst.msk [vmem:[%s225 + $0x28] sm:$0xf] %vm2388, %v2334
        %2400 = vst.msk [vmem:[%s225 + $0x2c] sm:$0xf] %vm2388, %v2335
        %2401 = vst.msk [vmem:[%s225 + $0x30] sm:$0xf] %vm2388, %v2336
        %2402 = vst.msk [vmem:[%s225 + $0x34] sm:$0xf] %vm2388, %v2337
        %2403 = vst.msk [vmem:[%s225 + $0x38] sm:$0xf] %vm2388, %v2338
        %2404 = vst.msk [vmem:[%s225 + $0x3c] sm:$0xf] %vm2388, %v2339
        %2405 = vst.msk [vmem:[%s225 + $0x40] sm:$0xf] %vm2388, %v2340
        %2406 = vst.msk [vmem:[%s225 + $0x44] sm:$0xf] %vm2388, %v2341
        %2407 = vst.msk [vmem:[%s225 + $0x48] sm:$0xf] %vm2388, %v2342
        %2408 = vst.msk [vmem:[%s225 + $0x4c] sm:$0xf] %vm2388, %v2343
        %2409 = vst.msk [vmem:[%s225 + $0x50] sm:$0xf] %vm2388, %v2344
        %2410 = vst.msk [vmem:[%s225 + $0x54] sm:$0xf] %vm2388, %v2345
        %2411 = vst.msk [vmem:[%s225 + $0x58] sm:$0xf] %vm2388, %v2346
        %2412 = vst.msk [vmem:[%s225 + $0x5c] sm:$0xf] %vm2388, %v2347
        %2413 = vst.msk [vmem:[%s225 + $0x60] sm:$0xf] %vm2388, %v2348
        %2414 = vst.msk [vmem:[%s225 + $0x64] sm:$0xf] %vm2388, %v2349
        %2415 = vst.msk [vmem:[%s225 + $0x68] sm:$0xf] %vm2388, %v2350
        %2416 = vst.msk [vmem:[%s225 + $0x6c] sm:$0xf] %vm2388, %v2351
        %2417 = vst.msk [vmem:[%s225 + $0x70] sm:$0xf] %vm2388, %v2352
        %2418 = vst.msk [vmem:[%s225 + $0x74] sm:$0xf] %vm2388, %v2353
        %2419 = vst.msk [vmem:[%s225 + $0x78] sm:$0xf] %vm2388, %v2354
        %2420 = vst.msk [vmem:[%s225 + $0x7c] sm:$0xf] %vm2388, %v2355
        %2421 = vst.msk [vmem:[%s225 + $0x80] sm:$0xf] %vm2388, %v2356
        %2422 = vst.msk [vmem:[%s225 + $0x84] sm:$0xf] %vm2388, %v2357
        %2423 = vst.msk [vmem:[%s225 + $0x88] sm:$0xf] %vm2388, %v2358
        %2424 = vst.msk [vmem:[%s225 + $0x8c] sm:$0xf] %vm2388, %v2359
        %2425 = vst.msk [vmem:[%s225 + $0x90] sm:$0xf] %vm2388, %v2360
        %2426 = vst.msk [vmem:[%s225 + $0x94] sm:$0xf] %vm2388, %v2361
        %2427 = vst.msk [vmem:[%s225 + $0x98] sm:$0xf] %vm2388, %v2362
        %2428 = vst.msk [vmem:[%s225 + $0x9c] sm:$0xf] %vm2388, %v2363
        %2429 = vst.msk [vmem:[%s225 + $0xa0] sm:$0xf] %vm2388, %v2364
        %2430 = vst.msk [vmem:[%s225 + $0xa4] sm:$0xf] %vm2388, %v2365
        %2431 = vst.msk [vmem:[%s225 + $0xa8] sm:$0xf] %vm2388, %v2366
        %2432 = vst.msk [vmem:[%s225 + $0xac] sm:$0xf] %vm2388, %v2367
        %2433 = vst.msk [vmem:[%s225 + $0xb0] sm:$0xf] %vm2388, %v2368
        %2434 = vst.msk [vmem:[%s225 + $0xb4] sm:$0xf] %vm2388, %v2369
        %2435 = vst.msk [vmem:[%s225 + $0xb8] sm:$0xf] %vm2388, %v2370
        %2436 = vst.msk [vmem:[%s225 + $0xbc] sm:$0xf] %vm2388, %v2371
        %2437 = vst.msk [vmem:[%s225 + $0xc0] sm:$0xf] %vm2388, %v2372
        %2438 = vst.msk [vmem:[%s225 + $0xc4] sm:$0xf] %vm2388, %v2373
        %2439 = vst.msk [vmem:[%s225 + $0xc8] sm:$0xf] %vm2388, %v2374
        %2440 = vst.msk [vmem:[%s225 + $0xcc] sm:$0xf] %vm2388, %v2375
        %2441 = vst.msk [vmem:[%s225 + $0xd0] sm:$0xf] %vm2388, %v2376
        %2442 = vst.msk [vmem:[%s225 + $0xd4] sm:$0xf] %vm2388, %v2377
        %2443 = vst.msk [vmem:[%s225 + $0xd8] sm:$0xf] %vm2388, %v2378
        %2444 = vst.msk [vmem:[%s225 + $0xdc] sm:$0xf] %vm2388, %v2379
        %2445 = vst.msk [vmem:[%s225 + $0xe0] sm:$0xf] %vm2388, %v2380
        %2446 = vst.msk [vmem:[%s225 + $0xe4] sm:$0xf] %vm2388, %v2381
        %2447 = vst.msk [vmem:[%s225 + $0xe8] sm:$0xf] %vm2388, %v2382
        %2448 = vst.msk [vmem:[%s225 + $0xec] sm:$0xf] %vm2388, %v2383
        %2449 = vst.msk [vmem:[%s225 + $0xf0] sm:$0xf] %vm2388, %v2384
        %2450 = vst.msk [vmem:[%s225 + $0xf4] sm:$0xf] %vm2388, %v2385
        %2451 = vst.msk [vmem:[%s225 + $0xf8] sm:$0xf] %vm2388, %v2386
        %2452 = vst.msk [vmem:[%s225 + $0xfc] sm:$0xf] %vm2388, %v2387
      $region40: #{fine_encoder_forward.11} parent=31 // pred_fallthru
        _
      %s2453 = smul.u32 64, %s18
      %p2454 = scmp.lt.s32.totalorder %s2453, 127
      %s2455 = scalar_select %p2454, %s2453, 127
      %s2456 = smul.addr %s2455, 4
      %s2457 = scalar_lea.vmem %s3, %s2456
      // Predicated region
      $region41: #{fine_encoder_forward.11} parent=31 // pred_check
        %p2458 = pneg %p119
      $region42: #{fine_encoder_forward.11} parent=31 // pred_check_branch
        %2460 = sbr.rel (%p2458) target = $region44
      $region43: #{fine_encoder_forward.11} parent=31 // pred_region
        %s2461 = smul.u32 64, %s18
      $region44: #{fine_encoder_forward.11} parent=31 // pred_fallthru
        _
    $region32: #{fine_encoder_forward.11} parent=5 // pred_fallthru
      _
    %p2462 = scmp.le.s32.totalorder 2, %s9
    // Predicated region
    $region45: #{fine_encoder_forward.11} parent=5 // pred_check
      %p2463 = pneg %p2462
    $region46: #{fine_encoder_forward.11} parent=5 // pred_check_branch
      %2465 = sbr.rel (%p2463) target = $region48
    $region47: #{fine_encoder_forward.11} parent=5 // pred_region
      %s2466 = ssub.s32 %s9, 2
      // Predicated region
      $region49: #{fine_encoder_forward.11} parent=47 // pred_check
        %p2467 = pneg %p125
      $region50: #{fine_encoder_forward.11} parent=47 // pred_check_branch
        %2469 = sbr.rel (%p2467) target = $region52
      $region51: #{fine_encoder_forward.11} parent=47 // pred_region
        %s2470 = smul.u32 64, %s20
        %p2471 = scmp.lt.s32.totalorder %s2470, 127
        %s2472 = scalar_select %p2471, %s2470, 127
        %s2473 = smul.addr %s2472, 4
        %s2474 = scalar_lea.vmem %s3, %s2473
      $region52: #{fine_encoder_forward.11} parent=47 // pred_fallthru
        _
    $region48: #{fine_encoder_forward.11} parent=5 // pred_fallthru
      _
  $region6: #{fine_encoder_forward.11} parent=0 // loop_footer
    %s13 = sadd.s32 1, %s9
  $region7: #{fine_encoder_forward.11} parent=0 // loop_footer_branch
    %8 = sbr.rel target = $region3
  $region8: #{fine_encoder_forward.11} parent=0 // loop_exit
    _

// kernel: fine_encoder_forward.12
$region0: #{fine_encoder_forward.12}
  #allocation0 [shape = 'u32[]', space=smem, size = 0x4, offset = 0x4, fixed_abs, tag = 'smem constant byte address 0x4 - core index']
  #allocation1 [shape = 'u32[72,128]{1,0:T(1,128)}', space=vmem, size = 0x9000, scoped, tag = 'internal scratch']
  %s0 = inlined_call_operand.vmem [shape: bf16[8,32,128], index: 0, kind: input, shape index: {}]
  %s1 = inlined_call_operand.vmem [shape: bf16[32,128], index: 1, kind: output, shape index: {}]
  %s2 = sld [smem:[#allocation0]]
  $region14: #{fine_encoder_forward.12} parent=0
    _
  %s4 = ssub.s32 1, %s2
  %s5 = scalar_select 0, %s4, %s2
  // Predicated region
  $region2: #{fine_encoder_forward.12} parent=0 // pred_check
    _
  $region3: #{fine_encoder_forward.12} parent=0 // pred_check_branch
    %7 = sbr.rel (0) target = $region5
  $region4: #{fine_encoder_forward.12} parent=0 // pred_region
    _
  $region5: #{fine_encoder_forward.12} parent=0 // pred_fallthru
    _
  %v8 = vld [vmem:[%s0] sm:$0xf]
  %v9 = vld [vmem:[%s0 + $0x4] sm:$0xf]
  %v10 = vld [vmem:[%s0 + $0x8] sm:$0xf]
  %v11 = vld [vmem:[%s0 + $0xc] sm:$0xf]
  %s12 = scalar_lea.vmem %s0, 16
  %v13 = vld [vmem:[%s12] sm:$0xf]
  %v14 = vld [vmem:[%s12 + $0x4] sm:$0xf]
  %v15 = vld [vmem:[%s12 + $0x8] sm:$0xf]
  %v16 = vld [vmem:[%s12 + $0xc] sm:$0xf]
  %v17 = vunpack.c.l.bf16 %v8
  %v18 = vunpack.c.l.bf16 %v9
  %v19 = vunpack.c.l.bf16 %v10
  %v20 = vunpack.c.l.bf16 %v11
  %v21 = vunpack.c.l.bf16 %v13
  %v22 = vunpack.c.l.bf16 %v14
  %v23 = vunpack.c.l.bf16 %v15
  %v24 = vunpack.c.l.bf16 %v16
  %v25 = vmax.f32 %v17, %v21
  %v26 = vmax.f32 %v18, %v22
  %v27 = vmax.f32 %v19, %v23
  %v28 = vmax.f32 %v20, %v24
  %v29 = vpack.c.bf16 %v25, %v25
  %v30 = vpack.c.bf16 %v26, %v26
  %v31 = vpack.c.bf16 %v27, %v27
  %v32 = vpack.c.bf16 %v28, %v28
  %s33 = scalar_lea.vmem %s0, 32
  %v34 = vld [vmem:[%s33] sm:$0xf]
  %v35 = vld [vmem:[%s33 + $0x4] sm:$0xf]
  %v36 = vld [vmem:[%s33 + $0x8] sm:$0xf]
  %v37 = vld [vmem:[%s33 + $0xc] sm:$0xf]
  %v38 = vunpack.c.l.bf16 %v29
  %v39 = vunpack.c.l.bf16 %v30
  %v40 = vunpack.c.l.bf16 %v31
  %v41 = vunpack.c.l.bf16 %v32
  %v42 = vunpack.c.l.bf16 %v34
  %v43 = vunpack.c.l.bf16 %v35
  %v44 = vunpack.c.l.bf16 %v36
  %v45 = vunpack.c.l.bf16 %v37
  %v46 = vmax.f32 %v38, %v42
  %v47 = vmax.f32 %v39, %v43
  %v48 = vmax.f32 %v40, %v44
  %v49 = vmax.f32 %v41, %v45
  %v50 = vpack.c.bf16 %v46, %v46
  %v51 = vpack.c.bf16 %v47, %v47
  %v52 = vpack.c.bf16 %v48, %v48
  %v53 = vpack.c.bf16 %v49, %v49
  %s54 = scalar_lea.vmem %s0, 48
  %v55 = vld [vmem:[%s54] sm:$0xf]
  %v56 = vld [vmem:[%s54 + $0x4] sm:$0xf]
  %v57 = vld [vmem:[%s54 + $0x8] sm:$0xf]
  %v58 = vld [vmem:[%s54 + $0xc] sm:$0xf]
  %v59 = vunpack.c.l.bf16 %v50
  %v60 = vunpack.c.l.bf16 %v51
  %v61 = vunpack.c.l.bf16 %v52
  %v62 = vunpack.c.l.bf16 %v53
  %v63 = vunpack.c.l.bf16 %v55
  %v64 = vunpack.c.l.bf16 %v56
  %v65 = vunpack.c.l.bf16 %v57
  %v66 = vunpack.c.l.bf16 %v58
  %v67 = vmax.f32 %v59, %v63
  %v68 = vmax.f32 %v60, %v64
  %v69 = vmax.f32 %v61, %v65
  %v70 = vmax.f32 %v62, %v66
  %v71 = vpack.c.bf16 %v67, %v67
  %v72 = vpack.c.bf16 %v68, %v68
  %v73 = vpack.c.bf16 %v69, %v69
  %v74 = vpack.c.bf16 %v70, %v70
  %s75 = scalar_lea.vmem %s0, 64
  %v76 = vld [vmem:[%s75] sm:$0xf]
  %v77 = vld [vmem:[%s75 + $0x4] sm:$0xf]
  %v78 = vld [vmem:[%s75 + $0x8] sm:$0xf]
  %v79 = vld [vmem:[%s75 + $0xc] sm:$0xf]
  %v80 = vunpack.c.l.bf16 %v71
  %v81 = vunpack.c.l.bf16 %v72
  %v82 = vunpack.c.l.bf16 %v73
  %v83 = vunpack.c.l.bf16 %v74
  %v84 = vunpack.c.l.bf16 %v76
  %v85 = vunpack.c.l.bf16 %v77
  %v86 = vunpack.c.l.bf16 %v78
  %v87 = vunpack.c.l.bf16 %v79
  %v88 = vmax.f32 %v80, %v84
  %v89 = vmax.f32 %v81, %v85
  %v90 = vmax.f32 %v82, %v86
  %v91 = vmax.f32 %v83, %v87
  %v92 = vpack.c.bf16 %v88, %v88
  %v93 = vpack.c.bf16 %v89, %v89
  %v94 = vpack.c.bf16 %v90, %v90
  %v95 = vpack.c.bf16 %v91, %v91
  %s96 = scalar_lea.vmem %s0, 80
  %v97 = vld [vmem:[%s96] sm:$0xf]
  %v98 = vld [vmem:[%s96 + $0x4] sm:$0xf]
  %v99 = vld [vmem:[%s96 + $0x8] sm:$0xf]
  %v100 = vld [vmem:[%s96 + $0xc] sm:$0xf]
  %v101 = vunpack.c.l.bf16 %v92
  %v102 = vunpack.c.l.bf16 %v93
  %v103 = vunpack.c.l.bf16 %v94
  %v104 = vunpack.c.l.bf16 %v95
  %v105 = vunpack.c.l.bf16 %v97
  %v106 = vunpack.c.l.bf16 %v98
  %v107 = vunpack.c.l.bf16 %v99
  %v108 = vunpack.c.l.bf16 %v100
  %v109 = vmax.f32 %v101, %v105
  %v110 = vmax.f32 %v102, %v106
  %v111 = vmax.f32 %v103, %v107
  %v112 = vmax.f32 %v104, %v108
  %v113 = vpack.c.bf16 %v109, %v109
  %v114 = vpack.c.bf16 %v110, %v110
  %v115 = vpack.c.bf16 %v111, %v111
  %v116 = vpack.c.bf16 %v112, %v112
  %s117 = scalar_lea.vmem %s0, 96
  %v118 = vld [vmem:[%s117] sm:$0xf]
  %v119 = vld [vmem:[%s117 + $0x4] sm:$0xf]
  %v120 = vld [vmem:[%s117 + $0x8] sm:$0xf]
  %v121 = vld [vmem:[%s117 + $0xc] sm:$0xf]
  %v122 = vunpack.c.l.bf16 %v113
  %v123 = vunpack.c.l.bf16 %v114
  %v124 = vunpack.c.l.bf16 %v115
  %v125 = vunpack.c.l.bf16 %v116
  %v126 = vunpack.c.l.bf16 %v118
  %v127 = vunpack.c.l.bf16 %v119
  %v128 = vunpack.c.l.bf16 %v120
  %v129 = vunpack.c.l.bf16 %v121
  %v130 = vmax.f32 %v122, %v126
  %v131 = vmax.f32 %v123, %v127
  %v132 = vmax.f32 %v124, %v128
  %v133 = vmax.f32 %v125, %v129
  %v134 = vpack.c.bf16 %v130, %v130
  %v135 = vpack.c.bf16 %v131, %v131
  %v136 = vpack.c.bf16 %v132, %v132
  %v137 = vpack.c.bf16 %v133, %v133
  %s138 = scalar_lea.vmem %s0, 112
  %v139 = vld [vmem:[%s138] sm:$0xf]
  %v140 = vld [vmem:[%s138 + $0x4] sm:$0xf]
  %v141 = vld [vmem:[%s138 + $0x8] sm:$0xf]
  %v142 = vld [vmem:[%s138 + $0xc] sm:$0xf]
  %v143 = vunpack.c.l.bf16 %v134
  %v144 = vunpack.c.l.bf16 %v135
  %v145 = vunpack.c.l.bf16 %v136
  %v146 = vunpack.c.l.bf16 %v137
  %v147 = vunpack.c.l.bf16 %v139
  %v148 = vunpack.c.l.bf16 %v140
  %v149 = vunpack.c.l.bf16 %v141
  %v150 = vunpack.c.l.bf16 %v142
  %v151 = vmax.f32 %v143, %v147
  %v152 = vmax.f32 %v144, %v148
  %v153 = vmax.f32 %v145, %v149
  %v154 = vmax.f32 %v146, %v150
  %v155 = vpack.c.bf16 %v151, %v151
  %v156 = vpack.c.bf16 %v152, %v152
  %v157 = vpack.c.bf16 %v153, %v153
  %v158 = vpack.c.bf16 %v154, %v154
  %159 = vst [vmem:[%s1] sm:$0xf] %v155
  %160 = vst [vmem:[%s1 + $0x4] sm:$0xf] %v156
  %161 = vst [vmem:[%s1 + $0x8] sm:$0xf] %v157
  %162 = vst [vmem:[%s1 + $0xc] sm:$0xf] %v158
  // Predicated region
  $region6: #{fine_encoder_forward.12} parent=0 // pred_check
    _
  $region7: #{fine_encoder_forward.12} parent=0 // pred_check_branch
    %164 = sbr.rel (0) target = $region9
  $region8: #{fine_encoder_forward.12} parent=0 // pred_region
    _
  $region9: #{fine_encoder_forward.12} parent=0 // pred_fallthru
    _
  // Predicated region
  $region10: #{fine_encoder_forward.12} parent=0 // pred_check
    _
  $region11: #{fine_encoder_forward.12} parent=0 // pred_check_branch
    %166 = sbr.rel (0) target = $region13
  $region12: #{fine_encoder_forward.12} parent=0 // pred_region
    _
  $region13: #{fine_encoder_forward.12} parent=0 // pred_fallthru
    _

// kernel: fine_encoder_forward.13
$region0: #{fine_encoder_forward.13}
  #allocation0 [shape = 'u32[]', space=smem, size = 0x4, offset = 0x4, fixed_abs, tag = 'smem constant byte address 0x4 - core index']
  #allocation1 [shape = 'u32[72,128]{1,0:T(1,128)}', space=vmem, size = 0x9000, scoped, tag = 'internal scratch']
  #allocation2 [shape = 'f32[128,32]{1,0:T(8,128)}', space=vmem, size = 0x10000, scoped, tag = 'scratch operand']
  %s0 = inlined_call_operand.vmem [shape: bf16[128,32], index: 0, kind: input, shape index: {}]
  %s1 = inlined_call_operand.vmem [shape: bf16[32,32], index: 1, kind: input, shape index: {}]
  %s2 = inlined_call_operand.vmem [shape: f32[1,32], index: 2, kind: input, shape index: {}]
  %s3 = inlined_call_operand.vmem [shape: bf16[128,32], index: 3, kind: output, shape index: {}]
  %s4 = sld [smem:[#allocation0]]
  $region30: #{fine_encoder_forward.13} parent=0
    _
  %s6 = ssub.s32 1, %s4
  %s7 = scalar_select 0, %s6, %s4
  // Predicated region
  $region2: #{fine_encoder_forward.13} parent=0 // pred_check
    _
  $region3: #{fine_encoder_forward.13} parent=0 // pred_check_branch
    %9 = sbr.rel (0) target = $region5
  $region4: #{fine_encoder_forward.13} parent=0 // pred_region
    _
  $region5: #{fine_encoder_forward.13} parent=0 // pred_fallthru
    _
  // Predicated region
  $region6: #{fine_encoder_forward.13} parent=0 // pred_check
    _
  $region7: #{fine_encoder_forward.13} parent=0 // pred_check_branch
    %11 = sbr.rel (0) target = $region9
  $region8: #{fine_encoder_forward.13} parent=0 // pred_region
    _
  $region9: #{fine_encoder_forward.13} parent=0 // pred_fallthru
    _
  // Predicated region
  $region10: #{fine_encoder_forward.13} parent=0 // pred_check
    _
  $region11: #{fine_encoder_forward.13} parent=0 // pred_check_branch
    %13 = sbr.rel (0) target = $region13
  $region12: #{fine_encoder_forward.13} parent=0 // pred_region
    _
  $region13: #{fine_encoder_forward.13} parent=0 // pred_fallthru
    _
  %p15 = scmp.eq.s32.totalorder 0, 0
  // Predicated region
  $region14: #{fine_encoder_forward.13} parent=0 // pred_check
    %p16 = pneg %p15
  $region15: #{fine_encoder_forward.13} parent=0 // pred_check_branch
    %18 = sbr.rel (%p16) target = $region17
  $region16: #{fine_encoder_forward.13} parent=0 // pred_region
    %vm19 = vcmask 261120
    %20 = vst.msk [vmem:[#allocation2] sm:$0xff] %vm19, 0.0
    %21 = vst.msk [vmem:[#allocation2 + $0x8] sm:$0xff] %vm19, 0.0
    %22 = vst.msk [vmem:[#allocation2 + $0x10] sm:$0xff] %vm19, 0.0
    %23 = vst.msk [vmem:[#allocation2 + $0x18] sm:$0xff] %vm19, 0.0
    %24 = vst.msk [vmem:[#allocation2 + $0x20] sm:$0xff] %vm19, 0.0
    %25 = vst.msk [vmem:[#allocation2 + $0x28] sm:$0xff] %vm19, 0.0
    %26 = vst.msk [vmem:[#allocation2 + $0x30] sm:$0xff] %vm19, 0.0
    %27 = vst.msk [vmem:[#allocation2 + $0x38] sm:$0xff] %vm19, 0.0
    %28 = vst.msk [vmem:[#allocation2 + $0x40] sm:$0xff] %vm19, 0.0
    %29 = vst.msk [vmem:[#allocation2 + $0x48] sm:$0xff] %vm19, 0.0
    %30 = vst.msk [vmem:[#allocation2 + $0x50] sm:$0xff] %vm19, 0.0
    %31 = vst.msk [vmem:[#allocation2 + $0x58] sm:$0xff] %vm19, 0.0
    %32 = vst.msk [vmem:[#allocation2 + $0x60] sm:$0xff] %vm19, 0.0
    %33 = vst.msk [vmem:[#allocation2 + $0x68] sm:$0xff] %vm19, 0.0
    %34 = vst.msk [vmem:[#allocation2 + $0x70] sm:$0xff] %vm19, 0.0
    %35 = vst.msk [vmem:[#allocation2 + $0x78] sm:$0xff] %vm19, 0.0
  $region17: #{fine_encoder_forward.13} parent=0 // pred_fallthru
    _
  %v36 = vld [vmem:[#allocation2] sm:$0xff]
  %v37 = vld [vmem:[#allocation2 + $0x8] sm:$0xff]
  %v38 = vld [vmem:[#allocation2 + $0x10] sm:$0xff]
  %v39 = vld [vmem:[#allocation2 + $0x18] sm:$0xff]
  %v40 = vld [vmem:[#allocation2 + $0x20] sm:$0xff]
  %v41 = vld [vmem:[#allocation2 + $0x28] sm:$0xff]
  %v42 = vld [vmem:[#allocation2 + $0x30] sm:$0xff]
  %v43 = vld [vmem:[#allocation2 + $0x38] sm:$0xff]
  %v44 = vld [vmem:[#allocation2 + $0x40] sm:$0xff]
  %v45 = vld [vmem:[#allocation2 + $0x48] sm:$0xff]
  %v46 = vld [vmem:[#allocation2 + $0x50] sm:$0xff]
  %v47 = vld [vmem:[#allocation2 + $0x58] sm:$0xff]
  %v48 = vld [vmem:[#allocation2 + $0x60] sm:$0xff]
  %v49 = vld [vmem:[#allocation2 + $0x68] sm:$0xff]
  %v50 = vld [vmem:[#allocation2 + $0x70] sm:$0xff]
  %v51 = vld [vmem:[#allocation2 + $0x78] sm:$0xff]
  %v52 = vld [vmem:[%s0] sm:$0xf]
  %v53 = vld [vmem:[%s0 + $0x4] sm:$0xf]
  %v54 = vld [vmem:[%s0 + $0x8] sm:$0xf]
  %v55 = vld [vmem:[%s0 + $0xc] sm:$0xf]
  %v56 = vld [vmem:[%s0 + $0x10] sm:$0xf]
  %v57 = vld [vmem:[%s0 + $0x14] sm:$0xf]
  %v58 = vld [vmem:[%s0 + $0x18] sm:$0xf]
  %v59 = vld [vmem:[%s0 + $0x1c] sm:$0xf]
  %v60 = vld [vmem:[%s0 + $0x20] sm:$0xf]
  %v61 = vld [vmem:[%s0 + $0x24] sm:$0xf]
  %v62 = vld [vmem:[%s0 + $0x28] sm:$0xf]
  %v63 = vld [vmem:[%s0 + $0x2c] sm:$0xf]
  %v64 = vld [vmem:[%s0 + $0x30] sm:$0xf]
  %v65 = vld [vmem:[%s0 + $0x34] sm:$0xf]
  %v66 = vld [vmem:[%s0 + $0x38] sm:$0xf]
  %v67 = vld [vmem:[%s0 + $0x3c] sm:$0xf]
  %v68 = vld [vmem:[%s1] sm:$0xf]
  %v69 = vld [vmem:[%s1 + $0x4] sm:$0xf]
  %v70 = vld [vmem:[%s1 + $0x8] sm:$0xf]
  %v71 = vld [vmem:[%s1 + $0xc] sm:$0xf]
  %v88 = vunpack.c.l.b16 %v52
  %v89 = vunpack.c.l.b16 %v53
  %v90 = vunpack.c.l.b16 %v54
  %v91 = vunpack.c.l.b16 %v55
  %v92 = vunpack.c.l.b16 %v56
  %v93 = vunpack.c.l.b16 %v57
  %v94 = vunpack.c.l.b16 %v58
  %v95 = vunpack.c.l.b16 %v59
  %v96 = vunpack.c.l.b16 %v60
  %v97 = vunpack.c.l.b16 %v61
  %v98 = vunpack.c.l.b16 %v62
  %v99 = vunpack.c.l.b16 %v63
  %v100 = vunpack.c.l.b16 %v64
  %v101 = vunpack.c.l.b16 %v65
  %v102 = vunpack.c.l.b16 %v66
  %v103 = vunpack.c.l.b16 %v67
  %v104 = vpack.c.b16 %v89, %v88
  %v105 = vpack.c.b16 %v91, %v90
  %v106 = vpack.c.b16 %v93, %v92
  %v107 = vpack.c.b16 %v95, %v94
  %v108 = vpack.c.b16 %v97, %v96
  %v109 = vpack.c.b16 %v99, %v98
  %v110 = vpack.c.b16 %v101, %v100
  %v111 = vpack.c.b16 %v103, %v102
  %v116 = vunpack.c.l.b16 %v68
  %v117 = vunpack.c.l.b16 %v69
  %v118 = vunpack.c.l.b16 %v70
  %v119 = vunpack.c.l.b16 %v71
  %v120 = vpack.c.b16 %v117, %v116
  %v121 = vpack.c.b16 %v119, %v118
  %vm124 = vcmask 261120
  %v126 = vsel %vm124, %v104, 0
  %v129 = vsel %vm124, %v105, 0
  %v132 = vsel %vm124, %v106, 0
  %v135 = vsel %vm124, %v107, 0
  %v138 = vsel %vm124, %v108, 0
  %v141 = vsel %vm124, %v109, 0
  %v144 = vsel %vm124, %v110, 0
  %v147 = vsel %vm124, %v111, 0
  %149 = vmatpush.bf16.msra.mxu0 0
  %150 = vmatpush.bf16.msra.mxu0 0
  %151 = vmatpush.bf16.msra.mxu0 0
  %152 = vmatpush.bf16.msra.mxu0 0
  %153 = vmatpush.bf16.msra.mxu0 0
  %154 = vmatpush.bf16.msra.mxu0 0
  %155 = vmatpush.bf16.msra.mxu0 %v121
  %156 = vmatpush.bf16.msra.mxu0 %v120
  %157 = vmatmul.bf16.gmra.mxu0 %v126
  %v158 = vpop.f32.mrf.mxu0
  %v159 = vadd.f32 0.0, %v158
  %v160 = vpop.f32.mrf.mxu0
  %v161 = vadd.f32 0.0, %v160
  %162 = vmatmul.bf16.gmra.mxu0 %v129
  %v163 = vpop.f32.mrf.mxu0
  %v164 = vadd.f32 0.0, %v163
  %v165 = vpop.f32.mrf.mxu0
  %v166 = vadd.f32 0.0, %v165
  %167 = vmatmul.bf16.gmra.mxu0 %v132
  %v168 = vpop.f32.mrf.mxu0
  %v169 = vadd.f32 0.0, %v168
  %v170 = vpop.f32.mrf.mxu0
  %v171 = vadd.f32 0.0, %v170
  %172 = vmatmul.bf16.gmra.mxu0 %v135
  %v173 = vpop.f32.mrf.mxu0
  %v174 = vadd.f32 0.0, %v173
  %v175 = vpop.f32.mrf.mxu0
  %v176 = vadd.f32 0.0, %v175
  %177 = vmatmul.bf16.gmra.mxu0 %v138
  %v178 = vpop.f32.mrf.mxu0
  %v179 = vadd.f32 0.0, %v178
  %v180 = vpop.f32.mrf.mxu0
  %v181 = vadd.f32 0.0, %v180
  %182 = vmatmul.bf16.gmra.mxu0 %v141
  %v183 = vpop.f32.mrf.mxu0
  %v184 = vadd.f32 0.0, %v183
  %v185 = vpop.f32.mrf.mxu0
  %v186 = vadd.f32 0.0, %v185
  %187 = vmatmul.bf16.gmra.mxu0 %v144
  %v188 = vpop.f32.mrf.mxu0
  %v189 = vadd.f32 0.0, %v188
  %v190 = vpop.f32.mrf.mxu0
  %v191 = vadd.f32 0.0, %v190
  %192 = vmatmul.bf16.gmra.mxu0 %v147
  %v193 = vpop.f32.mrf.mxu0
  %v194 = vadd.f32 0.0, %v193
  %v195 = vpop.f32.mrf.mxu0
  %v196 = vadd.f32 0.0, %v195
  %197 = vdwg.mxu0
  %v198 = vadd.f32 %v36, %v159
  %v199 = vadd.f32 %v37, %v161
  %v200 = vadd.f32 %v38, %v164
  %v201 = vadd.f32 %v39, %v166
  %v202 = vadd.f32 %v40, %v169
  %v203 = vadd.f32 %v41, %v171
  %v204 = vadd.f32 %v42, %v174
  %v205 = vadd.f32 %v43, %v176
  %v206 = vadd.f32 %v44, %v179
  %v207 = vadd.f32 %v45, %v181
  %v208 = vadd.f32 %v46, %v184
  %v209 = vadd.f32 %v47, %v186
  %v210 = vadd.f32 %v48, %v189
  %v211 = vadd.f32 %v49, %v191
  %v212 = vadd.f32 %v50, %v194
  %v213 = vadd.f32 %v51, %v196
  %214 = vst.msk [vmem:[#allocation2] sm:$0xff] %vm124, %v198
  %215 = vst.msk [vmem:[#allocation2 + $0x8] sm:$0xff] %vm124, %v199
  %216 = vst.msk [vmem:[#allocation2 + $0x10] sm:$0xff] %vm124, %v200
  %217 = vst.msk [vmem:[#allocation2 + $0x18] sm:$0xff] %vm124, %v201
  %218 = vst.msk [vmem:[#allocation2 + $0x20] sm:$0xff] %vm124, %v202
  %219 = vst.msk [vmem:[#allocation2 + $0x28] sm:$0xff] %vm124, %v203
  %220 = vst.msk [vmem:[#allocation2 + $0x30] sm:$0xff] %vm124, %v204
  %221 = vst.msk [vmem:[#allocation2 + $0x38] sm:$0xff] %vm124, %v205
  %222 = vst.msk [vmem:[#allocation2 + $0x40] sm:$0xff] %vm124, %v206
  %223 = vst.msk [vmem:[#allocation2 + $0x48] sm:$0xff] %vm124, %v207
  %224 = vst.msk [vmem:[#allocation2 + $0x50] sm:$0xff] %vm124, %v208
  %225 = vst.msk [vmem:[#allocation2 + $0x58] sm:$0xff] %vm124, %v209
  %226 = vst.msk [vmem:[#allocation2 + $0x60] sm:$0xff] %vm124, %v210
  %227 = vst.msk [vmem:[#allocation2 + $0x68] sm:$0xff] %vm124, %v211
  %228 = vst.msk [vmem:[#allocation2 + $0x70] sm:$0xff] %vm124, %v212
  %229 = vst.msk [vmem:[#allocation2 + $0x78] sm:$0xff] %vm124, %v213
  // Predicated region
  $region18: #{fine_encoder_forward.13} parent=0 // pred_check
    %p230 = pneg %p15
  $region19: #{fine_encoder_forward.13} parent=0 // pred_check_branch
    %232 = sbr.rel (%p230) target = $region21
  $region20: #{fine_encoder_forward.13} parent=0 // pred_region
    %v233 = vld [vmem:[#allocation2] sm:$0xff]
    %v234 = vld [vmem:[#allocation2 + $0x8] sm:$0xff]
    %v235 = vld [vmem:[#allocation2 + $0x10] sm:$0xff]
    %v236 = vld [vmem:[#allocation2 + $0x18] sm:$0xff]
    %v237 = vld [vmem:[#allocation2 + $0x20] sm:$0xff]
    %v238 = vld [vmem:[#allocation2 + $0x28] sm:$0xff]
    %v239 = vld [vmem:[#allocation2 + $0x30] sm:$0xff]
    %v240 = vld [vmem:[#allocation2 + $0x38] sm:$0xff]
    %v241 = vld [vmem:[#allocation2 + $0x40] sm:$0xff]
    %v242 = vld [vmem:[#allocation2 + $0x48] sm:$0xff]
    %v243 = vld [vmem:[#allocation2 + $0x50] sm:$0xff]
    %v244 = vld [vmem:[#allocation2 + $0x58] sm:$0xff]
    %v245 = vld [vmem:[#allocation2 + $0x60] sm:$0xff]
    %v246 = vld [vmem:[#allocation2 + $0x68] sm:$0xff]
    %v247 = vld [vmem:[#allocation2 + $0x70] sm:$0xff]
    %v248 = vld [vmem:[#allocation2 + $0x78] sm:$0xff]
    %v249 = vld [vmem:[%s2] sm:$0x1]
    %v251 = vperm.slane %v249, 0
    %v253 = vadd.f32 %v233, %v251
    %v254 = vadd.f32 %v234, %v251
    %v255 = vadd.f32 %v235, %v251
    %v256 = vadd.f32 %v236, %v251
    %v257 = vadd.f32 %v237, %v251
    %v258 = vadd.f32 %v238, %v251
    %v259 = vadd.f32 %v239, %v251
    %v260 = vadd.f32 %v240, %v251
    %v261 = vadd.f32 %v241, %v251
    %v262 = vadd.f32 %v242, %v251
    %v263 = vadd.f32 %v243, %v251
    %v264 = vadd.f32 %v244, %v251
    %v265 = vadd.f32 %v245, %v251
    %v266 = vadd.f32 %v246, %v251
    %v267 = vadd.f32 %v247, %v251
    %v268 = vadd.f32 %v248, %v251
    %v269 = vmul.f32 %v253, 0.5
    %v270 = vmul.f32 %v254, 0.5
    %v271 = vmul.f32 %v255, 0.5
    %v272 = vmul.f32 %v256, 0.5
    %v273 = vmul.f32 %v257, 0.5
    %v274 = vmul.f32 %v258, 0.5
    %v275 = vmul.f32 %v259, 0.5
    %v276 = vmul.f32 %v260, 0.5
    %v277 = vmul.f32 %v261, 0.5
    %v278 = vmul.f32 %v262, 0.5
    %v279 = vmul.f32 %v263, 0.5
    %v280 = vmul.f32 %v264, 0.5
    %v281 = vmul.f32 %v265, 0.5
    %v282 = vmul.f32 %v266, 0.5
    %v283 = vmul.f32 %v267, 0.5
    %v284 = vmul.f32 %v268, 0.5
    %v285 = vmul.f32 %v253, 0.044715
    %v286 = vmul.f32 %v254, 0.044715
    %v287 = vmul.f32 %v255, 0.044715
    %v288 = vmul.f32 %v256, 0.044715
    %v289 = vmul.f32 %v257, 0.044715
    %v290 = vmul.f32 %v258, 0.044715
    %v291 = vmul.f32 %v259, 0.044715
    %v292 = vmul.f32 %v260, 0.044715
    %v293 = vmul.f32 %v261, 0.044715
    %v294 = vmul.f32 %v262, 0.044715
    %v295 = vmul.f32 %v263, 0.044715
    %v296 = vmul.f32 %v264, 0.044715
    %v297 = vmul.f32 %v265, 0.044715
    %v298 = vmul.f32 %v266, 0.044715
    %v299 = vmul.f32 %v267, 0.044715
    %v300 = vmul.f32 %v268, 0.044715
    %v301 = vmul.f32 %v285, %v253
    %v302 = vmul.f32 %v286, %v254
    %v303 = vmul.f32 %v287, %v255
    %v304 = vmul.f32 %v288, %v256
    %v305 = vmul.f32 %v289, %v257
    %v306 = vmul.f32 %v290, %v258
    %v307 = vmul.f32 %v291, %v259
    %v308 = vmul.f32 %v292, %v260
    %v309 = vmul.f32 %v293, %v261
    %v310 = vmul.f32 %v294, %v262
    %v311 = vmul.f32 %v295, %v263
    %v312 = vmul.f32 %v296, %v264
    %v313 = vmul.f32 %v297, %v265
    %v314 = vmul.f32 %v298, %v266
    %v315 = vmul.f32 %v299, %v267
    %v316 = vmul.f32 %v300, %v268
    %v317 = vmul.f32 %v301, %v253
    %v318 = vmul.f32 %v302, %v254
    %v319 = vmul.f32 %v303, %v255
    %v320 = vmul.f32 %v304, %v256
    %v321 = vmul.f32 %v305, %v257
    %v322 = vmul.f32 %v306, %v258
    %v323 = vmul.f32 %v307, %v259
    %v324 = vmul.f32 %v308, %v260
    %v325 = vmul.f32 %v309, %v261
    %v326 = vmul.f32 %v310, %v262
    %v327 = vmul.f32 %v311, %v263
    %v328 = vmul.f32 %v312, %v264
    %v329 = vmul.f32 %v313, %v265
    %v330 = vmul.f32 %v314, %v266
    %v331 = vmul.f32 %v315, %v267
    %v332 = vmul.f32 %v316, %v268
    %v333 = vadd.f32 %v253, %v317
    %v334 = vadd.f32 %v254, %v318
    %v335 = vadd.f32 %v255, %v319
    %v336 = vadd.f32 %v256, %v320
    %v337 = vadd.f32 %v257, %v321
    %v338 = vadd.f32 %v258, %v322
    %v339 = vadd.f32 %v259, %v323
    %v340 = vadd.f32 %v260, %v324
    %v341 = vadd.f32 %v261, %v325
    %v342 = vadd.f32 %v262, %v326
    %v343 = vadd.f32 %v263, %v327
    %v344 = vadd.f32 %v264, %v328
    %v345 = vadd.f32 %v265, %v329
    %v346 = vadd.f32 %v266, %v330
    %v347 = vadd.f32 %v267, %v331
    %v348 = vadd.f32 %v268, %v332
    %v349 = vmul.f32 %v333, 0.7978846
    %v350 = vmul.f32 %v334, 0.7978846
    %v351 = vmul.f32 %v335, 0.7978846
    %v352 = vmul.f32 %v336, 0.7978846
    %v353 = vmul.f32 %v337, 0.7978846
    %v354 = vmul.f32 %v338, 0.7978846
    %v355 = vmul.f32 %v339, 0.7978846
    %v356 = vmul.f32 %v340, 0.7978846
    %v357 = vmul.f32 %v341, 0.7978846
    %v358 = vmul.f32 %v342, 0.7978846
    %v359 = vmul.f32 %v343, 0.7978846
    %v360 = vmul.f32 %v344, 0.7978846
    %v361 = vmul.f32 %v345, 0.7978846
    %v362 = vmul.f32 %v346, 0.7978846
    %v363 = vmul.f32 %v347, 0.7978846
    %v364 = vmul.f32 %v348, 0.7978846
    %v365 = vtanh.pop %v349
    %v366 = vtanh.pop %v350
    %v367 = vtanh.pop %v351
    %v368 = vtanh.pop %v352
    %v369 = vtanh.pop %v353
    %v370 = vtanh.pop %v354
    %v371 = vtanh.pop %v355
    %v372 = vtanh.pop %v356
    %v373 = vtanh.pop %v357
    %v374 = vtanh.pop %v358
    %v375 = vtanh.pop %v359
    %v376 = vtanh.pop %v360
    %v377 = vtanh.pop %v361
    %v378 = vtanh.pop %v362
    %v379 = vtanh.pop %v363
    %v380 = vtanh.pop %v364
    %v381 = vadd.f32 %v365, 1.0
    %v382 = vadd.f32 %v366, 1.0
    %v383 = vadd.f32 %v367, 1.0
    %v384 = vadd.f32 %v368, 1.0
    %v385 = vadd.f32 %v369, 1.0
    %v386 = vadd.f32 %v370, 1.0
    %v387 = vadd.f32 %v371, 1.0
    %v388 = vadd.f32 %v372, 1.0
    %v389 = vadd.f32 %v373, 1.0
    %v390 = vadd.f32 %v374, 1.0
    %v391 = vadd.f32 %v375, 1.0
    %v392 = vadd.f32 %v376, 1.0
    %v393 = vadd.f32 %v377, 1.0
    %v394 = vadd.f32 %v378, 1.0
    %v395 = vadd.f32 %v379, 1.0
    %v396 = vadd.f32 %v380, 1.0
    %v397 = vmul.f32 %v269, %v381
    %v398 = vmul.f32 %v270, %v382
    %v399 = vmul.f32 %v271, %v383
    %v400 = vmul.f32 %v272, %v384
    %v401 = vmul.f32 %v273, %v385
    %v402 = vmul.f32 %v274, %v386
    %v403 = vmul.f32 %v275, %v387
    %v404 = vmul.f32 %v276, %v388
    %v405 = vmul.f32 %v277, %v389
    %v406 = vmul.f32 %v278, %v390
    %v407 = vmul.f32 %v279, %v391
    %v408 = vmul.f32 %v280, %v392
    %v409 = vmul.f32 %v281, %v393
    %v410 = vmul.f32 %v282, %v394
    %v411 = vmul.f32 %v283, %v395
    %v412 = vmul.f32 %v284, %v396
    %v413 = vpack.c.bf16 %v397, %v397
    %v414 = vpack.c.bf16 %v398, %v398
    %v415 = vpack.c.bf16 %v399, %v399
    %v416 = vpack.c.bf16 %v400, %v400
    %v417 = vpack.c.bf16 %v401, %v401
    %v418 = vpack.c.bf16 %v402, %v402
    %v419 = vpack.c.bf16 %v403, %v403
    %v420 = vpack.c.bf16 %v404, %v404
    %v421 = vpack.c.bf16 %v405, %v405
    %v422 = vpack.c.bf16 %v406, %v406
    %v423 = vpack.c.bf16 %v407, %v407
    %v424 = vpack.c.bf16 %v408, %v408
    %v425 = vpack.c.bf16 %v409, %v409
    %v426 = vpack.c.bf16 %v410, %v410
    %v427 = vpack.c.bf16 %v411, %v411
    %v428 = vpack.c.bf16 %v412, %v412
    %vm429 = vcmask 257024
    %430 = vst.msk [vmem:[%s3] sm:$0xf] %vm429, %v413
    %431 = vst.msk [vmem:[%s3 + $0x4] sm:$0xf] %vm429, %v414
    %432 = vst.msk [vmem:[%s3 + $0x8] sm:$0xf] %vm429, %v415
    %433 = vst.msk [vmem:[%s3 + $0xc] sm:$0xf] %vm429, %v416
    %434 = vst.msk [vmem:[%s3 + $0x10] sm:$0xf] %vm429, %v417
    %435 = vst.msk [vmem:[%s3 + $0x14] sm:$0xf] %vm429, %v418
    %436 = vst.msk [vmem:[%s3 + $0x18] sm:$0xf] %vm429, %v419
    %437 = vst.msk [vmem:[%s3 + $0x1c] sm:$0xf] %vm429, %v420
    %438 = vst.msk [vmem:[%s3 + $0x20] sm:$0xf] %vm429, %v421
    %439 = vst.msk [vmem:[%s3 + $0x24] sm:$0xf] %vm429, %v422
    %440 = vst.msk [vmem:[%s3 + $0x28] sm:$0xf] %vm429, %v423
    %441 = vst.msk [vmem:[%s3 + $0x2c] sm:$0xf] %vm429, %v424
    %442 = vst.msk [vmem:[%s3 + $0x30] sm:$0xf] %vm429, %v425
    %443 = vst.msk [vmem:[%s3 + $0x34] sm:$0xf] %vm429, %v426
    %444 = vst.msk [vmem:[%s3 + $0x38] sm:$0xf] %vm429, %v427
    %445 = vst.msk [vmem:[%s3 + $0x3c] sm:$0xf] %vm429, %v428
  $region21: #{fine_encoder_forward.13} parent=0 // pred_fallthru
    _
  // Predicated region
  $region22: #{fine_encoder_forward.13} parent=0 // pred_check
    _
  $region23: #{fine_encoder_forward.13} parent=0 // pred_check_branch
    %447 = sbr.rel (0) target = $region25
  $region24: #{fine_encoder_forward.13} parent=0 // pred_region
    _
  $region25: #{fine_encoder_forward.13} parent=0 // pred_fallthru
    _
  // Predicated region
  $region26: #{fine_encoder_forward.13} parent=0 // pred_check
    _
  $region27: #{fine_encoder_forward.13} parent=0 // pred_check_branch
    %449 = sbr.rel (0) target = $region29
  $region28: #{fine_encoder_forward.13} parent=0 // pred_region
    _
  $region29: #{fine_encoder_forward.13} parent=0 // pred_fallthru
    _

// kernel: fine_encoder_forward.17
$region0: #{fine_encoder_forward.17}
  #allocation0 [shape = 'u32[]', space=smem, size = 0x4, offset = 0x4, fixed_abs, tag = 'smem constant byte address 0x4 - core index']
  #allocation1 [shape = 'u32[72,128]{1,0:T(1,128)}', space=vmem, size = 0x9000, scoped, tag = 'internal scratch']
  %s0 = inlined_call_operand.vmem [shape: bf16[128,32], index: 0, kind: input, shape index: {}]
  %s1 = inlined_call_operand.vmem [shape: bf16[128,32], index: 1, kind: input, shape index: {}]
  %s2 = inlined_call_operand.vmem [shape: f32[128,32], index: 2, kind: input, shape index: {}]
  %s3 = inlined_call_operand.vmem [shape: bf16[32,32], index: 3, kind: input, shape index: {}]
  %s4 = inlined_call_operand.vmem [shape: f32[1,32], index: 4, kind: input, shape index: {}]
  %s5 = inlined_call_operand.vmem [shape: bf16[32,32], index: 5, kind: input, shape index: {}]
  %s6 = inlined_call_operand.vmem [shape: f32[1,32], index: 6, kind: input, shape index: {}]
  %s7 = inlined_call_operand.vmem [shape: bf16[32,32], index: 7, kind: input, shape index: {}]
  %s8 = inlined_call_operand.vmem [shape: bf16[32,32], index: 8, kind: input, shape index: {}]
  %s9 = inlined_call_operand.vmem [shape: f32[1,32], index: 9, kind: input, shape index: {}]
  %s10 = inlined_call_operand.hbm [shape: f32[128,32], index: 10, kind: output, shape index: {}]
  %s11 = sld [smem:[#allocation0]]
  $region50: #{fine_encoder_forward.17} parent=0
    _
  %s13 = ssub.s32 1, %s11
  %s14 = scalar_select 0, %s13, %s11
  $region1: #{fine_encoder_forward.17} parent=0
    #allocation2 [shape = 'u8[65536]{0}', space=vmem, size = 0x10000, scoped, tag = 'output window, operand 0, single buffered']
    #allocation3 [shape = 's32[1]{0}', space=sflag, size = 0x4, scoped, tag = 'scoped memory for fine_encoder_forward.17']
    %15 = vsyncpa [#allocation3], 0
    // Predicated region
    $region2: #{fine_encoder_forward.17} parent=1 // pred_check
      _
    $region3: #{fine_encoder_forward.17} parent=1 // pred_check_branch
      %17 = sbr.rel (0) target = $region5
    $region4: #{fine_encoder_forward.17} parent=1 // pred_region
      _
    $region5: #{fine_encoder_forward.17} parent=1 // pred_fallthru
      _
    // Predicated region
    $region6: #{fine_encoder_forward.17} parent=1 // pred_check
      _
    $region7: #{fine_encoder_forward.17} parent=1 // pred_check_branch
      %19 = sbr.rel (0) target = $region9
    $region8: #{fine_encoder_forward.17} parent=1 // pred_region
      _
    $region9: #{fine_encoder_forward.17} parent=1 // pred_fallthru
      _
    // Predicated region
    $region10: #{fine_encoder_forward.17} parent=1 // pred_check
      _
    $region11: #{fine_encoder_forward.17} parent=1 // pred_check_branch
      %21 = sbr.rel (0) target = $region13
    $region12: #{fine_encoder_forward.17} parent=1 // pred_region
      _
    $region13: #{fine_encoder_forward.17} parent=1 // pred_fallthru
      _
    // Predicated region
    $region14: #{fine_encoder_forward.17} parent=1 // pred_check
      _
    $region15: #{fine_encoder_forward.17} parent=1 // pred_check_branch
      %23 = sbr.rel (0) target = $region17
    $region16: #{fine_encoder_forward.17} parent=1 // pred_region
      _
    $region17: #{fine_encoder_forward.17} parent=1 // pred_fallthru
      _
    // Predicated region
    $region18: #{fine_encoder_forward.17} parent=1 // pred_check
      _
    $region19: #{fine_encoder_forward.17} parent=1 // pred_check_branch
      %25 = sbr.rel (0) target = $region21
    $region20: #{fine_encoder_forward.17} parent=1 // pred_region
      _
    $region21: #{fine_encoder_forward.17} parent=1 // pred_fallthru
      _
    // Predicated region
    $region22: #{fine_encoder_forward.17} parent=1 // pred_check
      _
    $region23: #{fine_encoder_forward.17} parent=1 // pred_check_branch
      %27 = sbr.rel (0) target = $region25
    $region24: #{fine_encoder_forward.17} parent=1 // pred_region
      _
    $region25: #{fine_encoder_forward.17} parent=1 // pred_fallthru
      _
    // Predicated region
    $region26: #{fine_encoder_forward.17} parent=1 // pred_check
      _
    $region27: #{fine_encoder_forward.17} parent=1 // pred_check_branch
      %29 = sbr.rel (0) target = $region29
    $region28: #{fine_encoder_forward.17} parent=1 // pred_region
      _
    $region29: #{fine_encoder_forward.17} parent=1 // pred_fallthru
      _
    // Predicated region
    $region30: #{fine_encoder_forward.17} parent=1 // pred_check
      _
    $region31: #{fine_encoder_forward.17} parent=1 // pred_check_branch
      %31 = sbr.rel (0) target = $region33
    $region32: #{fine_encoder_forward.17} parent=1 // pred_region
      _
    $region33: #{fine_encoder_forward.17} parent=1 // pred_fallthru
      _
    // Predicated region
    $region34: #{fine_encoder_forward.17} parent=1 // pred_check
      _
    $region35: #{fine_encoder_forward.17} parent=1 // pred_check_branch
      %33 = sbr.rel (0) target = $region37
    $region36: #{fine_encoder_forward.17} parent=1 // pred_region
      _
    $region37: #{fine_encoder_forward.17} parent=1 // pred_fallthru
      _
    // Predicated region
    $region38: #{fine_encoder_forward.17} parent=1 // pred_check
      _
    $region39: #{fine_encoder_forward.17} parent=1 // pred_check_branch
      %35 = sbr.rel (0) target = $region41
    $region40: #{fine_encoder_forward.17} parent=1 // pred_region
      _
    $region41: #{fine_encoder_forward.17} parent=1 // pred_fallthru
      _
    %v37 = vld [vmem:[%s0] sm:$0xf]
    %v38 = vld [vmem:[%s0 + $0x4] sm:$0xf]
    %v39 = vld [vmem:[%s0 + $0x8] sm:$0xf]
    %v40 = vld [vmem:[%s0 + $0xc] sm:$0xf]
    %v41 = vld [vmem:[%s0 + $0x10] sm:$0xf]
    %v42 = vld [vmem:[%s0 + $0x14] sm:$0xf]
    %v43 = vld [vmem:[%s0 + $0x18] sm:$0xf]
    %v44 = vld [vmem:[%s0 + $0x1c] sm:$0xf]
    %v45 = vld [vmem:[%s0 + $0x20] sm:$0xf]
    %v46 = vld [vmem:[%s0 + $0x24] sm:$0xf]
    %v47 = vld [vmem:[%s0 + $0x28] sm:$0xf]
    %v48 = vld [vmem:[%s0 + $0x2c] sm:$0xf]
    %v49 = vld [vmem:[%s0 + $0x30] sm:$0xf]
    %v50 = vld [vmem:[%s0 + $0x34] sm:$0xf]
    %v51 = vld [vmem:[%s0 + $0x38] sm:$0xf]
    %v52 = vld [vmem:[%s0 + $0x3c] sm:$0xf]
    %v53 = vld [vmem:[%s3] sm:$0xf]
    %v54 = vld [vmem:[%s3 + $0x4] sm:$0xf]
    %v55 = vld [vmem:[%s3 + $0x8] sm:$0xf]
    %v56 = vld [vmem:[%s3 + $0xc] sm:$0xf]
    %v57 = vld [vmem:[%s4] sm:$0x1]
    %v59 = vperm.slane %v57, 0
    %v77 = vunpack.c.l.b16 %v37
    %v78 = vunpack.c.l.b16 %v38
    %v79 = vunpack.c.l.b16 %v39
    %v80 = vunpack.c.l.b16 %v40
    %v81 = vunpack.c.l.b16 %v41
    %v82 = vunpack.c.l.b16 %v42
    %v83 = vunpack.c.l.b16 %v43
    %v84 = vunpack.c.l.b16 %v44
    %v85 = vunpack.c.l.b16 %v45
    %v86 = vunpack.c.l.b16 %v46
    %v87 = vunpack.c.l.b16 %v47
    %v88 = vunpack.c.l.b16 %v48
    %v89 = vunpack.c.l.b16 %v49
    %v90 = vunpack.c.l.b16 %v50
    %v91 = vunpack.c.l.b16 %v51
    %v92 = vunpack.c.l.b16 %v52
    %v93 = vpack.c.b16 %v78, %v77
    %v94 = vpack.c.b16 %v80, %v79
    %v95 = vpack.c.b16 %v82, %v81
    %v96 = vpack.c.b16 %v84, %v83
    %v97 = vpack.c.b16 %v86, %v85
    %v98 = vpack.c.b16 %v88, %v87
    %v99 = vpack.c.b16 %v90, %v89
    %v100 = vpack.c.b16 %v92, %v91
    %v105 = vunpack.c.l.b16 %v53
    %v106 = vunpack.c.l.b16 %v54
    %v107 = vunpack.c.l.b16 %v55
    %v108 = vunpack.c.l.b16 %v56
    %v109 = vpack.c.b16 %v106, %v105
    %v110 = vpack.c.b16 %v108, %v107
    %vm113 = vcmask 261120
    %v115 = vsel %vm113, %v93, 0
    %v118 = vsel %vm113, %v94, 0
    %v121 = vsel %vm113, %v95, 0
    %v124 = vsel %vm113, %v96, 0
    %v127 = vsel %vm113, %v97, 0
    %v130 = vsel %vm113, %v98, 0
    %v133 = vsel %vm113, %v99, 0
    %v136 = vsel %vm113, %v100, 0
    %138 = vmatpush.bf16.msra.mxu0 0
    %139 = vmatpush.bf16.msra.mxu0 0
    %140 = vmatpush.bf16.msra.mxu0 0
    %141 = vmatpush.bf16.msra.mxu0 0
    %142 = vmatpush.bf16.msra.mxu0 0
    %143 = vmatpush.bf16.msra.mxu0 0
    %144 = vmatpush.bf16.msra.mxu0 %v110
    %145 = vmatpush.bf16.msra.mxu0 %v109
    %146 = vmatmul.bf16.gmra.mxu0 %v115
    %v147 = vpop.f32.mrf.mxu0
    %v148 = vadd.f32 %v59, %v147
    %v149 = vpop.f32.mrf.mxu0
    %v150 = vadd.f32 %v59, %v149
    %151 = vmatmul.bf16.gmra.mxu0 %v118
    %v152 = vpop.f32.mrf.mxu0
    %v153 = vadd.f32 %v59, %v152
    %v154 = vpop.f32.mrf.mxu0
    %v155 = vadd.f32 %v59, %v154
    %156 = vmatmul.bf16.gmra.mxu0 %v121
    %v157 = vpop.f32.mrf.mxu0
    %v158 = vadd.f32 %v59, %v157
    %v159 = vpop.f32.mrf.mxu0
    %v160 = vadd.f32 %v59, %v159
    %161 = vmatmul.bf16.gmra.mxu0 %v124
    %v162 = vpop.f32.mrf.mxu0
    %v163 = vadd.f32 %v59, %v162
    %v164 = vpop.f32.mrf.mxu0
    %v165 = vadd.f32 %v59, %v164
    %166 = vmatmul.bf16.gmra.mxu0 %v127
    %v167 = vpop.f32.mrf.mxu0
    %v168 = vadd.f32 %v59, %v167
    %v169 = vpop.f32.mrf.mxu0
    %v170 = vadd.f32 %v59, %v169
    %171 = vmatmul.bf16.gmra.mxu0 %v130
    %v172 = vpop.f32.mrf.mxu0
    %v173 = vadd.f32 %v59, %v172
    %v174 = vpop.f32.mrf.mxu0
    %v175 = vadd.f32 %v59, %v174
    %176 = vmatmul.bf16.gmra.mxu0 %v133
    %v177 = vpop.f32.mrf.mxu0
    %v178 = vadd.f32 %v59, %v177
    %v179 = vpop.f32.mrf.mxu0
    %v180 = vadd.f32 %v59, %v179
    %181 = vmatmul.bf16.gmra.mxu0 %v136
    %v182 = vpop.f32.mrf.mxu0
    %v183 = vadd.f32 %v59, %v182
    %v184 = vpop.f32.mrf.mxu0
    %v185 = vadd.f32 %v59, %v184
    %186 = vdwg.mxu0
    %v187 = vmul.f32 %v148, 0.5
    %v188 = vmul.f32 %v150, 0.5
    %v189 = vmul.f32 %v153, 0.5
    %v190 = vmul.f32 %v155, 0.5
    %v191 = vmul.f32 %v158, 0.5
    %v192 = vmul.f32 %v160, 0.5
    %v193 = vmul.f32 %v163, 0.5
    %v194 = vmul.f32 %v165, 0.5
    %v195 = vmul.f32 %v168, 0.5
    %v196 = vmul.f32 %v170, 0.5
    %v197 = vmul.f32 %v173, 0.5
    %v198 = vmul.f32 %v175, 0.5
    %v199 = vmul.f32 %v178, 0.5
    %v200 = vmul.f32 %v180, 0.5
    %v201 = vmul.f32 %v183, 0.5
    %v202 = vmul.f32 %v185, 0.5
    %v203 = vmul.f32 %v148, 0.044715
    %v204 = vmul.f32 %v150, 0.044715
    %v205 = vmul.f32 %v153, 0.044715
    %v206 = vmul.f32 %v155, 0.044715
    %v207 = vmul.f32 %v158, 0.044715
    %v208 = vmul.f32 %v160, 0.044715
    %v209 = vmul.f32 %v163, 0.044715
    %v210 = vmul.f32 %v165, 0.044715
    %v211 = vmul.f32 %v168, 0.044715
    %v212 = vmul.f32 %v170, 0.044715
    %v213 = vmul.f32 %v173, 0.044715
    %v214 = vmul.f32 %v175, 0.044715
    %v215 = vmul.f32 %v178, 0.044715
    %v216 = vmul.f32 %v180, 0.044715
    %v217 = vmul.f32 %v183, 0.044715
    %v218 = vmul.f32 %v185, 0.044715
    %v219 = vmul.f32 %v203, %v148
    %v220 = vmul.f32 %v204, %v150
    %v221 = vmul.f32 %v205, %v153
    %v222 = vmul.f32 %v206, %v155
    %v223 = vmul.f32 %v207, %v158
    %v224 = vmul.f32 %v208, %v160
    %v225 = vmul.f32 %v209, %v163
    %v226 = vmul.f32 %v210, %v165
    %v227 = vmul.f32 %v211, %v168
    %v228 = vmul.f32 %v212, %v170
    %v229 = vmul.f32 %v213, %v173
    %v230 = vmul.f32 %v214, %v175
    %v231 = vmul.f32 %v215, %v178
    %v232 = vmul.f32 %v216, %v180
    %v233 = vmul.f32 %v217, %v183
    %v234 = vmul.f32 %v218, %v185
    %v235 = vmul.f32 %v219, %v148
    %v236 = vmul.f32 %v220, %v150
    %v237 = vmul.f32 %v221, %v153
    %v238 = vmul.f32 %v222, %v155
    %v239 = vmul.f32 %v223, %v158
    %v240 = vmul.f32 %v224, %v160
    %v241 = vmul.f32 %v225, %v163
    %v242 = vmul.f32 %v226, %v165
    %v243 = vmul.f32 %v227, %v168
    %v244 = vmul.f32 %v228, %v170
    %v245 = vmul.f32 %v229, %v173
    %v246 = vmul.f32 %v230, %v175
    %v247 = vmul.f32 %v231, %v178
    %v248 = vmul.f32 %v232, %v180
    %v249 = vmul.f32 %v233, %v183
    %v250 = vmul.f32 %v234, %v185
    %v251 = vadd.f32 %v148, %v235
    %v252 = vadd.f32 %v150, %v236
    %v253 = vadd.f32 %v153, %v237
    %v254 = vadd.f32 %v155, %v238
    %v255 = vadd.f32 %v158, %v239
    %v256 = vadd.f32 %v160, %v240
    %v257 = vadd.f32 %v163, %v241
    %v258 = vadd.f32 %v165, %v242
    %v259 = vadd.f32 %v168, %v243
    %v260 = vadd.f32 %v170, %v244
    %v261 = vadd.f32 %v173, %v245
    %v262 = vadd.f32 %v175, %v246
    %v263 = vadd.f32 %v178, %v247
    %v264 = vadd.f32 %v180, %v248
    %v265 = vadd.f32 %v183, %v249
    %v266 = vadd.f32 %v185, %v250
    %v267 = vmul.f32 %v251, 0.7978846
    %v268 = vmul.f32 %v252, 0.7978846
    %v269 = vmul.f32 %v253, 0.7978846
    %v270 = vmul.f32 %v254, 0.7978846
    %v271 = vmul.f32 %v255, 0.7978846
    %v272 = vmul.f32 %v256, 0.7978846
    %v273 = vmul.f32 %v257, 0.7978846
    %v274 = vmul.f32 %v258, 0.7978846
    %v275 = vmul.f32 %v259, 0.7978846
    %v276 = vmul.f32 %v260, 0.7978846
    %v277 = vmul.f32 %v261, 0.7978846
    %v278 = vmul.f32 %v262, 0.7978846
    %v279 = vmul.f32 %v263, 0.7978846
    %v280 = vmul.f32 %v264, 0.7978846
    %v281 = vmul.f32 %v265, 0.7978846
    %v282 = vmul.f32 %v266, 0.7978846
    %v283 = vtanh.pop %v267
    %v284 = vtanh.pop %v268
    %v285 = vtanh.pop %v269
    %v286 = vtanh.pop %v270
    %v287 = vtanh.pop %v271
    %v288 = vtanh.pop %v272
    %v289 = vtanh.pop %v273
    %v290 = vtanh.pop %v274
    %v291 = vtanh.pop %v275
    %v292 = vtanh.pop %v276
    %v293 = vtanh.pop %v277
    %v294 = vtanh.pop %v278
    %v295 = vtanh.pop %v279
    %v296 = vtanh.pop %v280
    %v297 = vtanh.pop %v281
    %v298 = vtanh.pop %v282
    %v299 = vadd.f32 %v283, 1.0
    %v300 = vadd.f32 %v284, 1.0
    %v301 = vadd.f32 %v285, 1.0
    %v302 = vadd.f32 %v286, 1.0
    %v303 = vadd.f32 %v287, 1.0
    %v304 = vadd.f32 %v288, 1.0
    %v305 = vadd.f32 %v289, 1.0
    %v306 = vadd.f32 %v290, 1.0
    %v307 = vadd.f32 %v291, 1.0
    %v308 = vadd.f32 %v292, 1.0
    %v309 = vadd.f32 %v293, 1.0
    %v310 = vadd.f32 %v294, 1.0
    %v311 = vadd.f32 %v295, 1.0
    %v312 = vadd.f32 %v296, 1.0
    %v313 = vadd.f32 %v297, 1.0
    %v314 = vadd.f32 %v298, 1.0
    %v315 = vmul.f32 %v187, %v299
    %v316 = vmul.f32 %v188, %v300
    %v317 = vmul.f32 %v189, %v301
    %v318 = vmul.f32 %v190, %v302
    %v319 = vmul.f32 %v191, %v303
    %v320 = vmul.f32 %v192, %v304
    %v321 = vmul.f32 %v193, %v305
    %v322 = vmul.f32 %v194, %v306
    %v323 = vmul.f32 %v195, %v307
    %v324 = vmul.f32 %v196, %v308
    %v325 = vmul.f32 %v197, %v309
    %v326 = vmul.f32 %v198, %v310
    %v327 = vmul.f32 %v199, %v311
    %v328 = vmul.f32 %v200, %v312
    %v329 = vmul.f32 %v201, %v313
    %v330 = vmul.f32 %v202, %v314
    %v331 = vpack.c.bf16 %v316, %v315
    %v332 = vpack.c.bf16 %v318, %v317
    %v333 = vpack.c.bf16 %v320, %v319
    %v334 = vpack.c.bf16 %v322, %v321
    %v335 = vpack.c.bf16 %v324, %v323
    %v336 = vpack.c.bf16 %v326, %v325
    %v337 = vpack.c.bf16 %v328, %v327
    %v338 = vpack.c.bf16 %v330, %v329
    %v339 = vld [vmem:[%s5] sm:$0xf]
    %v340 = vld [vmem:[%s5 + $0x4] sm:$0xf]
    %v341 = vld [vmem:[%s5 + $0x8] sm:$0xf]
    %v342 = vld [vmem:[%s5 + $0xc] sm:$0xf]
    %v343 = vld [vmem:[%s6] sm:$0x1]
    %v345 = vperm.slane %v343, 0
    %v351 = vunpack.c.l.b16 %v339
    %v352 = vunpack.c.l.b16 %v340
    %v353 = vunpack.c.l.b16 %v341
    %v354 = vunpack.c.l.b16 %v342
    %v355 = vpack.c.b16 %v352, %v351
    %v356 = vpack.c.b16 %v354, %v353
    %v360 = vsel %vm113, %v331, 0
    %v363 = vsel %vm113, %v332, 0
    %v366 = vsel %vm113, %v333, 0
    %v369 = vsel %vm113, %v334, 0
    %v372 = vsel %vm113, %v335, 0
    %v375 = vsel %vm113, %v336, 0
    %v378 = vsel %vm113, %v337, 0
    %v381 = vsel %vm113, %v338, 0
    %383 = vmatpush.bf16.msra.mxu0 0
    %384 = vmatpush.bf16.msra.mxu0 0
    %385 = vmatpush.bf16.msra.mxu0 0
    %386 = vmatpush.bf16.msra.mxu0 0
    %387 = vmatpush.bf16.msra.mxu0 0
    %388 = vmatpush.bf16.msra.mxu0 0
    %389 = vmatpush.bf16.msra.mxu0 %v356
    %390 = vmatpush.bf16.msra.mxu0 %v355
    %391 = vmatmul.bf16.gmra.mxu0 %v360
    %v392 = vpop.f32.mrf.mxu0
    %v393 = vadd.f32 %v345, %v392
    %v394 = vpop.f32.mrf.mxu0
    %v395 = vadd.f32 %v345, %v394
    %396 = vmatmul.bf16.gmra.mxu0 %v363
    %v397 = vpop.f32.mrf.mxu0
    %v398 = vadd.f32 %v345, %v397
    %v399 = vpop.f32.mrf.mxu0
    %v400 = vadd.f32 %v345, %v399
    %401 = vmatmul.bf16.gmra.mxu0 %v366
    %v402 = vpop.f32.mrf.mxu0
    %v403 = vadd.f32 %v345, %v402
    %v404 = vpop.f32.mrf.mxu0
    %v405 = vadd.f32 %v345, %v404
    %406 = vmatmul.bf16.gmra.mxu0 %v369
    %v407 = vpop.f32.mrf.mxu0
    %v408 = vadd.f32 %v345, %v407
    %v409 = vpop.f32.mrf.mxu0
    %v410 = vadd.f32 %v345, %v409
    %411 = vmatmul.bf16.gmra.mxu0 %v372
    %v412 = vpop.f32.mrf.mxu0
    %v413 = vadd.f32 %v345, %v412
    %v414 = vpop.f32.mrf.mxu0
    %v415 = vadd.f32 %v345, %v414
    %416 = vmatmul.bf16.gmra.mxu0 %v375
    %v417 = vpop.f32.mrf.mxu0
    %v418 = vadd.f32 %v345, %v417
    %v419 = vpop.f32.mrf.mxu0
    %v420 = vadd.f32 %v345, %v419
    %421 = vmatmul.bf16.gmra.mxu0 %v378
    %v422 = vpop.f32.mrf.mxu0
    %v423 = vadd.f32 %v345, %v422
    %v424 = vpop.f32.mrf.mxu0
    %v425 = vadd.f32 %v345, %v424
    %426 = vmatmul.bf16.gmra.mxu0 %v381
    %v427 = vpop.f32.mrf.mxu0
    %v428 = vadd.f32 %v345, %v427
    %v429 = vpop.f32.mrf.mxu0
    %v430 = vadd.f32 %v345, %v429
    %431 = vdwg.mxu0
    %v432 = vmul.f32 %v393, 0.5
    %v433 = vmul.f32 %v395, 0.5
    %v434 = vmul.f32 %v398, 0.5
    %v435 = vmul.f32 %v400, 0.5
    %v436 = vmul.f32 %v403, 0.5
    %v437 = vmul.f32 %v405, 0.5
    %v438 = vmul.f32 %v408, 0.5
    %v439 = vmul.f32 %v410, 0.5
    %v440 = vmul.f32 %v413, 0.5
    %v441 = vmul.f32 %v415, 0.5
    %v442 = vmul.f32 %v418, 0.5
    %v443 = vmul.f32 %v420, 0.5
    %v444 = vmul.f32 %v423, 0.5
    %v445 = vmul.f32 %v425, 0.5
    %v446 = vmul.f32 %v428, 0.5
    %v447 = vmul.f32 %v430, 0.5
    %v448 = vmul.f32 %v393, 0.044715
    %v449 = vmul.f32 %v395, 0.044715
    %v450 = vmul.f32 %v398, 0.044715
    %v451 = vmul.f32 %v400, 0.044715
    %v452 = vmul.f32 %v403, 0.044715
    %v453 = vmul.f32 %v405, 0.044715
    %v454 = vmul.f32 %v408, 0.044715
    %v455 = vmul.f32 %v410, 0.044715
    %v456 = vmul.f32 %v413, 0.044715
    %v457 = vmul.f32 %v415, 0.044715
    %v458 = vmul.f32 %v418, 0.044715
    %v459 = vmul.f32 %v420, 0.044715
    %v460 = vmul.f32 %v423, 0.044715
    %v461 = vmul.f32 %v425, 0.044715
    %v462 = vmul.f32 %v428, 0.044715
    %v463 = vmul.f32 %v430, 0.044715
    %v464 = vmul.f32 %v448, %v393
    %v465 = vmul.f32 %v449, %v395
    %v466 = vmul.f32 %v450, %v398
    %v467 = vmul.f32 %v451, %v400
    %v468 = vmul.f32 %v452, %v403
    %v469 = vmul.f32 %v453, %v405
    %v470 = vmul.f32 %v454, %v408
    %v471 = vmul.f32 %v455, %v410
    %v472 = vmul.f32 %v456, %v413
    %v473 = vmul.f32 %v457, %v415
    %v474 = vmul.f32 %v458, %v418
    %v475 = vmul.f32 %v459, %v420
    %v476 = vmul.f32 %v460, %v423
    %v477 = vmul.f32 %v461, %v425
    %v478 = vmul.f32 %v462, %v428
    %v479 = vmul.f32 %v463, %v430
    %v480 = vmul.f32 %v464, %v393
    %v481 = vmul.f32 %v465, %v395
    %v482 = vmul.f32 %v466, %v398
    %v483 = vmul.f32 %v467, %v400
    %v484 = vmul.f32 %v468, %v403
    %v485 = vmul.f32 %v469, %v405
    %v486 = vmul.f32 %v470, %v408
    %v487 = vmul.f32 %v471, %v410
    %v488 = vmul.f32 %v472, %v413
    %v489 = vmul.f32 %v473, %v415
    %v490 = vmul.f32 %v474, %v418
    %v491 = vmul.f32 %v475, %v420
    %v492 = vmul.f32 %v476, %v423
    %v493 = vmul.f32 %v477, %v425
    %v494 = vmul.f32 %v478, %v428
    %v495 = vmul.f32 %v479, %v430
    %v496 = vadd.f32 %v393, %v480
    %v497 = vadd.f32 %v395, %v481
    %v498 = vadd.f32 %v398, %v482
    %v499 = vadd.f32 %v400, %v483
    %v500 = vadd.f32 %v403, %v484
    %v501 = vadd.f32 %v405, %v485
    %v502 = vadd.f32 %v408, %v486
    %v503 = vadd.f32 %v410, %v487
    %v504 = vadd.f32 %v413, %v488
    %v505 = vadd.f32 %v415, %v489
    %v506 = vadd.f32 %v418, %v490
    %v507 = vadd.f32 %v420, %v491
    %v508 = vadd.f32 %v423, %v492
    %v509 = vadd.f32 %v425, %v493
    %v510 = vadd.f32 %v428, %v494
    %v511 = vadd.f32 %v430, %v495
    %v512 = vmul.f32 %v496, 0.7978846
    %v513 = vmul.f32 %v497, 0.7978846
    %v514 = vmul.f32 %v498, 0.7978846
    %v515 = vmul.f32 %v499, 0.7978846
    %v516 = vmul.f32 %v500, 0.7978846
    %v517 = vmul.f32 %v501, 0.7978846
    %v518 = vmul.f32 %v502, 0.7978846
    %v519 = vmul.f32 %v503, 0.7978846
    %v520 = vmul.f32 %v504, 0.7978846
    %v521 = vmul.f32 %v505, 0.7978846
    %v522 = vmul.f32 %v506, 0.7978846
    %v523 = vmul.f32 %v507, 0.7978846
    %v524 = vmul.f32 %v508, 0.7978846
    %v525 = vmul.f32 %v509, 0.7978846
    %v526 = vmul.f32 %v510, 0.7978846
    %v527 = vmul.f32 %v511, 0.7978846
    %v528 = vtanh.pop %v512
    %v529 = vtanh.pop %v513
    %v530 = vtanh.pop %v514
    %v531 = vtanh.pop %v515
    %v532 = vtanh.pop %v516
    %v533 = vtanh.pop %v517
    %v534 = vtanh.pop %v518
    %v535 = vtanh.pop %v519
    %v536 = vtanh.pop %v520
    %v537 = vtanh.pop %v521
    %v538 = vtanh.pop %v522
    %v539 = vtanh.pop %v523
    %v540 = vtanh.pop %v524
    %v541 = vtanh.pop %v525
    %v542 = vtanh.pop %v526
    %v543 = vtanh.pop %v527
    %v544 = vadd.f32 %v528, 1.0
    %v545 = vadd.f32 %v529, 1.0
    %v546 = vadd.f32 %v530, 1.0
    %v547 = vadd.f32 %v531, 1.0
    %v548 = vadd.f32 %v532, 1.0
    %v549 = vadd.f32 %v533, 1.0
    %v550 = vadd.f32 %v534, 1.0
    %v551 = vadd.f32 %v535, 1.0
    %v552 = vadd.f32 %v536, 1.0
    %v553 = vadd.f32 %v537, 1.0
    %v554 = vadd.f32 %v538, 1.0
    %v555 = vadd.f32 %v539, 1.0
    %v556 = vadd.f32 %v540, 1.0
    %v557 = vadd.f32 %v541, 1.0
    %v558 = vadd.f32 %v542, 1.0
    %v559 = vadd.f32 %v543, 1.0
    %v560 = vmul.f32 %v432, %v544
    %v561 = vmul.f32 %v433, %v545
    %v562 = vmul.f32 %v434, %v546
    %v563 = vmul.f32 %v435, %v547
    %v564 = vmul.f32 %v436, %v548
    %v565 = vmul.f32 %v437, %v549
    %v566 = vmul.f32 %v438, %v550
    %v567 = vmul.f32 %v439, %v551
    %v568 = vmul.f32 %v440, %v552
    %v569 = vmul.f32 %v441, %v553
    %v570 = vmul.f32 %v442, %v554
    %v571 = vmul.f32 %v443, %v555
    %v572 = vmul.f32 %v444, %v556
    %v573 = vmul.f32 %v445, %v557
    %v574 = vmul.f32 %v446, %v558
    %v575 = vmul.f32 %v447, %v559
    %v576 = vpack.c.bf16 %v561, %v560
    %v577 = vpack.c.bf16 %v563, %v562
    %v578 = vpack.c.bf16 %v565, %v564
    %v579 = vpack.c.bf16 %v567, %v566
    %v580 = vpack.c.bf16 %v569, %v568
    %v581 = vpack.c.bf16 %v571, %v570
    %v582 = vpack.c.bf16 %v573, %v572
    %v583 = vpack.c.bf16 %v575, %v574
    %v584 = vld [vmem:[%s7] sm:$0xf]
    %v585 = vld [vmem:[%s7 + $0x4] sm:$0xf]
    %v586 = vld [vmem:[%s7 + $0x8] sm:$0xf]
    %v587 = vld [vmem:[%s7 + $0xc] sm:$0xf]
    %v588 = vld [vmem:[%s1] sm:$0xf]
    %v589 = vld [vmem:[%s1 + $0x4] sm:$0xf]
    %v590 = vld [vmem:[%s1 + $0x8] sm:$0xf]
    %v591 = vld [vmem:[%s1 + $0xc] sm:$0xf]
    %v592 = vld [vmem:[%s1 + $0x10] sm:$0xf]
    %v593 = vld [vmem:[%s1 + $0x14] sm:$0xf]
    %v594 = vld [vmem:[%s1 + $0x18] sm:$0xf]
    %v595 = vld [vmem:[%s1 + $0x1c] sm:$0xf]
    %v596 = vld [vmem:[%s1 + $0x20] sm:$0xf]
    %v597 = vld [vmem:[%s1 + $0x24] sm:$0xf]
    %v598 = vld [vmem:[%s1 + $0x28] sm:$0xf]
    %v599 = vld [vmem:[%s1 + $0x2c] sm:$0xf]
    %v600 = vld [vmem:[%s1 + $0x30] sm:$0xf]
    %v601 = vld [vmem:[%s1 + $0x34] sm:$0xf]
    %v602 = vld [vmem:[%s1 + $0x38] sm:$0xf]
    %v603 = vld [vmem:[%s1 + $0x3c] sm:$0xf]
    %v604 = vld [vmem:[%s8] sm:$0xf]
    %v605 = vld [vmem:[%s8 + $0x4] sm:$0xf]
    %v606 = vld [vmem:[%s8 + $0x8] sm:$0xf]
    %v607 = vld [vmem:[%s8 + $0xc] sm:$0xf]
    %v624 = vunpack.c.l.b16 %v588
    %v625 = vunpack.c.l.b16 %v589
    %v626 = vunpack.c.l.b16 %v590
    %v627 = vunpack.c.l.b16 %v591
    %v628 = vunpack.c.l.b16 %v592
    %v629 = vunpack.c.l.b16 %v593
    %v630 = vunpack.c.l.b16 %v594
    %v631 = vunpack.c.l.b16 %v595
    %v632 = vunpack.c.l.b16 %v596
    %v633 = vunpack.c.l.b16 %v597
    %v634 = vunpack.c.l.b16 %v598
    %v635 = vunpack.c.l.b16 %v599
    %v636 = vunpack.c.l.b16 %v600
    %v637 = vunpack.c.l.b16 %v601
    %v638 = vunpack.c.l.b16 %v602
    %v639 = vunpack.c.l.b16 %v603
    %v640 = vpack.c.b16 %v625, %v624
    %v641 = vpack.c.b16 %v627, %v626
    %v642 = vpack.c.b16 %v629, %v628
    %v643 = vpack.c.b16 %v631, %v630
    %v644 = vpack.c.b16 %v633, %v632
    %v645 = vpack.c.b16 %v635, %v634
    %v646 = vpack.c.b16 %v637, %v636
    %v647 = vpack.c.b16 %v639, %v638
    %v652 = vunpack.c.l.b16 %v604
    %v653 = vunpack.c.l.b16 %v605
    %v654 = vunpack.c.l.b16 %v606
    %v655 = vunpack.c.l.b16 %v607
    %v656 = vpack.c.b16 %v653, %v652
    %v657 = vpack.c.b16 %v655, %v654
    %v661 = vsel %vm113, %v640, 0
    %v664 = vsel %vm113, %v641, 0
    %v667 = vsel %vm113, %v642, 0
    %v670 = vsel %vm113, %v643, 0
    %v673 = vsel %vm113, %v644, 0
    %v676 = vsel %vm113, %v645, 0
    %v679 = vsel %vm113, %v646, 0
    %v682 = vsel %vm113, %v647, 0
    %684 = vmatpush.bf16.msra.mxu0 0
    %685 = vmatpush.bf16.msra.mxu0 0
    %686 = vmatpush.bf16.msra.mxu0 0
    %687 = vmatpush.bf16.msra.mxu0 0
    %688 = vmatpush.bf16.msra.mxu0 0
    %689 = vmatpush.bf16.msra.mxu0 0
    %690 = vmatpush.bf16.msra.mxu0 %v657
    %691 = vmatpush.bf16.msra.mxu0 %v656
    %692 = vmatmul.bf16.gmra.mxu0 %v661
    %v693 = vpop.f32.mrf.mxu0
    %v694 = vadd.f32 0.0, %v693
    %v695 = vpop.f32.mrf.mxu0
    %v696 = vadd.f32 0.0, %v695
    %697 = vmatmul.bf16.gmra.mxu0 %v664
    %v698 = vpop.f32.mrf.mxu0
    %v699 = vadd.f32 0.0, %v698
    %v700 = vpop.f32.mrf.mxu0
    %v701 = vadd.f32 0.0, %v700
    %702 = vmatmul.bf16.gmra.mxu0 %v667
    %v703 = vpop.f32.mrf.mxu0
    %v704 = vadd.f32 0.0, %v703
    %v705 = vpop.f32.mrf.mxu0
    %v706 = vadd.f32 0.0, %v705
    %707 = vmatmul.bf16.gmra.mxu0 %v670
    %v708 = vpop.f32.mrf.mxu0
    %v709 = vadd.f32 0.0, %v708
    %v710 = vpop.f32.mrf.mxu0
    %v711 = vadd.f32 0.0, %v710
    %712 = vmatmul.bf16.gmra.mxu0 %v673
    %v713 = vpop.f32.mrf.mxu0
    %v714 = vadd.f32 0.0, %v713
    %v715 = vpop.f32.mrf.mxu0
    %v716 = vadd.f32 0.0, %v715
    %717 = vmatmul.bf16.gmra.mxu0 %v676
    %v718 = vpop.f32.mrf.mxu0
    %v719 = vadd.f32 0.0, %v718
    %v720 = vpop.f32.mrf.mxu0
    %v721 = vadd.f32 0.0, %v720
    %722 = vmatmul.bf16.gmra.mxu0 %v679
    %v723 = vpop.f32.mrf.mxu0
    %v724 = vadd.f32 0.0, %v723
    %v725 = vpop.f32.mrf.mxu0
    %v726 = vadd.f32 0.0, %v725
    %727 = vmatmul.bf16.gmra.mxu0 %v682
    %v728 = vpop.f32.mrf.mxu0
    %v729 = vadd.f32 0.0, %v728
    %v730 = vpop.f32.mrf.mxu0
    %v731 = vadd.f32 0.0, %v730
    %732 = vdwg.mxu0
    %v737 = vunpack.c.l.b16 %v584
    %v738 = vunpack.c.l.b16 %v585
    %v739 = vunpack.c.l.b16 %v586
    %v740 = vunpack.c.l.b16 %v587
    %v741 = vpack.c.b16 %v738, %v737
    %v742 = vpack.c.b16 %v740, %v739
    %v746 = vsel %vm113, %v576, 0
    %v749 = vsel %vm113, %v577, 0
    %v752 = vsel %vm113, %v578, 0
    %v755 = vsel %vm113, %v579, 0
    %v758 = vsel %vm113, %v580, 0
    %v761 = vsel %vm113, %v581, 0
    %v764 = vsel %vm113, %v582, 0
    %v767 = vsel %vm113, %v583, 0
    %769 = vmatpush.bf16.msra.mxu0 0
    %770 = vmatpush.bf16.msra.mxu0 0
    %771 = vmatpush.bf16.msra.mxu0 0
    %772 = vmatpush.bf16.msra.mxu0 0
    %773 = vmatpush.bf16.msra.mxu0 0
    %774 = vmatpush.bf16.msra.mxu0 0
    %775 = vmatpush.bf16.msra.mxu0 %v742
    %776 = vmatpush.bf16.msra.mxu0 %v741
    %777 = vmatmul.bf16.gmra.mxu0 %v746
    %v778 = vpop.f32.mrf.mxu0
    %v779 = vadd.f32 %v694, %v778
    %v780 = vpop.f32.mrf.mxu0
    %v781 = vadd.f32 %v696, %v780
    %782 = vmatmul.bf16.gmra.mxu0 %v749
    %v783 = vpop.f32.mrf.mxu0
    %v784 = vadd.f32 %v699, %v783
    %v785 = vpop.f32.mrf.mxu0
    %v786 = vadd.f32 %v701, %v785
    %787 = vmatmul.bf16.gmra.mxu0 %v752
    %v788 = vpop.f32.mrf.mxu0
    %v789 = vadd.f32 %v704, %v788
    %v790 = vpop.f32.mrf.mxu0
    %v791 = vadd.f32 %v706, %v790
    %792 = vmatmul.bf16.gmra.mxu0 %v755
    %v793 = vpop.f32.mrf.mxu0
    %v794 = vadd.f32 %v709, %v793
    %v795 = vpop.f32.mrf.mxu0
    %v796 = vadd.f32 %v711, %v795
    %797 = vmatmul.bf16.gmra.mxu0 %v758
    %v798 = vpop.f32.mrf.mxu0
    %v799 = vadd.f32 %v714, %v798
    %v800 = vpop.f32.mrf.mxu0
    %v801 = vadd.f32 %v716, %v800
    %802 = vmatmul.bf16.gmra.mxu0 %v761
    %v803 = vpop.f32.mrf.mxu0
    %v804 = vadd.f32 %v719, %v803
    %v805 = vpop.f32.mrf.mxu0
    %v806 = vadd.f32 %v721, %v805
    %807 = vmatmul.bf16.gmra.mxu0 %v764
    %v808 = vpop.f32.mrf.mxu0
    %v809 = vadd.f32 %v724, %v808
    %v810 = vpop.f32.mrf.mxu0
    %v811 = vadd.f32 %v726, %v810
    %812 = vmatmul.bf16.gmra.mxu0 %v767
    %v813 = vpop.f32.mrf.mxu0
    %v814 = vadd.f32 %v729, %v813
    %v815 = vpop.f32.mrf.mxu0
    %v816 = vadd.f32 %v731, %v815
    %817 = vdwg.mxu0
    %v818 = vld [vmem:[%s9] sm:$0x1]
    %v820 = vperm.slane %v818, 0
    %v822 = vadd.f32 %v779, %v820
    %v823 = vadd.f32 %v781, %v820
    %v824 = vadd.f32 %v784, %v820
    %v825 = vadd.f32 %v786, %v820
    %v826 = vadd.f32 %v789, %v820
    %v827 = vadd.f32 %v791, %v820
    %v828 = vadd.f32 %v794, %v820
    %v829 = vadd.f32 %v796, %v820
    %v830 = vadd.f32 %v799, %v820
    %v831 = vadd.f32 %v801, %v820
    %v832 = vadd.f32 %v804, %v820
    %v833 = vadd.f32 %v806, %v820
    %v834 = vadd.f32 %v809, %v820
    %v835 = vadd.f32 %v811, %v820
    %v836 = vadd.f32 %v814, %v820
    %v837 = vadd.f32 %v816, %v820
    %v838 = vmul.f32 %v822, 0.5
    %v839 = vmul.f32 %v823, 0.5
    %v840 = vmul.f32 %v824, 0.5
    %v841 = vmul.f32 %v825, 0.5
    %v842 = vmul.f32 %v826, 0.5
    %v843 = vmul.f32 %v827, 0.5
    %v844 = vmul.f32 %v828, 0.5
    %v845 = vmul.f32 %v829, 0.5
    %v846 = vmul.f32 %v830, 0.5
    %v847 = vmul.f32 %v831, 0.5
    %v848 = vmul.f32 %v832, 0.5
    %v849 = vmul.f32 %v833, 0.5
    %v850 = vmul.f32 %v834, 0.5
    %v851 = vmul.f32 %v835, 0.5
    %v852 = vmul.f32 %v836, 0.5
    %v853 = vmul.f32 %v837, 0.5
    %v854 = vmul.f32 %v822, 0.044715
    %v855 = vmul.f32 %v823, 0.044715
    %v856 = vmul.f32 %v824, 0.044715
    %v857 = vmul.f32 %v825, 0.044715
    %v858 = vmul.f32 %v826, 0.044715
    %v859 = vmul.f32 %v827, 0.044715
    %v860 = vmul.f32 %v828, 0.044715
    %v861 = vmul.f32 %v829, 0.044715
    %v862 = vmul.f32 %v830, 0.044715
    %v863 = vmul.f32 %v831, 0.044715
    %v864 = vmul.f32 %v832, 0.044715
    %v865 = vmul.f32 %v833, 0.044715
    %v866 = vmul.f32 %v834, 0.044715
    %v867 = vmul.f32 %v835, 0.044715
    %v868 = vmul.f32 %v836, 0.044715
    %v869 = vmul.f32 %v837, 0.044715
    %v870 = vmul.f32 %v854, %v822
    %v871 = vmul.f32 %v855, %v823
    %v872 = vmul.f32 %v856, %v824
    %v873 = vmul.f32 %v857, %v825
    %v874 = vmul.f32 %v858, %v826
    %v875 = vmul.f32 %v859, %v827
    %v876 = vmul.f32 %v860, %v828
    %v877 = vmul.f32 %v861, %v829
    %v878 = vmul.f32 %v862, %v830
    %v879 = vmul.f32 %v863, %v831
    %v880 = vmul.f32 %v864, %v832
    %v881 = vmul.f32 %v865, %v833
    %v882 = vmul.f32 %v866, %v834
    %v883 = vmul.f32 %v867, %v835
    %v884 = vmul.f32 %v868, %v836
    %v885 = vmul.f32 %v869, %v837
    %v886 = vmul.f32 %v870, %v822
    %v887 = vmul.f32 %v871, %v823
    %v888 = vmul.f32 %v872, %v824
    %v889 = vmul.f32 %v873, %v825
    %v890 = vmul.f32 %v874, %v826
    %v891 = vmul.f32 %v875, %v827
    %v892 = vmul.f32 %v876, %v828
    %v893 = vmul.f32 %v877, %v829
    %v894 = vmul.f32 %v878, %v830
    %v895 = vmul.f32 %v879, %v831
    %v896 = vmul.f32 %v880, %v832
    %v897 = vmul.f32 %v881, %v833
    %v898 = vmul.f32 %v882, %v834
    %v899 = vmul.f32 %v883, %v835
    %v900 = vmul.f32 %v884, %v836
    %v901 = vmul.f32 %v885, %v837
    %v902 = vadd.f32 %v822, %v886
    %v903 = vadd.f32 %v823, %v887
    %v904 = vadd.f32 %v824, %v888
    %v905 = vadd.f32 %v825, %v889
    %v906 = vadd.f32 %v826, %v890
    %v907 = vadd.f32 %v827, %v891
    %v908 = vadd.f32 %v828, %v892
    %v909 = vadd.f32 %v829, %v893
    %v910 = vadd.f32 %v830, %v894
    %v911 = vadd.f32 %v831, %v895
    %v912 = vadd.f32 %v832, %v896
    %v913 = vadd.f32 %v833, %v897
    %v914 = vadd.f32 %v834, %v898
    %v915 = vadd.f32 %v835, %v899
    %v916 = vadd.f32 %v836, %v900
    %v917 = vadd.f32 %v837, %v901
    %v918 = vmul.f32 %v902, 0.7978846
    %v919 = vmul.f32 %v903, 0.7978846
    %v920 = vmul.f32 %v904, 0.7978846
    %v921 = vmul.f32 %v905, 0.7978846
    %v922 = vmul.f32 %v906, 0.7978846
    %v923 = vmul.f32 %v907, 0.7978846
    %v924 = vmul.f32 %v908, 0.7978846
    %v925 = vmul.f32 %v909, 0.7978846
    %v926 = vmul.f32 %v910, 0.7978846
    %v927 = vmul.f32 %v911, 0.7978846
    %v928 = vmul.f32 %v912, 0.7978846
    %v929 = vmul.f32 %v913, 0.7978846
    %v930 = vmul.f32 %v914, 0.7978846
    %v931 = vmul.f32 %v915, 0.7978846
    %v932 = vmul.f32 %v916, 0.7978846
    %v933 = vmul.f32 %v917, 0.7978846
    %v934 = vtanh.pop %v918
    %v935 = vtanh.pop %v919
    %v936 = vtanh.pop %v920
    %v937 = vtanh.pop %v921
    %v938 = vtanh.pop %v922
    %v939 = vtanh.pop %v923
    %v940 = vtanh.pop %v924
    %v941 = vtanh.pop %v925
    %v942 = vtanh.pop %v926
    %v943 = vtanh.pop %v927
    %v944 = vtanh.pop %v928
    %v945 = vtanh.pop %v929
    %v946 = vtanh.pop %v930
    %v947 = vtanh.pop %v931
    %v948 = vtanh.pop %v932
    %v949 = vtanh.pop %v933
    %v950 = vadd.f32 %v934, 1.0
    %v951 = vadd.f32 %v935, 1.0
    %v952 = vadd.f32 %v936, 1.0
    %v953 = vadd.f32 %v937, 1.0
    %v954 = vadd.f32 %v938, 1.0
    %v955 = vadd.f32 %v939, 1.0
    %v956 = vadd.f32 %v940, 1.0
    %v957 = vadd.f32 %v941, 1.0
    %v958 = vadd.f32 %v942, 1.0
    %v959 = vadd.f32 %v943, 1.0
    %v960 = vadd.f32 %v944, 1.0
    %v961 = vadd.f32 %v945, 1.0
    %v962 = vadd.f32 %v946, 1.0
    %v963 = vadd.f32 %v947, 1.0
    %v964 = vadd.f32 %v948, 1.0
    %v965 = vadd.f32 %v949, 1.0
    %v966 = vmul.f32 %v838, %v950
    %v967 = vmul.f32 %v839, %v951
    %v968 = vmul.f32 %v840, %v952
    %v969 = vmul.f32 %v841, %v953
    %v970 = vmul.f32 %v842, %v954
    %v971 = vmul.f32 %v843, %v955
    %v972 = vmul.f32 %v844, %v956
    %v973 = vmul.f32 %v845, %v957
    %v974 = vmul.f32 %v846, %v958
    %v975 = vmul.f32 %v847, %v959
    %v976 = vmul.f32 %v848, %v960
    %v977 = vmul.f32 %v849, %v961
    %v978 = vmul.f32 %v850, %v962
    %v979 = vmul.f32 %v851, %v963
    %v980 = vmul.f32 %v852, %v964
    %v981 = vmul.f32 %v853, %v965
    %v982 = vld [vmem:[%s2] sm:$0xff]
    %v983 = vld [vmem:[%s2 + $0x8] sm:$0xff]
    %v984 = vld [vmem:[%s2 + $0x10] sm:$0xff]
    %v985 = vld [vmem:[%s2 + $0x18] sm:$0xff]
    %v986 = vld [vmem:[%s2 + $0x20] sm:$0xff]
    %v987 = vld [vmem:[%s2 + $0x28] sm:$0xff]
    %v988 = vld [vmem:[%s2 + $0x30] sm:$0xff]
    %v989 = vld [vmem:[%s2 + $0x38] sm:$0xff]
    %v990 = vld [vmem:[%s2 + $0x40] sm:$0xff]
    %v991 = vld [vmem:[%s2 + $0x48] sm:$0xff]
    %v992 = vld [vmem:[%s2 + $0x50] sm:$0xff]
    %v993 = vld [vmem:[%s2 + $0x58] sm:$0xff]
    %v994 = vld [vmem:[%s2 + $0x60] sm:$0xff]
    %v995 = vld [vmem:[%s2 + $0x68] sm:$0xff]
    %v996 = vld [vmem:[%s2 + $0x70] sm:$0xff]
    %v997 = vld [vmem:[%s2 + $0x78] sm:$0xff]
    %v998 = vadd.f32 %v966, %v982
    %v999 = vadd.f32 %v967, %v983
    %v1000 = vadd.f32 %v968, %v984
    %v1001 = vadd.f32 %v969, %v985
    %v1002 = vadd.f32 %v970, %v986
    %v1003 = vadd.f32 %v971, %v987
    %v1004 = vadd.f32 %v972, %v988
    %v1005 = vadd.f32 %v973, %v989
    %v1006 = vadd.f32 %v974, %v990
    %v1007 = vadd.f32 %v975, %v991
    %v1008 = vadd.f32 %v976, %v992
    %v1009 = vadd.f32 %v977, %v993
    %v1010 = vadd.f32 %v978, %v994
    %v1011 = vadd.f32 %v979, %v995
    %v1012 = vadd.f32 %v980, %v996
    %v1013 = vadd.f32 %v981, %v997
    %1014 = vst.msk [vmem:[#allocation2] sm:$0xff] %vm113, %v998
    %1015 = vst.msk [vmem:[#allocation2 + $0x8] sm:$0xff] %vm113, %v999
    %1016 = vst.msk [vmem:[#allocation2 + $0x10] sm:$0xff] %vm113, %v1000
    %1017 = vst.msk [vmem:[#allocation2 + $0x18] sm:$0xff] %vm113, %v1001
    %1018 = vst.msk [vmem:[#allocation2 + $0x20] sm:$0xff] %vm113, %v1002
    %1019 = vst.msk [vmem:[#allocation2 + $0x28] sm:$0xff] %vm113, %v1003
    %1020 = vst.msk [vmem:[#allocation2 + $0x30] sm:$0xff] %vm113, %v1004
    %1021 = vst.msk [vmem:[#allocation2 + $0x38] sm:$0xff] %vm113, %v1005
    %1022 = vst.msk [vmem:[#allocation2 + $0x40] sm:$0xff] %vm113, %v1006
    %1023 = vst.msk [vmem:[#allocation2 + $0x48] sm:$0xff] %vm113, %v1007
    %1024 = vst.msk [vmem:[#allocation2 + $0x50] sm:$0xff] %vm113, %v1008
    %1025 = vst.msk [vmem:[#allocation2 + $0x58] sm:$0xff] %vm113, %v1009
    %1026 = vst.msk [vmem:[#allocation2 + $0x60] sm:$0xff] %vm113, %v1010
    %1027 = vst.msk [vmem:[#allocation2 + $0x68] sm:$0xff] %vm113, %v1011
    %1028 = vst.msk [vmem:[#allocation2 + $0x70] sm:$0xff] %vm113, %v1012
    %1029 = vst.msk [vmem:[#allocation2 + $0x78] sm:$0xff] %vm113, %v1013
    // Predicated region
    $region42: #{fine_encoder_forward.17} parent=1 // pred_check
      _
    $region43: #{fine_encoder_forward.17} parent=1 // pred_check_branch
      %1031 = sbr.rel (0) target = $region45
    $region44: #{fine_encoder_forward.17} parent=1 // pred_region
      %1033 = vsyncadd [#allocation3], 0
      %s1034 = sshll.u32 [#allocation2], 4
      %s1035 = int_to_ptr.vmem [resolvable:$true] %s1034
      %s1036 = sshll.u32 %s10, 4
      %s1037 = int_to_ptr.hbm [resolvable:$true] %s1036
      %1042 = dma.vmem_to_hbm [thread:$0]  %s1035, 2048, %s1037, [#allocation3], 128, 128, 8
    $region45: #{fine_encoder_forward.17} parent=1 // pred_fallthru
      _
    // Predicated region
    $region46: #{fine_encoder_forward.17} parent=1 // pred_check
      _
    $region47: #{fine_encoder_forward.17} parent=1 // pred_check_branch
      %1044 = sbr.rel (0) target = $region49
    $region48: #{fine_encoder_forward.17} parent=1 // pred_region
      %1046 = dma.done [#allocation3], 2048
    $region49: #{fine_encoder_forward.17} parent=1 // pred_fallthru
      _
    %1047 = vsyncpa [#allocation3], 1

// kernel: fine_encoder_forward.16
$region0: #{fine_encoder_forward.16}
  #allocation0 [shape = 'u32[]', space=smem, size = 0x4, offset = 0x4, fixed_abs, tag = 'smem constant byte address 0x4 - core index']
  #allocation1 [shape = 'u32[72,128]{1,0:T(1,128)}', space=vmem, size = 0x9000, scoped, tag = 'internal scratch']
  %s0 = inlined_call_operand.vmem [shape: bf16[54,32,128], index: 0, kind: input, shape index: {}]
  %s1 = inlined_call_operand.vmem [shape: f32[54,128], index: 1, kind: input, shape index: {}]
  %s2 = inlined_call_operand.vmem [shape: f32[1,128], index: 2, kind: input, shape index: {}]
  %s3 = inlined_call_operand.vmem [shape: bf16[32,128], index: 3, kind: output, shape index: {}]
  %s4 = sld [smem:[#allocation0]]
  $region22: #{fine_encoder_forward.16} parent=0
    _
  %s6 = ssub.s32 1, %s4
  %s7 = scalar_select 0, %s6, %s4
  // Predicated region
  $region2: #{fine_encoder_forward.16} parent=0 // pred_check
    _
  $region3: #{fine_encoder_forward.16} parent=0 // pred_check_branch
    %9 = sbr.rel (0) target = $region5
  $region4: #{fine_encoder_forward.16} parent=0 // pred_region
    _
  $region5: #{fine_encoder_forward.16} parent=0 // pred_fallthru
    _
  // Predicated region
  $region6: #{fine_encoder_forward.16} parent=0 // pred_check
    _
  $region7: #{fine_encoder_forward.16} parent=0 // pred_check_branch
    %11 = sbr.rel (0) target = $region9
  $region8: #{fine_encoder_forward.16} parent=0 // pred_region
    _
  $region9: #{fine_encoder_forward.16} parent=0 // pred_fallthru
    _
  // Predicated region
  $region10: #{fine_encoder_forward.16} parent=0 // pred_check
    _
  $region11: #{fine_encoder_forward.16} parent=0 // pred_check_branch
    %13 = sbr.rel (0) target = $region13
  $region12: #{fine_encoder_forward.16} parent=0 // pred_region
    _
  $region13: #{fine_encoder_forward.16} parent=0 // pred_fallthru
    _
  %v14 = vld [vmem:[%s1] sm:$0xff]
  %v15 = vld [vmem:[%s1 + $0x8] sm:$0xff]
  %v16 = vld [vmem:[%s1 + $0x10] sm:$0xff]
  %v17 = vld [vmem:[%s1 + $0x18] sm:$0xff]
  %v18 = vld [vmem:[%s1 + $0x20] sm:$0xff]
  %v19 = vld [vmem:[%s1 + $0x28] sm:$0xff]
  %v20 = vld [vmem:[%s1 + $0x30] sm:$0x3f]
  %v21 = vld [vmem:[%s0] sm:$0xf]
  %v22 = vld [vmem:[%s0 + $0x4] sm:$0xf]
  %v23 = vld [vmem:[%s0 + $0x8] sm:$0xf]
  %v24 = vld [vmem:[%s0 + $0xc] sm:$0xf]
  %v25 = vunpack.c.l.bf16 %v21
  %v26 = vunpack.c.l.bf16 %v22
  %v27 = vunpack.c.l.bf16 %v23
  %v28 = vunpack.c.l.bf16 %v24
  %v29 = vperm.slane %v14, 0
  %v30 = vmul.f32 %v25, %v29
  %v31 = vmul.f32 %v26, %v29
  %v32 = vmul.f32 %v27, %v29
  %v33 = vmul.f32 %v28, %v29
  %v34 = vadd.f32 %v30, 0.0
  %v35 = vadd.f32 %v31, 0.0
  %v36 = vadd.f32 %v32, 0.0
  %v37 = vadd.f32 %v33, 0.0
  %s38 = scalar_lea.vmem %s0, 16
  %v39 = vld [vmem:[%s38] sm:$0xf]
  %v40 = vld [vmem:[%s38 + $0x4] sm:$0xf]
  %v41 = vld [vmem:[%s38 + $0x8] sm:$0xf]
  %v42 = vld [vmem:[%s38 + $0xc] sm:$0xf]
  %v43 = vunpack.c.l.bf16 %v39
  %v44 = vunpack.c.l.bf16 %v40
  %v45 = vunpack.c.l.bf16 %v41
  %v46 = vunpack.c.l.bf16 %v42
  %v47 = vperm.slane %v14, 1
  %v48 = vmul.f32 %v43, %v47
  %v49 = vmul.f32 %v44, %v47
  %v50 = vmul.f32 %v45, %v47
  %v51 = vmul.f32 %v46, %v47
  %v52 = vadd.f32 %v34, %v48
  %v53 = vadd.f32 %v35, %v49
  %v54 = vadd.f32 %v36, %v50
  %v55 = vadd.f32 %v37, %v51
  %s56 = scalar_lea.vmem %s0, 32
  %v57 = vld [vmem:[%s56] sm:$0xf]
  %v58 = vld [vmem:[%s56 + $0x4] sm:$0xf]
  %v59 = vld [vmem:[%s56 + $0x8] sm:$0xf]
  %v60 = vld [vmem:[%s56 + $0xc] sm:$0xf]
  %v61 = vunpack.c.l.bf16 %v57
  %v62 = vunpack.c.l.bf16 %v58
  %v63 = vunpack.c.l.bf16 %v59
  %v64 = vunpack.c.l.bf16 %v60
  %v65 = vperm.slane %v14, 2
  %v66 = vmul.f32 %v61, %v65
  %v67 = vmul.f32 %v62, %v65
  %v68 = vmul.f32 %v63, %v65
  %v69 = vmul.f32 %v64, %v65
  %v70 = vadd.f32 %v52, %v66
  %v71 = vadd.f32 %v53, %v67
  %v72 = vadd.f32 %v54, %v68
  %v73 = vadd.f32 %v55, %v69
  %s74 = scalar_lea.vmem %s0, 48
  %v75 = vld [vmem:[%s74] sm:$0xf]
  %v76 = vld [vmem:[%s74 + $0x4] sm:$0xf]
  %v77 = vld [vmem:[%s74 + $0x8] sm:$0xf]
  %v78 = vld [vmem:[%s74 + $0xc] sm:$0xf]
  %v79 = vunpack.c.l.bf16 %v75
  %v80 = vunpack.c.l.bf16 %v76
  %v81 = vunpack.c.l.bf16 %v77
  %v82 = vunpack.c.l.bf16 %v78
  %v83 = vperm.slane %v14, 3
  %v84 = vmul.f32 %v79, %v83
  %v85 = vmul.f32 %v80, %v83
  %v86 = vmul.f32 %v81, %v83
  %v87 = vmul.f32 %v82, %v83
  %v88 = vadd.f32 %v70, %v84
  %v89 = vadd.f32 %v71, %v85
  %v90 = vadd.f32 %v72, %v86
  %v91 = vadd.f32 %v73, %v87
  %s92 = scalar_lea.vmem %s0, 64
  %v93 = vld [vmem:[%s92] sm:$0xf]
  %v94 = vld [vmem:[%s92 + $0x4] sm:$0xf]
  %v95 = vld [vmem:[%s92 + $0x8] sm:$0xf]
  %v96 = vld [vmem:[%s92 + $0xc] sm:$0xf]
  %v97 = vunpack.c.l.bf16 %v93
  %v98 = vunpack.c.l.bf16 %v94
  %v99 = vunpack.c.l.bf16 %v95
  %v100 = vunpack.c.l.bf16 %v96
  %v101 = vperm.slane %v14, 4
  %v102 = vmul.f32 %v97, %v101
  %v103 = vmul.f32 %v98, %v101
  %v104 = vmul.f32 %v99, %v101
  %v105 = vmul.f32 %v100, %v101
  %v106 = vadd.f32 %v88, %v102
  %v107 = vadd.f32 %v89, %v103
  %v108 = vadd.f32 %v90, %v104
  %v109 = vadd.f32 %v91, %v105
  %s110 = scalar_lea.vmem %s0, 80
  %v111 = vld [vmem:[%s110] sm:$0xf]
  %v112 = vld [vmem:[%s110 + $0x4] sm:$0xf]
  %v113 = vld [vmem:[%s110 + $0x8] sm:$0xf]
  %v114 = vld [vmem:[%s110 + $0xc] sm:$0xf]
  %v115 = vunpack.c.l.bf16 %v111
  %v116 = vunpack.c.l.bf16 %v112
  %v117 = vunpack.c.l.bf16 %v113
  %v118 = vunpack.c.l.bf16 %v114
  %v119 = vperm.slane %v14, 5
  %v120 = vmul.f32 %v115, %v119
  %v121 = vmul.f32 %v116, %v119
  %v122 = vmul.f32 %v117, %v119
  %v123 = vmul.f32 %v118, %v119
  %v124 = vadd.f32 %v106, %v120
  %v125 = vadd.f32 %v107, %v121
  %v126 = vadd.f32 %v108, %v122
  %v127 = vadd.f32 %v109, %v123
  %s128 = scalar_lea.vmem %s0, 96
  %v129 = vld [vmem:[%s128] sm:$0xf]
  %v130 = vld [vmem:[%s128 + $0x4] sm:$0xf]
  %v131 = vld [vmem:[%s128 + $0x8] sm:$0xf]
  %v132 = vld [vmem:[%s128 + $0xc] sm:$0xf]
  %v133 = vunpack.c.l.bf16 %v129
  %v134 = vunpack.c.l.bf16 %v130
  %v135 = vunpack.c.l.bf16 %v131
  %v136 = vunpack.c.l.bf16 %v132
  %v137 = vperm.slane %v14, 6
  %v138 = vmul.f32 %v133, %v137
  %v139 = vmul.f32 %v134, %v137
  %v140 = vmul.f32 %v135, %v137
  %v141 = vmul.f32 %v136, %v137
  %v142 = vadd.f32 %v124, %v138
  %v143 = vadd.f32 %v125, %v139
  %v144 = vadd.f32 %v126, %v140
  %v145 = vadd.f32 %v127, %v141
  %s146 = scalar_lea.vmem %s0, 112
  %v147 = vld [vmem:[%s146] sm:$0xf]
  %v148 = vld [vmem:[%s146 + $0x4] sm:$0xf]
  %v149 = vld [vmem:[%s146 + $0x8] sm:$0xf]
  %v150 = vld [vmem:[%s146 + $0xc] sm:$0xf]
  %v151 = vunpack.c.l.bf16 %v147
  %v152 = vunpack.c.l.bf16 %v148
  %v153 = vunpack.c.l.bf16 %v149
  %v154 = vunpack.c.l.bf16 %v150
  %v155 = vperm.slane %v14, 7
  %v156 = vmul.f32 %v151, %v155
  %v157 = vmul.f32 %v152, %v155
  %v158 = vmul.f32 %v153, %v155
  %v159 = vmul.f32 %v154, %v155
  %v160 = vadd.f32 %v142, %v156
  %v161 = vadd.f32 %v143, %v157
  %v162 = vadd.f32 %v144, %v158
  %v163 = vadd.f32 %v145, %v159
  %s164 = scalar_lea.vmem %s0, 128
  %v165 = vld [vmem:[%s164] sm:$0xf]
  %v166 = vld [vmem:[%s164 + $0x4] sm:$0xf]
  %v167 = vld [vmem:[%s164 + $0x8] sm:$0xf]
  %v168 = vld [vmem:[%s164 + $0xc] sm:$0xf]
  %v169 = vunpack.c.l.bf16 %v165
  %v170 = vunpack.c.l.bf16 %v166
  %v171 = vunpack.c.l.bf16 %v167
  %v172 = vunpack.c.l.bf16 %v168
  %v173 = vperm.slane %v15, 0
  %v174 = vmul.f32 %v169, %v173
  %v175 = vmul.f32 %v170, %v173
  %v176 = vmul.f32 %v171, %v173
  %v177 = vmul.f32 %v172, %v173
  %v178 = vadd.f32 %v160, %v174
  %v179 = vadd.f32 %v161, %v175
  %v180 = vadd.f32 %v162, %v176
  %v181 = vadd.f32 %v163, %v177
  %s182 = scalar_lea.vmem %s0, 144
  %v183 = vld [vmem:[%s182] sm:$0xf]
  %v184 = vld [vmem:[%s182 + $0x4] sm:$0xf]
  %v185 = vld [vmem:[%s182 + $0x8] sm:$0xf]
  %v186 = vld [vmem:[%s182 + $0xc] sm:$0xf]
  %v187 = vunpack.c.l.bf16 %v183
  %v188 = vunpack.c.l.bf16 %v184
  %v189 = vunpack.c.l.bf16 %v185
  %v190 = vunpack.c.l.bf16 %v186
  %v191 = vperm.slane %v15, 1
  %v192 = vmul.f32 %v187, %v191
  %v193 = vmul.f32 %v188, %v191
  %v194 = vmul.f32 %v189, %v191
  %v195 = vmul.f32 %v190, %v191
  %v196 = vadd.f32 %v178, %v192
  %v197 = vadd.f32 %v179, %v193
  %v198 = vadd.f32 %v180, %v194
  %v199 = vadd.f32 %v181, %v195
  %s200 = scalar_lea.vmem %s0, 160
  %v201 = vld [vmem:[%s200] sm:$0xf]
  %v202 = vld [vmem:[%s200 + $0x4] sm:$0xf]
  %v203 = vld [vmem:[%s200 + $0x8] sm:$0xf]
  %v204 = vld [vmem:[%s200 + $0xc] sm:$0xf]
  %v205 = vunpack.c.l.bf16 %v201
  %v206 = vunpack.c.l.bf16 %v202
  %v207 = vunpack.c.l.bf16 %v203
  %v208 = vunpack.c.l.bf16 %v204
  %v209 = vperm.slane %v15, 2
  %v210 = vmul.f32 %v205, %v209
  %v211 = vmul.f32 %v206, %v209
  %v212 = vmul.f32 %v207, %v209
  %v213 = vmul.f32 %v208, %v209
  %v214 = vadd.f32 %v196, %v210
  %v215 = vadd.f32 %v197, %v211
  %v216 = vadd.f32 %v198, %v212
  %v217 = vadd.f32 %v199, %v213
  %s218 = scalar_lea.vmem %s0, 176
  %v219 = vld [vmem:[%s218] sm:$0xf]
  %v220 = vld [vmem:[%s218 + $0x4] sm:$0xf]
  %v221 = vld [vmem:[%s218 + $0x8] sm:$0xf]
  %v222 = vld [vmem:[%s218 + $0xc] sm:$0xf]
  %v223 = vunpack.c.l.bf16 %v219
  %v224 = vunpack.c.l.bf16 %v220
  %v225 = vunpack.c.l.bf16 %v221
  %v226 = vunpack.c.l.bf16 %v222
  %v227 = vperm.slane %v15, 3
  %v228 = vmul.f32 %v223, %v227
  %v229 = vmul.f32 %v224, %v227
  %v230 = vmul.f32 %v225, %v227
  %v231 = vmul.f32 %v226, %v227
  %v232 = vadd.f32 %v214, %v228
  %v233 = vadd.f32 %v215, %v229
  %v234 = vadd.f32 %v216, %v230
  %v235 = vadd.f32 %v217, %v231
  %s236 = scalar_lea.vmem %s0, 192
  %v237 = vld [vmem:[%s236] sm:$0xf]
  %v238 = vld [vmem:[%s236 + $0x4] sm:$0xf]
  %v239 = vld [vmem:[%s236 + $0x8] sm:$0xf]
  %v240 = vld [vmem:[%s236 + $0xc] sm:$0xf]
  %v241 = vunpack.c.l.bf16 %v237
  %v242 = vunpack.c.l.bf16 %v238
  %v243 = vunpack.c.l.bf16 %v239
  %v244 = vunpack.c.l.bf16 %v240
  %v245 = vperm.slane %v15, 4
  %v246 = vmul.f32 %v241, %v245
  %v247 = vmul.f32 %v242, %v245
  %v248 = vmul.f32 %v243, %v245
  %v249 = vmul.f32 %v244, %v245
  %v250 = vadd.f32 %v232, %v246
  %v251 = vadd.f32 %v233, %v247
  %v252 = vadd.f32 %v234, %v248
  %v253 = vadd.f32 %v235, %v249
  %s254 = scalar_lea.vmem %s0, 208
  %v255 = vld [vmem:[%s254] sm:$0xf]
  %v256 = vld [vmem:[%s254 + $0x4] sm:$0xf]
  %v257 = vld [vmem:[%s254 + $0x8] sm:$0xf]
  %v258 = vld [vmem:[%s254 + $0xc] sm:$0xf]
  %v259 = vunpack.c.l.bf16 %v255
  %v260 = vunpack.c.l.bf16 %v256
  %v261 = vunpack.c.l.bf16 %v257
  %v262 = vunpack.c.l.bf16 %v258
  %v263 = vperm.slane %v15, 5
  %v264 = vmul.f32 %v259, %v263
  %v265 = vmul.f32 %v260, %v263
  %v266 = vmul.f32 %v261, %v263
  %v267 = vmul.f32 %v262, %v263
  %v268 = vadd.f32 %v250, %v264
  %v269 = vadd.f32 %v251, %v265
  %v270 = vadd.f32 %v252, %v266
  %v271 = vadd.f32 %v253, %v267
  %s272 = scalar_lea.vmem %s0, 224
  %v273 = vld [vmem:[%s272] sm:$0xf]
  %v274 = vld [vmem:[%s272 + $0x4] sm:$0xf]
  %v275 = vld [vmem:[%s272 + $0x8] sm:$0xf]
  %v276 = vld [vmem:[%s272 + $0xc] sm:$0xf]
  %v277 = vunpack.c.l.bf16 %v273
  %v278 = vunpack.c.l.bf16 %v274
  %v279 = vunpack.c.l.bf16 %v275
  %v280 = vunpack.c.l.bf16 %v276
  %v281 = vperm.slane %v15, 6
  %v282 = vmul.f32 %v277, %v281
  %v283 = vmul.f32 %v278, %v281
  %v284 = vmul.f32 %v279, %v281
  %v285 = vmul.f32 %v280, %v281
  %v286 = vadd.f32 %v268, %v282
  %v287 = vadd.f32 %v269, %v283
  %v288 = vadd.f32 %v270, %v284
  %v289 = vadd.f32 %v271, %v285
  %s290 = scalar_lea.vmem %s0, 240
  %v291 = vld [vmem:[%s290] sm:$0xf]
  %v292 = vld [vmem:[%s290 + $0x4] sm:$0xf]
  %v293 = vld [vmem:[%s290 + $0x8] sm:$0xf]
  %v294 = vld [vmem:[%s290 + $0xc] sm:$0xf]
  %v295 = vunpack.c.l.bf16 %v291
  %v296 = vunpack.c.l.bf16 %v292
  %v297 = vunpack.c.l.bf16 %v293
  %v298 = vunpack.c.l.bf16 %v294
  %v299 = vperm.slane %v15, 7
  %v300 = vmul.f32 %v295, %v299
  %v301 = vmul.f32 %v296, %v299
  %v302 = vmul.f32 %v297, %v299
  %v303 = vmul.f32 %v298, %v299
  %v304 = vadd.f32 %v286, %v300
  %v305 = vadd.f32 %v287, %v301
  %v306 = vadd.f32 %v288, %v302
  %v307 = vadd.f32 %v289, %v303
  %s308 = scalar_lea.vmem %s0, 256
  %v309 = vld [vmem:[%s308] sm:$0xf]
  %v310 = vld [vmem:[%s308 + $0x4] sm:$0xf]
  %v311 = vld [vmem:[%s308 + $0x8] sm:$0xf]
  %v312 = vld [vmem:[%s308 + $0xc] sm:$0xf]
  %v313 = vunpack.c.l.bf16 %v309
  %v314 = vunpack.c.l.bf16 %v310
  %v315 = vunpack.c.l.bf16 %v311
  %v316 = vunpack.c.l.bf16 %v312
  %v317 = vperm.slane %v16, 0
  %v318 = vmul.f32 %v313, %v317
  %v319 = vmul.f32 %v314, %v317
  %v320 = vmul.f32 %v315, %v317
  %v321 = vmul.f32 %v316, %v317
  %v322 = vadd.f32 %v304, %v318
  %v323 = vadd.f32 %v305, %v319
  %v324 = vadd.f32 %v306, %v320
  %v325 = vadd.f32 %v307, %v321
  %s326 = scalar_lea.vmem %s0, 272
  %v327 = vld [vmem:[%s326] sm:$0xf]
  %v328 = vld [vmem:[%s326 + $0x4] sm:$0xf]
  %v329 = vld [vmem:[%s326 + $0x8] sm:$0xf]
  %v330 = vld [vmem:[%s326 + $0xc] sm:$0xf]
  %v331 = vunpack.c.l.bf16 %v327
  %v332 = vunpack.c.l.bf16 %v328
  %v333 = vunpack.c.l.bf16 %v329
  %v334 = vunpack.c.l.bf16 %v330
  %v335 = vperm.slane %v16, 1
  %v336 = vmul.f32 %v331, %v335
  %v337 = vmul.f32 %v332, %v335
  %v338 = vmul.f32 %v333, %v335
  %v339 = vmul.f32 %v334, %v335
  %v340 = vadd.f32 %v322, %v336
  %v341 = vadd.f32 %v323, %v337
  %v342 = vadd.f32 %v324, %v338
  %v343 = vadd.f32 %v325, %v339
  %s344 = scalar_lea.vmem %s0, 288
  %v345 = vld [vmem:[%s344] sm:$0xf]
  %v346 = vld [vmem:[%s344 + $0x4] sm:$0xf]
  %v347 = vld [vmem:[%s344 + $0x8] sm:$0xf]
  %v348 = vld [vmem:[%s344 + $0xc] sm:$0xf]
  %v349 = vunpack.c.l.bf16 %v345
  %v350 = vunpack.c.l.bf16 %v346
  %v351 = vunpack.c.l.bf16 %v347
  %v352 = vunpack.c.l.bf16 %v348
  %v353 = vperm.slane %v16, 2
  %v354 = vmul.f32 %v349, %v353
  %v355 = vmul.f32 %v350, %v353
  %v356 = vmul.f32 %v351, %v353
  %v357 = vmul.f32 %v352, %v353
  %v358 = vadd.f32 %v340, %v354
  %v359 = vadd.f32 %v341, %v355
  %v360 = vadd.f32 %v342, %v356
  %v361 = vadd.f32 %v343, %v357
  %s362 = scalar_lea.vmem %s0, 304
  %v363 = vld [vmem:[%s362] sm:$0xf]
  %v364 = vld [vmem:[%s362 + $0x4] sm:$0xf]
  %v365 = vld [vmem:[%s362 + $0x8] sm:$0xf]
  %v366 = vld [vmem:[%s362 + $0xc] sm:$0xf]
  %v367 = vunpack.c.l.bf16 %v363
  %v368 = vunpack.c.l.bf16 %v364
  %v369 = vunpack.c.l.bf16 %v365
  %v370 = vunpack.c.l.bf16 %v366
  %v371 = vperm.slane %v16, 3
  %v372 = vmul.f32 %v367, %v371
  %v373 = vmul.f32 %v368, %v371
  %v374 = vmul.f32 %v369, %v371
  %v375 = vmul.f32 %v370, %v371
  %v376 = vadd.f32 %v358, %v372
  %v377 = vadd.f32 %v359, %v373
  %v378 = vadd.f32 %v360, %v374
  %v379 = vadd.f32 %v361, %v375
  %s380 = scalar_lea.vmem %s0, 320
  %v381 = vld [vmem:[%s380] sm:$0xf]
  %v382 = vld [vmem:[%s380 + $0x4] sm:$0xf]
  %v383 = vld [vmem:[%s380 + $0x8] sm:$0xf]
  %v384 = vld [vmem:[%s380 + $0xc] sm:$0xf]
  %v385 = vunpack.c.l.bf16 %v381
  %v386 = vunpack.c.l.bf16 %v382
  %v387 = vunpack.c.l.bf16 %v383
  %v388 = vunpack.c.l.bf16 %v384
  %v389 = vperm.slane %v16, 4
  %v390 = vmul.f32 %v385, %v389
  %v391 = vmul.f32 %v386, %v389
  %v392 = vmul.f32 %v387, %v389
  %v393 = vmul.f32 %v388, %v389
  %v394 = vadd.f32 %v376, %v390
  %v395 = vadd.f32 %v377, %v391
  %v396 = vadd.f32 %v378, %v392
  %v397 = vadd.f32 %v379, %v393
  %s398 = scalar_lea.vmem %s0, 336
  %v399 = vld [vmem:[%s398] sm:$0xf]
  %v400 = vld [vmem:[%s398 + $0x4] sm:$0xf]
  %v401 = vld [vmem:[%s398 + $0x8] sm:$0xf]
  %v402 = vld [vmem:[%s398 + $0xc] sm:$0xf]
  %v403 = vunpack.c.l.bf16 %v399
  %v404 = vunpack.c.l.bf16 %v400
  %v405 = vunpack.c.l.bf16 %v401
  %v406 = vunpack.c.l.bf16 %v402
  %v407 = vperm.slane %v16, 5
  %v408 = vmul.f32 %v403, %v407
  %v409 = vmul.f32 %v404, %v407
  %v410 = vmul.f32 %v405, %v407
  %v411 = vmul.f32 %v406, %v407
  %v412 = vadd.f32 %v394, %v408
  %v413 = vadd.f32 %v395, %v409
  %v414 = vadd.f32 %v396, %v410
  %v415 = vadd.f32 %v397, %v411
  %s416 = scalar_lea.vmem %s0, 352
  %v417 = vld [vmem:[%s416] sm:$0xf]
  %v418 = vld [vmem:[%s416 + $0x4] sm:$0xf]
  %v419 = vld [vmem:[%s416 + $0x8] sm:$0xf]
  %v420 = vld [vmem:[%s416 + $0xc] sm:$0xf]
  %v421 = vunpack.c.l.bf16 %v417
  %v422 = vunpack.c.l.bf16 %v418
  %v423 = vunpack.c.l.bf16 %v419
  %v424 = vunpack.c.l.bf16 %v420
  %v425 = vperm.slane %v16, 6
  %v426 = vmul.f32 %v421, %v425
  %v427 = vmul.f32 %v422, %v425
  %v428 = vmul.f32 %v423, %v425
  %v429 = vmul.f32 %v424, %v425
  %v430 = vadd.f32 %v412, %v426
  %v431 = vadd.f32 %v413, %v427
  %v432 = vadd.f32 %v414, %v428
  %v433 = vadd.f32 %v415, %v429
  %s434 = scalar_lea.vmem %s0, 368
  %v435 = vld [vmem:[%s434] sm:$0xf]
  %v436 = vld [vmem:[%s434 + $0x4] sm:$0xf]
  %v437 = vld [vmem:[%s434 + $0x8] sm:$0xf]
  %v438 = vld [vmem:[%s434 + $0xc] sm:$0xf]
  %v439 = vunpack.c.l.bf16 %v435
  %v440 = vunpack.c.l.bf16 %v436
  %v441 = vunpack.c.l.bf16 %v437
  %v442 = vunpack.c.l.bf16 %v438
  %v443 = vperm.slane %v16, 7
  %v444 = vmul.f32 %v439, %v443
  %v445 = vmul.f32 %v440, %v443
  %v446 = vmul.f32 %v441, %v443
  %v447 = vmul.f32 %v442, %v443
  %v448 = vadd.f32 %v430, %v444
  %v449 = vadd.f32 %v431, %v445
  %v450 = vadd.f32 %v432, %v446
  %v451 = vadd.f32 %v433, %v447
  %s452 = scalar_lea.vmem %s0, 384
  %v453 = vld [vmem:[%s452] sm:$0xf]
  %v454 = vld [vmem:[%s452 + $0x4] sm:$0xf]
  %v455 = vld [vmem:[%s452 + $0x8] sm:$0xf]
  %v456 = vld [vmem:[%s452 + $0xc] sm:$0xf]
  %v457 = vunpack.c.l.bf16 %v453
  %v458 = vunpack.c.l.bf16 %v454
  %v459 = vunpack.c.l.bf16 %v455
  %v460 = vunpack.c.l.bf16 %v456
  %v461 = vperm.slane %v17, 0
  %v462 = vmul.f32 %v457, %v461
  %v463 = vmul.f32 %v458, %v461
  %v464 = vmul.f32 %v459, %v461
  %v465 = vmul.f32 %v460, %v461
  %v466 = vadd.f32 %v448, %v462
  %v467 = vadd.f32 %v449, %v463
  %v468 = vadd.f32 %v450, %v464
  %v469 = vadd.f32 %v451, %v465
  %s470 = scalar_lea.vmem %s0, 400
  %v471 = vld [vmem:[%s470] sm:$0xf]
  %v472 = vld [vmem:[%s470 + $0x4] sm:$0xf]
  %v473 = vld [vmem:[%s470 + $0x8] sm:$0xf]
  %v474 = vld [vmem:[%s470 + $0xc] sm:$0xf]
  %v475 = vunpack.c.l.bf16 %v471
  %v476 = vunpack.c.l.bf16 %v472
  %v477 = vunpack.c.l.bf16 %v473
  %v478 = vunpack.c.l.bf16 %v474
  %v479 = vperm.slane %v17, 1
  %v480 = vmul.f32 %v475, %v479
  %v481 = vmul.f32 %v476, %v479
  %v482 = vmul.f32 %v477, %v479
  %v483 = vmul.f32 %v478, %v479
  %v484 = vadd.f32 %v466, %v480
  %v485 = vadd.f32 %v467, %v481
  %v486 = vadd.f32 %v468, %v482
  %v487 = vadd.f32 %v469, %v483
  %s488 = scalar_lea.vmem %s0, 416
  %v489 = vld [vmem:[%s488] sm:$0xf]
  %v490 = vld [vmem:[%s488 + $0x4] sm:$0xf]
  %v491 = vld [vmem:[%s488 + $0x8] sm:$0xf]
  %v492 = vld [vmem:[%s488 + $0xc] sm:$0xf]
  %v493 = vunpack.c.l.bf16 %v489
  %v494 = vunpack.c.l.bf16 %v490
  %v495 = vunpack.c.l.bf16 %v491
  %v496 = vunpack.c.l.bf16 %v492
  %v497 = vperm.slane %v17, 2
  %v498 = vmul.f32 %v493, %v497
  %v499 = vmul.f32 %v494, %v497
  %v500 = vmul.f32 %v495, %v497
  %v501 = vmul.f32 %v496, %v497
  %v502 = vadd.f32 %v484, %v498
  %v503 = vadd.f32 %v485, %v499
  %v504 = vadd.f32 %v486, %v500
  %v505 = vadd.f32 %v487, %v501
  %s506 = scalar_lea.vmem %s0, 432
  %v507 = vld [vmem:[%s506] sm:$0xf]
  %v508 = vld [vmem:[%s506 + $0x4] sm:$0xf]
  %v509 = vld [vmem:[%s506 + $0x8] sm:$0xf]
  %v510 = vld [vmem:[%s506 + $0xc] sm:$0xf]
  %v511 = vunpack.c.l.bf16 %v507
  %v512 = vunpack.c.l.bf16 %v508
  %v513 = vunpack.c.l.bf16 %v509
  %v514 = vunpack.c.l.bf16 %v510
  %v515 = vperm.slane %v17, 3
  %v516 = vmul.f32 %v511, %v515
  %v517 = vmul.f32 %v512, %v515
  %v518 = vmul.f32 %v513, %v515
  %v519 = vmul.f32 %v514, %v515
  %v520 = vadd.f32 %v502, %v516
  %v521 = vadd.f32 %v503, %v517
  %v522 = vadd.f32 %v504, %v518
  %v523 = vadd.f32 %v505, %v519
  %s524 = scalar_lea.vmem %s0, 448
  %v525 = vld [vmem:[%s524] sm:$0xf]
  %v526 = vld [vmem:[%s524 + $0x4] sm:$0xf]
  %v527 = vld [vmem:[%s524 + $0x8] sm:$0xf]
  %v528 = vld [vmem:[%s524 + $0xc] sm:$0xf]
  %v529 = vunpack.c.l.bf16 %v525
  %v530 = vunpack.c.l.bf16 %v526
  %v531 = vunpack.c.l.bf16 %v527
  %v532 = vunpack.c.l.bf16 %v528
  %v533 = vperm.slane %v17, 4
  %v534 = vmul.f32 %v529, %v533
  %v535 = vmul.f32 %v530, %v533
  %v536 = vmul.f32 %v531, %v533
  %v537 = vmul.f32 %v532, %v533
  %v538 = vadd.f32 %v520, %v534
  %v539 = vadd.f32 %v521, %v535
  %v540 = vadd.f32 %v522, %v536
  %v541 = vadd.f32 %v523, %v537
  %s542 = scalar_lea.vmem %s0, 464
  %v543 = vld [vmem:[%s542] sm:$0xf]
  %v544 = vld [vmem:[%s542 + $0x4] sm:$0xf]
  %v545 = vld [vmem:[%s542 + $0x8] sm:$0xf]
  %v546 = vld [vmem:[%s542 + $0xc] sm:$0xf]
  %v547 = vunpack.c.l.bf16 %v543
  %v548 = vunpack.c.l.bf16 %v544
  %v549 = vunpack.c.l.bf16 %v545
  %v550 = vunpack.c.l.bf16 %v546
  %v551 = vperm.slane %v17, 5
  %v552 = vmul.f32 %v547, %v551
  %v553 = vmul.f32 %v548, %v551
  %v554 = vmul.f32 %v549, %v551
  %v555 = vmul.f32 %v550, %v551
  %v556 = vadd.f32 %v538, %v552
  %v557 = vadd.f32 %v539, %v553
  %v558 = vadd.f32 %v540, %v554
  %v559 = vadd.f32 %v541, %v555
  %s560 = scalar_lea.vmem %s0, 480
  %v561 = vld [vmem:[%s560] sm:$0xf]
  %v562 = vld [vmem:[%s560 + $0x4] sm:$0xf]
  %v563 = vld [vmem:[%s560 + $0x8] sm:$0xf]
  %v564 = vld [vmem:[%s560 + $0xc] sm:$0xf]
  %v565 = vunpack.c.l.bf16 %v561
  %v566 = vunpack.c.l.bf16 %v562
  %v567 = vunpack.c.l.bf16 %v563
  %v568 = vunpack.c.l.bf16 %v564
  %v569 = vperm.slane %v17, 6
  %v570 = vmul.f32 %v565, %v569
  %v571 = vmul.f32 %v566, %v569
  %v572 = vmul.f32 %v567, %v569
  %v573 = vmul.f32 %v568, %v569
  %v574 = vadd.f32 %v556, %v570
  %v575 = vadd.f32 %v557, %v571
  %v576 = vadd.f32 %v558, %v572
  %v577 = vadd.f32 %v559, %v573
  %s578 = scalar_lea.vmem %s0, 496
  %v579 = vld [vmem:[%s578] sm:$0xf]
  %v580 = vld [vmem:[%s578 + $0x4] sm:$0xf]
  %v581 = vld [vmem:[%s578 + $0x8] sm:$0xf]
  %v582 = vld [vmem:[%s578 + $0xc] sm:$0xf]
  %v583 = vunpack.c.l.bf16 %v579
  %v584 = vunpack.c.l.bf16 %v580
  %v585 = vunpack.c.l.bf16 %v581
  %v586 = vunpack.c.l.bf16 %v582
  %v587 = vperm.slane %v17, 7
  %v588 = vmul.f32 %v583, %v587
  %v589 = vmul.f32 %v584, %v587
  %v590 = vmul.f32 %v585, %v587
  %v591 = vmul.f32 %v586, %v587
  %v592 = vadd.f32 %v574, %v588
  %v593 = vadd.f32 %v575, %v589
  %v594 = vadd.f32 %v576, %v590
  %v595 = vadd.f32 %v577, %v591
  %s596 = scalar_lea.vmem %s0, 512
  %v597 = vld [vmem:[%s596] sm:$0xf]
  %v598 = vld [vmem:[%s596 + $0x4] sm:$0xf]
  %v599 = vld [vmem:[%s596 + $0x8] sm:$0xf]
  %v600 = vld [vmem:[%s596 + $0xc] sm:$0xf]
  %v601 = vunpack.c.l.bf16 %v597
  %v602 = vunpack.c.l.bf16 %v598
  %v603 = vunpack.c.l.bf16 %v599
  %v604 = vunpack.c.l.bf16 %v600
  %v605 = vperm.slane %v18, 0
  %v606 = vmul.f32 %v601, %v605
  %v607 = vmul.f32 %v602, %v605
  %v608 = vmul.f32 %v603, %v605
  %v609 = vmul.f32 %v604, %v605
  %v610 = vadd.f32 %v592, %v606
  %v611 = vadd.f32 %v593, %v607
  %v612 = vadd.f32 %v594, %v608
  %v613 = vadd.f32 %v595, %v609
  %s614 = scalar_lea.vmem %s0, 528
  %v615 = vld [vmem:[%s614] sm:$0xf]
  %v616 = vld [vmem:[%s614 + $0x4] sm:$0xf]
  %v617 = vld [vmem:[%s614 + $0x8] sm:$0xf]
  %v618 = vld [vmem:[%s614 + $0xc] sm:$0xf]
  %v619 = vunpack.c.l.bf16 %v615
  %v620 = vunpack.c.l.bf16 %v616
  %v621 = vunpack.c.l.bf16 %v617
  %v622 = vunpack.c.l.bf16 %v618
  %v623 = vperm.slane %v18, 1
  %v624 = vmul.f32 %v619, %v623
  %v625 = vmul.f32 %v620, %v623
  %v626 = vmul.f32 %v621, %v623
  %v627 = vmul.f32 %v622, %v623
  %v628 = vadd.f32 %v610, %v624
  %v629 = vadd.f32 %v611, %v625
  %v630 = vadd.f32 %v612, %v626
  %v631 = vadd.f32 %v613, %v627
  %s632 = scalar_lea.vmem %s0, 544
  %v633 = vld [vmem:[%s632] sm:$0xf]
  %v634 = vld [vmem:[%s632 + $0x4] sm:$0xf]
  %v635 = vld [vmem:[%s632 + $0x8] sm:$0xf]
  %v636 = vld [vmem:[%s632 + $0xc] sm:$0xf]
  %v637 = vunpack.c.l.bf16 %v633
  %v638 = vunpack.c.l.bf16 %v634
  %v639 = vunpack.c.l.bf16 %v635
  %v640 = vunpack.c.l.bf16 %v636
  %v641 = vperm.slane %v18, 2
  %v642 = vmul.f32 %v637, %v641
  %v643 = vmul.f32 %v638, %v641
  %v644 = vmul.f32 %v639, %v641
  %v645 = vmul.f32 %v640, %v641
  %v646 = vadd.f32 %v628, %v642
  %v647 = vadd.f32 %v629, %v643
  %v648 = vadd.f32 %v630, %v644
  %v649 = vadd.f32 %v631, %v645
  %s650 = scalar_lea.vmem %s0, 560
  %v651 = vld [vmem:[%s650] sm:$0xf]
  %v652 = vld [vmem:[%s650 + $0x4] sm:$0xf]
  %v653 = vld [vmem:[%s650 + $0x8] sm:$0xf]
  %v654 = vld [vmem:[%s650 + $0xc] sm:$0xf]
  %v655 = vunpack.c.l.bf16 %v651
  %v656 = vunpack.c.l.bf16 %v652
  %v657 = vunpack.c.l.bf16 %v653
  %v658 = vunpack.c.l.bf16 %v654
  %v659 = vperm.slane %v18, 3
  %v660 = vmul.f32 %v655, %v659
  %v661 = vmul.f32 %v656, %v659
  %v662 = vmul.f32 %v657, %v659
  %v663 = vmul.f32 %v658, %v659
  %v664 = vadd.f32 %v646, %v660
  %v665 = vadd.f32 %v647, %v661
  %v666 = vadd.f32 %v648, %v662
  %v667 = vadd.f32 %v649, %v663
  %s668 = scalar_lea.vmem %s0, 576
  %v669 = vld [vmem:[%s668] sm:$0xf]
  %v670 = vld [vmem:[%s668 + $0x4] sm:$0xf]
  %v671 = vld [vmem:[%s668 + $0x8] sm:$0xf]
  %v672 = vld [vmem:[%s668 + $0xc] sm:$0xf]
  %v673 = vunpack.c.l.bf16 %v669
  %v674 = vunpack.c.l.bf16 %v670
  %v675 = vunpack.c.l.bf16 %v671
  %v676 = vunpack.c.l.bf16 %v672
  %v677 = vperm.slane %v18, 4
  %v678 = vmul.f32 %v673, %v677
  %v679 = vmul.f32 %v674, %v677
  %v680 = vmul.f32 %v675, %v677
  %v681 = vmul.f32 %v676, %v677
  %v682 = vadd.f32 %v664, %v678
  %v683 = vadd.f32 %v665, %v679
  %v684 = vadd.f32 %v666, %v680
  %v685 = vadd.f32 %v667, %v681
  %s686 = scalar_lea.vmem %s0, 592
  %v687 = vld [vmem:[%s686] sm:$0xf]
  %v688 = vld [vmem:[%s686 + $0x4] sm:$0xf]
  %v689 = vld [vmem:[%s686 + $0x8] sm:$0xf]
  %v690 = vld [vmem:[%s686 + $0xc] sm:$0xf]
  %v691 = vunpack.c.l.bf16 %v687
  %v692 = vunpack.c.l.bf16 %v688
  %v693 = vunpack.c.l.bf16 %v689
  %v694 = vunpack.c.l.bf16 %v690
  %v695 = vperm.slane %v18, 5
  %v696 = vmul.f32 %v691, %v695
  %v697 = vmul.f32 %v692, %v695
  %v698 = vmul.f32 %v693, %v695
  %v699 = vmul.f32 %v694, %v695
  %v700 = vadd.f32 %v682, %v696
  %v701 = vadd.f32 %v683, %v697
  %v702 = vadd.f32 %v684, %v698
  %v703 = vadd.f32 %v685, %v699
  %s704 = scalar_lea.vmem %s0, 608
  %v705 = vld [vmem:[%s704] sm:$0xf]
  %v706 = vld [vmem:[%s704 + $0x4] sm:$0xf]
  %v707 = vld [vmem:[%s704 + $0x8] sm:$0xf]
  %v708 = vld [vmem:[%s704 + $0xc] sm:$0xf]
  %v709 = vunpack.c.l.bf16 %v705
  %v710 = vunpack.c.l.bf16 %v706
  %v711 = vunpack.c.l.bf16 %v707
  %v712 = vunpack.c.l.bf16 %v708
  %v713 = vperm.slane %v18, 6
  %v714 = vmul.f32 %v709, %v713
  %v715 = vmul.f32 %v710, %v713
  %v716 = vmul.f32 %v711, %v713
  %v717 = vmul.f32 %v712, %v713
  %v718 = vadd.f32 %v700, %v714
  %v719 = vadd.f32 %v701, %v715
  %v720 = vadd.f32 %v702, %v716
  %v721 = vadd.f32 %v703, %v717
  %s722 = scalar_lea.vmem %s0, 624
  %v723 = vld [vmem:[%s722] sm:$0xf]
  %v724 = vld [vmem:[%s722 + $0x4] sm:$0xf]
  %v725 = vld [vmem:[%s722 + $0x8] sm:$0xf]
  %v726 = vld [vmem:[%s722 + $0xc] sm:$0xf]
  %v727 = vunpack.c.l.bf16 %v723
  %v728 = vunpack.c.l.bf16 %v724
  %v729 = vunpack.c.l.bf16 %v725
  %v730 = vunpack.c.l.bf16 %v726
  %v731 = vperm.slane %v18, 7
  %v732 = vmul.f32 %v727, %v731
  %v733 = vmul.f32 %v728, %v731
  %v734 = vmul.f32 %v729, %v731
  %v735 = vmul.f32 %v730, %v731
  %v736 = vadd.f32 %v718, %v732
  %v737 = vadd.f32 %v719, %v733
  %v738 = vadd.f32 %v720, %v734
  %v739 = vadd.f32 %v721, %v735
  %s740 = scalar_lea.vmem %s0, 640
  %v741 = vld [vmem:[%s740] sm:$0xf]
  %v742 = vld [vmem:[%s740 + $0x4] sm:$0xf]
  %v743 = vld [vmem:[%s740 + $0x8] sm:$0xf]
  %v744 = vld [vmem:[%s740 + $0xc] sm:$0xf]
  %v745 = vunpack.c.l.bf16 %v741
  %v746 = vunpack.c.l.bf16 %v742
  %v747 = vunpack.c.l.bf16 %v743
  %v748 = vunpack.c.l.bf16 %v744
  %v749 = vperm.slane %v19, 0
  %v750 = vmul.f32 %v745, %v749
  %v751 = vmul.f32 %v746, %v749
  %v752 = vmul.f32 %v747, %v749
  %v753 = vmul.f32 %v748, %v749
  %v754 = vadd.f32 %v736, %v750
  %v755 = vadd.f32 %v737, %v751
  %v756 = vadd.f32 %v738, %v752
  %v757 = vadd.f32 %v739, %v753
  %s758 = scalar_lea.vmem %s0, 656
  %v759 = vld [vmem:[%s758] sm:$0xf]
  %v760 = vld [vmem:[%s758 + $0x4] sm:$0xf]
  %v761 = vld [vmem:[%s758 + $0x8] sm:$0xf]
  %v762 = vld [vmem:[%s758 + $0xc] sm:$0xf]
  %v763 = vunpack.c.l.bf16 %v759
  %v764 = vunpack.c.l.bf16 %v760
  %v765 = vunpack.c.l.bf16 %v761
  %v766 = vunpack.c.l.bf16 %v762
  %v767 = vperm.slane %v19, 1
  %v768 = vmul.f32 %v763, %v767
  %v769 = vmul.f32 %v764, %v767
  %v770 = vmul.f32 %v765, %v767
  %v771 = vmul.f32 %v766, %v767
  %v772 = vadd.f32 %v754, %v768
  %v773 = vadd.f32 %v755, %v769
  %v774 = vadd.f32 %v756, %v770
  %v775 = vadd.f32 %v757, %v771
  %s776 = scalar_lea.vmem %s0, 672
  %v777 = vld [vmem:[%s776] sm:$0xf]
  %v778 = vld [vmem:[%s776 + $0x4] sm:$0xf]
  %v779 = vld [vmem:[%s776 + $0x8] sm:$0xf]
  %v780 = vld [vmem:[%s776 + $0xc] sm:$0xf]
  %v781 = vunpack.c.l.bf16 %v777
  %v782 = vunpack.c.l.bf16 %v778
  %v783 = vunpack.c.l.bf16 %v779
  %v784 = vunpack.c.l.bf16 %v780
  %v785 = vperm.slane %v19, 2
  %v786 = vmul.f32 %v781, %v785
  %v787 = vmul.f32 %v782, %v785
  %v788 = vmul.f32 %v783, %v785
  %v789 = vmul.f32 %v784, %v785
  %v790 = vadd.f32 %v772, %v786
  %v791 = vadd.f32 %v773, %v787
  %v792 = vadd.f32 %v774, %v788
  %v793 = vadd.f32 %v775, %v789
  %s794 = scalar_lea.vmem %s0, 688
  %v795 = vld [vmem:[%s794] sm:$0xf]
  %v796 = vld [vmem:[%s794 + $0x4] sm:$0xf]
  %v797 = vld [vmem:[%s794 + $0x8] sm:$0xf]
  %v798 = vld [vmem:[%s794 + $0xc] sm:$0xf]
  %v799 = vunpack.c.l.bf16 %v795
  %v800 = vunpack.c.l.bf16 %v796
  %v801 = vunpack.c.l.bf16 %v797
  %v802 = vunpack.c.l.bf16 %v798
  %v803 = vperm.slane %v19, 3
  %v804 = vmul.f32 %v799, %v803
  %v805 = vmul.f32 %v800, %v803
  %v806 = vmul.f32 %v801, %v803
  %v807 = vmul.f32 %v802, %v803
  %v808 = vadd.f32 %v790, %v804
  %v809 = vadd.f32 %v791, %v805
  %v810 = vadd.f32 %v792, %v806
  %v811 = vadd.f32 %v793, %v807
  %s812 = scalar_lea.vmem %s0, 704
  %v813 = vld [vmem:[%s812] sm:$0xf]
  %v814 = vld [vmem:[%s812 + $0x4] sm:$0xf]
  %v815 = vld [vmem:[%s812 + $0x8] sm:$0xf]
  %v816 = vld [vmem:[%s812 + $0xc] sm:$0xf]
  %v817 = vunpack.c.l.bf16 %v813
  %v818 = vunpack.c.l.bf16 %v814
  %v819 = vunpack.c.l.bf16 %v815
  %v820 = vunpack.c.l.bf16 %v816
  %v821 = vperm.slane %v19, 4
  %v822 = vmul.f32 %v817, %v821
  %v823 = vmul.f32 %v818, %v821
  %v824 = vmul.f32 %v819, %v821
  %v825 = vmul.f32 %v820, %v821
  %v826 = vadd.f32 %v808, %v822
  %v827 = vadd.f32 %v809, %v823
  %v828 = vadd.f32 %v810, %v824
  %v829 = vadd.f32 %v811, %v825
  %s830 = scalar_lea.vmem %s0, 720
  %v831 = vld [vmem:[%s830] sm:$0xf]
  %v832 = vld [vmem:[%s830 + $0x4] sm:$0xf]
  %v833 = vld [vmem:[%s830 + $0x8] sm:$0xf]
  %v834 = vld [vmem:[%s830 + $0xc] sm:$0xf]
  %v835 = vunpack.c.l.bf16 %v831
  %v836 = vunpack.c.l.bf16 %v832
  %v837 = vunpack.c.l.bf16 %v833
  %v838 = vunpack.c.l.bf16 %v834
  %v839 = vperm.slane %v19, 5
  %v840 = vmul.f32 %v835, %v839
  %v841 = vmul.f32 %v836, %v839
  %v842 = vmul.f32 %v837, %v839
  %v843 = vmul.f32 %v838, %v839
  %v844 = vadd.f32 %v826, %v840
  %v845 = vadd.f32 %v827, %v841
  %v846 = vadd.f32 %v828, %v842
  %v847 = vadd.f32 %v829, %v843
  %s848 = scalar_lea.vmem %s0, 736
  %v849 = vld [vmem:[%s848] sm:$0xf]
  %v850 = vld [vmem:[%s848 + $0x4] sm:$0xf]
  %v851 = vld [vmem:[%s848 + $0x8] sm:$0xf]
  %v852 = vld [vmem:[%s848 + $0xc] sm:$0xf]
  %v853 = vunpack.c.l.bf16 %v849
  %v854 = vunpack.c.l.bf16 %v850
  %v855 = vunpack.c.l.bf16 %v851
  %v856 = vunpack.c.l.bf16 %v852
  %v857 = vperm.slane %v19, 6
  %v858 = vmul.f32 %v853, %v857
  %v859 = vmul.f32 %v854, %v857
  %v860 = vmul.f32 %v855, %v857
  %v861 = vmul.f32 %v856, %v857
  %v862 = vadd.f32 %v844, %v858
  %v863 = vadd.f32 %v845, %v859
  %v864 = vadd.f32 %v846, %v860
  %v865 = vadd.f32 %v847, %v861
  %s866 = scalar_lea.vmem %s0, 752
  %v867 = vld [vmem:[%s866] sm:$0xf]
  %v868 = vld [vmem:[%s866 + $0x4] sm:$0xf]
  %v869 = vld [vmem:[%s866 + $0x8] sm:$0xf]
  %v870 = vld [vmem:[%s866 + $0xc] sm:$0xf]
  %v871 = vunpack.c.l.bf16 %v867
  %v872 = vunpack.c.l.bf16 %v868
  %v873 = vunpack.c.l.bf16 %v869
  %v874 = vunpack.c.l.bf16 %v870
  %v875 = vperm.slane %v19, 7
  %v876 = vmul.f32 %v871, %v875
  %v877 = vmul.f32 %v872, %v875
  %v878 = vmul.f32 %v873, %v875
  %v879 = vmul.f32 %v874, %v875
  %v880 = vadd.f32 %v862, %v876
  %v881 = vadd.f32 %v863, %v877
  %v882 = vadd.f32 %v864, %v878
  %v883 = vadd.f32 %v865, %v879
  %s884 = scalar_lea.vmem %s0, 768
  %v885 = vld [vmem:[%s884] sm:$0xf]
  %v886 = vld [vmem:[%s884 + $0x4] sm:$0xf]
  %v887 = vld [vmem:[%s884 + $0x8] sm:$0xf]
  %v888 = vld [vmem:[%s884 + $0xc] sm:$0xf]
  %v889 = vunpack.c.l.bf16 %v885
  %v890 = vunpack.c.l.bf16 %v886
  %v891 = vunpack.c.l.bf16 %v887
  %v892 = vunpack.c.l.bf16 %v888
  %v893 = vperm.slane %v20, 0
  %v894 = vmul.f32 %v889, %v893
  %v895 = vmul.f32 %v890, %v893
  %v896 = vmul.f32 %v891, %v893
  %v897 = vmul.f32 %v892, %v893
  %v898 = vadd.f32 %v880, %v894
  %v899 = vadd.f32 %v881, %v895
  %v900 = vadd.f32 %v882, %v896
  %v901 = vadd.f32 %v883, %v897
  %s902 = scalar_lea.vmem %s0, 784
  %v903 = vld [vmem:[%s902] sm:$0xf]
  %v904 = vld [vmem:[%s902 + $0x4] sm:$0xf]
  %v905 = vld [vmem:[%s902 + $0x8] sm:$0xf]
  %v906 = vld [vmem:[%s902 + $0xc] sm:$0xf]
  %v907 = vunpack.c.l.bf16 %v903
  %v908 = vunpack.c.l.bf16 %v904
  %v909 = vunpack.c.l.bf16 %v905
  %v910 = vunpack.c.l.bf16 %v906
  %v911 = vperm.slane %v20, 1
  %v912 = vmul.f32 %v907, %v911
  %v913 = vmul.f32 %v908, %v911
  %v914 = vmul.f32 %v909, %v911
  %v915 = vmul.f32 %v910, %v911
  %v916 = vadd.f32 %v898, %v912
  %v917 = vadd.f32 %v899, %v913
  %v918 = vadd.f32 %v900, %v914
  %v919 = vadd.f32 %v901, %v915
  %s920 = scalar_lea.vmem %s0, 800
  %v921 = vld [vmem:[%s920] sm:$0xf]
  %v922 = vld [vmem:[%s920 + $0x4] sm:$0xf]
  %v923 = vld [vmem:[%s920 + $0x8] sm:$0xf]
  %v924 = vld [vmem:[%s920 + $0xc] sm:$0xf]
  %v925 = vunpack.c.l.bf16 %v921
  %v926 = vunpack.c.l.bf16 %v922
  %v927 = vunpack.c.l.bf16 %v923
  %v928 = vunpack.c.l.bf16 %v924
  %v929 = vperm.slane %v20, 2
  %v930 = vmul.f32 %v925, %v929
  %v931 = vmul.f32 %v926, %v929
  %v932 = vmul.f32 %v927, %v929
  %v933 = vmul.f32 %v928, %v929
  %v934 = vadd.f32 %v916, %v930
  %v935 = vadd.f32 %v917, %v931
  %v936 = vadd.f32 %v918, %v932
  %v937 = vadd.f32 %v919, %v933
  %s938 = scalar_lea.vmem %s0, 816
  %v939 = vld [vmem:[%s938] sm:$0xf]
  %v940 = vld [vmem:[%s938 + $0x4] sm:$0xf]
  %v941 = vld [vmem:[%s938 + $0x8] sm:$0xf]
  %v942 = vld [vmem:[%s938 + $0xc] sm:$0xf]
  %v943 = vunpack.c.l.bf16 %v939
  %v944 = vunpack.c.l.bf16 %v940
  %v945 = vunpack.c.l.bf16 %v941
  %v946 = vunpack.c.l.bf16 %v942
  %v947 = vperm.slane %v20, 3
  %v948 = vmul.f32 %v943, %v947
  %v949 = vmul.f32 %v944, %v947
  %v950 = vmul.f32 %v945, %v947
  %v951 = vmul.f32 %v946, %v947
  %v952 = vadd.f32 %v934, %v948
  %v953 = vadd.f32 %v935, %v949
  %v954 = vadd.f32 %v936, %v950
  %v955 = vadd.f32 %v937, %v951
  %s956 = scalar_lea.vmem %s0, 832
  %v957 = vld [vmem:[%s956] sm:$0xf]
  %v958 = vld [vmem:[%s956 + $0x4] sm:$0xf]
  %v959 = vld [vmem:[%s956 + $0x8] sm:$0xf]
  %v960 = vld [vmem:[%s956 + $0xc] sm:$0xf]
  %v961 = vunpack.c.l.bf16 %v957
  %v962 = vunpack.c.l.bf16 %v958
  %v963 = vunpack.c.l.bf16 %v959
  %v964 = vunpack.c.l.bf16 %v960
  %v965 = vperm.slane %v20, 4
  %v966 = vmul.f32 %v961, %v965
  %v967 = vmul.f32 %v962, %v965
  %v968 = vmul.f32 %v963, %v965
  %v969 = vmul.f32 %v964, %v965
  %v970 = vadd.f32 %v952, %v966
  %v971 = vadd.f32 %v953, %v967
  %v972 = vadd.f32 %v954, %v968
  %v973 = vadd.f32 %v955, %v969
  %s974 = scalar_lea.vmem %s0, 848
  %v975 = vld [vmem:[%s974] sm:$0xf]
  %v976 = vld [vmem:[%s974 + $0x4] sm:$0xf]
  %v977 = vld [vmem:[%s974 + $0x8] sm:$0xf]
  %v978 = vld [vmem:[%s974 + $0xc] sm:$0xf]
  %v979 = vunpack.c.l.bf16 %v975
  %v980 = vunpack.c.l.bf16 %v976
  %v981 = vunpack.c.l.bf16 %v977
  %v982 = vunpack.c.l.bf16 %v978
  %v983 = vperm.slane %v20, 5
  %v984 = vmul.f32 %v979, %v983
  %v985 = vmul.f32 %v980, %v983
  %v986 = vmul.f32 %v981, %v983
  %v987 = vmul.f32 %v982, %v983
  %v988 = vadd.f32 %v970, %v984
  %v989 = vadd.f32 %v971, %v985
  %v990 = vadd.f32 %v972, %v986
  %v991 = vadd.f32 %v973, %v987
  %v992 = vld [vmem:[%s2] sm:$0x1]
  %v994 = vperm.slane %v992, 0
  %v996 = vadd.f32 %v988, %v994
  %v997 = vadd.f32 %v989, %v994
  %v998 = vadd.f32 %v990, %v994
  %v999 = vadd.f32 %v991, %v994
  %v1000 = vmul.f32 %v996, 0.5
  %v1001 = vmul.f32 %v997, 0.5
  %v1002 = vmul.f32 %v998, 0.5
  %v1003 = vmul.f32 %v999, 0.5
  %v1004 = vmul.f32 %v996, 0.044715
  %v1005 = vmul.f32 %v997, 0.044715
  %v1006 = vmul.f32 %v998, 0.044715
  %v1007 = vmul.f32 %v999, 0.044715
  %v1008 = vmul.f32 %v1004, %v996
  %v1009 = vmul.f32 %v1005, %v997
  %v1010 = vmul.f32 %v1006, %v998
  %v1011 = vmul.f32 %v1007, %v999
  %v1012 = vmul.f32 %v1008, %v996
  %v1013 = vmul.f32 %v1009, %v997
  %v1014 = vmul.f32 %v1010, %v998
  %v1015 = vmul.f32 %v1011, %v999
  %v1016 = vadd.f32 %v996, %v1012
  %v1017 = vadd.f32 %v997, %v1013
  %v1018 = vadd.f32 %v998, %v1014
  %v1019 = vadd.f32 %v999, %v1015
  %v1020 = vmul.f32 %v1016, 0.7978846
  %v1021 = vmul.f32 %v1017, 0.7978846
  %v1022 = vmul.f32 %v1018, 0.7978846
  %v1023 = vmul.f32 %v1019, 0.7978846
  %v1024 = vtanh.pop %v1020
  %v1025 = vtanh.pop %v1021
  %v1026 = vtanh.pop %v1022
  %v1027 = vtanh.pop %v1023
  %v1028 = vadd.f32 %v1024, 1.0
  %v1029 = vadd.f32 %v1025, 1.0
  %v1030 = vadd.f32 %v1026, 1.0
  %v1031 = vadd.f32 %v1027, 1.0
  %v1032 = vmul.f32 %v1000, %v1028
  %v1033 = vmul.f32 %v1001, %v1029
  %v1034 = vmul.f32 %v1002, %v1030
  %v1035 = vmul.f32 %v1003, %v1031
  %v1036 = vpack.c.bf16 %v1032, %v1032
  %v1037 = vpack.c.bf16 %v1033, %v1033
  %v1038 = vpack.c.bf16 %v1034, %v1034
  %v1039 = vpack.c.bf16 %v1035, %v1035
  %1040 = vst [vmem:[%s3] sm:$0xf] %v1036
  %1041 = vst [vmem:[%s3 + $0x4] sm:$0xf] %v1037
  %1042 = vst [vmem:[%s3 + $0x8] sm:$0xf] %v1038
  %1043 = vst [vmem:[%s3 + $0xc] sm:$0xf] %v1039
  // Predicated region
  $region14: #{fine_encoder_forward.16} parent=0 // pred_check
    _
  $region15: #{fine_encoder_forward.16} parent=0 // pred_check_branch
    %1045 = sbr.rel (0) target = $region17
  $region16: #{fine_encoder_forward.16} parent=0 // pred_region
    _
  $region17: #{fine_encoder_forward.16} parent=0 // pred_fallthru
    _
  // Predicated region
  $region18: #{fine_encoder_forward.16} parent=0 // pred_check
    _
  $region19: #{fine_encoder_forward.16} parent=0 // pred_check_branch
    %1047 = sbr.rel (0) target = $region21
  $region20: #{fine_encoder_forward.16} parent=0 // pred_region
    _
  $region21: #{fine_encoder_forward.16} parent=0 // pred_fallthru
    _

</llo_original>
